<compile_context>
chip_gen: v5e
topology: v5e:2x2
jax: 0.10.0
libtpu: 0.0.40
codegen_flags: <defaults>
</compile_context>

<pallas_src>
import functools

import jax
import jax.numpy as jnp
from jax.experimental import pallas as pl
from jax.experimental.pallas import tpu as pltpu

K_IN = 784            # 28 * 28 — x block last dim (== full array dim)
H1 = 896              # layer-1 output padded 784 -> 7*128 lanes
H2 = 1024
H_TAIL = 128          # 20/20/20/10-wide tail padded to one 128-lane tile
OUT = 10


def _round_up(n, m):
    return (n + m - 1) // m * m


def _cdiv(a, b):
    return -(-a // b)


def _pad_to(a, shape):
    return jnp.pad(a, [(0, s - d) for d, s in zip(a.shape, shape)])


def _fc3_kernel(x_ref,
                w1, b1, w2, b2, w3, b3,        # seq   : 784 -> 896 -> 1024 -> 128 (padded)
                w4, b4, w5, b5, w6, b6,        # seq_2 : 128 -> 128 -> 128 (padded)
                o_ref, *scratch, manual_w2):
    if manual_w2:
        # grid == 1: W2 lives in HBM (pl.ANY). Start its DMA immediately and hide it
        # behind the x cast + layer-1 matmul; wait only right before layer 2.
        w2_vmem, w2_sem = scratch
        w2_copy = pltpu.make_async_copy(w2, w2_vmem, w2_sem)
        w2_copy.start()

    def linear(h, w, b_ref):
        # bf16 x bf16 -> fp32 accumulate on the MXU, fp32 bias add on the VPU.
        return jnp.dot(h, w, preferred_element_type=jnp.float32) + b_ref[...]

    def relu_bf16(acc):
        return jnp.maximum(acc, 0.0).astype(jnp.bfloat16)

    x = x_ref[...].astype(jnp.bfloat16)                 # (TB, 784) f32 -> bf16 in-kernel
    h = relu_bf16(linear(x, w1[...], b1))               # (TB, 896)

    if manual_w2:
        w2_copy.wait()
        w2_mat = w2_vmem[...]
    else:
        w2_mat = w2[...]

    h = relu_bf16(linear(h, w2_mat, b2))                # (TB, 1024)
    h = relu_bf16(linear(h, w3[...], b3))               # (TB, 128)
    h = relu_bf16(linear(h, w4[...], b4))               # (TB, 128)
    h = relu_bf16(linear(h, w5[...], b5))               # (TB, 128)
    o_ref[...] = linear(h, w6[...], b6).astype(o_ref.dtype)   # (TB, 128), lane-dense


@functools.partial(jax.jit, static_argnames=("tb",))
def fc3_forward(x, params, tb=256):
    """x: (B, 1, 28, 28) float32 NCHW.  params: 6 x (W(in,out), b(1,out)) float32."""
    B = x.shape[0]
    x_flat = x.reshape(B, -1)                           # matches x.view(x.size(0), -1)

    # Batch tile: multiple of 16 (bf16 sublane packing). For B > tb, pick the tile so
    # the grid has >= 2 steps (v7x dual-TensorCore occupancy); for small B use a
    # single tile so the manual W2-DMA overlap path kicks in.
    if B > tb:
        tb_eff = min(tb, _round_up(_cdiv(B, 2), 16))
    else:
        tb_eff = max(16, _round_up(B, 16))
    b_pad = _round_up(B, tb_eff)
    num_tiles = b_pad // tb_eff

    # x stays f32 and un-padded in the lane dim; only the batch dim is padded (and
    # only when needed), so there is no materialized cast/lane-pad round trip.
    x_p = x_flat if b_pad == B else _pad_to(x_flat, (b_pad, K_IN))

    (w1, b1), (w2, b2), (w3, b3), (w4, b4), (w5, b5), (w6, b6) = params
    # Zero-pad weights/biases to lane-aligned shapes. Pad entries are exact zeros, so
    # padded lanes stay zero through bias + ReLU and hit zero rows of the next W.
    w1p = _pad_to(w1, (K_IN, H1)).astype(jnp.bfloat16)       # (784, 896)
    b1p = _pad_to(b1, (1, H1)).astype(jnp.float32)
    w2p = _pad_to(w2, (H1, H2)).astype(jnp.bfloat16)         # (896, 1024)
    b2p = b2.astype(jnp.float32)
    w3p = _pad_to(w3, (H2, H_TAIL)).astype(jnp.bfloat16)     # (1024, 128)
    b3p = _pad_to(b3, (1, H_TAIL)).astype(jnp.float32)
    w4p = _pad_to(w4, (H_TAIL, H_TAIL)).astype(jnp.bfloat16)
    b4p = _pad_to(b4, (1, H_TAIL)).astype(jnp.float32)
    w5p = _pad_to(w5, (H_TAIL, H_TAIL)).astype(jnp.bfloat16)
    b5p = _pad_to(b5, (1, H_TAIL)).astype(jnp.float32)
    w6p = _pad_to(w6, (H_TAIL, H_TAIL)).astype(jnp.bfloat16)
    b6p = _pad_to(b6, (1, H_TAIL)).astype(jnp.float32)

    # Constant index_map -> parameters DMA'd to VMEM once, resident across grid steps.
    resident = lambda a: pl.BlockSpec(a.shape, lambda i: (0, 0))

    manual_w2 = num_tiles == 1            # small-batch latency path: hand-DMA W2
    if manual_w2:
        w2_spec = pl.BlockSpec(memory_space=pl.ANY)
        scratch_shapes = [pltpu.VMEM((H1, H2), jnp.bfloat16),
                          pltpu.SemaphoreType.DMA(())]
    else:
        w2_spec = resident(w2p)
        scratch_shapes = []

    weight_specs = [resident(w1p), resident(b1p), w2_spec, resident(b2p),
                    resident(w3p), resident(b3p), resident(w4p), resident(b4p),
                    resident(w5p), resident(b5p), resident(w6p), resident(b6p)]

    out = pl.pallas_call(
        functools.partial(_fc3_kernel, manual_w2=manual_w2),
        out_shape=jax.ShapeDtypeStruct((b_pad, H_TAIL), jnp.float32),
        grid=(num_tiles,),
        in_specs=[pl.BlockSpec((tb_eff, K_IN), lambda i: (i, 0))] + weight_specs,
        out_specs=pl.BlockSpec((tb_eff, H_TAIL), lambda i: (i, 0)),
        scratch_shapes=scratch_shapes,
        compiler_params=pltpu.CompilerParams(
            dimension_semantics=("parallel",),    # shard batch tiles across TCs (v7x)
            vmem_limit_bytes=32 * 1024 * 1024,    # safe on v5e/v6e/v7x
        ),
    )(x_p, w1p, b1p, w2p, b2p, w3p, b3p, w4p, b4p, w5p, b5p, w6p, b6p)
    return out[:B, :OUT]


def init_params(key):
    """Deterministic synthetic parameters with the shapes implied by FC_3.__init__.
    Weights as (in_features, out_features); biases as (1, out_features)."""
    layer_dims = [(784, 784), (784, 1024), (1024, 20),     # seq
                  (20, 20), (20, 20), (20, 10)]            # seq_2
    params = []
    for (fan_in, fan_out) in layer_dims:
        key, kw, kb = jax.random.split(key, 3)
        bound = 1.0 / (fan_in ** 0.5)                      # PyTorch Linear default range
        w = jax.random.uniform(kw, (fan_in, fan_out), jnp.float32, -bound, bound)
        b = jax.random.uniform(kb, (1, fan_out), jnp.float32, -bound, bound)
        params.append((w, b))
    return params


def _reference_forward(x, params):
    """Pure-JAX reference at matching (bf16 weights/activations, fp32 accum) precision."""
    h = x.reshape(x.shape[0], -1).astype(jnp.bfloat16)
    for i, (w, b) in enumerate(params):
        acc = jnp.dot(h, w.astype(jnp.bfloat16),
                      preferred_element_type=jnp.float32) + b
        if i != len(params) - 1:
            h = jnp.maximum(acc, 0.0).astype(jnp.bfloat16)
        else:
            h = acc
    return h


if __name__ == "__main__":
    key = jax.random.PRNGKey(0)
    key, kx = jax.random.split(key)

    B = 2
    x = jax.random.normal(kx, (B, 1, 28, 28), jnp.float32)   # MNIST-shaped NCHW input
    params = init_params(key)

    z = fc3_forward(x, params)
    z = jax.block_until_ready(z)

    z_ref = _reference_forward(x, params)
    assert z.shape == (B, OUT)
    assert jnp.allclose(z, z_ref, atol=1e-2, rtol=1e-2), "mismatch vs reference"

    print("KERNEL_OK")
</pallas_src>

<mosaic_0001>
module attributes {stable_mosaic.version = 11 : i64} {
  func.func @_fc3_kernel(%arg0: i32, %arg1: memref<16x784xf32, #tpu.memory_space<vmem>>, %arg2: memref<784x896xbf16, #tpu.memory_space<vmem>>, %arg3: memref<1x896xf32, #tpu.memory_space<vmem>>, %arg4: memref<896x1024xbf16, #tpu.memory_space<any>>, %arg5: memref<1x1024xf32, #tpu.memory_space<vmem>>, %arg6: memref<1024x128xbf16, #tpu.memory_space<vmem>>, %arg7: memref<1x128xf32, #tpu.memory_space<vmem>>, %arg8: memref<128x128xbf16, #tpu.memory_space<vmem>>, %arg9: memref<1x128xf32, #tpu.memory_space<vmem>>, %arg10: memref<128x128xbf16, #tpu.memory_space<vmem>>, %arg11: memref<1x128xf32, #tpu.memory_space<vmem>>, %arg12: memref<128x128xbf16, #tpu.memory_space<vmem>>, %arg13: memref<1x128xf32, #tpu.memory_space<vmem>>, %arg14: memref<16x128xf32, #tpu.memory_space<vmem>>, %arg15: memref<896x1024xbf16, #tpu.memory_space<vmem>>, %arg16: memref<!tpu.dma_semaphore, #tpu.memory_space<semaphore_mem>>) attributes {dimension_semantics = [#tpu.dimension_semantics<parallel>], iteration_bounds = array<i64: 1>, scalar_prefetch = 0 : i64, scratch_operands = 2 : i64, tpu.core_type = #tpu.core_type<tc>, window_params = [{transform_indices = @transform_0, window_bounds = array<i64: 16, 784>}, {pipeline_mode = #tpu.pipeline_mode<synchronous>, transform_indices = @transform_1, window_bounds = array<i64: 784, 896>}, {pipeline_mode = #tpu.pipeline_mode<synchronous>, transform_indices = @transform_2, window_bounds = array<i64: 1, 896>}, {}, {pipeline_mode = #tpu.pipeline_mode<synchronous>, transform_indices = @transform_4, window_bounds = array<i64: 1, 1024>}, {pipeline_mode = #tpu.pipeline_mode<synchronous>, transform_indices = @transform_5, window_bounds = array<i64: 1024, 128>}, {pipeline_mode = #tpu.pipeline_mode<synchronous>, transform_indices = @transform_6, window_bounds = array<i64: 1, 128>}, {pipeline_mode = #tpu.pipeline_mode<synchronous>, transform_indices = @transform_7, window_bounds = array<i64: 128, 128>}, {pipeline_mode = #tpu.pipeline_mode<synchronous>, transform_indices = @transform_8, window_bounds = array<i64: 1, 128>}, {pipeline_mode = #tpu.pipeline_mode<synchronous>, transform_indices = @transform_9, window_bounds = array<i64: 128, 128>}, {pipeline_mode = #tpu.pipeline_mode<synchronous>, transform_indices = @transform_10, window_bounds = array<i64: 1, 128>}, {pipeline_mode = #tpu.pipeline_mode<synchronous>, transform_indices = @transform_11, window_bounds = array<i64: 128, 128>}, {pipeline_mode = #tpu.pipeline_mode<synchronous>, transform_indices = @transform_12, window_bounds = array<i64: 1, 128>}, {transform_indices = @transform_13, window_bounds = array<i64: 16, 128>}]} {
    tpu.enqueue_dma source(%arg4 : memref<896x1024xbf16, #tpu.memory_space<any>>) target(%arg15 : memref<896x1024xbf16, #tpu.memory_space<vmem>>) target_semaphore(%arg16 : memref<!tpu.dma_semaphore, #tpu.memory_space<semaphore_mem>>)
    %c0 = arith.constant 0 : index
    %c0_0 = arith.constant 0 : index
    %0 = vector.load %arg1[%c0, %c0_0] : memref<16x784xf32, #tpu.memory_space<vmem>>, vector<16x784xf32>
    %1 = arith.truncf %0 : vector<16x784xf32> to vector<16x784xbf16>
    %c0_1 = arith.constant 0 : index
    %c0_2 = arith.constant 0 : index
    %2 = vector.load %arg2[%c0_1, %c0_2] : memref<784x896xbf16, #tpu.memory_space<vmem>>, vector<784x896xbf16>
    %cst = arith.constant dense<0.000000e+00> : vector<16x896xf32>
    %3 = tpu.matmul %1, %2, %cst {dimension_numbers = #tpu.dot_dimension_numbers<[1], [0], [0], [1], [0, 0, 1, 1], [], []>} : vector<16x784xbf16>, vector<784x896xbf16>, vector<16x896xf32> -> vector<16x896xf32>
    %c0_3 = arith.constant 0 : index
    %c0_4 = arith.constant 0 : index
    %4 = vector.load %arg3[%c0_3, %c0_4] : memref<1x896xf32, #tpu.memory_space<vmem>>, vector<1x896xf32>
    %5 = vector.broadcast %4 : vector<1x896xf32> to vector<16x896xf32>
    %6 = arith.addf %3, %5 : vector<16x896xf32>
    %cst_5 = arith.constant 0.000000e+00 : f32
    %7 = vector.broadcast %cst_5 : f32 to vector<16x896xf32>
    %8 = arith.maximumf %6, %7 : vector<16x896xf32>
    %9 = arith.truncf %8 : vector<16x896xf32> to vector<16x896xbf16>
    tpu.wait_dma2 semaphore(%arg16 : memref<!tpu.dma_semaphore, #tpu.memory_space<semaphore_mem>>) src(%arg4 : memref<896x1024xbf16, #tpu.memory_space<any>>) dst(%arg15 : memref<896x1024xbf16, #tpu.memory_space<vmem>>)
    %c0_6 = arith.constant 0 : index
    %c0_7 = arith.constant 0 : index
    %10 = vector.load %arg15[%c0_6, %c0_7] : memref<896x1024xbf16, #tpu.memory_space<vmem>>, vector<896x1024xbf16>
    %cst_8 = arith.constant dense<0.000000e+00> : vector<16x1024xf32>
    %11 = tpu.matmul %9, %10, %cst_8 {dimension_numbers = #tpu.dot_dimension_numbers<[1], [0], [0], [1], [0, 0, 1, 1], [], []>} : vector<16x896xbf16>, vector<896x1024xbf16>, vector<16x1024xf32> -> vector<16x1024xf32>
    %c0_9 = arith.constant 0 : index
    %c0_10 = arith.constant 0 : index
    %12 = vector.load %arg5[%c0_9, %c0_10] : memref<1x1024xf32, #tpu.memory_space<vmem>>, vector<1x1024xf32>
    %13 = vector.broadcast %12 : vector<1x1024xf32> to vector<16x1024xf32>
    %14 = arith.addf %11, %13 : vector<16x1024xf32>
    %cst_11 = arith.constant 0.000000e+00 : f32
    %15 = vector.broadcast %cst_11 : f32 to vector<16x1024xf32>
    %16 = arith.maximumf %14, %15 : vector<16x1024xf32>
    %17 = arith.truncf %16 : vector<16x1024xf32> to vector<16x1024xbf16>
    %c0_12 = arith.constant 0 : index
    %c0_13 = arith.constant 0 : index
    %18 = vector.load %arg6[%c0_12, %c0_13] : memref<1024x128xbf16, #tpu.memory_space<vmem>>, vector<1024x128xbf16>
    %cst_14 = arith.constant dense<0.000000e+00> : vector<16x128xf32>
    %19 = tpu.matmul %17, %18, %cst_14 {dimension_numbers = #tpu.dot_dimension_numbers<[1], [0], [0], [1], [0, 0, 1, 1], [], []>} : vector<16x1024xbf16>, vector<1024x128xbf16>, vector<16x128xf32> -> vector<16x128xf32>
    %c0_15 = arith.constant 0 : index
    %c0_16 = arith.constant 0 : index
    %20 = vector.load %arg7[%c0_15, %c0_16] : memref<1x128xf32, #tpu.memory_space<vmem>>, vector<1x128xf32>
    %21 = vector.broadcast %20 : vector<1x128xf32> to vector<16x128xf32>
    %22 = arith.addf %19, %21 : vector<16x128xf32>
    %cst_17 = arith.constant 0.000000e+00 : f32
    %23 = vector.broadcast %cst_17 : f32 to vector<16x128xf32>
    %24 = arith.maximumf %22, %23 : vector<16x128xf32>
    %25 = arith.truncf %24 : vector<16x128xf32> to vector<16x128xbf16>
    %c0_18 = arith.constant 0 : index
    %c0_19 = arith.constant 0 : index
    %26 = vector.load %arg8[%c0_18, %c0_19] : memref<128x128xbf16, #tpu.memory_space<vmem>>, vector<128x128xbf16>
    %cst_20 = arith.constant dense<0.000000e+00> : vector<16x128xf32>
    %27 = tpu.matmul %25, %26, %cst_20 {dimension_numbers = #tpu.dot_dimension_numbers<[1], [0], [0], [1], [0, 0, 1, 1], [], []>} : vector<16x128xbf16>, vector<128x128xbf16>, vector<16x128xf32> -> vector<16x128xf32>
    %c0_21 = arith.constant 0 : index
    %c0_22 = arith.constant 0 : index
    %28 = vector.load %arg9[%c0_21, %c0_22] : memref<1x128xf32, #tpu.memory_space<vmem>>, vector<1x128xf32>
    %29 = vector.broadcast %28 : vector<1x128xf32> to vector<16x128xf32>
    %30 = arith.addf %27, %29 : vector<16x128xf32>
    %cst_23 = arith.constant 0.000000e+00 : f32
    %31 = vector.broadcast %cst_23 : f32 to vector<16x128xf32>
    %32 = arith.maximumf %30, %31 : vector<16x128xf32>
    %33 = arith.truncf %32 : vector<16x128xf32> to vector<16x128xbf16>
    %c0_24 = arith.constant 0 : index
    %c0_25 = arith.constant 0 : index
    %34 = vector.load %arg10[%c0_24, %c0_25] : memref<128x128xbf16, #tpu.memory_space<vmem>>, vector<128x128xbf16>
    %cst_26 = arith.constant dense<0.000000e+00> : vector<16x128xf32>
    %35 = tpu.matmul %33, %34, %cst_26 {dimension_numbers = #tpu.dot_dimension_numbers<[1], [0], [0], [1], [0, 0, 1, 1], [], []>} : vector<16x128xbf16>, vector<128x128xbf16>, vector<16x128xf32> -> vector<16x128xf32>
    %c0_27 = arith.constant 0 : index
    %c0_28 = arith.constant 0 : index
    %36 = vector.load %arg11[%c0_27, %c0_28] : memref<1x128xf32, #tpu.memory_space<vmem>>, vector<1x128xf32>
    %37 = vector.broadcast %36 : vector<1x128xf32> to vector<16x128xf32>
    %38 = arith.addf %35, %37 : vector<16x128xf32>
    %cst_29 = arith.constant 0.000000e+00 : f32
    %39 = vector.broadcast %cst_29 : f32 to vector<16x128xf32>
    %40 = arith.maximumf %38, %39 : vector<16x128xf32>
    %41 = arith.truncf %40 : vector<16x128xf32> to vector<16x128xbf16>
    %c0_30 = arith.constant 0 : index
    %c0_31 = arith.constant 0 : index
    %42 = vector.load %arg12[%c0_30, %c0_31] : memref<128x128xbf16, #tpu.memory_space<vmem>>, vector<128x128xbf16>
    %cst_32 = arith.constant dense<0.000000e+00> : vector<16x128xf32>
    %43 = tpu.matmul %41, %42, %cst_32 {dimension_numbers = #tpu.dot_dimension_numbers<[1], [0], [0], [1], [0, 0, 1, 1], [], []>} : vector<16x128xbf16>, vector<128x128xbf16>, vector<16x128xf32> -> vector<16x128xf32>
    %c0_33 = arith.constant 0 : index
    %c0_34 = arith.constant 0 : index
    %44 = vector.load %arg13[%c0_33, %c0_34] : memref<1x128xf32, #tpu.memory_space<vmem>>, vector<1x128xf32>
    %45 = vector.broadcast %44 : vector<1x128xf32> to vector<16x128xf32>
    %46 = arith.addf %43, %45 : vector<16x128xf32>
    %c0_35 = arith.constant 0 : index
    %c0_36 = arith.constant 0 : index
    %47 = vector.load %arg14[%c0_35, %c0_36] : memref<16x128xf32, #tpu.memory_space<vmem>>, vector<16x128xf32>
    tpu.vector_store %arg14[%c0_35, %c0_36], %46 {strides = array<i32>} : memref<16x128xf32, #tpu.memory_space<vmem>>, vector<16x128xf32>,
    return
  }
  func.func @transform_0(%arg0: i32) -> (i32, i32) {
    %c0_i32 = arith.constant 0 : i32
    %c0_i32_0 = arith.constant 0 : i32
    return %arg0, %c0_i32 : i32, i32
  }
  func.func @transform_1(%arg0: i32) -> (i32, i32) {
    %c0_i32 = arith.constant 0 : i32
    %c0_i32_0 = arith.constant 0 : i32
    %c0_i32_1 = arith.constant 0 : i32
    return %c0_i32, %c0_i32_0 : i32, i32
  }
  func.func @transform_2(%arg0: i32) -> (i32, i32) {
    %c0_i32 = arith.constant 0 : i32
    %c0_i32_0 = arith.constant 0 : i32
    %c0_i32_1 = arith.constant 0 : i32
    return %c0_i32, %c0_i32_0 : i32, i32
  }
  func.func @transform_4(%arg0: i32) -> (i32, i32) {
    %c0_i32 = arith.constant 0 : i32
    %c0_i32_0 = arith.constant 0 : i32
    %c0_i32_1 = arith.constant 0 : i32
    return %c0_i32, %c0_i32_0 : i32, i32
  }
  func.func @transform_5(%arg0: i32) -> (i32, i32) {
    %c0_i32 = arith.constant 0 : i32
    %c0_i32_0 = arith.constant 0 : i32
    %c0_i32_1 = arith.constant 0 : i32
    return %c0_i32, %c0_i32_0 : i32, i32
  }
  func.func @transform_6(%arg0: i32) -> (i32, i32) {
    %c0_i32 = arith.constant 0 : i32
    %c0_i32_0 = arith.constant 0 : i32
    %c0_i32_1 = arith.constant 0 : i32
    return %c0_i32, %c0_i32_0 : i32, i32
  }
  func.func @transform_7(%arg0: i32) -> (i32, i32) {
    %c0_i32 = arith.constant 0 : i32
    %c0_i32_0 = arith.constant 0 : i32
    %c0_i32_1 = arith.constant 0 : i32
    return %c0_i32, %c0_i32_0 : i32, i32
  }
  func.func @transform_8(%arg0: i32) -> (i32, i32) {
    %c0_i32 = arith.constant 0 : i32
    %c0_i32_0 = arith.constant 0 : i32
    %c0_i32_1 = arith.constant 0 : i32
    return %c0_i32, %c0_i32_0 : i32, i32
  }
  func.func @transform_9(%arg0: i32) -> (i32, i32) {
    %c0_i32 = arith.constant 0 : i32
    %c0_i32_0 = arith.constant 0 : i32
    %c0_i32_1 = arith.constant 0 : i32
    return %c0_i32, %c0_i32_0 : i32, i32
  }
  func.func @transform_10(%arg0: i32) -> (i32, i32) {
    %c0_i32 = arith.constant 0 : i32
    %c0_i32_0 = arith.constant 0 : i32
    %c0_i32_1 = arith.constant 0 : i32
    return %c0_i32, %c0_i32_0 : i32, i32
  }
  func.func @transform_11(%arg0: i32) -> (i32, i32) {
    %c0_i32 = arith.constant 0 : i32
    %c0_i32_0 = arith.constant 0 : i32
    %c0_i32_1 = arith.constant 0 : i32
    return %c0_i32, %c0_i32_0 : i32, i32
  }
  func.func @transform_12(%arg0: i32) -> (i32, i32) {
    %c0_i32 = arith.constant 0 : i32
    %c0_i32_0 = arith.constant 0 : i32
    %c0_i32_1 = arith.constant 0 : i32
    return %c0_i32, %c0_i32_0 : i32, i32
  }
  func.func @transform_13(%arg0: i32) -> (i32, i32) {
    %c0_i32 = arith.constant 0 : i32
    %c0_i32_0 = arith.constant 0 : i32
    return %arg0, %c0_i32 : i32, i32
  }
}

</mosaic_0001>

<llo_original>
// kernel: fc3_forward.1
$region0: #{fc3_forward.1}
  #allocation0 [shape = 'u32[]', space=smem, size = 0x4, offset = 0x4, fixed_abs, tag = 'smem constant byte address 0x4 - core index']
  #allocation1 [shape = 'u32[72,128]{1,0:T(1,128)}', space=vmem, size = 0x9000, scoped, tag = 'internal scratch']
  #allocation2 [shape = 'bf16[896,1024]{1,0:T(8,128)(2,1)}', space=vmem, size = 0x1c0000, scoped, tag = 'scratch operand']
  #allocation3 [shape = 's32[1]{0}', space=sflag, size = 0x4, scoped, tag = 'scratch operand']
  #allocation4 [shape = 's32[]', space=sflag, size = 0x4, offset = 0, fixed_abs, tag = 'sflag constant byte address 0x0 - dummy sync flag']
  %s0 = inlined_call_operand.vmem [shape: f32[16,784], index: 0, kind: input, shape index: {}]
  %s1 = inlined_call_operand.vmem [shape: bf16[784,896], index: 1, kind: input, shape index: {}]
  %s2 = inlined_call_operand.vmem [shape: f32[1,896], index: 2, kind: input, shape index: {}]
  %s3 = inlined_call_operand.vmem [shape: bf16[896,1024], index: 3, kind: input, shape index: {}]
  %s4 = inlined_call_operand.vmem [shape: f32[1,1024], index: 4, kind: input, shape index: {}]
  %s5 = inlined_call_operand.vmem [shape: bf16[1024,128], index: 5, kind: input, shape index: {}]
  %s6 = inlined_call_operand.vmem [shape: f32[1,128], index: 6, kind: input, shape index: {}]
  %s7 = inlined_call_operand.vmem [shape: bf16[128,128], index: 7, kind: input, shape index: {}]
  %s8 = inlined_call_operand.vmem [shape: f32[1,128], index: 8, kind: input, shape index: {}]
  %s9 = inlined_call_operand.vmem [shape: bf16[128,128], index: 9, kind: input, shape index: {}]
  %s10 = inlined_call_operand.vmem [shape: f32[1,128], index: 10, kind: input, shape index: {}]
  %s11 = inlined_call_operand.vmem [shape: bf16[128,128], index: 11, kind: input, shape index: {}]
  %s12 = inlined_call_operand.vmem [shape: f32[1,128], index: 12, kind: input, shape index: {}]
  %s13 = inlined_call_operand.vmem [shape: f32[16,128], index: 13, kind: output, shape index: {}]
  %s14 = sld [smem:[#allocation0]]
  $region77: #{fc3_forward.1} parent=0
    _
  %s16 = ssub.s32 1, %s14
  %s17 = scalar_select 0, %s16, %s14
  // Predicated region
  $region2: #{fc3_forward.1} parent=0 // pred_check
    _
  $region3: #{fc3_forward.1} parent=0 // pred_check_branch
    %19 = sbr.rel (0) target = $region5
  $region4: #{fc3_forward.1} parent=0 // pred_region
    _
  $region5: #{fc3_forward.1} parent=0 // pred_fallthru
    _
  // Predicated region
  $region6: #{fc3_forward.1} parent=0 // pred_check
    _
  $region7: #{fc3_forward.1} parent=0 // pred_check_branch
    %21 = sbr.rel (0) target = $region9
  $region8: #{fc3_forward.1} parent=0 // pred_region
    _
  $region9: #{fc3_forward.1} parent=0 // pred_fallthru
    _
  // Predicated region
  $region10: #{fc3_forward.1} parent=0 // pred_check
    _
  $region11: #{fc3_forward.1} parent=0 // pred_check_branch
    %23 = sbr.rel (0) target = $region13
  $region12: #{fc3_forward.1} parent=0 // pred_region
    _
  $region13: #{fc3_forward.1} parent=0 // pred_fallthru
    _
  // Predicated region
  $region14: #{fc3_forward.1} parent=0 // pred_check
    _
  $region15: #{fc3_forward.1} parent=0 // pred_check_branch
    %25 = sbr.rel (0) target = $region17
  $region16: #{fc3_forward.1} parent=0 // pred_region
    _
  $region17: #{fc3_forward.1} parent=0 // pred_fallthru
    _
  // Predicated region
  $region18: #{fc3_forward.1} parent=0 // pred_check
    _
  $region19: #{fc3_forward.1} parent=0 // pred_check_branch
    %27 = sbr.rel (0) target = $region21
  $region20: #{fc3_forward.1} parent=0 // pred_region
    _
  $region21: #{fc3_forward.1} parent=0 // pred_fallthru
    _
  // Predicated region
  $region22: #{fc3_forward.1} parent=0 // pred_check
    _
  $region23: #{fc3_forward.1} parent=0 // pred_check_branch
    %29 = sbr.rel (0) target = $region25
  $region24: #{fc3_forward.1} parent=0 // pred_region
    _
  $region25: #{fc3_forward.1} parent=0 // pred_fallthru
    _
  // Predicated region
  $region26: #{fc3_forward.1} parent=0 // pred_check
    _
  $region27: #{fc3_forward.1} parent=0 // pred_check_branch
    %31 = sbr.rel (0) target = $region29
  $region28: #{fc3_forward.1} parent=0 // pred_region
    _
  $region29: #{fc3_forward.1} parent=0 // pred_fallthru
    _
  // Predicated region
  $region30: #{fc3_forward.1} parent=0 // pred_check
    _
  $region31: #{fc3_forward.1} parent=0 // pred_check_branch
    %33 = sbr.rel (0) target = $region33
  $region32: #{fc3_forward.1} parent=0 // pred_region
    _
  $region33: #{fc3_forward.1} parent=0 // pred_fallthru
    _
  // Predicated region
  $region34: #{fc3_forward.1} parent=0 // pred_check
    _
  $region35: #{fc3_forward.1} parent=0 // pred_check_branch
    %35 = sbr.rel (0) target = $region37
  $region36: #{fc3_forward.1} parent=0 // pred_region
    _
  $region37: #{fc3_forward.1} parent=0 // pred_fallthru
    _
  // Predicated region
  $region38: #{fc3_forward.1} parent=0 // pred_check
    _
  $region39: #{fc3_forward.1} parent=0 // pred_check_branch
    %37 = sbr.rel (0) target = $region41
  $region40: #{fc3_forward.1} parent=0 // pred_region
    _
  $region41: #{fc3_forward.1} parent=0 // pred_fallthru
    _
  // Predicated region
  $region42: #{fc3_forward.1} parent=0 // pred_check
    _
  $region43: #{fc3_forward.1} parent=0 // pred_check_branch
    %39 = sbr.rel (0) target = $region45
  $region44: #{fc3_forward.1} parent=0 // pred_region
    _
  $region45: #{fc3_forward.1} parent=0 // pred_fallthru
    _
  // Predicated region
  $region46: #{fc3_forward.1} parent=0 // pred_check
    _
  $region47: #{fc3_forward.1} parent=0 // pred_check_branch
    %41 = sbr.rel (0) target = $region49
  $region48: #{fc3_forward.1} parent=0 // pred_region
    _
  $region49: #{fc3_forward.1} parent=0 // pred_fallthru
    _
  // Predicated region
  $region50: #{fc3_forward.1} parent=0 // pred_check
    _
  $region51: #{fc3_forward.1} parent=0 // pred_check_branch
    %44 = sbr.rel (0) target = $region53
  $region52: #{fc3_forward.1} parent=0 // pred_region
    loop: start=0, step=1, limit=1
    $region54: #{fc3_forward.1} parent=52 // loop_pre_header
      _
    $region55: #{fc3_forward.1} parent=52 // loop_header
      %s46 = sphi 0, %s50
      %p47 = scmp.ge.s32.totalorder %s46, 1
      %s51 = sphi %s3, %s3
      %s52 = sphi [#allocation2], [#allocation2]
    $region56: #{fc3_forward.1} parent=52 // loop_header_branch
      %49 = sbr.rel (%p47) target = $region60
    $region57: #{fc3_forward.1} parent=52 // loop_body
      %v53 = vld [vmem:[%s51] sm:$0xff]
      %54 = vst [vmem:[%s52] sm:$0xff] %v53
      %v55 = vld [vmem:[%s51 + $0x8] sm:$0xff]
      %56 = vst [vmem:[%s52 + $0x8] sm:$0xff] %v55
      %v57 = vld [vmem:[%s51 + $0x10] sm:$0xff]
      %58 = vst [vmem:[%s52 + $0x10] sm:$0xff] %v57
      %v59 = vld [vmem:[%s51 + $0x18] sm:$0xff]
      %60 = vst [vmem:[%s52 + $0x18] sm:$0xff] %v59
      %v61 = vld [vmem:[%s51 + $0x20] sm:$0xff]
      %62 = vst [vmem:[%s52 + $0x20] sm:$0xff] %v61
      %v63 = vld [vmem:[%s51 + $0x28] sm:$0xff]
      %64 = vst [vmem:[%s52 + $0x28] sm:$0xff] %v63
      %v65 = vld [vmem:[%s51 + $0x30] sm:$0xff]
      %66 = vst [vmem:[%s52 + $0x30] sm:$0xff] %v65
      %v67 = vld [vmem:[%s51 + $0x38] sm:$0xff]
      %68 = vst [vmem:[%s52 + $0x38] sm:$0xff] %v67
      %v69 = vld [vmem:[%s51 + $0x40] sm:$0xff]
      %70 = vst [vmem:[%s52 + $0x40] sm:$0xff] %v69
      %v71 = vld [vmem:[%s51 + $0x48] sm:$0xff]
      %72 = vst [vmem:[%s52 + $0x48] sm:$0xff] %v71
      %v73 = vld [vmem:[%s51 + $0x50] sm:$0xff]
      %74 = vst [vmem:[%s52 + $0x50] sm:$0xff] %v73
      %v75 = vld [vmem:[%s51 + $0x58] sm:$0xff]
      %76 = vst [vmem:[%s52 + $0x58] sm:$0xff] %v75
      %v77 = vld [vmem:[%s51 + $0x60] sm:$0xff]
      %78 = vst [vmem:[%s52 + $0x60] sm:$0xff] %v77
      %v79 = vld [vmem:[%s51 + $0x68] sm:$0xff]
      %80 = vst [vmem:[%s52 + $0x68] sm:$0xff] %v79
      %v81 = vld [vmem:[%s51 + $0x70] sm:$0xff]
      %82 = vst [vmem:[%s52 + $0x70] sm:$0xff] %v81
      %v83 = vld [vmem:[%s51 + $0x78] sm:$0xff]
      %84 = vst [vmem:[%s52 + $0x78] sm:$0xff] %v83
      %v85 = vld [vmem:[%s51 + $0x80] sm:$0xff]
      %86 = vst [vmem:[%s52 + $0x80] sm:$0xff] %v85
      %v87 = vld [vmem:[%s51 + $0x88] sm:$0xff]
      %88 = vst [vmem:[%s52 + $0x88] sm:$0xff] %v87
      %v89 = vld [vmem:[%s51 + $0x90] sm:$0xff]
      %90 = vst [vmem:[%s52 + $0x90] sm:$0xff] %v89
      %v91 = vld [vmem:[%s51 + $0x98] sm:$0xff]
      %92 = vst [vmem:[%s52 + $0x98] sm:$0xff] %v91
      %v93 = vld [vmem:[%s51 + $0xa0] sm:$0xff]
      %94 = vst [vmem:[%s52 + $0xa0] sm:$0xff] %v93
      %v95 = vld [vmem:[%s51 + $0xa8] sm:$0xff]
      %96 = vst [vmem:[%s52 + $0xa8] sm:$0xff] %v95
      %v97 = vld [vmem:[%s51 + $0xb0] sm:$0xff]
      %98 = vst [vmem:[%s52 + $0xb0] sm:$0xff] %v97
      %v99 = vld [vmem:[%s51 + $0xb8] sm:$0xff]
      %100 = vst [vmem:[%s52 + $0xb8] sm:$0xff] %v99
      %v101 = vld [vmem:[%s51 + $0xc0] sm:$0xff]
      %102 = vst [vmem:[%s52 + $0xc0] sm:$0xff] %v101
      %v103 = vld [vmem:[%s51 + $0xc8] sm:$0xff]
      %104 = vst [vmem:[%s52 + $0xc8] sm:$0xff] %v103
      %v105 = vld [vmem:[%s51 + $0xd0] sm:$0xff]
      %106 = vst [vmem:[%s52 + $0xd0] sm:$0xff] %v105
      %v107 = vld [vmem:[%s51 + $0xd8] sm:$0xff]
      %108 = vst [vmem:[%s52 + $0xd8] sm:$0xff] %v107
      %v109 = vld [vmem:[%s51 + $0xe0] sm:$0xff]
      %110 = vst [vmem:[%s52 + $0xe0] sm:$0xff] %v109
      %v111 = vld [vmem:[%s51 + $0xe8] sm:$0xff]
      %112 = vst [vmem:[%s52 + $0xe8] sm:$0xff] %v111
      %v113 = vld [vmem:[%s51 + $0xf0] sm:$0xff]
      %114 = vst [vmem:[%s52 + $0xf0] sm:$0xff] %v113
      %v115 = vld [vmem:[%s51 + $0xf8] sm:$0xff]
      %116 = vst [vmem:[%s52 + $0xf8] sm:$0xff] %v115
      %v117 = vld [vmem:[%s51 + $0x100] sm:$0xff]
      %118 = vst [vmem:[%s52 + $0x100] sm:$0xff] %v117
      %v119 = vld [vmem:[%s51 + $0x108] sm:$0xff]
      %120 = vst [vmem:[%s52 + $0x108] sm:$0xff] %v119
      %v121 = vld [vmem:[%s51 + $0x110] sm:$0xff]
      %122 = vst [vmem:[%s52 + $0x110] sm:$0xff] %v121
      %v123 = vld [vmem:[%s51 + $0x118] sm:$0xff]
      %124 = vst [vmem:[%s52 + $0x118] sm:$0xff] %v123
      %v125 = vld [vmem:[%s51 + $0x120] sm:$0xff]
      %126 = vst [vmem:[%s52 + $0x120] sm:$0xff] %v125
      %v127 = vld [vmem:[%s51 + $0x128] sm:$0xff]
      %128 = vst [vmem:[%s52 + $0x128] sm:$0xff] %v127
      %v129 = vld [vmem:[%s51 + $0x130] sm:$0xff]
      %130 = vst [vmem:[%s52 + $0x130] sm:$0xff] %v129
      %v131 = vld [vmem:[%s51 + $0x138] sm:$0xff]
      %132 = vst [vmem:[%s52 + $0x138] sm:$0xff] %v131
      %v133 = vld [vmem:[%s51 + $0x140] sm:$0xff]
      %134 = vst [vmem:[%s52 + $0x140] sm:$0xff] %v133
      %v135 = vld [vmem:[%s51 + $0x148] sm:$0xff]
      %136 = vst [vmem:[%s52 + $0x148] sm:$0xff] %v135
      %v137 = vld [vmem:[%s51 + $0x150] sm:$0xff]
      %138 = vst [vmem:[%s52 + $0x150] sm:$0xff] %v137
      %v139 = vld [vmem:[%s51 + $0x158] sm:$0xff]
      %140 = vst [vmem:[%s52 + $0x158] sm:$0xff] %v139
      %v141 = vld [vmem:[%s51 + $0x160] sm:$0xff]
      %142 = vst [vmem:[%s52 + $0x160] sm:$0xff] %v141
      %v143 = vld [vmem:[%s51 + $0x168] sm:$0xff]
      %144 = vst [vmem:[%s52 + $0x168] sm:$0xff] %v143
      %v145 = vld [vmem:[%s51 + $0x170] sm:$0xff]
      %146 = vst [vmem:[%s52 + $0x170] sm:$0xff] %v145
      %v147 = vld [vmem:[%s51 + $0x178] sm:$0xff]
      %148 = vst [vmem:[%s52 + $0x178] sm:$0xff] %v147
      %v149 = vld [vmem:[%s51 + $0x180] sm:$0xff]
      %150 = vst [vmem:[%s52 + $0x180] sm:$0xff] %v149
      %v151 = vld [vmem:[%s51 + $0x188] sm:$0xff]
      %152 = vst [vmem:[%s52 + $0x188] sm:$0xff] %v151
      %v153 = vld [vmem:[%s51 + $0x190] sm:$0xff]
      %154 = vst [vmem:[%s52 + $0x190] sm:$0xff] %v153
      %v155 = vld [vmem:[%s51 + $0x198] sm:$0xff]
      %156 = vst [vmem:[%s52 + $0x198] sm:$0xff] %v155
      %v157 = vld [vmem:[%s51 + $0x1a0] sm:$0xff]
      %158 = vst [vmem:[%s52 + $0x1a0] sm:$0xff] %v157
      %v159 = vld [vmem:[%s51 + $0x1a8] sm:$0xff]
      %160 = vst [vmem:[%s52 + $0x1a8] sm:$0xff] %v159
      %v161 = vld [vmem:[%s51 + $0x1b0] sm:$0xff]
      %162 = vst [vmem:[%s52 + $0x1b0] sm:$0xff] %v161
      %v163 = vld [vmem:[%s51 + $0x1b8] sm:$0xff]
      %164 = vst [vmem:[%s52 + $0x1b8] sm:$0xff] %v163
      %v165 = vld [vmem:[%s51 + $0x1c0] sm:$0xff]
      %166 = vst [vmem:[%s52 + $0x1c0] sm:$0xff] %v165
      %v167 = vld [vmem:[%s51 + $0x1c8] sm:$0xff]
      %168 = vst [vmem:[%s52 + $0x1c8] sm:$0xff] %v167
      %v169 = vld [vmem:[%s51 + $0x1d0] sm:$0xff]
      %170 = vst [vmem:[%s52 + $0x1d0] sm:$0xff] %v169
      %v171 = vld [vmem:[%s51 + $0x1d8] sm:$0xff]
      %172 = vst [vmem:[%s52 + $0x1d8] sm:$0xff] %v171
      %v173 = vld [vmem:[%s51 + $0x1e0] sm:$0xff]
      %174 = vst [vmem:[%s52 + $0x1e0] sm:$0xff] %v173
      %v175 = vld [vmem:[%s51 + $0x1e8] sm:$0xff]
      %176 = vst [vmem:[%s52 + $0x1e8] sm:$0xff] %v175
      %v177 = vld [vmem:[%s51 + $0x1f0] sm:$0xff]
      %178 = vst [vmem:[%s52 + $0x1f0] sm:$0xff] %v177
      %v179 = vld [vmem:[%s51 + $0x1f8] sm:$0xff]
      %180 = vst [vmem:[%s52 + $0x1f8] sm:$0xff] %v179
      %v181 = vld [vmem:[%s51 + $0x200] sm:$0xff]
      %182 = vst [vmem:[%s52 + $0x200] sm:$0xff] %v181
      %v183 = vld [vmem:[%s51 + $0x208] sm:$0xff]
      %184 = vst [vmem:[%s52 + $0x208] sm:$0xff] %v183
      %v185 = vld [vmem:[%s51 + $0x210] sm:$0xff]
      %186 = vst [vmem:[%s52 + $0x210] sm:$0xff] %v185
      %v187 = vld [vmem:[%s51 + $0x218] sm:$0xff]
      %188 = vst [vmem:[%s52 + $0x218] sm:$0xff] %v187
      %v189 = vld [vmem:[%s51 + $0x220] sm:$0xff]
      %190 = vst [vmem:[%s52 + $0x220] sm:$0xff] %v189
      %v191 = vld [vmem:[%s51 + $0x228] sm:$0xff]
      %192 = vst [vmem:[%s52 + $0x228] sm:$0xff] %v191
      %v193 = vld [vmem:[%s51 + $0x230] sm:$0xff]
      %194 = vst [vmem:[%s52 + $0x230] sm:$0xff] %v193
      %v195 = vld [vmem:[%s51 + $0x238] sm:$0xff]
      %196 = vst [vmem:[%s52 + $0x238] sm:$0xff] %v195
      %v197 = vld [vmem:[%s51 + $0x240] sm:$0xff]
      %198 = vst [vmem:[%s52 + $0x240] sm:$0xff] %v197
      %v199 = vld [vmem:[%s51 + $0x248] sm:$0xff]
      %200 = vst [vmem:[%s52 + $0x248] sm:$0xff] %v199
      %v201 = vld [vmem:[%s51 + $0x250] sm:$0xff]
      %202 = vst [vmem:[%s52 + $0x250] sm:$0xff] %v201
      %v203 = vld [vmem:[%s51 + $0x258] sm:$0xff]
      %204 = vst [vmem:[%s52 + $0x258] sm:$0xff] %v203
      %v205 = vld [vmem:[%s51 + $0x260] sm:$0xff]
      %206 = vst [vmem:[%s52 + $0x260] sm:$0xff] %v205
      %v207 = vld [vmem:[%s51 + $0x268] sm:$0xff]
      %208 = vst [vmem:[%s52 + $0x268] sm:$0xff] %v207
      %v209 = vld [vmem:[%s51 + $0x270] sm:$0xff]
      %210 = vst [vmem:[%s52 + $0x270] sm:$0xff] %v209
      %v211 = vld [vmem:[%s51 + $0x278] sm:$0xff]
      %212 = vst [vmem:[%s52 + $0x278] sm:$0xff] %v211
      %v213 = vld [vmem:[%s51 + $0x280] sm:$0xff]
      %214 = vst [vmem:[%s52 + $0x280] sm:$0xff] %v213
      %v215 = vld [vmem:[%s51 + $0x288] sm:$0xff]
      %216 = vst [vmem:[%s52 + $0x288] sm:$0xff] %v215
      %v217 = vld [vmem:[%s51 + $0x290] sm:$0xff]
      %218 = vst [vmem:[%s52 + $0x290] sm:$0xff] %v217
      %v219 = vld [vmem:[%s51 + $0x298] sm:$0xff]
      %220 = vst [vmem:[%s52 + $0x298] sm:$0xff] %v219
      %v221 = vld [vmem:[%s51 + $0x2a0] sm:$0xff]
      %222 = vst [vmem:[%s52 + $0x2a0] sm:$0xff] %v221
      %v223 = vld [vmem:[%s51 + $0x2a8] sm:$0xff]
      %224 = vst [vmem:[%s52 + $0x2a8] sm:$0xff] %v223
      %v225 = vld [vmem:[%s51 + $0x2b0] sm:$0xff]
      %226 = vst [vmem:[%s52 + $0x2b0] sm:$0xff] %v225
      %v227 = vld [vmem:[%s51 + $0x2b8] sm:$0xff]
      %228 = vst [vmem:[%s52 + $0x2b8] sm:$0xff] %v227
      %v229 = vld [vmem:[%s51 + $0x2c0] sm:$0xff]
      %230 = vst [vmem:[%s52 + $0x2c0] sm:$0xff] %v229
      %v231 = vld [vmem:[%s51 + $0x2c8] sm:$0xff]
      %232 = vst [vmem:[%s52 + $0x2c8] sm:$0xff] %v231
      %v233 = vld [vmem:[%s51 + $0x2d0] sm:$0xff]
      %234 = vst [vmem:[%s52 + $0x2d0] sm:$0xff] %v233
      %v235 = vld [vmem:[%s51 + $0x2d8] sm:$0xff]
      %236 = vst [vmem:[%s52 + $0x2d8] sm:$0xff] %v235
      %v237 = vld [vmem:[%s51 + $0x2e0] sm:$0xff]
      %238 = vst [vmem:[%s52 + $0x2e0] sm:$0xff] %v237
      %v239 = vld [vmem:[%s51 + $0x2e8] sm:$0xff]
      %240 = vst [vmem:[%s52 + $0x2e8] sm:$0xff] %v239
      %v241 = vld [vmem:[%s51 + $0x2f0] sm:$0xff]
      %242 = vst [vmem:[%s52 + $0x2f0] sm:$0xff] %v241
      %v243 = vld [vmem:[%s51 + $0x2f8] sm:$0xff]
      %244 = vst [vmem:[%s52 + $0x2f8] sm:$0xff] %v243
      %v245 = vld [vmem:[%s51 + $0x300] sm:$0xff]
      %246 = vst [vmem:[%s52 + $0x300] sm:$0xff] %v245
      %v247 = vld [vmem:[%s51 + $0x308] sm:$0xff]
      %248 = vst [vmem:[%s52 + $0x308] sm:$0xff] %v247
      %v249 = vld [vmem:[%s51 + $0x310] sm:$0xff]
      %250 = vst [vmem:[%s52 + $0x310] sm:$0xff] %v249
      %v251 = vld [vmem:[%s51 + $0x318] sm:$0xff]
      %252 = vst [vmem:[%s52 + $0x318] sm:$0xff] %v251
      %v253 = vld [vmem:[%s51 + $0x320] sm:$0xff]
      %254 = vst [vmem:[%s52 + $0x320] sm:$0xff] %v253
      %v255 = vld [vmem:[%s51 + $0x328] sm:$0xff]
      %256 = vst [vmem:[%s52 + $0x328] sm:$0xff] %v255
      %v257 = vld [vmem:[%s51 + $0x330] sm:$0xff]
      %258 = vst [vmem:[%s52 + $0x330] sm:$0xff] %v257
      %v259 = vld [vmem:[%s51 + $0x338] sm:$0xff]
      %260 = vst [vmem:[%s52 + $0x338] sm:$0xff] %v259
      %v261 = vld [vmem:[%s51 + $0x340] sm:$0xff]
      %262 = vst [vmem:[%s52 + $0x340] sm:$0xff] %v261
      %v263 = vld [vmem:[%s51 + $0x348] sm:$0xff]
      %264 = vst [vmem:[%s52 + $0x348] sm:$0xff] %v263
      %v265 = vld [vmem:[%s51 + $0x350] sm:$0xff]
      %266 = vst [vmem:[%s52 + $0x350] sm:$0xff] %v265
      %v267 = vld [vmem:[%s51 + $0x358] sm:$0xff]
      %268 = vst [vmem:[%s52 + $0x358] sm:$0xff] %v267
      %v269 = vld [vmem:[%s51 + $0x360] sm:$0xff]
      %270 = vst [vmem:[%s52 + $0x360] sm:$0xff] %v269
      %v271 = vld [vmem:[%s51 + $0x368] sm:$0xff]
      %272 = vst [vmem:[%s52 + $0x368] sm:$0xff] %v271
      %v273 = vld [vmem:[%s51 + $0x370] sm:$0xff]
      %274 = vst [vmem:[%s52 + $0x370] sm:$0xff] %v273
      %v275 = vld [vmem:[%s51 + $0x378] sm:$0xff]
      %276 = vst [vmem:[%s52 + $0x378] sm:$0xff] %v275
      %v277 = vld [vmem:[%s51 + $0x380] sm:$0xff]
      %278 = vst [vmem:[%s52 + $0x380] sm:$0xff] %v277
      %v279 = vld [vmem:[%s51 + $0x388] sm:$0xff]
      %280 = vst [vmem:[%s52 + $0x388] sm:$0xff] %v279
      %v281 = vld [vmem:[%s51 + $0x390] sm:$0xff]
      %282 = vst [vmem:[%s52 + $0x390] sm:$0xff] %v281
      %v283 = vld [vmem:[%s51 + $0x398] sm:$0xff]
      %284 = vst [vmem:[%s52 + $0x398] sm:$0xff] %v283
      %v285 = vld [vmem:[%s51 + $0x3a0] sm:$0xff]
      %286 = vst [vmem:[%s52 + $0x3a0] sm:$0xff] %v285
      %v287 = vld [vmem:[%s51 + $0x3a8] sm:$0xff]
      %288 = vst [vmem:[%s52 + $0x3a8] sm:$0xff] %v287
      %v289 = vld [vmem:[%s51 + $0x3b0] sm:$0xff]
      %290 = vst [vmem:[%s52 + $0x3b0] sm:$0xff] %v289
      %v291 = vld [vmem:[%s51 + $0x3b8] sm:$0xff]
      %292 = vst [vmem:[%s52 + $0x3b8] sm:$0xff] %v291
      %v293 = vld [vmem:[%s51 + $0x3c0] sm:$0xff]
      %294 = vst [vmem:[%s52 + $0x3c0] sm:$0xff] %v293
      %v295 = vld [vmem:[%s51 + $0x3c8] sm:$0xff]
      %296 = vst [vmem:[%s52 + $0x3c8] sm:$0xff] %v295
      %v297 = vld [vmem:[%s51 + $0x3d0] sm:$0xff]
      %298 = vst [vmem:[%s52 + $0x3d0] sm:$0xff] %v297
      %v299 = vld [vmem:[%s51 + $0x3d8] sm:$0xff]
      %300 = vst [vmem:[%s52 + $0x3d8] sm:$0xff] %v299
      %v301 = vld [vmem:[%s51 + $0x3e0] sm:$0xff]
      %302 = vst [vmem:[%s52 + $0x3e0] sm:$0xff] %v301
      %v303 = vld [vmem:[%s51 + $0x3e8] sm:$0xff]
      %304 = vst [vmem:[%s52 + $0x3e8] sm:$0xff] %v303
      %v305 = vld [vmem:[%s51 + $0x3f0] sm:$0xff]
      %306 = vst [vmem:[%s52 + $0x3f0] sm:$0xff] %v305
      %v307 = vld [vmem:[%s51 + $0x3f8] sm:$0xff]
      %308 = vst [vmem:[%s52 + $0x3f8] sm:$0xff] %v307
      %v309 = vld [vmem:[%s51 + $0x400] sm:$0xff]
      %310 = vst [vmem:[%s52 + $0x400] sm:$0xff] %v309
      %v311 = vld [vmem:[%s51 + $0x408] sm:$0xff]
      %312 = vst [vmem:[%s52 + $0x408] sm:$0xff] %v311
      %v313 = vld [vmem:[%s51 + $0x410] sm:$0xff]
      %314 = vst [vmem:[%s52 + $0x410] sm:$0xff] %v313
      %v315 = vld [vmem:[%s51 + $0x418] sm:$0xff]
      %316 = vst [vmem:[%s52 + $0x418] sm:$0xff] %v315
      %v317 = vld [vmem:[%s51 + $0x420] sm:$0xff]
      %318 = vst [vmem:[%s52 + $0x420] sm:$0xff] %v317
      %v319 = vld [vmem:[%s51 + $0x428] sm:$0xff]
      %320 = vst [vmem:[%s52 + $0x428] sm:$0xff] %v319
      %v321 = vld [vmem:[%s51 + $0x430] sm:$0xff]
      %322 = vst [vmem:[%s52 + $0x430] sm:$0xff] %v321
      %v323 = vld [vmem:[%s51 + $0x438] sm:$0xff]
      %324 = vst [vmem:[%s52 + $0x438] sm:$0xff] %v323
      %v325 = vld [vmem:[%s51 + $0x440] sm:$0xff]
      %326 = vst [vmem:[%s52 + $0x440] sm:$0xff] %v325
      %v327 = vld [vmem:[%s51 + $0x448] sm:$0xff]
      %328 = vst [vmem:[%s52 + $0x448] sm:$0xff] %v327
      %v329 = vld [vmem:[%s51 + $0x450] sm:$0xff]
      %330 = vst [vmem:[%s52 + $0x450] sm:$0xff] %v329
      %v331 = vld [vmem:[%s51 + $0x458] sm:$0xff]
      %332 = vst [vmem:[%s52 + $0x458] sm:$0xff] %v331
      %v333 = vld [vmem:[%s51 + $0x460] sm:$0xff]
      %334 = vst [vmem:[%s52 + $0x460] sm:$0xff] %v333
      %v335 = vld [vmem:[%s51 + $0x468] sm:$0xff]
      %336 = vst [vmem:[%s52 + $0x468] sm:$0xff] %v335
      %v337 = vld [vmem:[%s51 + $0x470] sm:$0xff]
      %338 = vst [vmem:[%s52 + $0x470] sm:$0xff] %v337
      %v339 = vld [vmem:[%s51 + $0x478] sm:$0xff]
      %340 = vst [vmem:[%s52 + $0x478] sm:$0xff] %v339
      %v341 = vld [vmem:[%s51 + $0x480] sm:$0xff]
      %342 = vst [vmem:[%s52 + $0x480] sm:$0xff] %v341
      %v343 = vld [vmem:[%s51 + $0x488] sm:$0xff]
      %344 = vst [vmem:[%s52 + $0x488] sm:$0xff] %v343
      %v345 = vld [vmem:[%s51 + $0x490] sm:$0xff]
      %346 = vst [vmem:[%s52 + $0x490] sm:$0xff] %v345
      %v347 = vld [vmem:[%s51 + $0x498] sm:$0xff]
      %348 = vst [vmem:[%s52 + $0x498] sm:$0xff] %v347
      %v349 = vld [vmem:[%s51 + $0x4a0] sm:$0xff]
      %350 = vst [vmem:[%s52 + $0x4a0] sm:$0xff] %v349
      %v351 = vld [vmem:[%s51 + $0x4a8] sm:$0xff]
      %352 = vst [vmem:[%s52 + $0x4a8] sm:$0xff] %v351
      %v353 = vld [vmem:[%s51 + $0x4b0] sm:$0xff]
      %354 = vst [vmem:[%s52 + $0x4b0] sm:$0xff] %v353
      %v355 = vld [vmem:[%s51 + $0x4b8] sm:$0xff]
      %356 = vst [vmem:[%s52 + $0x4b8] sm:$0xff] %v355
      %v357 = vld [vmem:[%s51 + $0x4c0] sm:$0xff]
      %358 = vst [vmem:[%s52 + $0x4c0] sm:$0xff] %v357
      %v359 = vld [vmem:[%s51 + $0x4c8] sm:$0xff]
      %360 = vst [vmem:[%s52 + $0x4c8] sm:$0xff] %v359
      %v361 = vld [vmem:[%s51 + $0x4d0] sm:$0xff]
      %362 = vst [vmem:[%s52 + $0x4d0] sm:$0xff] %v361
      %v363 = vld [vmem:[%s51 + $0x4d8] sm:$0xff]
      %364 = vst [vmem:[%s52 + $0x4d8] sm:$0xff] %v363
      %v365 = vld [vmem:[%s51 + $0x4e0] sm:$0xff]
      %366 = vst [vmem:[%s52 + $0x4e0] sm:$0xff] %v365
      %v367 = vld [vmem:[%s51 + $0x4e8] sm:$0xff]
      %368 = vst [vmem:[%s52 + $0x4e8] sm:$0xff] %v367
      %v369 = vld [vmem:[%s51 + $0x4f0] sm:$0xff]
      %370 = vst [vmem:[%s52 + $0x4f0] sm:$0xff] %v369
      %v371 = vld [vmem:[%s51 + $0x4f8] sm:$0xff]
      %372 = vst [vmem:[%s52 + $0x4f8] sm:$0xff] %v371
      %v373 = vld [vmem:[%s51 + $0x500] sm:$0xff]
      %374 = vst [vmem:[%s52 + $0x500] sm:$0xff] %v373
      %v375 = vld [vmem:[%s51 + $0x508] sm:$0xff]
      %376 = vst [vmem:[%s52 + $0x508] sm:$0xff] %v375
      %v377 = vld [vmem:[%s51 + $0x510] sm:$0xff]
      %378 = vst [vmem:[%s52 + $0x510] sm:$0xff] %v377
      %v379 = vld [vmem:[%s51 + $0x518] sm:$0xff]
      %380 = vst [vmem:[%s52 + $0x518] sm:$0xff] %v379
      %v381 = vld [vmem:[%s51 + $0x520] sm:$0xff]
      %382 = vst [vmem:[%s52 + $0x520] sm:$0xff] %v381
      %v383 = vld [vmem:[%s51 + $0x528] sm:$0xff]
      %384 = vst [vmem:[%s52 + $0x528] sm:$0xff] %v383
      %v385 = vld [vmem:[%s51 + $0x530] sm:$0xff]
      %386 = vst [vmem:[%s52 + $0x530] sm:$0xff] %v385
      %v387 = vld [vmem:[%s51 + $0x538] sm:$0xff]
      %388 = vst [vmem:[%s52 + $0x538] sm:$0xff] %v387
      %v389 = vld [vmem:[%s51 + $0x540] sm:$0xff]
      %390 = vst [vmem:[%s52 + $0x540] sm:$0xff] %v389
      %v391 = vld [vmem:[%s51 + $0x548] sm:$0xff]
      %392 = vst [vmem:[%s52 + $0x548] sm:$0xff] %v391
      %v393 = vld [vmem:[%s51 + $0x550] sm:$0xff]
      %394 = vst [vmem:[%s52 + $0x550] sm:$0xff] %v393
      %v395 = vld [vmem:[%s51 + $0x558] sm:$0xff]
      %396 = vst [vmem:[%s52 + $0x558] sm:$0xff] %v395
      %v397 = vld [vmem:[%s51 + $0x560] sm:$0xff]
      %398 = vst [vmem:[%s52 + $0x560] sm:$0xff] %v397
      %v399 = vld [vmem:[%s51 + $0x568] sm:$0xff]
      %400 = vst [vmem:[%s52 + $0x568] sm:$0xff] %v399
      %v401 = vld [vmem:[%s51 + $0x570] sm:$0xff]
      %402 = vst [vmem:[%s52 + $0x570] sm:$0xff] %v401
      %v403 = vld [vmem:[%s51 + $0x578] sm:$0xff]
      %404 = vst [vmem:[%s52 + $0x578] sm:$0xff] %v403
      %v405 = vld [vmem:[%s51 + $0x580] sm:$0xff]
      %406 = vst [vmem:[%s52 + $0x580] sm:$0xff] %v405
      %v407 = vld [vmem:[%s51 + $0x588] sm:$0xff]
      %408 = vst [vmem:[%s52 + $0x588] sm:$0xff] %v407
      %v409 = vld [vmem:[%s51 + $0x590] sm:$0xff]
      %410 = vst [vmem:[%s52 + $0x590] sm:$0xff] %v409
      %v411 = vld [vmem:[%s51 + $0x598] sm:$0xff]
      %412 = vst [vmem:[%s52 + $0x598] sm:$0xff] %v411
      %v413 = vld [vmem:[%s51 + $0x5a0] sm:$0xff]
      %414 = vst [vmem:[%s52 + $0x5a0] sm:$0xff] %v413
      %v415 = vld [vmem:[%s51 + $0x5a8] sm:$0xff]
      %416 = vst [vmem:[%s52 + $0x5a8] sm:$0xff] %v415
      %v417 = vld [vmem:[%s51 + $0x5b0] sm:$0xff]
      %418 = vst [vmem:[%s52 + $0x5b0] sm:$0xff] %v417
      %v419 = vld [vmem:[%s51 + $0x5b8] sm:$0xff]
      %420 = vst [vmem:[%s52 + $0x5b8] sm:$0xff] %v419
      %v421 = vld [vmem:[%s51 + $0x5c0] sm:$0xff]
      %422 = vst [vmem:[%s52 + $0x5c0] sm:$0xff] %v421
      %v423 = vld [vmem:[%s51 + $0x5c8] sm:$0xff]
      %424 = vst [vmem:[%s52 + $0x5c8] sm:$0xff] %v423
      %v425 = vld [vmem:[%s51 + $0x5d0] sm:$0xff]
      %426 = vst [vmem:[%s52 + $0x5d0] sm:$0xff] %v425
      %v427 = vld [vmem:[%s51 + $0x5d8] sm:$0xff]
      %428 = vst [vmem:[%s52 + $0x5d8] sm:$0xff] %v427
      %v429 = vld [vmem:[%s51 + $0x5e0] sm:$0xff]
      %430 = vst [vmem:[%s52 + $0x5e0] sm:$0xff] %v429
      %v431 = vld [vmem:[%s51 + $0x5e8] sm:$0xff]
      %432 = vst [vmem:[%s52 + $0x5e8] sm:$0xff] %v431
      %v433 = vld [vmem:[%s51 + $0x5f0] sm:$0xff]
      %434 = vst [vmem:[%s52 + $0x5f0] sm:$0xff] %v433
      %v435 = vld [vmem:[%s51 + $0x5f8] sm:$0xff]
      %436 = vst [vmem:[%s52 + $0x5f8] sm:$0xff] %v435
      %v437 = vld [vmem:[%s51 + $0x600] sm:$0xff]
      %438 = vst [vmem:[%s52 + $0x600] sm:$0xff] %v437
      %v439 = vld [vmem:[%s51 + $0x608] sm:$0xff]
      %440 = vst [vmem:[%s52 + $0x608] sm:$0xff] %v439
      %v441 = vld [vmem:[%s51 + $0x610] sm:$0xff]
      %442 = vst [vmem:[%s52 + $0x610] sm:$0xff] %v441
      %v443 = vld [vmem:[%s51 + $0x618] sm:$0xff]
      %444 = vst [vmem:[%s52 + $0x618] sm:$0xff] %v443
      %v445 = vld [vmem:[%s51 + $0x620] sm:$0xff]
      %446 = vst [vmem:[%s52 + $0x620] sm:$0xff] %v445
      %v447 = vld [vmem:[%s51 + $0x628] sm:$0xff]
      %448 = vst [vmem:[%s52 + $0x628] sm:$0xff] %v447
      %v449 = vld [vmem:[%s51 + $0x630] sm:$0xff]
      %450 = vst [vmem:[%s52 + $0x630] sm:$0xff] %v449
      %v451 = vld [vmem:[%s51 + $0x638] sm:$0xff]
      %452 = vst [vmem:[%s52 + $0x638] sm:$0xff] %v451
      %v453 = vld [vmem:[%s51 + $0x640] sm:$0xff]
      %454 = vst [vmem:[%s52 + $0x640] sm:$0xff] %v453
      %v455 = vld [vmem:[%s51 + $0x648] sm:$0xff]
      %456 = vst [vmem:[%s52 + $0x648] sm:$0xff] %v455
      %v457 = vld [vmem:[%s51 + $0x650] sm:$0xff]
      %458 = vst [vmem:[%s52 + $0x650] sm:$0xff] %v457
      %v459 = vld [vmem:[%s51 + $0x658] sm:$0xff]
      %460 = vst [vmem:[%s52 + $0x658] sm:$0xff] %v459
      %v461 = vld [vmem:[%s51 + $0x660] sm:$0xff]
      %462 = vst [vmem:[%s52 + $0x660] sm:$0xff] %v461
      %v463 = vld [vmem:[%s51 + $0x668] sm:$0xff]
      %464 = vst [vmem:[%s52 + $0x668] sm:$0xff] %v463
      %v465 = vld [vmem:[%s51 + $0x670] sm:$0xff]
      %466 = vst [vmem:[%s52 + $0x670] sm:$0xff] %v465
      %v467 = vld [vmem:[%s51 + $0x678] sm:$0xff]
      %468 = vst [vmem:[%s52 + $0x678] sm:$0xff] %v467
      %v469 = vld [vmem:[%s51 + $0x680] sm:$0xff]
      %470 = vst [vmem:[%s52 + $0x680] sm:$0xff] %v469
      %v471 = vld [vmem:[%s51 + $0x688] sm:$0xff]
      %472 = vst [vmem:[%s52 + $0x688] sm:$0xff] %v471
      %v473 = vld [vmem:[%s51 + $0x690] sm:$0xff]
      %474 = vst [vmem:[%s52 + $0x690] sm:$0xff] %v473
      %v475 = vld [vmem:[%s51 + $0x698] sm:$0xff]
      %476 = vst [vmem:[%s52 + $0x698] sm:$0xff] %v475
      %v477 = vld [vmem:[%s51 + $0x6a0] sm:$0xff]
      %478 = vst [vmem:[%s52 + $0x6a0] sm:$0xff] %v477
      %v479 = vld [vmem:[%s51 + $0x6a8] sm:$0xff]
      %480 = vst [vmem:[%s52 + $0x6a8] sm:$0xff] %v479
      %v481 = vld [vmem:[%s51 + $0x6b0] sm:$0xff]
      %482 = vst [vmem:[%s52 + $0x6b0] sm:$0xff] %v481
      %v483 = vld [vmem:[%s51 + $0x6b8] sm:$0xff]
      %484 = vst [vmem:[%s52 + $0x6b8] sm:$0xff] %v483
      %v485 = vld [vmem:[%s51 + $0x6c0] sm:$0xff]
      %486 = vst [vmem:[%s52 + $0x6c0] sm:$0xff] %v485
      %v487 = vld [vmem:[%s51 + $0x6c8] sm:$0xff]
      %488 = vst [vmem:[%s52 + $0x6c8] sm:$0xff] %v487
      %v489 = vld [vmem:[%s51 + $0x6d0] sm:$0xff]
      %490 = vst [vmem:[%s52 + $0x6d0] sm:$0xff] %v489
      %v491 = vld [vmem:[%s51 + $0x6d8] sm:$0xff]
      %492 = vst [vmem:[%s52 + $0x6d8] sm:$0xff] %v491
      %v493 = vld [vmem:[%s51 + $0x6e0] sm:$0xff]
      %494 = vst [vmem:[%s52 + $0x6e0] sm:$0xff] %v493
      %v495 = vld [vmem:[%s51 + $0x6e8] sm:$0xff]
      %496 = vst [vmem:[%s52 + $0x6e8] sm:$0xff] %v495
      %v497 = vld [vmem:[%s51 + $0x6f0] sm:$0xff]
      %498 = vst [vmem:[%s52 + $0x6f0] sm:$0xff] %v497
      %v499 = vld [vmem:[%s51 + $0x6f8] sm:$0xff]
      %500 = vst [vmem:[%s52 + $0x6f8] sm:$0xff] %v499
      %v501 = vld [vmem:[%s51 + $0x700] sm:$0xff]
      %502 = vst [vmem:[%s52 + $0x700] sm:$0xff] %v501
      %v503 = vld [vmem:[%s51 + $0x708] sm:$0xff]
      %504 = vst [vmem:[%s52 + $0x708] sm:$0xff] %v503
      %v505 = vld [vmem:[%s51 + $0x710] sm:$0xff]
      %506 = vst [vmem:[%s52 + $0x710] sm:$0xff] %v505
      %v507 = vld [vmem:[%s51 + $0x718] sm:$0xff]
      %508 = vst [vmem:[%s52 + $0x718] sm:$0xff] %v507
      %v509 = vld [vmem:[%s51 + $0x720] sm:$0xff]
      %510 = vst [vmem:[%s52 + $0x720] sm:$0xff] %v509
      %v511 = vld [vmem:[%s51 + $0x728] sm:$0xff]
      %512 = vst [vmem:[%s52 + $0x728] sm:$0xff] %v511
      %v513 = vld [vmem:[%s51 + $0x730] sm:$0xff]
      %514 = vst [vmem:[%s52 + $0x730] sm:$0xff] %v513
      %v515 = vld [vmem:[%s51 + $0x738] sm:$0xff]
      %516 = vst [vmem:[%s52 + $0x738] sm:$0xff] %v515
      %v517 = vld [vmem:[%s51 + $0x740] sm:$0xff]
      %518 = vst [vmem:[%s52 + $0x740] sm:$0xff] %v517
      %v519 = vld [vmem:[%s51 + $0x748] sm:$0xff]
      %520 = vst [vmem:[%s52 + $0x748] sm:$0xff] %v519
      %v521 = vld [vmem:[%s51 + $0x750] sm:$0xff]
      %522 = vst [vmem:[%s52 + $0x750] sm:$0xff] %v521
      %v523 = vld [vmem:[%s51 + $0x758] sm:$0xff]
      %524 = vst [vmem:[%s52 + $0x758] sm:$0xff] %v523
      %v525 = vld [vmem:[%s51 + $0x760] sm:$0xff]
      %526 = vst [vmem:[%s52 + $0x760] sm:$0xff] %v525
      %v527 = vld [vmem:[%s51 + $0x768] sm:$0xff]
      %528 = vst [vmem:[%s52 + $0x768] sm:$0xff] %v527
      %v529 = vld [vmem:[%s51 + $0x770] sm:$0xff]
      %530 = vst [vmem:[%s52 + $0x770] sm:$0xff] %v529
      %v531 = vld [vmem:[%s51 + $0x778] sm:$0xff]
      %532 = vst [vmem:[%s52 + $0x778] sm:$0xff] %v531
      %v533 = vld [vmem:[%s51 + $0x780] sm:$0xff]
      %534 = vst [vmem:[%s52 + $0x780] sm:$0xff] %v533
      %v535 = vld [vmem:[%s51 + $0x788] sm:$0xff]
      %536 = vst [vmem:[%s52 + $0x788] sm:$0xff] %v535
      %v537 = vld [vmem:[%s51 + $0x790] sm:$0xff]
      %538 = vst [vmem:[%s52 + $0x790] sm:$0xff] %v537
      %v539 = vld [vmem:[%s51 + $0x798] sm:$0xff]
      %540 = vst [vmem:[%s52 + $0x798] sm:$0xff] %v539
      %v541 = vld [vmem:[%s51 + $0x7a0] sm:$0xff]
      %542 = vst [vmem:[%s52 + $0x7a0] sm:$0xff] %v541
      %v543 = vld [vmem:[%s51 + $0x7a8] sm:$0xff]
      %544 = vst [vmem:[%s52 + $0x7a8] sm:$0xff] %v543
      %v545 = vld [vmem:[%s51 + $0x7b0] sm:$0xff]
      %546 = vst [vmem:[%s52 + $0x7b0] sm:$0xff] %v545
      %v547 = vld [vmem:[%s51 + $0x7b8] sm:$0xff]
      %548 = vst [vmem:[%s52 + $0x7b8] sm:$0xff] %v547
      %v549 = vld [vmem:[%s51 + $0x7c0] sm:$0xff]
      %550 = vst [vmem:[%s52 + $0x7c0] sm:$0xff] %v549
      %v551 = vld [vmem:[%s51 + $0x7c8] sm:$0xff]
      %552 = vst [vmem:[%s52 + $0x7c8] sm:$0xff] %v551
      %v553 = vld [vmem:[%s51 + $0x7d0] sm:$0xff]
      %554 = vst [vmem:[%s52 + $0x7d0] sm:$0xff] %v553
      %v555 = vld [vmem:[%s51 + $0x7d8] sm:$0xff]
      %556 = vst [vmem:[%s52 + $0x7d8] sm:$0xff] %v555
      %v557 = vld [vmem:[%s51 + $0x7e0] sm:$0xff]
      %558 = vst [vmem:[%s52 + $0x7e0] sm:$0xff] %v557
      %v559 = vld [vmem:[%s51 + $0x7e8] sm:$0xff]
      %560 = vst [vmem:[%s52 + $0x7e8] sm:$0xff] %v559
      %v561 = vld [vmem:[%s51 + $0x7f0] sm:$0xff]
      %562 = vst [vmem:[%s52 + $0x7f0] sm:$0xff] %v561
      %v563 = vld [vmem:[%s51 + $0x7f8] sm:$0xff]
      %564 = vst [vmem:[%s52 + $0x7f8] sm:$0xff] %v563
      %v565 = vld [vmem:[%s51 + $0x800] sm:$0xff]
      %566 = vst [vmem:[%s52 + $0x800] sm:$0xff] %v565
      %v567 = vld [vmem:[%s51 + $0x808] sm:$0xff]
      %568 = vst [vmem:[%s52 + $0x808] sm:$0xff] %v567
      %v569 = vld [vmem:[%s51 + $0x810] sm:$0xff]
      %570 = vst [vmem:[%s52 + $0x810] sm:$0xff] %v569
      %v571 = vld [vmem:[%s51 + $0x818] sm:$0xff]
      %572 = vst [vmem:[%s52 + $0x818] sm:$0xff] %v571
      %v573 = vld [vmem:[%s51 + $0x820] sm:$0xff]
      %574 = vst [vmem:[%s52 + $0x820] sm:$0xff] %v573
      %v575 = vld [vmem:[%s51 + $0x828] sm:$0xff]
      %576 = vst [vmem:[%s52 + $0x828] sm:$0xff] %v575
      %v577 = vld [vmem:[%s51 + $0x830] sm:$0xff]
      %578 = vst [vmem:[%s52 + $0x830] sm:$0xff] %v577
      %v579 = vld [vmem:[%s51 + $0x838] sm:$0xff]
      %580 = vst [vmem:[%s52 + $0x838] sm:$0xff] %v579
      %v581 = vld [vmem:[%s51 + $0x840] sm:$0xff]
      %582 = vst [vmem:[%s52 + $0x840] sm:$0xff] %v581
      %v583 = vld [vmem:[%s51 + $0x848] sm:$0xff]
      %584 = vst [vmem:[%s52 + $0x848] sm:$0xff] %v583
      %v585 = vld [vmem:[%s51 + $0x850] sm:$0xff]
      %586 = vst [vmem:[%s52 + $0x850] sm:$0xff] %v585
      %v587 = vld [vmem:[%s51 + $0x858] sm:$0xff]
      %588 = vst [vmem:[%s52 + $0x858] sm:$0xff] %v587
      %v589 = vld [vmem:[%s51 + $0x860] sm:$0xff]
      %590 = vst [vmem:[%s52 + $0x860] sm:$0xff] %v589
      %v591 = vld [vmem:[%s51 + $0x868] sm:$0xff]
      %592 = vst [vmem:[%s52 + $0x868] sm:$0xff] %v591
      %v593 = vld [vmem:[%s51 + $0x870] sm:$0xff]
      %594 = vst [vmem:[%s52 + $0x870] sm:$0xff] %v593
      %v595 = vld [vmem:[%s51 + $0x878] sm:$0xff]
      %596 = vst [vmem:[%s52 + $0x878] sm:$0xff] %v595
      %v597 = vld [vmem:[%s51 + $0x880] sm:$0xff]
      %598 = vst [vmem:[%s52 + $0x880] sm:$0xff] %v597
      %v599 = vld [vmem:[%s51 + $0x888] sm:$0xff]
      %600 = vst [vmem:[%s52 + $0x888] sm:$0xff] %v599
      %v601 = vld [vmem:[%s51 + $0x890] sm:$0xff]
      %602 = vst [vmem:[%s52 + $0x890] sm:$0xff] %v601
      %v603 = vld [vmem:[%s51 + $0x898] sm:$0xff]
      %604 = vst [vmem:[%s52 + $0x898] sm:$0xff] %v603
      %v605 = vld [vmem:[%s51 + $0x8a0] sm:$0xff]
      %606 = vst [vmem:[%s52 + $0x8a0] sm:$0xff] %v605
      %v607 = vld [vmem:[%s51 + $0x8a8] sm:$0xff]
      %608 = vst [vmem:[%s52 + $0x8a8] sm:$0xff] %v607
      %v609 = vld [vmem:[%s51 + $0x8b0] sm:$0xff]
      %610 = vst [vmem:[%s52 + $0x8b0] sm:$0xff] %v609
      %v611 = vld [vmem:[%s51 + $0x8b8] sm:$0xff]
      %612 = vst [vmem:[%s52 + $0x8b8] sm:$0xff] %v611
      %v613 = vld [vmem:[%s51 + $0x8c0] sm:$0xff]
      %614 = vst [vmem:[%s52 + $0x8c0] sm:$0xff] %v613
      %v615 = vld [vmem:[%s51 + $0x8c8] sm:$0xff]
      %616 = vst [vmem:[%s52 + $0x8c8] sm:$0xff] %v615
      %v617 = vld [vmem:[%s51 + $0x8d0] sm:$0xff]
      %618 = vst [vmem:[%s52 + $0x8d0] sm:$0xff] %v617
      %v619 = vld [vmem:[%s51 + $0x8d8] sm:$0xff]
      %620 = vst [vmem:[%s52 + $0x8d8] sm:$0xff] %v619
      %v621 = vld [vmem:[%s51 + $0x8e0] sm:$0xff]
      %622 = vst [vmem:[%s52 + $0x8e0] sm:$0xff] %v621
      %v623 = vld [vmem:[%s51 + $0x8e8] sm:$0xff]
      %624 = vst [vmem:[%s52 + $0x8e8] sm:$0xff] %v623
      %v625 = vld [vmem:[%s51 + $0x8f0] sm:$0xff]
      %626 = vst [vmem:[%s52 + $0x8f0] sm:$0xff] %v625
      %v627 = vld [vmem:[%s51 + $0x8f8] sm:$0xff]
      %628 = vst [vmem:[%s52 + $0x8f8] sm:$0xff] %v627
      %v629 = vld [vmem:[%s51 + $0x900] sm:$0xff]
      %630 = vst [vmem:[%s52 + $0x900] sm:$0xff] %v629
      %v631 = vld [vmem:[%s51 + $0x908] sm:$0xff]
      %632 = vst [vmem:[%s52 + $0x908] sm:$0xff] %v631
      %v633 = vld [vmem:[%s51 + $0x910] sm:$0xff]
      %634 = vst [vmem:[%s52 + $0x910] sm:$0xff] %v633
      %v635 = vld [vmem:[%s51 + $0x918] sm:$0xff]
      %636 = vst [vmem:[%s52 + $0x918] sm:$0xff] %v635
      %v637 = vld [vmem:[%s51 + $0x920] sm:$0xff]
      %638 = vst [vmem:[%s52 + $0x920] sm:$0xff] %v637
      %v639 = vld [vmem:[%s51 + $0x928] sm:$0xff]
      %640 = vst [vmem:[%s52 + $0x928] sm:$0xff] %v639
      %v641 = vld [vmem:[%s51 + $0x930] sm:$0xff]
      %642 = vst [vmem:[%s52 + $0x930] sm:$0xff] %v641
      %v643 = vld [vmem:[%s51 + $0x938] sm:$0xff]
      %644 = vst [vmem:[%s52 + $0x938] sm:$0xff] %v643
      %v645 = vld [vmem:[%s51 + $0x940] sm:$0xff]
      %646 = vst [vmem:[%s52 + $0x940] sm:$0xff] %v645
      %v647 = vld [vmem:[%s51 + $0x948] sm:$0xff]
      %648 = vst [vmem:[%s52 + $0x948] sm:$0xff] %v647
      %v649 = vld [vmem:[%s51 + $0x950] sm:$0xff]
      %650 = vst [vmem:[%s52 + $0x950] sm:$0xff] %v649
      %v651 = vld [vmem:[%s51 + $0x958] sm:$0xff]
      %652 = vst [vmem:[%s52 + $0x958] sm:$0xff] %v651
      %v653 = vld [vmem:[%s51 + $0x960] sm:$0xff]
      %654 = vst [vmem:[%s52 + $0x960] sm:$0xff] %v653
      %v655 = vld [vmem:[%s51 + $0x968] sm:$0xff]
      %656 = vst [vmem:[%s52 + $0x968] sm:$0xff] %v655
      %v657 = vld [vmem:[%s51 + $0x970] sm:$0xff]
      %658 = vst [vmem:[%s52 + $0x970] sm:$0xff] %v657
      %v659 = vld [vmem:[%s51 + $0x978] sm:$0xff]
      %660 = vst [vmem:[%s52 + $0x978] sm:$0xff] %v659
      %v661 = vld [vmem:[%s51 + $0x980] sm:$0xff]
      %662 = vst [vmem:[%s52 + $0x980] sm:$0xff] %v661
      %v663 = vld [vmem:[%s51 + $0x988] sm:$0xff]
      %664 = vst [vmem:[%s52 + $0x988] sm:$0xff] %v663
      %v665 = vld [vmem:[%s51 + $0x990] sm:$0xff]
      %666 = vst [vmem:[%s52 + $0x990] sm:$0xff] %v665
      %v667 = vld [vmem:[%s51 + $0x998] sm:$0xff]
      %668 = vst [vmem:[%s52 + $0x998] sm:$0xff] %v667
      %v669 = vld [vmem:[%s51 + $0x9a0] sm:$0xff]
      %670 = vst [vmem:[%s52 + $0x9a0] sm:$0xff] %v669
      %v671 = vld [vmem:[%s51 + $0x9a8] sm:$0xff]
      %672 = vst [vmem:[%s52 + $0x9a8] sm:$0xff] %v671
      %v673 = vld [vmem:[%s51 + $0x9b0] sm:$0xff]
      %674 = vst [vmem:[%s52 + $0x9b0] sm:$0xff] %v673
      %v675 = vld [vmem:[%s51 + $0x9b8] sm:$0xff]
      %676 = vst [vmem:[%s52 + $0x9b8] sm:$0xff] %v675
      %v677 = vld [vmem:[%s51 + $0x9c0] sm:$0xff]
      %678 = vst [vmem:[%s52 + $0x9c0] sm:$0xff] %v677
      %v679 = vld [vmem:[%s51 + $0x9c8] sm:$0xff]
      %680 = vst [vmem:[%s52 + $0x9c8] sm:$0xff] %v679
      %v681 = vld [vmem:[%s51 + $0x9d0] sm:$0xff]
      %682 = vst [vmem:[%s52 + $0x9d0] sm:$0xff] %v681
      %v683 = vld [vmem:[%s51 + $0x9d8] sm:$0xff]
      %684 = vst [vmem:[%s52 + $0x9d8] sm:$0xff] %v683
      %v685 = vld [vmem:[%s51 + $0x9e0] sm:$0xff]
      %686 = vst [vmem:[%s52 + $0x9e0] sm:$0xff] %v685
      %v687 = vld [vmem:[%s51 + $0x9e8] sm:$0xff]
      %688 = vst [vmem:[%s52 + $0x9e8] sm:$0xff] %v687
      %v689 = vld [vmem:[%s51 + $0x9f0] sm:$0xff]
      %690 = vst [vmem:[%s52 + $0x9f0] sm:$0xff] %v689
      %v691 = vld [vmem:[%s51 + $0x9f8] sm:$0xff]
      %692 = vst [vmem:[%s52 + $0x9f8] sm:$0xff] %v691
      %v693 = vld [vmem:[%s51 + $0xa00] sm:$0xff]
      %694 = vst [vmem:[%s52 + $0xa00] sm:$0xff] %v693
      %v695 = vld [vmem:[%s51 + $0xa08] sm:$0xff]
      %696 = vst [vmem:[%s52 + $0xa08] sm:$0xff] %v695
      %v697 = vld [vmem:[%s51 + $0xa10] sm:$0xff]
      %698 = vst [vmem:[%s52 + $0xa10] sm:$0xff] %v697
      %v699 = vld [vmem:[%s51 + $0xa18] sm:$0xff]
      %700 = vst [vmem:[%s52 + $0xa18] sm:$0xff] %v699
      %v701 = vld [vmem:[%s51 + $0xa20] sm:$0xff]
      %702 = vst [vmem:[%s52 + $0xa20] sm:$0xff] %v701
      %v703 = vld [vmem:[%s51 + $0xa28] sm:$0xff]
      %704 = vst [vmem:[%s52 + $0xa28] sm:$0xff] %v703
      %v705 = vld [vmem:[%s51 + $0xa30] sm:$0xff]
      %706 = vst [vmem:[%s52 + $0xa30] sm:$0xff] %v705
      %v707 = vld [vmem:[%s51 + $0xa38] sm:$0xff]
      %708 = vst [vmem:[%s52 + $0xa38] sm:$0xff] %v707
      %v709 = vld [vmem:[%s51 + $0xa40] sm:$0xff]
      %710 = vst [vmem:[%s52 + $0xa40] sm:$0xff] %v709
      %v711 = vld [vmem:[%s51 + $0xa48] sm:$0xff]
      %712 = vst [vmem:[%s52 + $0xa48] sm:$0xff] %v711
      %v713 = vld [vmem:[%s51 + $0xa50] sm:$0xff]
      %714 = vst [vmem:[%s52 + $0xa50] sm:$0xff] %v713
      %v715 = vld [vmem:[%s51 + $0xa58] sm:$0xff]
      %716 = vst [vmem:[%s52 + $0xa58] sm:$0xff] %v715
      %v717 = vld [vmem:[%s51 + $0xa60] sm:$0xff]
      %718 = vst [vmem:[%s52 + $0xa60] sm:$0xff] %v717
      %v719 = vld [vmem:[%s51 + $0xa68] sm:$0xff]
      %720 = vst [vmem:[%s52 + $0xa68] sm:$0xff] %v719
      %v721 = vld [vmem:[%s51 + $0xa70] sm:$0xff]
      %722 = vst [vmem:[%s52 + $0xa70] sm:$0xff] %v721
      %v723 = vld [vmem:[%s51 + $0xa78] sm:$0xff]
      %724 = vst [vmem:[%s52 + $0xa78] sm:$0xff] %v723
      %v725 = vld [vmem:[%s51 + $0xa80] sm:$0xff]
      %726 = vst [vmem:[%s52 + $0xa80] sm:$0xff] %v725
      %v727 = vld [vmem:[%s51 + $0xa88] sm:$0xff]
      %728 = vst [vmem:[%s52 + $0xa88] sm:$0xff] %v727
      %v729 = vld [vmem:[%s51 + $0xa90] sm:$0xff]
      %730 = vst [vmem:[%s52 + $0xa90] sm:$0xff] %v729
      %v731 = vld [vmem:[%s51 + $0xa98] sm:$0xff]
      %732 = vst [vmem:[%s52 + $0xa98] sm:$0xff] %v731
      %v733 = vld [vmem:[%s51 + $0xaa0] sm:$0xff]
      %734 = vst [vmem:[%s52 + $0xaa0] sm:$0xff] %v733
      %v735 = vld [vmem:[%s51 + $0xaa8] sm:$0xff]
      %736 = vst [vmem:[%s52 + $0xaa8] sm:$0xff] %v735
      %v737 = vld [vmem:[%s51 + $0xab0] sm:$0xff]
      %738 = vst [vmem:[%s52 + $0xab0] sm:$0xff] %v737
      %v739 = vld [vmem:[%s51 + $0xab8] sm:$0xff]
      %740 = vst [vmem:[%s52 + $0xab8] sm:$0xff] %v739
      %v741 = vld [vmem:[%s51 + $0xac0] sm:$0xff]
      %742 = vst [vmem:[%s52 + $0xac0] sm:$0xff] %v741
      %v743 = vld [vmem:[%s51 + $0xac8] sm:$0xff]
      %744 = vst [vmem:[%s52 + $0xac8] sm:$0xff] %v743
      %v745 = vld [vmem:[%s51 + $0xad0] sm:$0xff]
      %746 = vst [vmem:[%s52 + $0xad0] sm:$0xff] %v745
      %v747 = vld [vmem:[%s51 + $0xad8] sm:$0xff]
      %748 = vst [vmem:[%s52 + $0xad8] sm:$0xff] %v747
      %v749 = vld [vmem:[%s51 + $0xae0] sm:$0xff]
      %750 = vst [vmem:[%s52 + $0xae0] sm:$0xff] %v749
      %v751 = vld [vmem:[%s51 + $0xae8] sm:$0xff]
      %752 = vst [vmem:[%s52 + $0xae8] sm:$0xff] %v751
      %v753 = vld [vmem:[%s51 + $0xaf0] sm:$0xff]
      %754 = vst [vmem:[%s52 + $0xaf0] sm:$0xff] %v753
      %v755 = vld [vmem:[%s51 + $0xaf8] sm:$0xff]
      %756 = vst [vmem:[%s52 + $0xaf8] sm:$0xff] %v755
      %v757 = vld [vmem:[%s51 + $0xb00] sm:$0xff]
      %758 = vst [vmem:[%s52 + $0xb00] sm:$0xff] %v757
      %v759 = vld [vmem:[%s51 + $0xb08] sm:$0xff]
      %760 = vst [vmem:[%s52 + $0xb08] sm:$0xff] %v759
      %v761 = vld [vmem:[%s51 + $0xb10] sm:$0xff]
      %762 = vst [vmem:[%s52 + $0xb10] sm:$0xff] %v761
      %v763 = vld [vmem:[%s51 + $0xb18] sm:$0xff]
      %764 = vst [vmem:[%s52 + $0xb18] sm:$0xff] %v763
      %v765 = vld [vmem:[%s51 + $0xb20] sm:$0xff]
      %766 = vst [vmem:[%s52 + $0xb20] sm:$0xff] %v765
      %v767 = vld [vmem:[%s51 + $0xb28] sm:$0xff]
      %768 = vst [vmem:[%s52 + $0xb28] sm:$0xff] %v767
      %v769 = vld [vmem:[%s51 + $0xb30] sm:$0xff]
      %770 = vst [vmem:[%s52 + $0xb30] sm:$0xff] %v769
      %v771 = vld [vmem:[%s51 + $0xb38] sm:$0xff]
      %772 = vst [vmem:[%s52 + $0xb38] sm:$0xff] %v771
      %v773 = vld [vmem:[%s51 + $0xb40] sm:$0xff]
      %774 = vst [vmem:[%s52 + $0xb40] sm:$0xff] %v773
      %v775 = vld [vmem:[%s51 + $0xb48] sm:$0xff]
      %776 = vst [vmem:[%s52 + $0xb48] sm:$0xff] %v775
      %v777 = vld [vmem:[%s51 + $0xb50] sm:$0xff]
      %778 = vst [vmem:[%s52 + $0xb50] sm:$0xff] %v777
      %v779 = vld [vmem:[%s51 + $0xb58] sm:$0xff]
      %780 = vst [vmem:[%s52 + $0xb58] sm:$0xff] %v779
      %v781 = vld [vmem:[%s51 + $0xb60] sm:$0xff]
      %782 = vst [vmem:[%s52 + $0xb60] sm:$0xff] %v781
      %v783 = vld [vmem:[%s51 + $0xb68] sm:$0xff]
      %784 = vst [vmem:[%s52 + $0xb68] sm:$0xff] %v783
      %v785 = vld [vmem:[%s51 + $0xb70] sm:$0xff]
      %786 = vst [vmem:[%s52 + $0xb70] sm:$0xff] %v785
      %v787 = vld [vmem:[%s51 + $0xb78] sm:$0xff]
      %788 = vst [vmem:[%s52 + $0xb78] sm:$0xff] %v787
      %v789 = vld [vmem:[%s51 + $0xb80] sm:$0xff]
      %790 = vst [vmem:[%s52 + $0xb80] sm:$0xff] %v789
      %v791 = vld [vmem:[%s51 + $0xb88] sm:$0xff]
      %792 = vst [vmem:[%s52 + $0xb88] sm:$0xff] %v791
      %v793 = vld [vmem:[%s51 + $0xb90] sm:$0xff]
      %794 = vst [vmem:[%s52 + $0xb90] sm:$0xff] %v793
      %v795 = vld [vmem:[%s51 + $0xb98] sm:$0xff]
      %796 = vst [vmem:[%s52 + $0xb98] sm:$0xff] %v795
      %v797 = vld [vmem:[%s51 + $0xba0] sm:$0xff]
      %798 = vst [vmem:[%s52 + $0xba0] sm:$0xff] %v797
      %v799 = vld [vmem:[%s51 + $0xba8] sm:$0xff]
      %800 = vst [vmem:[%s52 + $0xba8] sm:$0xff] %v799
      %v801 = vld [vmem:[%s51 + $0xbb0] sm:$0xff]
      %802 = vst [vmem:[%s52 + $0xbb0] sm:$0xff] %v801
      %v803 = vld [vmem:[%s51 + $0xbb8] sm:$0xff]
      %804 = vst [vmem:[%s52 + $0xbb8] sm:$0xff] %v803
      %v805 = vld [vmem:[%s51 + $0xbc0] sm:$0xff]
      %806 = vst [vmem:[%s52 + $0xbc0] sm:$0xff] %v805
      %v807 = vld [vmem:[%s51 + $0xbc8] sm:$0xff]
      %808 = vst [vmem:[%s52 + $0xbc8] sm:$0xff] %v807
      %v809 = vld [vmem:[%s51 + $0xbd0] sm:$0xff]
      %810 = vst [vmem:[%s52 + $0xbd0] sm:$0xff] %v809
      %v811 = vld [vmem:[%s51 + $0xbd8] sm:$0xff]
      %812 = vst [vmem:[%s52 + $0xbd8] sm:$0xff] %v811
      %v813 = vld [vmem:[%s51 + $0xbe0] sm:$0xff]
      %814 = vst [vmem:[%s52 + $0xbe0] sm:$0xff] %v813
      %v815 = vld [vmem:[%s51 + $0xbe8] sm:$0xff]
      %816 = vst [vmem:[%s52 + $0xbe8] sm:$0xff] %v815
      %v817 = vld [vmem:[%s51 + $0xbf0] sm:$0xff]
      %818 = vst [vmem:[%s52 + $0xbf0] sm:$0xff] %v817
      %v819 = vld [vmem:[%s51 + $0xbf8] sm:$0xff]
      %820 = vst [vmem:[%s52 + $0xbf8] sm:$0xff] %v819
      %v821 = vld [vmem:[%s51 + $0xc00] sm:$0xff]
      %822 = vst [vmem:[%s52 + $0xc00] sm:$0xff] %v821
      %v823 = vld [vmem:[%s51 + $0xc08] sm:$0xff]
      %824 = vst [vmem:[%s52 + $0xc08] sm:$0xff] %v823
      %v825 = vld [vmem:[%s51 + $0xc10] sm:$0xff]
      %826 = vst [vmem:[%s52 + $0xc10] sm:$0xff] %v825
      %v827 = vld [vmem:[%s51 + $0xc18] sm:$0xff]
      %828 = vst [vmem:[%s52 + $0xc18] sm:$0xff] %v827
      %v829 = vld [vmem:[%s51 + $0xc20] sm:$0xff]
      %830 = vst [vmem:[%s52 + $0xc20] sm:$0xff] %v829
      %v831 = vld [vmem:[%s51 + $0xc28] sm:$0xff]
      %832 = vst [vmem:[%s52 + $0xc28] sm:$0xff] %v831
      %v833 = vld [vmem:[%s51 + $0xc30] sm:$0xff]
      %834 = vst [vmem:[%s52 + $0xc30] sm:$0xff] %v833
      %v835 = vld [vmem:[%s51 + $0xc38] sm:$0xff]
      %836 = vst [vmem:[%s52 + $0xc38] sm:$0xff] %v835
      %v837 = vld [vmem:[%s51 + $0xc40] sm:$0xff]
      %838 = vst [vmem:[%s52 + $0xc40] sm:$0xff] %v837
      %v839 = vld [vmem:[%s51 + $0xc48] sm:$0xff]
      %840 = vst [vmem:[%s52 + $0xc48] sm:$0xff] %v839
      %v841 = vld [vmem:[%s51 + $0xc50] sm:$0xff]
      %842 = vst [vmem:[%s52 + $0xc50] sm:$0xff] %v841
      %v843 = vld [vmem:[%s51 + $0xc58] sm:$0xff]
      %844 = vst [vmem:[%s52 + $0xc58] sm:$0xff] %v843
      %v845 = vld [vmem:[%s51 + $0xc60] sm:$0xff]
      %846 = vst [vmem:[%s52 + $0xc60] sm:$0xff] %v845
      %v847 = vld [vmem:[%s51 + $0xc68] sm:$0xff]
      %848 = vst [vmem:[%s52 + $0xc68] sm:$0xff] %v847
      %v849 = vld [vmem:[%s51 + $0xc70] sm:$0xff]
      %850 = vst [vmem:[%s52 + $0xc70] sm:$0xff] %v849
      %v851 = vld [vmem:[%s51 + $0xc78] sm:$0xff]
      %852 = vst [vmem:[%s52 + $0xc78] sm:$0xff] %v851
      %v853 = vld [vmem:[%s51 + $0xc80] sm:$0xff]
      %854 = vst [vmem:[%s52 + $0xc80] sm:$0xff] %v853
      %v855 = vld [vmem:[%s51 + $0xc88] sm:$0xff]
      %856 = vst [vmem:[%s52 + $0xc88] sm:$0xff] %v855
      %v857 = vld [vmem:[%s51 + $0xc90] sm:$0xff]
      %858 = vst [vmem:[%s52 + $0xc90] sm:$0xff] %v857
      %v859 = vld [vmem:[%s51 + $0xc98] sm:$0xff]
      %860 = vst [vmem:[%s52 + $0xc98] sm:$0xff] %v859
      %v861 = vld [vmem:[%s51 + $0xca0] sm:$0xff]
      %862 = vst [vmem:[%s52 + $0xca0] sm:$0xff] %v861
      %v863 = vld [vmem:[%s51 + $0xca8] sm:$0xff]
      %864 = vst [vmem:[%s52 + $0xca8] sm:$0xff] %v863
      %v865 = vld [vmem:[%s51 + $0xcb0] sm:$0xff]
      %866 = vst [vmem:[%s52 + $0xcb0] sm:$0xff] %v865
      %v867 = vld [vmem:[%s51 + $0xcb8] sm:$0xff]
      %868 = vst [vmem:[%s52 + $0xcb8] sm:$0xff] %v867
      %v869 = vld [vmem:[%s51 + $0xcc0] sm:$0xff]
      %870 = vst [vmem:[%s52 + $0xcc0] sm:$0xff] %v869
      %v871 = vld [vmem:[%s51 + $0xcc8] sm:$0xff]
      %872 = vst [vmem:[%s52 + $0xcc8] sm:$0xff] %v871
      %v873 = vld [vmem:[%s51 + $0xcd0] sm:$0xff]
      %874 = vst [vmem:[%s52 + $0xcd0] sm:$0xff] %v873
      %v875 = vld [vmem:[%s51 + $0xcd8] sm:$0xff]
      %876 = vst [vmem:[%s52 + $0xcd8] sm:$0xff] %v875
      %v877 = vld [vmem:[%s51 + $0xce0] sm:$0xff]
      %878 = vst [vmem:[%s52 + $0xce0] sm:$0xff] %v877
      %v879 = vld [vmem:[%s51 + $0xce8] sm:$0xff]
      %880 = vst [vmem:[%s52 + $0xce8] sm:$0xff] %v879
      %v881 = vld [vmem:[%s51 + $0xcf0] sm:$0xff]
      %882 = vst [vmem:[%s52 + $0xcf0] sm:$0xff] %v881
      %v883 = vld [vmem:[%s51 + $0xcf8] sm:$0xff]
      %884 = vst [vmem:[%s52 + $0xcf8] sm:$0xff] %v883
      %v885 = vld [vmem:[%s51 + $0xd00] sm:$0xff]
      %886 = vst [vmem:[%s52 + $0xd00] sm:$0xff] %v885
      %v887 = vld [vmem:[%s51 + $0xd08] sm:$0xff]
      %888 = vst [vmem:[%s52 + $0xd08] sm:$0xff] %v887
      %v889 = vld [vmem:[%s51 + $0xd10] sm:$0xff]
      %890 = vst [vmem:[%s52 + $0xd10] sm:$0xff] %v889
      %v891 = vld [vmem:[%s51 + $0xd18] sm:$0xff]
      %892 = vst [vmem:[%s52 + $0xd18] sm:$0xff] %v891
      %v893 = vld [vmem:[%s51 + $0xd20] sm:$0xff]
      %894 = vst [vmem:[%s52 + $0xd20] sm:$0xff] %v893
      %v895 = vld [vmem:[%s51 + $0xd28] sm:$0xff]
      %896 = vst [vmem:[%s52 + $0xd28] sm:$0xff] %v895
      %v897 = vld [vmem:[%s51 + $0xd30] sm:$0xff]
      %898 = vst [vmem:[%s52 + $0xd30] sm:$0xff] %v897
      %v899 = vld [vmem:[%s51 + $0xd38] sm:$0xff]
      %900 = vst [vmem:[%s52 + $0xd38] sm:$0xff] %v899
      %v901 = vld [vmem:[%s51 + $0xd40] sm:$0xff]
      %902 = vst [vmem:[%s52 + $0xd40] sm:$0xff] %v901
      %v903 = vld [vmem:[%s51 + $0xd48] sm:$0xff]
      %904 = vst [vmem:[%s52 + $0xd48] sm:$0xff] %v903
      %v905 = vld [vmem:[%s51 + $0xd50] sm:$0xff]
      %906 = vst [vmem:[%s52 + $0xd50] sm:$0xff] %v905
      %v907 = vld [vmem:[%s51 + $0xd58] sm:$0xff]
      %908 = vst [vmem:[%s52 + $0xd58] sm:$0xff] %v907
      %v909 = vld [vmem:[%s51 + $0xd60] sm:$0xff]
      %910 = vst [vmem:[%s52 + $0xd60] sm:$0xff] %v909
      %v911 = vld [vmem:[%s51 + $0xd68] sm:$0xff]
      %912 = vst [vmem:[%s52 + $0xd68] sm:$0xff] %v911
      %v913 = vld [vmem:[%s51 + $0xd70] sm:$0xff]
      %914 = vst [vmem:[%s52 + $0xd70] sm:$0xff] %v913
      %v915 = vld [vmem:[%s51 + $0xd78] sm:$0xff]
      %916 = vst [vmem:[%s52 + $0xd78] sm:$0xff] %v915
      %v917 = vld [vmem:[%s51 + $0xd80] sm:$0xff]
      %918 = vst [vmem:[%s52 + $0xd80] sm:$0xff] %v917
      %v919 = vld [vmem:[%s51 + $0xd88] sm:$0xff]
      %920 = vst [vmem:[%s52 + $0xd88] sm:$0xff] %v919
      %v921 = vld [vmem:[%s51 + $0xd90] sm:$0xff]
      %922 = vst [vmem:[%s52 + $0xd90] sm:$0xff] %v921
      %v923 = vld [vmem:[%s51 + $0xd98] sm:$0xff]
      %924 = vst [vmem:[%s52 + $0xd98] sm:$0xff] %v923
      %v925 = vld [vmem:[%s51 + $0xda0] sm:$0xff]
      %926 = vst [vmem:[%s52 + $0xda0] sm:$0xff] %v925
      %v927 = vld [vmem:[%s51 + $0xda8] sm:$0xff]
      %928 = vst [vmem:[%s52 + $0xda8] sm:$0xff] %v927
      %v929 = vld [vmem:[%s51 + $0xdb0] sm:$0xff]
      %930 = vst [vmem:[%s52 + $0xdb0] sm:$0xff] %v929
      %v931 = vld [vmem:[%s51 + $0xdb8] sm:$0xff]
      %932 = vst [vmem:[%s52 + $0xdb8] sm:$0xff] %v931
      %v933 = vld [vmem:[%s51 + $0xdc0] sm:$0xff]
      %934 = vst [vmem:[%s52 + $0xdc0] sm:$0xff] %v933
      %v935 = vld [vmem:[%s51 + $0xdc8] sm:$0xff]
      %936 = vst [vmem:[%s52 + $0xdc8] sm:$0xff] %v935
      %v937 = vld [vmem:[%s51 + $0xdd0] sm:$0xff]
      %938 = vst [vmem:[%s52 + $0xdd0] sm:$0xff] %v937
      %v939 = vld [vmem:[%s51 + $0xdd8] sm:$0xff]
      %940 = vst [vmem:[%s52 + $0xdd8] sm:$0xff] %v939
      %v941 = vld [vmem:[%s51 + $0xde0] sm:$0xff]
      %942 = vst [vmem:[%s52 + $0xde0] sm:$0xff] %v941
      %v943 = vld [vmem:[%s51 + $0xde8] sm:$0xff]
      %944 = vst [vmem:[%s52 + $0xde8] sm:$0xff] %v943
      %v945 = vld [vmem:[%s51 + $0xdf0] sm:$0xff]
      %946 = vst [vmem:[%s52 + $0xdf0] sm:$0xff] %v945
      %v947 = vld [vmem:[%s51 + $0xdf8] sm:$0xff]
      %948 = vst [vmem:[%s52 + $0xdf8] sm:$0xff] %v947
    $region58: #{fc3_forward.1} parent=52 // loop_footer
      %s50 = sadd.s32 1, %s46
    $region59: #{fc3_forward.1} parent=52 // loop_footer_branch
      %45 = sbr.rel target = $region55
    $region60: #{fc3_forward.1} parent=52 // loop_exit
      _
  $region53: #{fc3_forward.1} parent=0 // pred_fallthru
    _
  // Predicated region
  $region61: #{fc3_forward.1} parent=0 // pred_check
    _
  $region62: #{fc3_forward.1} parent=0 // pred_check_branch
    %950 = sbr.rel target = $region64
  $region63: #{fc3_forward.1} parent=0 // pred_region
    _
  $region64: #{fc3_forward.1} parent=0 // pred_fallthru
    _
  // Predicated region
  $region65: #{fc3_forward.1} parent=0 // pred_check
    _
  $region66: #{fc3_forward.1} parent=0 // pred_check_branch
    %953 = sbr.rel (0) target = $region68
  $region67: #{fc3_forward.1} parent=0 // pred_region
    %954 = vsyncadd [#allocation3], 57344
  $region68: #{fc3_forward.1} parent=0 // pred_fallthru
    _
  %v955 = vld [vmem:[%s0] sm:$0xff]
  %v956 = vld [vmem:[%s0 + $0x8] sm:$0xff]
  %v957 = vld [vmem:[%s0 + $0x10] sm:$0xff]
  %v958 = vld [vmem:[%s0 + $0x18] sm:$0xff]
  %v959 = vld [vmem:[%s0 + $0x20] sm:$0xff]
  %v960 = vld [vmem:[%s0 + $0x28] sm:$0xff]
  %v961 = vld [vmem:[%s0 + $0x30] sm:$0xff]
  %v962 = vld [vmem:[%s0 + $0x38] sm:$0xff]
  %v963 = vld [vmem:[%s0 + $0x40] sm:$0xff]
  %v964 = vld [vmem:[%s0 + $0x48] sm:$0xff]
  %v965 = vld [vmem:[%s0 + $0x50] sm:$0xff]
  %v966 = vld [vmem:[%s0 + $0x58] sm:$0xff]
  %v967 = vld [vmem:[%s0 + $0x60] sm:$0xff]
  %v968 = vld [vmem:[%s0 + $0x68] sm:$0xff]
  %v969 = vpack.c.bf16 %v962, %v955
  %v970 = vpack.c.bf16 %v963, %v956
  %v971 = vpack.c.bf16 %v964, %v957
  %v972 = vpack.c.bf16 %v965, %v958
  %v973 = vpack.c.bf16 %v966, %v959
  %v974 = vpack.c.bf16 %v967, %v960
  %v975 = vpack.c.bf16 %v968, %v961
  %v976 = vld [vmem:[%s1] sm:$0xff]
  %v977 = vld [vmem:[%s1 + $0x8] sm:$0xff]
  %v978 = vld [vmem:[%s1 + $0x10] sm:$0xff]
  %v979 = vld [vmem:[%s1 + $0x18] sm:$0xf]
  %v980 = vld [vmem:[%s1 + $0x1c] sm:$0xff]
  %v981 = vld [vmem:[%s1 + $0x24] sm:$0xff]
  %v982 = vld [vmem:[%s1 + $0x2c] sm:$0xff]
  %v983 = vld [vmem:[%s1 + $0x34] sm:$0xf]
  %v984 = vld [vmem:[%s1 + $0x38] sm:$0xff]
  %v985 = vld [vmem:[%s1 + $0x40] sm:$0xff]
  %v986 = vld [vmem:[%s1 + $0x48] sm:$0xff]
  %v987 = vld [vmem:[%s1 + $0x50] sm:$0xf]
  %v988 = vld [vmem:[%s1 + $0x54] sm:$0xff]
  %v989 = vld [vmem:[%s1 + $0x5c] sm:$0xff]
  %v990 = vld [vmem:[%s1 + $0x64] sm:$0xff]
  %v991 = vld [vmem:[%s1 + $0x6c] sm:$0xf]
  %v992 = vld [vmem:[%s1 + $0x70] sm:$0xff]
  %v993 = vld [vmem:[%s1 + $0x78] sm:$0xff]
  %v994 = vld [vmem:[%s1 + $0x80] sm:$0xff]
  %v995 = vld [vmem:[%s1 + $0x88] sm:$0xf]
  %v996 = vld [vmem:[%s1 + $0x8c] sm:$0xff]
  %v997 = vld [vmem:[%s1 + $0x94] sm:$0xff]
  %v998 = vld [vmem:[%s1 + $0x9c] sm:$0xff]
  %v999 = vld [vmem:[%s1 + $0xa4] sm:$0xf]
  %v1000 = vld [vmem:[%s1 + $0xa8] sm:$0xff]
  %v1001 = vld [vmem:[%s1 + $0xb0] sm:$0xff]
  %v1002 = vld [vmem:[%s1 + $0xb8] sm:$0xff]
  %v1003 = vld [vmem:[%s1 + $0xc0] sm:$0xf]
  %v1004 = vld [vmem:[%s1 + $0xc4] sm:$0xff]
  %v1005 = vld [vmem:[%s1 + $0xcc] sm:$0xff]
  %v1006 = vld [vmem:[%s1 + $0xd4] sm:$0xff]
  %v1007 = vld [vmem:[%s1 + $0xdc] sm:$0xf]
  %v1008 = vld [vmem:[%s1 + $0xe0] sm:$0xff]
  %v1009 = vld [vmem:[%s1 + $0xe8] sm:$0xff]
  %v1010 = vld [vmem:[%s1 + $0xf0] sm:$0xff]
  %v1011 = vld [vmem:[%s1 + $0xf8] sm:$0xf]
  %v1012 = vld [vmem:[%s1 + $0xfc] sm:$0xff]
  %v1013 = vld [vmem:[%s1 + $0x104] sm:$0xff]
  %v1014 = vld [vmem:[%s1 + $0x10c] sm:$0xff]
  %v1015 = vld [vmem:[%s1 + $0x114] sm:$0xf]
  %v1016 = vld [vmem:[%s1 + $0x118] sm:$0xff]
  %v1017 = vld [vmem:[%s1 + $0x120] sm:$0xff]
  %v1018 = vld [vmem:[%s1 + $0x128] sm:$0xff]
  %v1019 = vld [vmem:[%s1 + $0x130] sm:$0xf]
  %v1020 = vld [vmem:[%s1 + $0x134] sm:$0xff]
  %v1021 = vld [vmem:[%s1 + $0x13c] sm:$0xff]
  %v1022 = vld [vmem:[%s1 + $0x144] sm:$0xff]
  %v1023 = vld [vmem:[%s1 + $0x14c] sm:$0xf]
  %v1024 = vld [vmem:[%s1 + $0x150] sm:$0xff]
  %v1025 = vld [vmem:[%s1 + $0x158] sm:$0xff]
  %v1026 = vld [vmem:[%s1 + $0x160] sm:$0xff]
  %v1027 = vld [vmem:[%s1 + $0x168] sm:$0xf]
  %v1028 = vld [vmem:[%s1 + $0x16c] sm:$0xff]
  %v1029 = vld [vmem:[%s1 + $0x174] sm:$0xff]
  %v1030 = vld [vmem:[%s1 + $0x17c] sm:$0xff]
  %v1031 = vld [vmem:[%s1 + $0x184] sm:$0xf]
  %v1032 = vld [vmem:[%s1 + $0x188] sm:$0xff]
  %v1033 = vld [vmem:[%s1 + $0x190] sm:$0xff]
  %v1034 = vld [vmem:[%s1 + $0x198] sm:$0xff]
  %v1035 = vld [vmem:[%s1 + $0x1a0] sm:$0xf]
  %v1036 = vld [vmem:[%s1 + $0x1a4] sm:$0xff]
  %v1037 = vld [vmem:[%s1 + $0x1ac] sm:$0xff]
  %v1038 = vld [vmem:[%s1 + $0x1b4] sm:$0xff]
  %v1039 = vld [vmem:[%s1 + $0x1bc] sm:$0xf]
  %v1040 = vld [vmem:[%s1 + $0x1c0] sm:$0xff]
  %v1041 = vld [vmem:[%s1 + $0x1c8] sm:$0xff]
  %v1042 = vld [vmem:[%s1 + $0x1d0] sm:$0xff]
  %v1043 = vld [vmem:[%s1 + $0x1d8] sm:$0xf]
  %v1044 = vld [vmem:[%s1 + $0x1dc] sm:$0xff]
  %v1045 = vld [vmem:[%s1 + $0x1e4] sm:$0xff]
  %v1046 = vld [vmem:[%s1 + $0x1ec] sm:$0xff]
  %v1047 = vld [vmem:[%s1 + $0x1f4] sm:$0xf]
  %v1048 = vld [vmem:[%s1 + $0x1f8] sm:$0xff]
  %v1049 = vld [vmem:[%s1 + $0x200] sm:$0xff]
  %v1050 = vld [vmem:[%s1 + $0x208] sm:$0xff]
  %v1051 = vld [vmem:[%s1 + $0x210] sm:$0xf]
  %v1052 = vld [vmem:[%s1 + $0x214] sm:$0xff]
  %v1053 = vld [vmem:[%s1 + $0x21c] sm:$0xff]
  %v1054 = vld [vmem:[%s1 + $0x224] sm:$0xff]
  %v1055 = vld [vmem:[%s1 + $0x22c] sm:$0xf]
  %v1056 = vld [vmem:[%s1 + $0x230] sm:$0xff]
  %v1057 = vld [vmem:[%s1 + $0x238] sm:$0xff]
  %v1058 = vld [vmem:[%s1 + $0x240] sm:$0xff]
  %v1059 = vld [vmem:[%s1 + $0x248] sm:$0xf]
  %v1060 = vld [vmem:[%s1 + $0x24c] sm:$0xff]
  %v1061 = vld [vmem:[%s1 + $0x254] sm:$0xff]
  %v1062 = vld [vmem:[%s1 + $0x25c] sm:$0xff]
  %v1063 = vld [vmem:[%s1 + $0x264] sm:$0xf]
  %v1064 = vld [vmem:[%s1 + $0x268] sm:$0xff]
  %v1065 = vld [vmem:[%s1 + $0x270] sm:$0xff]
  %v1066 = vld [vmem:[%s1 + $0x278] sm:$0xff]
  %v1067 = vld [vmem:[%s1 + $0x280] sm:$0xf]
  %v1068 = vld [vmem:[%s1 + $0x284] sm:$0xff]
  %v1069 = vld [vmem:[%s1 + $0x28c] sm:$0xff]
  %v1070 = vld [vmem:[%s1 + $0x294] sm:$0xff]
  %v1071 = vld [vmem:[%s1 + $0x29c] sm:$0xf]
  %v1072 = vld [vmem:[%s1 + $0x2a0] sm:$0xff]
  %v1073 = vld [vmem:[%s1 + $0x2a8] sm:$0xff]
  %v1074 = vld [vmem:[%s1 + $0x2b0] sm:$0xff]
  %v1075 = vld [vmem:[%s1 + $0x2b8] sm:$0xf]
  %v1076 = vld [vmem:[%s1 + $0x2bc] sm:$0xff]
  %v1077 = vld [vmem:[%s1 + $0x2c4] sm:$0xff]
  %v1078 = vld [vmem:[%s1 + $0x2cc] sm:$0xff]
  %v1079 = vld [vmem:[%s1 + $0x2d4] sm:$0xf]
  %v1080 = vld [vmem:[%s1 + $0x2d8] sm:$0xff]
  %v1081 = vld [vmem:[%s1 + $0x2e0] sm:$0xff]
  %v1082 = vld [vmem:[%s1 + $0x2e8] sm:$0xff]
  %v1083 = vld [vmem:[%s1 + $0x2f0] sm:$0xf]
  %v1084 = vld [vmem:[%s1 + $0x2f4] sm:$0xff]
  %v1085 = vld [vmem:[%s1 + $0x2fc] sm:$0xff]
  %v1086 = vld [vmem:[%s1 + $0x304] sm:$0xff]
  %v1087 = vld [vmem:[%s1 + $0x30c] sm:$0xf]
  %v1088 = vld [vmem:[%s1 + $0x310] sm:$0xff]
  %v1089 = vld [vmem:[%s1 + $0x318] sm:$0xff]
  %v1090 = vld [vmem:[%s1 + $0x320] sm:$0xff]
  %v1091 = vld [vmem:[%s1 + $0x328] sm:$0xf]
  %v1092 = vld [vmem:[%s1 + $0x32c] sm:$0xff]
  %v1093 = vld [vmem:[%s1 + $0x334] sm:$0xff]
  %v1094 = vld [vmem:[%s1 + $0x33c] sm:$0xff]
  %v1095 = vld [vmem:[%s1 + $0x344] sm:$0xf]
  %v1096 = vld [vmem:[%s1 + $0x348] sm:$0xff]
  %v1097 = vld [vmem:[%s1 + $0x350] sm:$0xff]
  %v1098 = vld [vmem:[%s1 + $0x358] sm:$0xff]
  %v1099 = vld [vmem:[%s1 + $0x360] sm:$0xf]
  %v1100 = vld [vmem:[%s1 + $0x364] sm:$0xff]
  %v1101 = vld [vmem:[%s1 + $0x36c] sm:$0xff]
  %v1102 = vld [vmem:[%s1 + $0x374] sm:$0xff]
  %v1103 = vld [vmem:[%s1 + $0x37c] sm:$0xf]
  %v1104 = vld [vmem:[%s1 + $0x380] sm:$0xff]
  %v1105 = vld [vmem:[%s1 + $0x388] sm:$0xff]
  %v1106 = vld [vmem:[%s1 + $0x390] sm:$0xff]
  %v1107 = vld [vmem:[%s1 + $0x398] sm:$0xf]
  %v1108 = vld [vmem:[%s1 + $0x39c] sm:$0xff]
  %v1109 = vld [vmem:[%s1 + $0x3a4] sm:$0xff]
  %v1110 = vld [vmem:[%s1 + $0x3ac] sm:$0xff]
  %v1111 = vld [vmem:[%s1 + $0x3b4] sm:$0xf]
  %v1112 = vld [vmem:[%s1 + $0x3b8] sm:$0xff]
  %v1113 = vld [vmem:[%s1 + $0x3c0] sm:$0xff]
  %v1114 = vld [vmem:[%s1 + $0x3c8] sm:$0xff]
  %v1115 = vld [vmem:[%s1 + $0x3d0] sm:$0xf]
  %v1116 = vld [vmem:[%s1 + $0x3d4] sm:$0xff]
  %v1117 = vld [vmem:[%s1 + $0x3dc] sm:$0xff]
  %v1118 = vld [vmem:[%s1 + $0x3e4] sm:$0xff]
  %v1119 = vld [vmem:[%s1 + $0x3ec] sm:$0xf]
  %v1120 = vld [vmem:[%s1 + $0x3f0] sm:$0xff]
  %v1121 = vld [vmem:[%s1 + $0x3f8] sm:$0xff]
  %v1122 = vld [vmem:[%s1 + $0x400] sm:$0xff]
  %v1123 = vld [vmem:[%s1 + $0x408] sm:$0xf]
  %v1124 = vld [vmem:[%s1 + $0x40c] sm:$0xff]
  %v1125 = vld [vmem:[%s1 + $0x414] sm:$0xff]
  %v1126 = vld [vmem:[%s1 + $0x41c] sm:$0xff]
  %v1127 = vld [vmem:[%s1 + $0x424] sm:$0xf]
  %v1128 = vld [vmem:[%s1 + $0x428] sm:$0xff]
  %v1129 = vld [vmem:[%s1 + $0x430] sm:$0xff]
  %v1130 = vld [vmem:[%s1 + $0x438] sm:$0xff]
  %v1131 = vld [vmem:[%s1 + $0x440] sm:$0xf]
  %v1132 = vld [vmem:[%s1 + $0x444] sm:$0xff]
  %v1133 = vld [vmem:[%s1 + $0x44c] sm:$0xff]
  %v1134 = vld [vmem:[%s1 + $0x454] sm:$0xff]
  %v1135 = vld [vmem:[%s1 + $0x45c] sm:$0xf]
  %v1136 = vld [vmem:[%s1 + $0x460] sm:$0xff]
  %v1137 = vld [vmem:[%s1 + $0x468] sm:$0xff]
  %v1138 = vld [vmem:[%s1 + $0x470] sm:$0xff]
  %v1139 = vld [vmem:[%s1 + $0x478] sm:$0xf]
  %v1140 = vld [vmem:[%s1 + $0x47c] sm:$0xff]
  %v1141 = vld [vmem:[%s1 + $0x484] sm:$0xff]
  %v1142 = vld [vmem:[%s1 + $0x48c] sm:$0xff]
  %v1143 = vld [vmem:[%s1 + $0x494] sm:$0xf]
  %v1144 = vld [vmem:[%s1 + $0x498] sm:$0xff]
  %v1145 = vld [vmem:[%s1 + $0x4a0] sm:$0xff]
  %v1146 = vld [vmem:[%s1 + $0x4a8] sm:$0xff]
  %v1147 = vld [vmem:[%s1 + $0x4b0] sm:$0xf]
  %v1148 = vld [vmem:[%s1 + $0x4b4] sm:$0xff]
  %v1149 = vld [vmem:[%s1 + $0x4bc] sm:$0xff]
  %v1150 = vld [vmem:[%s1 + $0x4c4] sm:$0xff]
  %v1151 = vld [vmem:[%s1 + $0x4cc] sm:$0xf]
  %v1152 = vld [vmem:[%s1 + $0x4d0] sm:$0xff]
  %v1153 = vld [vmem:[%s1 + $0x4d8] sm:$0xff]
  %v1154 = vld [vmem:[%s1 + $0x4e0] sm:$0xff]
  %v1155 = vld [vmem:[%s1 + $0x4e8] sm:$0xf]
  %v1156 = vld [vmem:[%s1 + $0x4ec] sm:$0xff]
  %v1157 = vld [vmem:[%s1 + $0x4f4] sm:$0xff]
  %v1158 = vld [vmem:[%s1 + $0x4fc] sm:$0xff]
  %v1159 = vld [vmem:[%s1 + $0x504] sm:$0xf]
  %v1160 = vld [vmem:[%s1 + $0x508] sm:$0xff]
  %v1161 = vld [vmem:[%s1 + $0x510] sm:$0xff]
  %v1162 = vld [vmem:[%s1 + $0x518] sm:$0xff]
  %v1163 = vld [vmem:[%s1 + $0x520] sm:$0xf]
  %v1164 = vld [vmem:[%s1 + $0x524] sm:$0xff]
  %v1165 = vld [vmem:[%s1 + $0x52c] sm:$0xff]
  %v1166 = vld [vmem:[%s1 + $0x534] sm:$0xff]
  %v1167 = vld [vmem:[%s1 + $0x53c] sm:$0xf]
  %v1168 = vld [vmem:[%s1 + $0x540] sm:$0xff]
  %v1169 = vld [vmem:[%s1 + $0x548] sm:$0xff]
  %v1170 = vld [vmem:[%s1 + $0x550] sm:$0xff]
  %v1171 = vld [vmem:[%s1 + $0x558] sm:$0xf]
  %v1172 = vld [vmem:[%s1 + $0x55c] sm:$0xff]
  %v1173 = vld [vmem:[%s1 + $0x564] sm:$0xff]
  %v1174 = vld [vmem:[%s1 + $0x56c] sm:$0xff]
  %v1175 = vld [vmem:[%s1 + $0x574] sm:$0xf]
  %v1176 = vld [vmem:[%s1 + $0x578] sm:$0xff]
  %v1177 = vld [vmem:[%s1 + $0x580] sm:$0xff]
  %v1178 = vld [vmem:[%s1 + $0x588] sm:$0xff]
  %v1179 = vld [vmem:[%s1 + $0x590] sm:$0xf]
  %v1180 = vld [vmem:[%s1 + $0x594] sm:$0xff]
  %v1181 = vld [vmem:[%s1 + $0x59c] sm:$0xff]
  %v1182 = vld [vmem:[%s1 + $0x5a4] sm:$0xff]
  %v1183 = vld [vmem:[%s1 + $0x5ac] sm:$0xf]
  %v1184 = vld [vmem:[%s1 + $0x5b0] sm:$0xff]
  %v1185 = vld [vmem:[%s1 + $0x5b8] sm:$0xff]
  %v1186 = vld [vmem:[%s1 + $0x5c0] sm:$0xff]
  %v1187 = vld [vmem:[%s1 + $0x5c8] sm:$0xf]
  %v1188 = vld [vmem:[%s1 + $0x5cc] sm:$0xff]
  %v1189 = vld [vmem:[%s1 + $0x5d4] sm:$0xff]
  %v1190 = vld [vmem:[%s1 + $0x5dc] sm:$0xff]
  %v1191 = vld [vmem:[%s1 + $0x5e4] sm:$0xf]
  %v1192 = vld [vmem:[%s1 + $0x5e8] sm:$0xff]
  %v1193 = vld [vmem:[%s1 + $0x5f0] sm:$0xff]
  %v1194 = vld [vmem:[%s1 + $0x5f8] sm:$0xff]
  %v1195 = vld [vmem:[%s1 + $0x600] sm:$0xf]
  %v1196 = vld [vmem:[%s1 + $0x604] sm:$0xff]
  %v1197 = vld [vmem:[%s1 + $0x60c] sm:$0xff]
  %v1198 = vld [vmem:[%s1 + $0x614] sm:$0xff]
  %v1199 = vld [vmem:[%s1 + $0x61c] sm:$0xf]
  %v1200 = vld [vmem:[%s1 + $0x620] sm:$0xff]
  %v1201 = vld [vmem:[%s1 + $0x628] sm:$0xff]
  %v1202 = vld [vmem:[%s1 + $0x630] sm:$0xff]
  %v1203 = vld [vmem:[%s1 + $0x638] sm:$0xf]
  %v1204 = vld [vmem:[%s1 + $0x63c] sm:$0xff]
  %v1205 = vld [vmem:[%s1 + $0x644] sm:$0xff]
  %v1206 = vld [vmem:[%s1 + $0x64c] sm:$0xff]
  %v1207 = vld [vmem:[%s1 + $0x654] sm:$0xf]
  %v1208 = vld [vmem:[%s1 + $0x658] sm:$0xff]
  %v1209 = vld [vmem:[%s1 + $0x660] sm:$0xff]
  %v1210 = vld [vmem:[%s1 + $0x668] sm:$0xff]
  %v1211 = vld [vmem:[%s1 + $0x670] sm:$0xf]
  %v1212 = vld [vmem:[%s1 + $0x674] sm:$0xff]
  %v1213 = vld [vmem:[%s1 + $0x67c] sm:$0xff]
  %v1214 = vld [vmem:[%s1 + $0x684] sm:$0xff]
  %v1215 = vld [vmem:[%s1 + $0x68c] sm:$0xf]
  %v1216 = vld [vmem:[%s1 + $0x690] sm:$0xff]
  %v1217 = vld [vmem:[%s1 + $0x698] sm:$0xff]
  %v1218 = vld [vmem:[%s1 + $0x6a0] sm:$0xff]
  %v1219 = vld [vmem:[%s1 + $0x6a8] sm:$0xf]
  %v1220 = vld [vmem:[%s1 + $0x6ac] sm:$0xff]
  %v1221 = vld [vmem:[%s1 + $0x6b4] sm:$0xff]
  %v1222 = vld [vmem:[%s1 + $0x6bc] sm:$0xff]
  %v1223 = vld [vmem:[%s1 + $0x6c4] sm:$0xf]
  %v1224 = vld [vmem:[%s1 + $0x6c8] sm:$0xff]
  %v1225 = vld [vmem:[%s1 + $0x6d0] sm:$0xff]
  %v1226 = vld [vmem:[%s1 + $0x6d8] sm:$0xff]
  %v1227 = vld [vmem:[%s1 + $0x6e0] sm:$0xf]
  %v1228 = vld [vmem:[%s1 + $0x6e4] sm:$0xff]
  %v1229 = vld [vmem:[%s1 + $0x6ec] sm:$0xff]
  %v1230 = vld [vmem:[%s1 + $0x6f4] sm:$0xff]
  %v1231 = vld [vmem:[%s1 + $0x6fc] sm:$0xf]
  %v1232 = vld [vmem:[%s1 + $0x700] sm:$0xff]
  %v1233 = vld [vmem:[%s1 + $0x708] sm:$0xff]
  %v1234 = vld [vmem:[%s1 + $0x710] sm:$0xff]
  %v1235 = vld [vmem:[%s1 + $0x718] sm:$0xf]
  %v1236 = vld [vmem:[%s1 + $0x71c] sm:$0xff]
  %v1237 = vld [vmem:[%s1 + $0x724] sm:$0xff]
  %v1238 = vld [vmem:[%s1 + $0x72c] sm:$0xff]
  %v1239 = vld [vmem:[%s1 + $0x734] sm:$0xf]
  %v1240 = vld [vmem:[%s1 + $0x738] sm:$0xff]
  %v1241 = vld [vmem:[%s1 + $0x740] sm:$0xff]
  %v1242 = vld [vmem:[%s1 + $0x748] sm:$0xff]
  %v1243 = vld [vmem:[%s1 + $0x750] sm:$0xf]
  %v1244 = vld [vmem:[%s1 + $0x754] sm:$0xff]
  %v1245 = vld [vmem:[%s1 + $0x75c] sm:$0xff]
  %v1246 = vld [vmem:[%s1 + $0x764] sm:$0xff]
  %v1247 = vld [vmem:[%s1 + $0x76c] sm:$0xf]
  %v1248 = vld [vmem:[%s1 + $0x770] sm:$0xff]
  %v1249 = vld [vmem:[%s1 + $0x778] sm:$0xff]
  %v1250 = vld [vmem:[%s1 + $0x780] sm:$0xff]
  %v1251 = vld [vmem:[%s1 + $0x788] sm:$0xf]
  %v1252 = vld [vmem:[%s1 + $0x78c] sm:$0xff]
  %v1253 = vld [vmem:[%s1 + $0x794] sm:$0xff]
  %v1254 = vld [vmem:[%s1 + $0x79c] sm:$0xff]
  %v1255 = vld [vmem:[%s1 + $0x7a4] sm:$0xf]
  %v1256 = vld [vmem:[%s1 + $0x7a8] sm:$0xff]
  %v1257 = vld [vmem:[%s1 + $0x7b0] sm:$0xff]
  %v1258 = vld [vmem:[%s1 + $0x7b8] sm:$0xff]
  %v1259 = vld [vmem:[%s1 + $0x7c0] sm:$0xf]
  %v1260 = vld [vmem:[%s1 + $0x7c4] sm:$0xff]
  %v1261 = vld [vmem:[%s1 + $0x7cc] sm:$0xff]
  %v1262 = vld [vmem:[%s1 + $0x7d4] sm:$0xff]
  %v1263 = vld [vmem:[%s1 + $0x7dc] sm:$0xf]
  %v1264 = vld [vmem:[%s1 + $0x7e0] sm:$0xff]
  %v1265 = vld [vmem:[%s1 + $0x7e8] sm:$0xff]
  %v1266 = vld [vmem:[%s1 + $0x7f0] sm:$0xff]
  %v1267 = vld [vmem:[%s1 + $0x7f8] sm:$0xf]
  %v1268 = vld [vmem:[%s1 + $0x7fc] sm:$0xff]
  %v1269 = vld [vmem:[%s1 + $0x804] sm:$0xff]
  %v1270 = vld [vmem:[%s1 + $0x80c] sm:$0xff]
  %v1271 = vld [vmem:[%s1 + $0x814] sm:$0xf]
  %v1272 = vld [vmem:[%s1 + $0x818] sm:$0xff]
  %v1273 = vld [vmem:[%s1 + $0x820] sm:$0xff]
  %v1274 = vld [vmem:[%s1 + $0x828] sm:$0xff]
  %v1275 = vld [vmem:[%s1 + $0x830] sm:$0xf]
  %v1276 = vld [vmem:[%s1 + $0x834] sm:$0xff]
  %v1277 = vld [vmem:[%s1 + $0x83c] sm:$0xff]
  %v1278 = vld [vmem:[%s1 + $0x844] sm:$0xff]
  %v1279 = vld [vmem:[%s1 + $0x84c] sm:$0xf]
  %v1280 = vld [vmem:[%s1 + $0x850] sm:$0xff]
  %v1281 = vld [vmem:[%s1 + $0x858] sm:$0xff]
  %v1282 = vld [vmem:[%s1 + $0x860] sm:$0xff]
  %v1283 = vld [vmem:[%s1 + $0x868] sm:$0xf]
  %v1284 = vld [vmem:[%s1 + $0x86c] sm:$0xff]
  %v1285 = vld [vmem:[%s1 + $0x874] sm:$0xff]
  %v1286 = vld [vmem:[%s1 + $0x87c] sm:$0xff]
  %v1287 = vld [vmem:[%s1 + $0x884] sm:$0xf]
  %v1288 = vld [vmem:[%s1 + $0x888] sm:$0xff]
  %v1289 = vld [vmem:[%s1 + $0x890] sm:$0xff]
  %v1290 = vld [vmem:[%s1 + $0x898] sm:$0xff]
  %v1291 = vld [vmem:[%s1 + $0x8a0] sm:$0xf]
  %v1292 = vld [vmem:[%s1 + $0x8a4] sm:$0xff]
  %v1293 = vld [vmem:[%s1 + $0x8ac] sm:$0xff]
  %v1294 = vld [vmem:[%s1 + $0x8b4] sm:$0xff]
  %v1295 = vld [vmem:[%s1 + $0x8bc] sm:$0xf]
  %v1296 = vld [vmem:[%s1 + $0x8c0] sm:$0xff]
  %v1297 = vld [vmem:[%s1 + $0x8c8] sm:$0xff]
  %v1298 = vld [vmem:[%s1 + $0x8d0] sm:$0xff]
  %v1299 = vld [vmem:[%s1 + $0x8d8] sm:$0xf]
  %v1300 = vld [vmem:[%s1 + $0x8dc] sm:$0xff]
  %v1301 = vld [vmem:[%s1 + $0x8e4] sm:$0xff]
  %v1302 = vld [vmem:[%s1 + $0x8ec] sm:$0xff]
  %v1303 = vld [vmem:[%s1 + $0x8f4] sm:$0xf]
  %v1304 = vld [vmem:[%s1 + $0x8f8] sm:$0xff]
  %v1305 = vld [vmem:[%s1 + $0x900] sm:$0xff]
  %v1306 = vld [vmem:[%s1 + $0x908] sm:$0xff]
  %v1307 = vld [vmem:[%s1 + $0x910] sm:$0xf]
  %v1308 = vld [vmem:[%s1 + $0x914] sm:$0xff]
  %v1309 = vld [vmem:[%s1 + $0x91c] sm:$0xff]
  %v1310 = vld [vmem:[%s1 + $0x924] sm:$0xff]
  %v1311 = vld [vmem:[%s1 + $0x92c] sm:$0xf]
  %v1312 = vld [vmem:[%s1 + $0x930] sm:$0xff]
  %v1313 = vld [vmem:[%s1 + $0x938] sm:$0xff]
  %v1314 = vld [vmem:[%s1 + $0x940] sm:$0xff]
  %v1315 = vld [vmem:[%s1 + $0x948] sm:$0xf]
  %v1316 = vld [vmem:[%s1 + $0x94c] sm:$0xff]
  %v1317 = vld [vmem:[%s1 + $0x954] sm:$0xff]
  %v1318 = vld [vmem:[%s1 + $0x95c] sm:$0xff]
  %v1319 = vld [vmem:[%s1 + $0x964] sm:$0xf]
  %v1320 = vld [vmem:[%s1 + $0x968] sm:$0xff]
  %v1321 = vld [vmem:[%s1 + $0x970] sm:$0xff]
  %v1322 = vld [vmem:[%s1 + $0x978] sm:$0xff]
  %v1323 = vld [vmem:[%s1 + $0x980] sm:$0xf]
  %v1324 = vld [vmem:[%s1 + $0x984] sm:$0xff]
  %v1325 = vld [vmem:[%s1 + $0x98c] sm:$0xff]
  %v1326 = vld [vmem:[%s1 + $0x994] sm:$0xff]
  %v1327 = vld [vmem:[%s1 + $0x99c] sm:$0xf]
  %v1328 = vld [vmem:[%s1 + $0x9a0] sm:$0xff]
  %v1329 = vld [vmem:[%s1 + $0x9a8] sm:$0xff]
  %v1330 = vld [vmem:[%s1 + $0x9b0] sm:$0xff]
  %v1331 = vld [vmem:[%s1 + $0x9b8] sm:$0xf]
  %v1332 = vld [vmem:[%s1 + $0x9bc] sm:$0xff]
  %v1333 = vld [vmem:[%s1 + $0x9c4] sm:$0xff]
  %v1334 = vld [vmem:[%s1 + $0x9cc] sm:$0xff]
  %v1335 = vld [vmem:[%s1 + $0x9d4] sm:$0xf]
  %v1336 = vld [vmem:[%s1 + $0x9d8] sm:$0xff]
  %v1337 = vld [vmem:[%s1 + $0x9e0] sm:$0xff]
  %v1338 = vld [vmem:[%s1 + $0x9e8] sm:$0xff]
  %v1339 = vld [vmem:[%s1 + $0x9f0] sm:$0xf]
  %v1340 = vld [vmem:[%s1 + $0x9f4] sm:$0xff]
  %v1341 = vld [vmem:[%s1 + $0x9fc] sm:$0xff]
  %v1342 = vld [vmem:[%s1 + $0xa04] sm:$0xff]
  %v1343 = vld [vmem:[%s1 + $0xa0c] sm:$0xf]
  %v1344 = vld [vmem:[%s1 + $0xa10] sm:$0xff]
  %v1345 = vld [vmem:[%s1 + $0xa18] sm:$0xff]
  %v1346 = vld [vmem:[%s1 + $0xa20] sm:$0xff]
  %v1347 = vld [vmem:[%s1 + $0xa28] sm:$0xf]
  %v1348 = vld [vmem:[%s1 + $0xa2c] sm:$0xff]
  %v1349 = vld [vmem:[%s1 + $0xa34] sm:$0xff]
  %v1350 = vld [vmem:[%s1 + $0xa3c] sm:$0xff]
  %v1351 = vld [vmem:[%s1 + $0xa44] sm:$0xf]
  %v1352 = vld [vmem:[%s1 + $0xa48] sm:$0xff]
  %v1353 = vld [vmem:[%s1 + $0xa50] sm:$0xff]
  %v1354 = vld [vmem:[%s1 + $0xa58] sm:$0xff]
  %v1355 = vld [vmem:[%s1 + $0xa60] sm:$0xf]
  %v1356 = vld [vmem:[%s1 + $0xa64] sm:$0xff]
  %v1357 = vld [vmem:[%s1 + $0xa6c] sm:$0xff]
  %v1358 = vld [vmem:[%s1 + $0xa74] sm:$0xff]
  %v1359 = vld [vmem:[%s1 + $0xa7c] sm:$0xf]
  %v1360 = vld [vmem:[%s1 + $0xa80] sm:$0xff]
  %v1361 = vld [vmem:[%s1 + $0xa88] sm:$0xff]
  %v1362 = vld [vmem:[%s1 + $0xa90] sm:$0xff]
  %v1363 = vld [vmem:[%s1 + $0xa98] sm:$0xf]
  %v1364 = vld [vmem:[%s1 + $0xa9c] sm:$0xff]
  %v1365 = vld [vmem:[%s1 + $0xaa4] sm:$0xff]
  %v1366 = vld [vmem:[%s1 + $0xaac] sm:$0xff]
  %v1367 = vld [vmem:[%s1 + $0xab4] sm:$0xf]
  %v1368 = vld [vmem:[%s2] sm:$0xff]
  %v1370 = vperm.slane %v1368, 0
  %v1371 = vperm.slane %v1368, 1
  %v1372 = vperm.slane %v1368, 2
  %v1373 = vperm.slane %v1368, 3
  %v1374 = vperm.slane %v1368, 4
  %v1375 = vperm.slane %v1368, 5
  %v1376 = vperm.slane %v1368, 6
  %v1776 = vunpack.c.l.b16 %v976
  %v1777 = vunpack.c.h.b16 %v976
  %v1778 = vunpack.c.l.b16 %v977
  %v1779 = vunpack.c.h.b16 %v977
  %v1780 = vunpack.c.l.b16 %v978
  %v1781 = vunpack.c.h.b16 %v978
  %v1782 = vunpack.c.l.b16 %v979
  %v1783 = vunpack.c.l.b16 %v980
  %v1784 = vunpack.c.h.b16 %v980
  %v1785 = vunpack.c.l.b16 %v981
  %v1786 = vunpack.c.h.b16 %v981
  %v1787 = vunpack.c.l.b16 %v982
  %v1788 = vunpack.c.h.b16 %v982
  %v1789 = vunpack.c.l.b16 %v983
  %v1790 = vunpack.c.l.b16 %v984
  %v1791 = vunpack.c.h.b16 %v984
  %v1792 = vunpack.c.l.b16 %v985
  %v1793 = vunpack.c.h.b16 %v985
  %v1794 = vunpack.c.l.b16 %v986
  %v1795 = vunpack.c.h.b16 %v986
  %v1796 = vunpack.c.l.b16 %v987
  %v1797 = vunpack.c.l.b16 %v988
  %v1798 = vunpack.c.h.b16 %v988
  %v1799 = vunpack.c.l.b16 %v989
  %v1800 = vunpack.c.h.b16 %v989
  %v1801 = vunpack.c.l.b16 %v990
  %v1802 = vunpack.c.h.b16 %v990
  %v1803 = vunpack.c.l.b16 %v991
  %v1804 = vunpack.c.l.b16 %v992
  %v1805 = vunpack.c.h.b16 %v992
  %v1806 = vunpack.c.l.b16 %v993
  %v1807 = vunpack.c.h.b16 %v993
  %v1808 = vunpack.c.l.b16 %v994
  %v1809 = vunpack.c.h.b16 %v994
  %v1810 = vunpack.c.l.b16 %v995
  %v1811 = vunpack.c.l.b16 %v996
  %v1812 = vunpack.c.h.b16 %v996
  %v1813 = vunpack.c.l.b16 %v997
  %v1814 = vunpack.c.h.b16 %v997
  %v1815 = vunpack.c.l.b16 %v998
  %v1816 = vunpack.c.h.b16 %v998
  %v1817 = vunpack.c.l.b16 %v999
  %v1818 = vunpack.c.l.b16 %v1000
  %v1819 = vunpack.c.h.b16 %v1000
  %v1820 = vunpack.c.l.b16 %v1001
  %v1821 = vunpack.c.h.b16 %v1001
  %v1822 = vunpack.c.l.b16 %v1002
  %v1823 = vunpack.c.h.b16 %v1002
  %v1824 = vunpack.c.l.b16 %v1003
  %v1825 = vunpack.c.l.b16 %v1004
  %v1826 = vunpack.c.h.b16 %v1004
  %v1827 = vunpack.c.l.b16 %v1005
  %v1828 = vunpack.c.h.b16 %v1005
  %v1829 = vunpack.c.l.b16 %v1006
  %v1830 = vunpack.c.h.b16 %v1006
  %v1831 = vunpack.c.l.b16 %v1007
  %v1832 = vunpack.c.l.b16 %v1008
  %v1833 = vunpack.c.h.b16 %v1008
  %v1834 = vunpack.c.l.b16 %v1009
  %v1835 = vunpack.c.h.b16 %v1009
  %v1836 = vunpack.c.l.b16 %v1010
  %v1837 = vunpack.c.h.b16 %v1010
  %v1838 = vunpack.c.l.b16 %v1011
  %v1839 = vunpack.c.l.b16 %v1012
  %v1840 = vunpack.c.h.b16 %v1012
  %v1841 = vunpack.c.l.b16 %v1013
  %v1842 = vunpack.c.h.b16 %v1013
  %v1843 = vunpack.c.l.b16 %v1014
  %v1844 = vunpack.c.h.b16 %v1014
  %v1845 = vunpack.c.l.b16 %v1015
  %v1846 = vunpack.c.l.b16 %v1016
  %v1847 = vunpack.c.h.b16 %v1016
  %v1848 = vunpack.c.l.b16 %v1017
  %v1849 = vunpack.c.h.b16 %v1017
  %v1850 = vunpack.c.l.b16 %v1018
  %v1851 = vunpack.c.h.b16 %v1018
  %v1852 = vunpack.c.l.b16 %v1019
  %v1853 = vunpack.c.l.b16 %v1020
  %v1854 = vunpack.c.h.b16 %v1020
  %v1855 = vunpack.c.l.b16 %v1021
  %v1856 = vunpack.c.h.b16 %v1021
  %v1857 = vunpack.c.l.b16 %v1022
  %v1858 = vunpack.c.h.b16 %v1022
  %v1859 = vunpack.c.l.b16 %v1023
  %v1860 = vunpack.c.l.b16 %v1024
  %v1861 = vunpack.c.h.b16 %v1024
  %v1862 = vunpack.c.l.b16 %v1025
  %v1863 = vunpack.c.h.b16 %v1025
  %v1864 = vunpack.c.l.b16 %v1026
  %v1865 = vunpack.c.h.b16 %v1026
  %v1866 = vunpack.c.l.b16 %v1027
  %v1867 = vunpack.c.l.b16 %v1028
  %v1868 = vunpack.c.h.b16 %v1028
  %v1869 = vunpack.c.l.b16 %v1029
  %v1870 = vunpack.c.h.b16 %v1029
  %v1871 = vunpack.c.l.b16 %v1030
  %v1872 = vunpack.c.h.b16 %v1030
  %v1873 = vunpack.c.l.b16 %v1031
  %v1874 = vunpack.c.l.b16 %v1032
  %v1875 = vunpack.c.h.b16 %v1032
  %v1876 = vunpack.c.l.b16 %v1033
  %v1877 = vunpack.c.h.b16 %v1033
  %v1878 = vunpack.c.l.b16 %v1034
  %v1879 = vunpack.c.h.b16 %v1034
  %v1880 = vunpack.c.l.b16 %v1035
  %v1881 = vunpack.c.l.b16 %v1036
  %v1882 = vunpack.c.h.b16 %v1036
  %v1883 = vunpack.c.l.b16 %v1037
  %v1884 = vunpack.c.h.b16 %v1037
  %v1885 = vunpack.c.l.b16 %v1038
  %v1886 = vunpack.c.h.b16 %v1038
  %v1887 = vunpack.c.l.b16 %v1039
  %v1888 = vunpack.c.l.b16 %v1040
  %v1889 = vunpack.c.h.b16 %v1040
  %v1890 = vunpack.c.l.b16 %v1041
  %v1891 = vunpack.c.h.b16 %v1041
  %v1892 = vunpack.c.l.b16 %v1042
  %v1893 = vunpack.c.h.b16 %v1042
  %v1894 = vunpack.c.l.b16 %v1043
  %v1895 = vunpack.c.l.b16 %v1044
  %v1896 = vunpack.c.h.b16 %v1044
  %v1897 = vunpack.c.l.b16 %v1045
  %v1898 = vunpack.c.h.b16 %v1045
  %v1899 = vunpack.c.l.b16 %v1046
  %v1900 = vunpack.c.h.b16 %v1046
  %v1901 = vunpack.c.l.b16 %v1047
  %v1902 = vunpack.c.l.b16 %v1048
  %v1903 = vunpack.c.h.b16 %v1048
  %v1904 = vunpack.c.l.b16 %v1049
  %v1905 = vunpack.c.h.b16 %v1049
  %v1906 = vunpack.c.l.b16 %v1050
  %v1907 = vunpack.c.h.b16 %v1050
  %v1908 = vunpack.c.l.b16 %v1051
  %v1909 = vunpack.c.l.b16 %v1052
  %v1910 = vunpack.c.h.b16 %v1052
  %v1911 = vunpack.c.l.b16 %v1053
  %v1912 = vunpack.c.h.b16 %v1053
  %v1913 = vunpack.c.l.b16 %v1054
  %v1914 = vunpack.c.h.b16 %v1054
  %v1915 = vunpack.c.l.b16 %v1055
  %v1916 = vunpack.c.l.b16 %v1056
  %v1917 = vunpack.c.h.b16 %v1056
  %v1918 = vunpack.c.l.b16 %v1057
  %v1919 = vunpack.c.h.b16 %v1057
  %v1920 = vunpack.c.l.b16 %v1058
  %v1921 = vunpack.c.h.b16 %v1058
  %v1922 = vunpack.c.l.b16 %v1059
  %v1923 = vunpack.c.l.b16 %v1060
  %v1924 = vunpack.c.h.b16 %v1060
  %v1925 = vunpack.c.l.b16 %v1061
  %v1926 = vunpack.c.h.b16 %v1061
  %v1927 = vunpack.c.l.b16 %v1062
  %v1928 = vunpack.c.h.b16 %v1062
  %v1929 = vunpack.c.l.b16 %v1063
  %v1930 = vunpack.c.l.b16 %v1064
  %v1931 = vunpack.c.h.b16 %v1064
  %v1932 = vunpack.c.l.b16 %v1065
  %v1933 = vunpack.c.h.b16 %v1065
  %v1934 = vunpack.c.l.b16 %v1066
  %v1935 = vunpack.c.h.b16 %v1066
  %v1936 = vunpack.c.l.b16 %v1067
  %v1937 = vunpack.c.l.b16 %v1068
  %v1938 = vunpack.c.h.b16 %v1068
  %v1939 = vunpack.c.l.b16 %v1069
  %v1940 = vunpack.c.h.b16 %v1069
  %v1941 = vunpack.c.l.b16 %v1070
  %v1942 = vunpack.c.h.b16 %v1070
  %v1943 = vunpack.c.l.b16 %v1071
  %v1944 = vunpack.c.l.b16 %v1072
  %v1945 = vunpack.c.h.b16 %v1072
  %v1946 = vunpack.c.l.b16 %v1073
  %v1947 = vunpack.c.h.b16 %v1073
  %v1948 = vunpack.c.l.b16 %v1074
  %v1949 = vunpack.c.h.b16 %v1074
  %v1950 = vunpack.c.l.b16 %v1075
  %v1951 = vunpack.c.l.b16 %v1076
  %v1952 = vunpack.c.h.b16 %v1076
  %v1953 = vunpack.c.l.b16 %v1077
  %v1954 = vunpack.c.h.b16 %v1077
  %v1955 = vunpack.c.l.b16 %v1078
  %v1956 = vunpack.c.h.b16 %v1078
  %v1957 = vunpack.c.l.b16 %v1079
  %v1958 = vunpack.c.l.b16 %v1080
  %v1959 = vunpack.c.h.b16 %v1080
  %v1960 = vunpack.c.l.b16 %v1081
  %v1961 = vunpack.c.h.b16 %v1081
  %v1962 = vunpack.c.l.b16 %v1082
  %v1963 = vunpack.c.h.b16 %v1082
  %v1964 = vunpack.c.l.b16 %v1083
  %v1965 = vunpack.c.l.b16 %v1084
  %v1966 = vunpack.c.h.b16 %v1084
  %v1967 = vunpack.c.l.b16 %v1085
  %v1968 = vunpack.c.h.b16 %v1085
  %v1969 = vunpack.c.l.b16 %v1086
  %v1970 = vunpack.c.h.b16 %v1086
  %v1971 = vunpack.c.l.b16 %v1087
  %v1972 = vunpack.c.l.b16 %v1088
  %v1973 = vunpack.c.h.b16 %v1088
  %v1974 = vunpack.c.l.b16 %v1089
  %v1975 = vunpack.c.h.b16 %v1089
  %v1976 = vunpack.c.l.b16 %v1090
  %v1977 = vunpack.c.h.b16 %v1090
  %v1978 = vunpack.c.l.b16 %v1091
  %v1979 = vunpack.c.l.b16 %v1092
  %v1980 = vunpack.c.h.b16 %v1092
  %v1981 = vunpack.c.l.b16 %v1093
  %v1982 = vunpack.c.h.b16 %v1093
  %v1983 = vunpack.c.l.b16 %v1094
  %v1984 = vunpack.c.h.b16 %v1094
  %v1985 = vunpack.c.l.b16 %v1095
  %v1986 = vunpack.c.l.b16 %v1096
  %v1987 = vunpack.c.h.b16 %v1096
  %v1988 = vunpack.c.l.b16 %v1097
  %v1989 = vunpack.c.h.b16 %v1097
  %v1990 = vunpack.c.l.b16 %v1098
  %v1991 = vunpack.c.h.b16 %v1098
  %v1992 = vunpack.c.l.b16 %v1099
  %v1993 = vunpack.c.l.b16 %v1100
  %v1994 = vunpack.c.h.b16 %v1100
  %v1995 = vunpack.c.l.b16 %v1101
  %v1996 = vunpack.c.h.b16 %v1101
  %v1997 = vunpack.c.l.b16 %v1102
  %v1998 = vunpack.c.h.b16 %v1102
  %v1999 = vunpack.c.l.b16 %v1103
  %v2000 = vunpack.c.l.b16 %v1104
  %v2001 = vunpack.c.h.b16 %v1104
  %v2002 = vunpack.c.l.b16 %v1105
  %v2003 = vunpack.c.h.b16 %v1105
  %v2004 = vunpack.c.l.b16 %v1106
  %v2005 = vunpack.c.h.b16 %v1106
  %v2006 = vunpack.c.l.b16 %v1107
  %v2007 = vunpack.c.l.b16 %v1108
  %v2008 = vunpack.c.h.b16 %v1108
  %v2009 = vunpack.c.l.b16 %v1109
  %v2010 = vunpack.c.h.b16 %v1109
  %v2011 = vunpack.c.l.b16 %v1110
  %v2012 = vunpack.c.h.b16 %v1110
  %v2013 = vunpack.c.l.b16 %v1111
  %v2014 = vunpack.c.l.b16 %v1112
  %v2015 = vunpack.c.h.b16 %v1112
  %v2016 = vunpack.c.l.b16 %v1113
  %v2017 = vunpack.c.h.b16 %v1113
  %v2018 = vunpack.c.l.b16 %v1114
  %v2019 = vunpack.c.h.b16 %v1114
  %v2020 = vunpack.c.l.b16 %v1115
  %v2021 = vunpack.c.l.b16 %v1116
  %v2022 = vunpack.c.h.b16 %v1116
  %v2023 = vunpack.c.l.b16 %v1117
  %v2024 = vunpack.c.h.b16 %v1117
  %v2025 = vunpack.c.l.b16 %v1118
  %v2026 = vunpack.c.h.b16 %v1118
  %v2027 = vunpack.c.l.b16 %v1119
  %v2028 = vunpack.c.l.b16 %v1120
  %v2029 = vunpack.c.h.b16 %v1120
  %v2030 = vunpack.c.l.b16 %v1121
  %v2031 = vunpack.c.h.b16 %v1121
  %v2032 = vunpack.c.l.b16 %v1122
  %v2033 = vunpack.c.h.b16 %v1122
  %v2034 = vunpack.c.l.b16 %v1123
  %v2035 = vunpack.c.l.b16 %v1124
  %v2036 = vunpack.c.h.b16 %v1124
  %v2037 = vunpack.c.l.b16 %v1125
  %v2038 = vunpack.c.h.b16 %v1125
  %v2039 = vunpack.c.l.b16 %v1126
  %v2040 = vunpack.c.h.b16 %v1126
  %v2041 = vunpack.c.l.b16 %v1127
  %v2042 = vunpack.c.l.b16 %v1128
  %v2043 = vunpack.c.h.b16 %v1128
  %v2044 = vunpack.c.l.b16 %v1129
  %v2045 = vunpack.c.h.b16 %v1129
  %v2046 = vunpack.c.l.b16 %v1130
  %v2047 = vunpack.c.h.b16 %v1130
  %v2048 = vunpack.c.l.b16 %v1131
  %v2049 = vunpack.c.l.b16 %v1132
  %v2050 = vunpack.c.h.b16 %v1132
  %v2051 = vunpack.c.l.b16 %v1133
  %v2052 = vunpack.c.h.b16 %v1133
  %v2053 = vunpack.c.l.b16 %v1134
  %v2054 = vunpack.c.h.b16 %v1134
  %v2055 = vunpack.c.l.b16 %v1135
  %v2056 = vunpack.c.l.b16 %v1136
  %v2057 = vunpack.c.h.b16 %v1136
  %v2058 = vunpack.c.l.b16 %v1137
  %v2059 = vunpack.c.h.b16 %v1137
  %v2060 = vunpack.c.l.b16 %v1138
  %v2061 = vunpack.c.h.b16 %v1138
  %v2062 = vunpack.c.l.b16 %v1139
  %v2063 = vunpack.c.l.b16 %v1140
  %v2064 = vunpack.c.h.b16 %v1140
  %v2065 = vunpack.c.l.b16 %v1141
  %v2066 = vunpack.c.h.b16 %v1141
  %v2067 = vunpack.c.l.b16 %v1142
  %v2068 = vunpack.c.h.b16 %v1142
  %v2069 = vunpack.c.l.b16 %v1143
  %v2070 = vunpack.c.l.b16 %v1144
  %v2071 = vunpack.c.h.b16 %v1144
  %v2072 = vunpack.c.l.b16 %v1145
  %v2073 = vunpack.c.h.b16 %v1145
  %v2074 = vunpack.c.l.b16 %v1146
  %v2075 = vunpack.c.h.b16 %v1146
  %v2076 = vunpack.c.l.b16 %v1147
  %v2077 = vunpack.c.l.b16 %v1148
  %v2078 = vunpack.c.h.b16 %v1148
  %v2079 = vunpack.c.l.b16 %v1149
  %v2080 = vunpack.c.h.b16 %v1149
  %v2081 = vunpack.c.l.b16 %v1150
  %v2082 = vunpack.c.h.b16 %v1150
  %v2083 = vunpack.c.l.b16 %v1151
  %v2084 = vunpack.c.l.b16 %v1152
  %v2085 = vunpack.c.h.b16 %v1152
  %v2086 = vunpack.c.l.b16 %v1153
  %v2087 = vunpack.c.h.b16 %v1153
  %v2088 = vunpack.c.l.b16 %v1154
  %v2089 = vunpack.c.h.b16 %v1154
  %v2090 = vunpack.c.l.b16 %v1155
  %v2091 = vunpack.c.l.b16 %v1156
  %v2092 = vunpack.c.h.b16 %v1156
  %v2093 = vunpack.c.l.b16 %v1157
  %v2094 = vunpack.c.h.b16 %v1157
  %v2095 = vunpack.c.l.b16 %v1158
  %v2096 = vunpack.c.h.b16 %v1158
  %v2097 = vunpack.c.l.b16 %v1159
  %v2098 = vunpack.c.l.b16 %v1160
  %v2099 = vunpack.c.h.b16 %v1160
  %v2100 = vunpack.c.l.b16 %v1161
  %v2101 = vunpack.c.h.b16 %v1161
  %v2102 = vunpack.c.l.b16 %v1162
  %v2103 = vunpack.c.h.b16 %v1162
  %v2104 = vunpack.c.l.b16 %v1163
  %v2105 = vunpack.c.l.b16 %v1164
  %v2106 = vunpack.c.h.b16 %v1164
  %v2107 = vunpack.c.l.b16 %v1165
  %v2108 = vunpack.c.h.b16 %v1165
  %v2109 = vunpack.c.l.b16 %v1166
  %v2110 = vunpack.c.h.b16 %v1166
  %v2111 = vunpack.c.l.b16 %v1167
  %v2112 = vunpack.c.l.b16 %v1168
  %v2113 = vunpack.c.h.b16 %v1168
  %v2114 = vunpack.c.l.b16 %v1169
  %v2115 = vunpack.c.h.b16 %v1169
  %v2116 = vunpack.c.l.b16 %v1170
  %v2117 = vunpack.c.h.b16 %v1170
  %v2118 = vunpack.c.l.b16 %v1171
  %v2119 = vunpack.c.l.b16 %v1172
  %v2120 = vunpack.c.h.b16 %v1172
  %v2121 = vunpack.c.l.b16 %v1173
  %v2122 = vunpack.c.h.b16 %v1173
  %v2123 = vunpack.c.l.b16 %v1174
  %v2124 = vunpack.c.h.b16 %v1174
  %v2125 = vunpack.c.l.b16 %v1175
  %v2126 = vunpack.c.l.b16 %v1176
  %v2127 = vunpack.c.h.b16 %v1176
  %v2128 = vunpack.c.l.b16 %v1177
  %v2129 = vunpack.c.h.b16 %v1177
  %v2130 = vunpack.c.l.b16 %v1178
  %v2131 = vunpack.c.h.b16 %v1178
  %v2132 = vunpack.c.l.b16 %v1179
  %v2133 = vunpack.c.l.b16 %v1180
  %v2134 = vunpack.c.h.b16 %v1180
  %v2135 = vunpack.c.l.b16 %v1181
  %v2136 = vunpack.c.h.b16 %v1181
  %v2137 = vunpack.c.l.b16 %v1182
  %v2138 = vunpack.c.h.b16 %v1182
  %v2139 = vunpack.c.l.b16 %v1183
  %v2140 = vunpack.c.l.b16 %v1184
  %v2141 = vunpack.c.h.b16 %v1184
  %v2142 = vunpack.c.l.b16 %v1185
  %v2143 = vunpack.c.h.b16 %v1185
  %v2144 = vunpack.c.l.b16 %v1186
  %v2145 = vunpack.c.h.b16 %v1186
  %v2146 = vunpack.c.l.b16 %v1187
  %v2147 = vunpack.c.l.b16 %v1188
  %v2148 = vunpack.c.h.b16 %v1188
  %v2149 = vunpack.c.l.b16 %v1189
  %v2150 = vunpack.c.h.b16 %v1189
  %v2151 = vunpack.c.l.b16 %v1190
  %v2152 = vunpack.c.h.b16 %v1190
  %v2153 = vunpack.c.l.b16 %v1191
  %v2154 = vunpack.c.l.b16 %v1192
  %v2155 = vunpack.c.h.b16 %v1192
  %v2156 = vunpack.c.l.b16 %v1193
  %v2157 = vunpack.c.h.b16 %v1193
  %v2158 = vunpack.c.l.b16 %v1194
  %v2159 = vunpack.c.h.b16 %v1194
  %v2160 = vunpack.c.l.b16 %v1195
  %v2161 = vunpack.c.l.b16 %v1196
  %v2162 = vunpack.c.h.b16 %v1196
  %v2163 = vunpack.c.l.b16 %v1197
  %v2164 = vunpack.c.h.b16 %v1197
  %v2165 = vunpack.c.l.b16 %v1198
  %v2166 = vunpack.c.h.b16 %v1198
  %v2167 = vunpack.c.l.b16 %v1199
  %v2168 = vunpack.c.l.b16 %v1200
  %v2169 = vunpack.c.h.b16 %v1200
  %v2170 = vunpack.c.l.b16 %v1201
  %v2171 = vunpack.c.h.b16 %v1201
  %v2172 = vunpack.c.l.b16 %v1202
  %v2173 = vunpack.c.h.b16 %v1202
  %v2174 = vunpack.c.l.b16 %v1203
  %v2175 = vunpack.c.l.b16 %v1204
  %v2176 = vunpack.c.h.b16 %v1204
  %v2177 = vunpack.c.l.b16 %v1205
  %v2178 = vunpack.c.h.b16 %v1205
  %v2179 = vunpack.c.l.b16 %v1206
  %v2180 = vunpack.c.h.b16 %v1206
  %v2181 = vunpack.c.l.b16 %v1207
  %v2182 = vunpack.c.l.b16 %v1208
  %v2183 = vunpack.c.h.b16 %v1208
  %v2184 = vunpack.c.l.b16 %v1209
  %v2185 = vunpack.c.h.b16 %v1209
  %v2186 = vunpack.c.l.b16 %v1210
  %v2187 = vunpack.c.h.b16 %v1210
  %v2188 = vunpack.c.l.b16 %v1211
  %v2189 = vunpack.c.l.b16 %v1212
  %v2190 = vunpack.c.h.b16 %v1212
  %v2191 = vunpack.c.l.b16 %v1213
  %v2192 = vunpack.c.h.b16 %v1213
  %v2193 = vunpack.c.l.b16 %v1214
  %v2194 = vunpack.c.h.b16 %v1214
  %v2195 = vunpack.c.l.b16 %v1215
  %v2196 = vunpack.c.l.b16 %v1216
  %v2197 = vunpack.c.h.b16 %v1216
  %v2198 = vunpack.c.l.b16 %v1217
  %v2199 = vunpack.c.h.b16 %v1217
  %v2200 = vunpack.c.l.b16 %v1218
  %v2201 = vunpack.c.h.b16 %v1218
  %v2202 = vunpack.c.l.b16 %v1219
  %v2203 = vunpack.c.l.b16 %v1220
  %v2204 = vunpack.c.h.b16 %v1220
  %v2205 = vunpack.c.l.b16 %v1221
  %v2206 = vunpack.c.h.b16 %v1221
  %v2207 = vunpack.c.l.b16 %v1222
  %v2208 = vunpack.c.h.b16 %v1222
  %v2209 = vunpack.c.l.b16 %v1223
  %v2210 = vunpack.c.l.b16 %v1224
  %v2211 = vunpack.c.h.b16 %v1224
  %v2212 = vunpack.c.l.b16 %v1225
  %v2213 = vunpack.c.h.b16 %v1225
  %v2214 = vunpack.c.l.b16 %v1226
  %v2215 = vunpack.c.h.b16 %v1226
  %v2216 = vunpack.c.l.b16 %v1227
  %v2217 = vunpack.c.l.b16 %v1228
  %v2218 = vunpack.c.h.b16 %v1228
  %v2219 = vunpack.c.l.b16 %v1229
  %v2220 = vunpack.c.h.b16 %v1229
  %v2221 = vunpack.c.l.b16 %v1230
  %v2222 = vunpack.c.h.b16 %v1230
  %v2223 = vunpack.c.l.b16 %v1231
  %v2224 = vunpack.c.l.b16 %v1232
  %v2225 = vunpack.c.h.b16 %v1232
  %v2226 = vunpack.c.l.b16 %v1233
  %v2227 = vunpack.c.h.b16 %v1233
  %v2228 = vunpack.c.l.b16 %v1234
  %v2229 = vunpack.c.h.b16 %v1234
  %v2230 = vunpack.c.l.b16 %v1235
  %v2231 = vunpack.c.l.b16 %v1236
  %v2232 = vunpack.c.h.b16 %v1236
  %v2233 = vunpack.c.l.b16 %v1237
  %v2234 = vunpack.c.h.b16 %v1237
  %v2235 = vunpack.c.l.b16 %v1238
  %v2236 = vunpack.c.h.b16 %v1238
  %v2237 = vunpack.c.l.b16 %v1239
  %v2238 = vunpack.c.l.b16 %v1240
  %v2239 = vunpack.c.h.b16 %v1240
  %v2240 = vunpack.c.l.b16 %v1241
  %v2241 = vunpack.c.h.b16 %v1241
  %v2242 = vunpack.c.l.b16 %v1242
  %v2243 = vunpack.c.h.b16 %v1242
  %v2244 = vunpack.c.l.b16 %v1243
  %v2245 = vunpack.c.l.b16 %v1244
  %v2246 = vunpack.c.h.b16 %v1244
  %v2247 = vunpack.c.l.b16 %v1245
  %v2248 = vunpack.c.h.b16 %v1245
  %v2249 = vunpack.c.l.b16 %v1246
  %v2250 = vunpack.c.h.b16 %v1246
  %v2251 = vunpack.c.l.b16 %v1247
  %v2252 = vunpack.c.l.b16 %v1248
  %v2253 = vunpack.c.h.b16 %v1248
  %v2254 = vunpack.c.l.b16 %v1249
  %v2255 = vunpack.c.h.b16 %v1249
  %v2256 = vunpack.c.l.b16 %v1250
  %v2257 = vunpack.c.h.b16 %v1250
  %v2258 = vunpack.c.l.b16 %v1251
  %v2259 = vunpack.c.l.b16 %v1252
  %v2260 = vunpack.c.h.b16 %v1252
  %v2261 = vunpack.c.l.b16 %v1253
  %v2262 = vunpack.c.h.b16 %v1253
  %v2263 = vunpack.c.l.b16 %v1254
  %v2264 = vunpack.c.h.b16 %v1254
  %v2265 = vunpack.c.l.b16 %v1255
  %v2266 = vunpack.c.l.b16 %v1256
  %v2267 = vunpack.c.h.b16 %v1256
  %v2268 = vunpack.c.l.b16 %v1257
  %v2269 = vunpack.c.h.b16 %v1257
  %v2270 = vunpack.c.l.b16 %v1258
  %v2271 = vunpack.c.h.b16 %v1258
  %v2272 = vunpack.c.l.b16 %v1259
  %v2273 = vunpack.c.l.b16 %v1260
  %v2274 = vunpack.c.h.b16 %v1260
  %v2275 = vunpack.c.l.b16 %v1261
  %v2276 = vunpack.c.h.b16 %v1261
  %v2277 = vunpack.c.l.b16 %v1262
  %v2278 = vunpack.c.h.b16 %v1262
  %v2279 = vunpack.c.l.b16 %v1263
  %v2280 = vunpack.c.l.b16 %v1264
  %v2281 = vunpack.c.h.b16 %v1264
  %v2282 = vunpack.c.l.b16 %v1265
  %v2283 = vunpack.c.h.b16 %v1265
  %v2284 = vunpack.c.l.b16 %v1266
  %v2285 = vunpack.c.h.b16 %v1266
  %v2286 = vunpack.c.l.b16 %v1267
  %v2287 = vunpack.c.l.b16 %v1268
  %v2288 = vunpack.c.h.b16 %v1268
  %v2289 = vunpack.c.l.b16 %v1269
  %v2290 = vunpack.c.h.b16 %v1269
  %v2291 = vunpack.c.l.b16 %v1270
  %v2292 = vunpack.c.h.b16 %v1270
  %v2293 = vunpack.c.l.b16 %v1271
  %v2294 = vunpack.c.l.b16 %v1272
  %v2295 = vunpack.c.h.b16 %v1272
  %v2296 = vunpack.c.l.b16 %v1273
  %v2297 = vunpack.c.h.b16 %v1273
  %v2298 = vunpack.c.l.b16 %v1274
  %v2299 = vunpack.c.h.b16 %v1274
  %v2300 = vunpack.c.l.b16 %v1275
  %v2301 = vunpack.c.l.b16 %v1276
  %v2302 = vunpack.c.h.b16 %v1276
  %v2303 = vunpack.c.l.b16 %v1277
  %v2304 = vunpack.c.h.b16 %v1277
  %v2305 = vunpack.c.l.b16 %v1278
  %v2306 = vunpack.c.h.b16 %v1278
  %v2307 = vunpack.c.l.b16 %v1279
  %v2308 = vunpack.c.l.b16 %v1280
  %v2309 = vunpack.c.h.b16 %v1280
  %v2310 = vunpack.c.l.b16 %v1281
  %v2311 = vunpack.c.h.b16 %v1281
  %v2312 = vunpack.c.l.b16 %v1282
  %v2313 = vunpack.c.h.b16 %v1282
  %v2314 = vunpack.c.l.b16 %v1283
  %v2315 = vunpack.c.l.b16 %v1284
  %v2316 = vunpack.c.h.b16 %v1284
  %v2317 = vunpack.c.l.b16 %v1285
  %v2318 = vunpack.c.h.b16 %v1285
  %v2319 = vunpack.c.l.b16 %v1286
  %v2320 = vunpack.c.h.b16 %v1286
  %v2321 = vunpack.c.l.b16 %v1287
  %v2322 = vunpack.c.l.b16 %v1288
  %v2323 = vunpack.c.h.b16 %v1288
  %v2324 = vunpack.c.l.b16 %v1289
  %v2325 = vunpack.c.h.b16 %v1289
  %v2326 = vunpack.c.l.b16 %v1290
  %v2327 = vunpack.c.h.b16 %v1290
  %v2328 = vunpack.c.l.b16 %v1291
  %v2329 = vunpack.c.l.b16 %v1292
  %v2330 = vunpack.c.h.b16 %v1292
  %v2331 = vunpack.c.l.b16 %v1293
  %v2332 = vunpack.c.h.b16 %v1293
  %v2333 = vunpack.c.l.b16 %v1294
  %v2334 = vunpack.c.h.b16 %v1294
  %v2335 = vunpack.c.l.b16 %v1295
  %v2336 = vunpack.c.l.b16 %v1296
  %v2337 = vunpack.c.h.b16 %v1296
  %v2338 = vunpack.c.l.b16 %v1297
  %v2339 = vunpack.c.h.b16 %v1297
  %v2340 = vunpack.c.l.b16 %v1298
  %v2341 = vunpack.c.h.b16 %v1298
  %v2342 = vunpack.c.l.b16 %v1299
  %v2343 = vunpack.c.l.b16 %v1300
  %v2344 = vunpack.c.h.b16 %v1300
  %v2345 = vunpack.c.l.b16 %v1301
  %v2346 = vunpack.c.h.b16 %v1301
  %v2347 = vunpack.c.l.b16 %v1302
  %v2348 = vunpack.c.h.b16 %v1302
  %v2349 = vunpack.c.l.b16 %v1303
  %v2350 = vunpack.c.l.b16 %v1304
  %v2351 = vunpack.c.h.b16 %v1304
  %v2352 = vunpack.c.l.b16 %v1305
  %v2353 = vunpack.c.h.b16 %v1305
  %v2354 = vunpack.c.l.b16 %v1306
  %v2355 = vunpack.c.h.b16 %v1306
  %v2356 = vunpack.c.l.b16 %v1307
  %v2357 = vunpack.c.l.b16 %v1308
  %v2358 = vunpack.c.h.b16 %v1308
  %v2359 = vunpack.c.l.b16 %v1309
  %v2360 = vunpack.c.h.b16 %v1309
  %v2361 = vunpack.c.l.b16 %v1310
  %v2362 = vunpack.c.h.b16 %v1310
  %v2363 = vunpack.c.l.b16 %v1311
  %v2364 = vunpack.c.l.b16 %v1312
  %v2365 = vunpack.c.h.b16 %v1312
  %v2366 = vunpack.c.l.b16 %v1313
  %v2367 = vunpack.c.h.b16 %v1313
  %v2368 = vunpack.c.l.b16 %v1314
  %v2369 = vunpack.c.h.b16 %v1314
  %v2370 = vunpack.c.l.b16 %v1315
  %v2371 = vunpack.c.l.b16 %v1316
  %v2372 = vunpack.c.h.b16 %v1316
  %v2373 = vunpack.c.l.b16 %v1317
  %v2374 = vunpack.c.h.b16 %v1317
  %v2375 = vunpack.c.l.b16 %v1318
  %v2376 = vunpack.c.h.b16 %v1318
  %v2377 = vunpack.c.l.b16 %v1319
  %v2378 = vunpack.c.l.b16 %v1320
  %v2379 = vunpack.c.h.b16 %v1320
  %v2380 = vunpack.c.l.b16 %v1321
  %v2381 = vunpack.c.h.b16 %v1321
  %v2382 = vunpack.c.l.b16 %v1322
  %v2383 = vunpack.c.h.b16 %v1322
  %v2384 = vunpack.c.l.b16 %v1323
  %v2385 = vunpack.c.l.b16 %v1324
  %v2386 = vunpack.c.h.b16 %v1324
  %v2387 = vunpack.c.l.b16 %v1325
  %v2388 = vunpack.c.h.b16 %v1325
  %v2389 = vunpack.c.l.b16 %v1326
  %v2390 = vunpack.c.h.b16 %v1326
  %v2391 = vunpack.c.l.b16 %v1327
  %v2392 = vunpack.c.l.b16 %v1328
  %v2393 = vunpack.c.h.b16 %v1328
  %v2394 = vunpack.c.l.b16 %v1329
  %v2395 = vunpack.c.h.b16 %v1329
  %v2396 = vunpack.c.l.b16 %v1330
  %v2397 = vunpack.c.h.b16 %v1330
  %v2398 = vunpack.c.l.b16 %v1331
  %v2399 = vunpack.c.l.b16 %v1332
  %v2400 = vunpack.c.h.b16 %v1332
  %v2401 = vunpack.c.l.b16 %v1333
  %v2402 = vunpack.c.h.b16 %v1333
  %v2403 = vunpack.c.l.b16 %v1334
  %v2404 = vunpack.c.h.b16 %v1334
  %v2405 = vunpack.c.l.b16 %v1335
  %v2406 = vunpack.c.l.b16 %v1336
  %v2407 = vunpack.c.h.b16 %v1336
  %v2408 = vunpack.c.l.b16 %v1337
  %v2409 = vunpack.c.h.b16 %v1337
  %v2410 = vunpack.c.l.b16 %v1338
  %v2411 = vunpack.c.h.b16 %v1338
  %v2412 = vunpack.c.l.b16 %v1339
  %v2413 = vunpack.c.l.b16 %v1340
  %v2414 = vunpack.c.h.b16 %v1340
  %v2415 = vunpack.c.l.b16 %v1341
  %v2416 = vunpack.c.h.b16 %v1341
  %v2417 = vunpack.c.l.b16 %v1342
  %v2418 = vunpack.c.h.b16 %v1342
  %v2419 = vunpack.c.l.b16 %v1343
  %v2420 = vunpack.c.l.b16 %v1344
  %v2421 = vunpack.c.h.b16 %v1344
  %v2422 = vunpack.c.l.b16 %v1345
  %v2423 = vunpack.c.h.b16 %v1345
  %v2424 = vunpack.c.l.b16 %v1346
  %v2425 = vunpack.c.h.b16 %v1346
  %v2426 = vunpack.c.l.b16 %v1347
  %v2427 = vunpack.c.l.b16 %v1348
  %v2428 = vunpack.c.h.b16 %v1348
  %v2429 = vunpack.c.l.b16 %v1349
  %v2430 = vunpack.c.h.b16 %v1349
  %v2431 = vunpack.c.l.b16 %v1350
  %v2432 = vunpack.c.h.b16 %v1350
  %v2433 = vunpack.c.l.b16 %v1351
  %v2434 = vunpack.c.l.b16 %v1352
  %v2435 = vunpack.c.h.b16 %v1352
  %v2436 = vunpack.c.l.b16 %v1353
  %v2437 = vunpack.c.h.b16 %v1353
  %v2438 = vunpack.c.l.b16 %v1354
  %v2439 = vunpack.c.h.b16 %v1354
  %v2440 = vunpack.c.l.b16 %v1355
  %v2441 = vunpack.c.l.b16 %v1356
  %v2442 = vunpack.c.h.b16 %v1356
  %v2443 = vunpack.c.l.b16 %v1357
  %v2444 = vunpack.c.h.b16 %v1357
  %v2445 = vunpack.c.l.b16 %v1358
  %v2446 = vunpack.c.h.b16 %v1358
  %v2447 = vunpack.c.l.b16 %v1359
  %v2448 = vunpack.c.l.b16 %v1360
  %v2449 = vunpack.c.h.b16 %v1360
  %v2450 = vunpack.c.l.b16 %v1361
  %v2451 = vunpack.c.h.b16 %v1361
  %v2452 = vunpack.c.l.b16 %v1362
  %v2453 = vunpack.c.h.b16 %v1362
  %v2454 = vunpack.c.l.b16 %v1363
  %v2455 = vunpack.c.l.b16 %v1364
  %v2456 = vunpack.c.h.b16 %v1364
  %v2457 = vunpack.c.l.b16 %v1365
  %v2458 = vunpack.c.h.b16 %v1365
  %v2459 = vunpack.c.l.b16 %v1366
  %v2460 = vunpack.c.h.b16 %v1366
  %v2461 = vunpack.c.l.b16 %v1367
  %v2462 = vpack.c.b16 %v1783, %v1776
  %v2463 = vpack.c.b16 %v1784, %v1777
  %v2464 = vpack.c.b16 %v1785, %v1778
  %v2465 = vpack.c.b16 %v1786, %v1779
  %v2466 = vpack.c.b16 %v1787, %v1780
  %v2467 = vpack.c.b16 %v1788, %v1781
  %v2468 = vpack.c.b16 %v1789, %v1782
  %v2469 = vpack.c.b16 %v1797, %v1790
  %v2470 = vpack.c.b16 %v1798, %v1791
  %v2471 = vpack.c.b16 %v1799, %v1792
  %v2472 = vpack.c.b16 %v1800, %v1793
  %v2473 = vpack.c.b16 %v1801, %v1794
  %v2474 = vpack.c.b16 %v1802, %v1795
  %v2475 = vpack.c.b16 %v1803, %v1796
  %v2476 = vpack.c.b16 %v1811, %v1804
  %v2477 = vpack.c.b16 %v1812, %v1805
  %v2478 = vpack.c.b16 %v1813, %v1806
  %v2479 = vpack.c.b16 %v1814, %v1807
  %v2480 = vpack.c.b16 %v1815, %v1808
  %v2481 = vpack.c.b16 %v1816, %v1809
  %v2482 = vpack.c.b16 %v1817, %v1810
  %v2483 = vpack.c.b16 %v1825, %v1818
  %v2484 = vpack.c.b16 %v1826, %v1819
  %v2485 = vpack.c.b16 %v1827, %v1820
  %v2486 = vpack.c.b16 %v1828, %v1821
  %v2487 = vpack.c.b16 %v1829, %v1822
  %v2488 = vpack.c.b16 %v1830, %v1823
  %v2489 = vpack.c.b16 %v1831, %v1824
  %v2490 = vpack.c.b16 %v1839, %v1832
  %v2491 = vpack.c.b16 %v1840, %v1833
  %v2492 = vpack.c.b16 %v1841, %v1834
  %v2493 = vpack.c.b16 %v1842, %v1835
  %v2494 = vpack.c.b16 %v1843, %v1836
  %v2495 = vpack.c.b16 %v1844, %v1837
  %v2496 = vpack.c.b16 %v1845, %v1838
  %v2497 = vpack.c.b16 %v1853, %v1846
  %v2498 = vpack.c.b16 %v1854, %v1847
  %v2499 = vpack.c.b16 %v1855, %v1848
  %v2500 = vpack.c.b16 %v1856, %v1849
  %v2501 = vpack.c.b16 %v1857, %v1850
  %v2502 = vpack.c.b16 %v1858, %v1851
  %v2503 = vpack.c.b16 %v1859, %v1852
  %v2504 = vpack.c.b16 %v1867, %v1860
  %v2505 = vpack.c.b16 %v1868, %v1861
  %v2506 = vpack.c.b16 %v1869, %v1862
  %v2507 = vpack.c.b16 %v1870, %v1863
  %v2508 = vpack.c.b16 %v1871, %v1864
  %v2509 = vpack.c.b16 %v1872, %v1865
  %v2510 = vpack.c.b16 %v1873, %v1866
  %v2511 = vpack.c.b16 %v1881, %v1874
  %v2512 = vpack.c.b16 %v1882, %v1875
  %v2513 = vpack.c.b16 %v1883, %v1876
  %v2514 = vpack.c.b16 %v1884, %v1877
  %v2515 = vpack.c.b16 %v1885, %v1878
  %v2516 = vpack.c.b16 %v1886, %v1879
  %v2517 = vpack.c.b16 %v1887, %v1880
  %v2518 = vpack.c.b16 %v1895, %v1888
  %v2519 = vpack.c.b16 %v1896, %v1889
  %v2520 = vpack.c.b16 %v1897, %v1890
  %v2521 = vpack.c.b16 %v1898, %v1891
  %v2522 = vpack.c.b16 %v1899, %v1892
  %v2523 = vpack.c.b16 %v1900, %v1893
  %v2524 = vpack.c.b16 %v1901, %v1894
  %v2525 = vpack.c.b16 %v1909, %v1902
  %v2526 = vpack.c.b16 %v1910, %v1903
  %v2527 = vpack.c.b16 %v1911, %v1904
  %v2528 = vpack.c.b16 %v1912, %v1905
  %v2529 = vpack.c.b16 %v1913, %v1906
  %v2530 = vpack.c.b16 %v1914, %v1907
  %v2531 = vpack.c.b16 %v1915, %v1908
  %v2532 = vpack.c.b16 %v1923, %v1916
  %v2533 = vpack.c.b16 %v1924, %v1917
  %v2534 = vpack.c.b16 %v1925, %v1918
  %v2535 = vpack.c.b16 %v1926, %v1919
  %v2536 = vpack.c.b16 %v1927, %v1920
  %v2537 = vpack.c.b16 %v1928, %v1921
  %v2538 = vpack.c.b16 %v1929, %v1922
  %v2539 = vpack.c.b16 %v1937, %v1930
  %v2540 = vpack.c.b16 %v1938, %v1931
  %v2541 = vpack.c.b16 %v1939, %v1932
  %v2542 = vpack.c.b16 %v1940, %v1933
  %v2543 = vpack.c.b16 %v1941, %v1934
  %v2544 = vpack.c.b16 %v1942, %v1935
  %v2545 = vpack.c.b16 %v1943, %v1936
  %v2546 = vpack.c.b16 %v1951, %v1944
  %v2547 = vpack.c.b16 %v1952, %v1945
  %v2548 = vpack.c.b16 %v1953, %v1946
  %v2549 = vpack.c.b16 %v1954, %v1947
  %v2550 = vpack.c.b16 %v1955, %v1948
  %v2551 = vpack.c.b16 %v1956, %v1949
  %v2552 = vpack.c.b16 %v1957, %v1950
  %v2553 = vpack.c.b16 %v1965, %v1958
  %v2554 = vpack.c.b16 %v1966, %v1959
  %v2555 = vpack.c.b16 %v1967, %v1960
  %v2556 = vpack.c.b16 %v1968, %v1961
  %v2557 = vpack.c.b16 %v1969, %v1962
  %v2558 = vpack.c.b16 %v1970, %v1963
  %v2559 = vpack.c.b16 %v1971, %v1964
  %v2560 = vpack.c.b16 %v1979, %v1972
  %v2561 = vpack.c.b16 %v1980, %v1973
  %v2562 = vpack.c.b16 %v1981, %v1974
  %v2563 = vpack.c.b16 %v1982, %v1975
  %v2564 = vpack.c.b16 %v1983, %v1976
  %v2565 = vpack.c.b16 %v1984, %v1977
  %v2566 = vpack.c.b16 %v1985, %v1978
  %v2567 = vpack.c.b16 %v1993, %v1986
  %v2568 = vpack.c.b16 %v1994, %v1987
  %v2569 = vpack.c.b16 %v1995, %v1988
  %v2570 = vpack.c.b16 %v1996, %v1989
  %v2571 = vpack.c.b16 %v1997, %v1990
  %v2572 = vpack.c.b16 %v1998, %v1991
  %v2573 = vpack.c.b16 %v1999, %v1992
  %v2574 = vpack.c.b16 %v2007, %v2000
  %v2575 = vpack.c.b16 %v2008, %v2001
  %v2576 = vpack.c.b16 %v2009, %v2002
  %v2577 = vpack.c.b16 %v2010, %v2003
  %v2578 = vpack.c.b16 %v2011, %v2004
  %v2579 = vpack.c.b16 %v2012, %v2005
  %v2580 = vpack.c.b16 %v2013, %v2006
  %v2581 = vpack.c.b16 %v2021, %v2014
  %v2582 = vpack.c.b16 %v2022, %v2015
  %v2583 = vpack.c.b16 %v2023, %v2016
  %v2584 = vpack.c.b16 %v2024, %v2017
  %v2585 = vpack.c.b16 %v2025, %v2018
  %v2586 = vpack.c.b16 %v2026, %v2019
  %v2587 = vpack.c.b16 %v2027, %v2020
  %v2588 = vpack.c.b16 %v2035, %v2028
  %v2589 = vpack.c.b16 %v2036, %v2029
  %v2590 = vpack.c.b16 %v2037, %v2030
  %v2591 = vpack.c.b16 %v2038, %v2031
  %v2592 = vpack.c.b16 %v2039, %v2032
  %v2593 = vpack.c.b16 %v2040, %v2033
  %v2594 = vpack.c.b16 %v2041, %v2034
  %v2595 = vpack.c.b16 %v2049, %v2042
  %v2596 = vpack.c.b16 %v2050, %v2043
  %v2597 = vpack.c.b16 %v2051, %v2044
  %v2598 = vpack.c.b16 %v2052, %v2045
  %v2599 = vpack.c.b16 %v2053, %v2046
  %v2600 = vpack.c.b16 %v2054, %v2047
  %v2601 = vpack.c.b16 %v2055, %v2048
  %v2602 = vpack.c.b16 %v2063, %v2056
  %v2603 = vpack.c.b16 %v2064, %v2057
  %v2604 = vpack.c.b16 %v2065, %v2058
  %v2605 = vpack.c.b16 %v2066, %v2059
  %v2606 = vpack.c.b16 %v2067, %v2060
  %v2607 = vpack.c.b16 %v2068, %v2061
  %v2608 = vpack.c.b16 %v2069, %v2062
  %v2609 = vpack.c.b16 %v2077, %v2070
  %v2610 = vpack.c.b16 %v2078, %v2071
  %v2611 = vpack.c.b16 %v2079, %v2072
  %v2612 = vpack.c.b16 %v2080, %v2073
  %v2613 = vpack.c.b16 %v2081, %v2074
  %v2614 = vpack.c.b16 %v2082, %v2075
  %v2615 = vpack.c.b16 %v2083, %v2076
  %v2616 = vpack.c.b16 %v2091, %v2084
  %v2617 = vpack.c.b16 %v2092, %v2085
  %v2618 = vpack.c.b16 %v2093, %v2086
  %v2619 = vpack.c.b16 %v2094, %v2087
  %v2620 = vpack.c.b16 %v2095, %v2088
  %v2621 = vpack.c.b16 %v2096, %v2089
  %v2622 = vpack.c.b16 %v2097, %v2090
  %v2623 = vpack.c.b16 %v2105, %v2098
  %v2624 = vpack.c.b16 %v2106, %v2099
  %v2625 = vpack.c.b16 %v2107, %v2100
  %v2626 = vpack.c.b16 %v2108, %v2101
  %v2627 = vpack.c.b16 %v2109, %v2102
  %v2628 = vpack.c.b16 %v2110, %v2103
  %v2629 = vpack.c.b16 %v2111, %v2104
  %v2630 = vpack.c.b16 %v2119, %v2112
  %v2631 = vpack.c.b16 %v2120, %v2113
  %v2632 = vpack.c.b16 %v2121, %v2114
  %v2633 = vpack.c.b16 %v2122, %v2115
  %v2634 = vpack.c.b16 %v2123, %v2116
  %v2635 = vpack.c.b16 %v2124, %v2117
  %v2636 = vpack.c.b16 %v2125, %v2118
  %v2637 = vpack.c.b16 %v2133, %v2126
  %v2638 = vpack.c.b16 %v2134, %v2127
  %v2639 = vpack.c.b16 %v2135, %v2128
  %v2640 = vpack.c.b16 %v2136, %v2129
  %v2641 = vpack.c.b16 %v2137, %v2130
  %v2642 = vpack.c.b16 %v2138, %v2131
  %v2643 = vpack.c.b16 %v2139, %v2132
  %v2644 = vpack.c.b16 %v2147, %v2140
  %v2645 = vpack.c.b16 %v2148, %v2141
  %v2646 = vpack.c.b16 %v2149, %v2142
  %v2647 = vpack.c.b16 %v2150, %v2143
  %v2648 = vpack.c.b16 %v2151, %v2144
  %v2649 = vpack.c.b16 %v2152, %v2145
  %v2650 = vpack.c.b16 %v2153, %v2146
  %v2651 = vpack.c.b16 %v2161, %v2154
  %v2652 = vpack.c.b16 %v2162, %v2155
  %v2653 = vpack.c.b16 %v2163, %v2156
  %v2654 = vpack.c.b16 %v2164, %v2157
  %v2655 = vpack.c.b16 %v2165, %v2158
  %v2656 = vpack.c.b16 %v2166, %v2159
  %v2657 = vpack.c.b16 %v2167, %v2160
  %v2658 = vpack.c.b16 %v2175, %v2168
  %v2659 = vpack.c.b16 %v2176, %v2169
  %v2660 = vpack.c.b16 %v2177, %v2170
  %v2661 = vpack.c.b16 %v2178, %v2171
  %v2662 = vpack.c.b16 %v2179, %v2172
  %v2663 = vpack.c.b16 %v2180, %v2173
  %v2664 = vpack.c.b16 %v2181, %v2174
  %v2665 = vpack.c.b16 %v2189, %v2182
  %v2666 = vpack.c.b16 %v2190, %v2183
  %v2667 = vpack.c.b16 %v2191, %v2184
  %v2668 = vpack.c.b16 %v2192, %v2185
  %v2669 = vpack.c.b16 %v2193, %v2186
  %v2670 = vpack.c.b16 %v2194, %v2187
  %v2671 = vpack.c.b16 %v2195, %v2188
  %v2672 = vpack.c.b16 %v2203, %v2196
  %v2673 = vpack.c.b16 %v2204, %v2197
  %v2674 = vpack.c.b16 %v2205, %v2198
  %v2675 = vpack.c.b16 %v2206, %v2199
  %v2676 = vpack.c.b16 %v2207, %v2200
  %v2677 = vpack.c.b16 %v2208, %v2201
  %v2678 = vpack.c.b16 %v2209, %v2202
  %v2679 = vpack.c.b16 %v2217, %v2210
  %v2680 = vpack.c.b16 %v2218, %v2211
  %v2681 = vpack.c.b16 %v2219, %v2212
  %v2682 = vpack.c.b16 %v2220, %v2213
  %v2683 = vpack.c.b16 %v2221, %v2214
  %v2684 = vpack.c.b16 %v2222, %v2215
  %v2685 = vpack.c.b16 %v2223, %v2216
  %v2686 = vpack.c.b16 %v2231, %v2224
  %v2687 = vpack.c.b16 %v2232, %v2225
  %v2688 = vpack.c.b16 %v2233, %v2226
  %v2689 = vpack.c.b16 %v2234, %v2227
  %v2690 = vpack.c.b16 %v2235, %v2228
  %v2691 = vpack.c.b16 %v2236, %v2229
  %v2692 = vpack.c.b16 %v2237, %v2230
  %v2693 = vpack.c.b16 %v2245, %v2238
  %v2694 = vpack.c.b16 %v2246, %v2239
  %v2695 = vpack.c.b16 %v2247, %v2240
  %v2696 = vpack.c.b16 %v2248, %v2241
  %v2697 = vpack.c.b16 %v2249, %v2242
  %v2698 = vpack.c.b16 %v2250, %v2243
  %v2699 = vpack.c.b16 %v2251, %v2244
  %v2700 = vpack.c.b16 %v2259, %v2252
  %v2701 = vpack.c.b16 %v2260, %v2253
  %v2702 = vpack.c.b16 %v2261, %v2254
  %v2703 = vpack.c.b16 %v2262, %v2255
  %v2704 = vpack.c.b16 %v2263, %v2256
  %v2705 = vpack.c.b16 %v2264, %v2257
  %v2706 = vpack.c.b16 %v2265, %v2258
  %v2707 = vpack.c.b16 %v2273, %v2266
  %v2708 = vpack.c.b16 %v2274, %v2267
  %v2709 = vpack.c.b16 %v2275, %v2268
  %v2710 = vpack.c.b16 %v2276, %v2269
  %v2711 = vpack.c.b16 %v2277, %v2270
  %v2712 = vpack.c.b16 %v2278, %v2271
  %v2713 = vpack.c.b16 %v2279, %v2272
  %v2714 = vpack.c.b16 %v2287, %v2280
  %v2715 = vpack.c.b16 %v2288, %v2281
  %v2716 = vpack.c.b16 %v2289, %v2282
  %v2717 = vpack.c.b16 %v2290, %v2283
  %v2718 = vpack.c.b16 %v2291, %v2284
  %v2719 = vpack.c.b16 %v2292, %v2285
  %v2720 = vpack.c.b16 %v2293, %v2286
  %v2721 = vpack.c.b16 %v2301, %v2294
  %v2722 = vpack.c.b16 %v2302, %v2295
  %v2723 = vpack.c.b16 %v2303, %v2296
  %v2724 = vpack.c.b16 %v2304, %v2297
  %v2725 = vpack.c.b16 %v2305, %v2298
  %v2726 = vpack.c.b16 %v2306, %v2299
  %v2727 = vpack.c.b16 %v2307, %v2300
  %v2728 = vpack.c.b16 %v2315, %v2308
  %v2729 = vpack.c.b16 %v2316, %v2309
  %v2730 = vpack.c.b16 %v2317, %v2310
  %v2731 = vpack.c.b16 %v2318, %v2311
  %v2732 = vpack.c.b16 %v2319, %v2312
  %v2733 = vpack.c.b16 %v2320, %v2313
  %v2734 = vpack.c.b16 %v2321, %v2314
  %v2735 = vpack.c.b16 %v2329, %v2322
  %v2736 = vpack.c.b16 %v2330, %v2323
  %v2737 = vpack.c.b16 %v2331, %v2324
  %v2738 = vpack.c.b16 %v2332, %v2325
  %v2739 = vpack.c.b16 %v2333, %v2326
  %v2740 = vpack.c.b16 %v2334, %v2327
  %v2741 = vpack.c.b16 %v2335, %v2328
  %v2742 = vpack.c.b16 %v2343, %v2336
  %v2743 = vpack.c.b16 %v2344, %v2337
  %v2744 = vpack.c.b16 %v2345, %v2338
  %v2745 = vpack.c.b16 %v2346, %v2339
  %v2746 = vpack.c.b16 %v2347, %v2340
  %v2747 = vpack.c.b16 %v2348, %v2341
  %v2748 = vpack.c.b16 %v2349, %v2342
  %v2749 = vpack.c.b16 %v2357, %v2350
  %v2750 = vpack.c.b16 %v2358, %v2351
  %v2751 = vpack.c.b16 %v2359, %v2352
  %v2752 = vpack.c.b16 %v2360, %v2353
  %v2753 = vpack.c.b16 %v2361, %v2354
  %v2754 = vpack.c.b16 %v2362, %v2355
  %v2755 = vpack.c.b16 %v2363, %v2356
  %v2756 = vpack.c.b16 %v2371, %v2364
  %v2757 = vpack.c.b16 %v2372, %v2365
  %v2758 = vpack.c.b16 %v2373, %v2366
  %v2759 = vpack.c.b16 %v2374, %v2367
  %v2760 = vpack.c.b16 %v2375, %v2368
  %v2761 = vpack.c.b16 %v2376, %v2369
  %v2762 = vpack.c.b16 %v2377, %v2370
  %v2763 = vpack.c.b16 %v2385, %v2378
  %v2764 = vpack.c.b16 %v2386, %v2379
  %v2765 = vpack.c.b16 %v2387, %v2380
  %v2766 = vpack.c.b16 %v2388, %v2381
  %v2767 = vpack.c.b16 %v2389, %v2382
  %v2768 = vpack.c.b16 %v2390, %v2383
  %v2769 = vpack.c.b16 %v2391, %v2384
  %v2770 = vpack.c.b16 %v2399, %v2392
  %v2771 = vpack.c.b16 %v2400, %v2393
  %v2772 = vpack.c.b16 %v2401, %v2394
  %v2773 = vpack.c.b16 %v2402, %v2395
  %v2774 = vpack.c.b16 %v2403, %v2396
  %v2775 = vpack.c.b16 %v2404, %v2397
  %v2776 = vpack.c.b16 %v2405, %v2398
  %v2777 = vpack.c.b16 %v2413, %v2406
  %v2778 = vpack.c.b16 %v2414, %v2407
  %v2779 = vpack.c.b16 %v2415, %v2408
  %v2780 = vpack.c.b16 %v2416, %v2409
  %v2781 = vpack.c.b16 %v2417, %v2410
  %v2782 = vpack.c.b16 %v2418, %v2411
  %v2783 = vpack.c.b16 %v2419, %v2412
  %v2784 = vpack.c.b16 %v2427, %v2420
  %v2785 = vpack.c.b16 %v2428, %v2421
  %v2786 = vpack.c.b16 %v2429, %v2422
  %v2787 = vpack.c.b16 %v2430, %v2423
  %v2788 = vpack.c.b16 %v2431, %v2424
  %v2789 = vpack.c.b16 %v2432, %v2425
  %v2790 = vpack.c.b16 %v2433, %v2426
  %v2791 = vpack.c.b16 %v2441, %v2434
  %v2792 = vpack.c.b16 %v2442, %v2435
  %v2793 = vpack.c.b16 %v2443, %v2436
  %v2794 = vpack.c.b16 %v2444, %v2437
  %v2795 = vpack.c.b16 %v2445, %v2438
  %v2796 = vpack.c.b16 %v2446, %v2439
  %v2797 = vpack.c.b16 %v2447, %v2440
  %v2798 = vpack.c.b16 %v2455, %v2448
  %v2799 = vpack.c.b16 %v2456, %v2449
  %v2800 = vpack.c.b16 %v2457, %v2450
  %v2801 = vpack.c.b16 %v2458, %v2451
  %v2802 = vpack.c.b16 %v2459, %v2452
  %v2803 = vpack.c.b16 %v2460, %v2453
  %v2804 = vpack.c.b16 %v2461, %v2454
  %vm3148 = vcmask 130048
  %v3150 = vsel %vm3148, %v975, 0
  %3152 = vmatpush.bf16.msra.mxu0 %v2511
  %3153 = vmatpush.bf16.msra.mxu0 %v2504
  %3154 = vmatpush.bf16.msra.mxu0 %v2497
  %3155 = vmatpush.bf16.msra.mxu0 %v2490
  %3156 = vmatpush.bf16.msra.mxu0 %v2483
  %3157 = vmatpush.bf16.msra.mxu0 %v2476
  %3158 = vmatpush.bf16.msra.mxu0 %v2469
  %3159 = vmatpush.bf16.msra.mxu0 %v2462
  %3160 = vmatmul.bf16.gmra.mxu0 %v969
  %v3161 = vpop.f32.mrf.mxu0
  %v3162 = vadd.f32 %v1370, %v3161
  %v3163 = vpop.f32.mrf.mxu0
  %v3164 = vadd.f32 %v1370, %v3163
  %3165 = vdwg.mxu0
  %3166 = vmatpush.bf16.msra.mxu0 %v2567
  %3167 = vmatpush.bf16.msra.mxu0 %v2560
  %3168 = vmatpush.bf16.msra.mxu0 %v2553
  %3169 = vmatpush.bf16.msra.mxu0 %v2546
  %3170 = vmatpush.bf16.msra.mxu0 %v2539
  %3171 = vmatpush.bf16.msra.mxu0 %v2532
  %3172 = vmatpush.bf16.msra.mxu0 %v2525
  %3173 = vmatpush.bf16.msra.mxu0 %v2518
  %3174 = vmatmul.bf16.gmra.mxu0 %v970
  %v3175 = vpop.f32.mrf.mxu0
  %v3176 = vadd.f32 %v3162, %v3175
  %v3177 = vpop.f32.mrf.mxu0
  %v3178 = vadd.f32 %v3164, %v3177
  %3179 = vdwg.mxu0
  %3180 = vmatpush.bf16.msra.mxu0 %v2623
  %3181 = vmatpush.bf16.msra.mxu0 %v2616
  %3182 = vmatpush.bf16.msra.mxu0 %v2609
  %3183 = vmatpush.bf16.msra.mxu0 %v2602
  %3184 = vmatpush.bf16.msra.mxu0 %v2595
  %3185 = vmatpush.bf16.msra.mxu0 %v2588
  %3186 = vmatpush.bf16.msra.mxu0 %v2581
  %3187 = vmatpush.bf16.msra.mxu0 %v2574
  %3188 = vmatmul.bf16.gmra.mxu0 %v971
  %v3189 = vpop.f32.mrf.mxu0
  %v3190 = vadd.f32 %v3176, %v3189
  %v3191 = vpop.f32.mrf.mxu0
  %v3192 = vadd.f32 %v3178, %v3191
  %3193 = vdwg.mxu0
  %3194 = vmatpush.bf16.msra.mxu0 %v2679
  %3195 = vmatpush.bf16.msra.mxu0 %v2672
  %3196 = vmatpush.bf16.msra.mxu0 %v2665
  %3197 = vmatpush.bf16.msra.mxu0 %v2658
  %3198 = vmatpush.bf16.msra.mxu0 %v2651
  %3199 = vmatpush.bf16.msra.mxu0 %v2644
  %3200 = vmatpush.bf16.msra.mxu0 %v2637
  %3201 = vmatpush.bf16.msra.mxu0 %v2630
  %3202 = vmatmul.bf16.gmra.mxu0 %v972
  %v3203 = vpop.f32.mrf.mxu0
  %v3204 = vadd.f32 %v3190, %v3203
  %v3205 = vpop.f32.mrf.mxu0
  %v3206 = vadd.f32 %v3192, %v3205
  %3207 = vdwg.mxu0
  %3208 = vmatpush.bf16.msra.mxu0 %v2735
  %3209 = vmatpush.bf16.msra.mxu0 %v2728
  %3210 = vmatpush.bf16.msra.mxu0 %v2721
  %3211 = vmatpush.bf16.msra.mxu0 %v2714
  %3212 = vmatpush.bf16.msra.mxu0 %v2707
  %3213 = vmatpush.bf16.msra.mxu0 %v2700
  %3214 = vmatpush.bf16.msra.mxu0 %v2693
  %3215 = vmatpush.bf16.msra.mxu0 %v2686
  %3216 = vmatmul.bf16.gmra.mxu0 %v973
  %v3217 = vpop.f32.mrf.mxu0
  %v3218 = vadd.f32 %v3204, %v3217
  %v3219 = vpop.f32.mrf.mxu0
  %v3220 = vadd.f32 %v3206, %v3219
  %3221 = vdwg.mxu0
  %3222 = vmatpush.bf16.msra.mxu0 %v2791
  %3223 = vmatpush.bf16.msra.mxu0 %v2784
  %3224 = vmatpush.bf16.msra.mxu0 %v2777
  %3225 = vmatpush.bf16.msra.mxu0 %v2770
  %3226 = vmatpush.bf16.msra.mxu0 %v2763
  %3227 = vmatpush.bf16.msra.mxu0 %v2756
  %3228 = vmatpush.bf16.msra.mxu0 %v2749
  %3229 = vmatpush.bf16.msra.mxu0 %v2742
  %3230 = vmatmul.bf16.gmra.mxu0 %v974
  %v3231 = vpop.f32.mrf.mxu0
  %v3232 = vadd.f32 %v3218, %v3231
  %v3233 = vpop.f32.mrf.mxu0
  %v3234 = vadd.f32 %v3220, %v3233
  %3235 = vdwg.mxu0
  %3236 = vmatpush.bf16.msra.mxu0 0
  %3237 = vmatpush.bf16.msra.mxu0 0
  %3238 = vmatpush.bf16.msra.mxu0 0
  %3239 = vmatpush.bf16.msra.mxu0 0
  %3240 = vmatpush.bf16.msra.mxu0 0
  %3241 = vmatpush.bf16.msra.mxu0 0
  %3242 = vmatpush.bf16.msra.mxu0 0
  %3243 = vmatpush.bf16.msra.mxu0 %v2798
  %3244 = vmatmul.bf16.gmra.mxu0 %v3150
  %v3245 = vpop.f32.mrf.mxu0
  %v3246 = vadd.f32 %v3232, %v3245
  %v3247 = vpop.f32.mrf.mxu0
  %v3248 = vadd.f32 %v3234, %v3247
  %3249 = vdwg.mxu0
  %3250 = vmatpush.bf16.msra.mxu0 %v2512
  %3251 = vmatpush.bf16.msra.mxu0 %v2505
  %3252 = vmatpush.bf16.msra.mxu0 %v2498
  %3253 = vmatpush.bf16.msra.mxu0 %v2491
  %3254 = vmatpush.bf16.msra.mxu0 %v2484
  %3255 = vmatpush.bf16.msra.mxu0 %v2477
  %3256 = vmatpush.bf16.msra.mxu0 %v2470
  %3257 = vmatpush.bf16.msra.mxu0 %v2463
  %3258 = vmatmul.bf16.gmra.mxu0 %v969
  %v3259 = vpop.f32.mrf.mxu0
  %v3260 = vadd.f32 %v1371, %v3259
  %v3261 = vpop.f32.mrf.mxu0
  %v3262 = vadd.f32 %v1371, %v3261
  %3263 = vdwg.mxu0
  %3264 = vmatpush.bf16.msra.mxu0 %v2568
  %3265 = vmatpush.bf16.msra.mxu0 %v2561
  %3266 = vmatpush.bf16.msra.mxu0 %v2554
  %3267 = vmatpush.bf16.msra.mxu0 %v2547
  %3268 = vmatpush.bf16.msra.mxu0 %v2540
  %3269 = vmatpush.bf16.msra.mxu0 %v2533
  %3270 = vmatpush.bf16.msra.mxu0 %v2526
  %3271 = vmatpush.bf16.msra.mxu0 %v2519
  %3272 = vmatmul.bf16.gmra.mxu0 %v970
  %v3273 = vpop.f32.mrf.mxu0
  %v3274 = vadd.f32 %v3260, %v3273
  %v3275 = vpop.f32.mrf.mxu0
  %v3276 = vadd.f32 %v3262, %v3275
  %3277 = vdwg.mxu0
  %3278 = vmatpush.bf16.msra.mxu0 %v2624
  %3279 = vmatpush.bf16.msra.mxu0 %v2617
  %3280 = vmatpush.bf16.msra.mxu0 %v2610
  %3281 = vmatpush.bf16.msra.mxu0 %v2603
  %3282 = vmatpush.bf16.msra.mxu0 %v2596
  %3283 = vmatpush.bf16.msra.mxu0 %v2589
  %3284 = vmatpush.bf16.msra.mxu0 %v2582
  %3285 = vmatpush.bf16.msra.mxu0 %v2575
  %3286 = vmatmul.bf16.gmra.mxu0 %v971
  %v3287 = vpop.f32.mrf.mxu0
  %v3288 = vadd.f32 %v3274, %v3287
  %v3289 = vpop.f32.mrf.mxu0
  %v3290 = vadd.f32 %v3276, %v3289
  %3291 = vdwg.mxu0
  %3292 = vmatpush.bf16.msra.mxu0 %v2680
  %3293 = vmatpush.bf16.msra.mxu0 %v2673
  %3294 = vmatpush.bf16.msra.mxu0 %v2666
  %3295 = vmatpush.bf16.msra.mxu0 %v2659
  %3296 = vmatpush.bf16.msra.mxu0 %v2652
  %3297 = vmatpush.bf16.msra.mxu0 %v2645
  %3298 = vmatpush.bf16.msra.mxu0 %v2638
  %3299 = vmatpush.bf16.msra.mxu0 %v2631
  %3300 = vmatmul.bf16.gmra.mxu0 %v972
  %v3301 = vpop.f32.mrf.mxu0
  %v3302 = vadd.f32 %v3288, %v3301
  %v3303 = vpop.f32.mrf.mxu0
  %v3304 = vadd.f32 %v3290, %v3303
  %3305 = vdwg.mxu0
  %3306 = vmatpush.bf16.msra.mxu0 %v2736
  %3307 = vmatpush.bf16.msra.mxu0 %v2729
  %3308 = vmatpush.bf16.msra.mxu0 %v2722
  %3309 = vmatpush.bf16.msra.mxu0 %v2715
  %3310 = vmatpush.bf16.msra.mxu0 %v2708
  %3311 = vmatpush.bf16.msra.mxu0 %v2701
  %3312 = vmatpush.bf16.msra.mxu0 %v2694
  %3313 = vmatpush.bf16.msra.mxu0 %v2687
  %3314 = vmatmul.bf16.gmra.mxu0 %v973
  %v3315 = vpop.f32.mrf.mxu0
  %v3316 = vadd.f32 %v3302, %v3315
  %v3317 = vpop.f32.mrf.mxu0
  %v3318 = vadd.f32 %v3304, %v3317
  %3319 = vdwg.mxu0
  %3320 = vmatpush.bf16.msra.mxu0 %v2792
  %3321 = vmatpush.bf16.msra.mxu0 %v2785
  %3322 = vmatpush.bf16.msra.mxu0 %v2778
  %3323 = vmatpush.bf16.msra.mxu0 %v2771
  %3324 = vmatpush.bf16.msra.mxu0 %v2764
  %3325 = vmatpush.bf16.msra.mxu0 %v2757
  %3326 = vmatpush.bf16.msra.mxu0 %v2750
  %3327 = vmatpush.bf16.msra.mxu0 %v2743
  %3328 = vmatmul.bf16.gmra.mxu0 %v974
  %v3329 = vpop.f32.mrf.mxu0
  %v3330 = vadd.f32 %v3316, %v3329
  %v3331 = vpop.f32.mrf.mxu0
  %v3332 = vadd.f32 %v3318, %v3331
  %3333 = vdwg.mxu0
  %3334 = vmatpush.bf16.msra.mxu0 0
  %3335 = vmatpush.bf16.msra.mxu0 0
  %3336 = vmatpush.bf16.msra.mxu0 0
  %3337 = vmatpush.bf16.msra.mxu0 0
  %3338 = vmatpush.bf16.msra.mxu0 0
  %3339 = vmatpush.bf16.msra.mxu0 0
  %3340 = vmatpush.bf16.msra.mxu0 0
  %3341 = vmatpush.bf16.msra.mxu0 %v2799
  %3342 = vmatmul.bf16.gmra.mxu0 %v3150
  %v3343 = vpop.f32.mrf.mxu0
  %v3344 = vadd.f32 %v3330, %v3343
  %v3345 = vpop.f32.mrf.mxu0
  %v3346 = vadd.f32 %v3332, %v3345
  %3347 = vdwg.mxu0
  %3348 = vmatpush.bf16.msra.mxu0 %v2513
  %3349 = vmatpush.bf16.msra.mxu0 %v2506
  %3350 = vmatpush.bf16.msra.mxu0 %v2499
  %3351 = vmatpush.bf16.msra.mxu0 %v2492
  %3352 = vmatpush.bf16.msra.mxu0 %v2485
  %3353 = vmatpush.bf16.msra.mxu0 %v2478
  %3354 = vmatpush.bf16.msra.mxu0 %v2471
  %3355 = vmatpush.bf16.msra.mxu0 %v2464
  %3356 = vmatmul.bf16.gmra.mxu0 %v969
  %v3357 = vpop.f32.mrf.mxu0
  %v3358 = vadd.f32 %v1372, %v3357
  %v3359 = vpop.f32.mrf.mxu0
  %v3360 = vadd.f32 %v1372, %v3359
  %3361 = vdwg.mxu0
  %3362 = vmatpush.bf16.msra.mxu0 %v2569
  %3363 = vmatpush.bf16.msra.mxu0 %v2562
  %3364 = vmatpush.bf16.msra.mxu0 %v2555
  %3365 = vmatpush.bf16.msra.mxu0 %v2548
  %3366 = vmatpush.bf16.msra.mxu0 %v2541
  %3367 = vmatpush.bf16.msra.mxu0 %v2534
  %3368 = vmatpush.bf16.msra.mxu0 %v2527
  %3369 = vmatpush.bf16.msra.mxu0 %v2520
  %3370 = vmatmul.bf16.gmra.mxu0 %v970
  %v3371 = vpop.f32.mrf.mxu0
  %v3372 = vadd.f32 %v3358, %v3371
  %v3373 = vpop.f32.mrf.mxu0
  %v3374 = vadd.f32 %v3360, %v3373
  %3375 = vdwg.mxu0
  %3376 = vmatpush.bf16.msra.mxu0 %v2625
  %3377 = vmatpush.bf16.msra.mxu0 %v2618
  %3378 = vmatpush.bf16.msra.mxu0 %v2611
  %3379 = vmatpush.bf16.msra.mxu0 %v2604
  %3380 = vmatpush.bf16.msra.mxu0 %v2597
  %3381 = vmatpush.bf16.msra.mxu0 %v2590
  %3382 = vmatpush.bf16.msra.mxu0 %v2583
  %3383 = vmatpush.bf16.msra.mxu0 %v2576
  %3384 = vmatmul.bf16.gmra.mxu0 %v971
  %v3385 = vpop.f32.mrf.mxu0
  %v3386 = vadd.f32 %v3372, %v3385
  %v3387 = vpop.f32.mrf.mxu0
  %v3388 = vadd.f32 %v3374, %v3387
  %3389 = vdwg.mxu0
  %3390 = vmatpush.bf16.msra.mxu0 %v2681
  %3391 = vmatpush.bf16.msra.mxu0 %v2674
  %3392 = vmatpush.bf16.msra.mxu0 %v2667
  %3393 = vmatpush.bf16.msra.mxu0 %v2660
  %3394 = vmatpush.bf16.msra.mxu0 %v2653
  %3395 = vmatpush.bf16.msra.mxu0 %v2646
  %3396 = vmatpush.bf16.msra.mxu0 %v2639
  %3397 = vmatpush.bf16.msra.mxu0 %v2632
  %3398 = vmatmul.bf16.gmra.mxu0 %v972
  %v3399 = vpop.f32.mrf.mxu0
  %v3400 = vadd.f32 %v3386, %v3399
  %v3401 = vpop.f32.mrf.mxu0
  %v3402 = vadd.f32 %v3388, %v3401
  %3403 = vdwg.mxu0
  %3404 = vmatpush.bf16.msra.mxu0 %v2737
  %3405 = vmatpush.bf16.msra.mxu0 %v2730
  %3406 = vmatpush.bf16.msra.mxu0 %v2723
  %3407 = vmatpush.bf16.msra.mxu0 %v2716
  %3408 = vmatpush.bf16.msra.mxu0 %v2709
  %3409 = vmatpush.bf16.msra.mxu0 %v2702
  %3410 = vmatpush.bf16.msra.mxu0 %v2695
  %3411 = vmatpush.bf16.msra.mxu0 %v2688
  %3412 = vmatmul.bf16.gmra.mxu0 %v973
  %v3413 = vpop.f32.mrf.mxu0
  %v3414 = vadd.f32 %v3400, %v3413
  %v3415 = vpop.f32.mrf.mxu0
  %v3416 = vadd.f32 %v3402, %v3415
  %3417 = vdwg.mxu0
  %3418 = vmatpush.bf16.msra.mxu0 %v2793
  %3419 = vmatpush.bf16.msra.mxu0 %v2786
  %3420 = vmatpush.bf16.msra.mxu0 %v2779
  %3421 = vmatpush.bf16.msra.mxu0 %v2772
  %3422 = vmatpush.bf16.msra.mxu0 %v2765
  %3423 = vmatpush.bf16.msra.mxu0 %v2758
  %3424 = vmatpush.bf16.msra.mxu0 %v2751
  %3425 = vmatpush.bf16.msra.mxu0 %v2744
  %3426 = vmatmul.bf16.gmra.mxu0 %v974
  %v3427 = vpop.f32.mrf.mxu0
  %v3428 = vadd.f32 %v3414, %v3427
  %v3429 = vpop.f32.mrf.mxu0
  %v3430 = vadd.f32 %v3416, %v3429
  %3431 = vdwg.mxu0
  %3432 = vmatpush.bf16.msra.mxu0 0
  %3433 = vmatpush.bf16.msra.mxu0 0
  %3434 = vmatpush.bf16.msra.mxu0 0
  %3435 = vmatpush.bf16.msra.mxu0 0
  %3436 = vmatpush.bf16.msra.mxu0 0
  %3437 = vmatpush.bf16.msra.mxu0 0
  %3438 = vmatpush.bf16.msra.mxu0 0
  %3439 = vmatpush.bf16.msra.mxu0 %v2800
  %3440 = vmatmul.bf16.gmra.mxu0 %v3150
  %v3441 = vpop.f32.mrf.mxu0
  %v3442 = vadd.f32 %v3428, %v3441
  %v3443 = vpop.f32.mrf.mxu0
  %v3444 = vadd.f32 %v3430, %v3443
  %3445 = vdwg.mxu0
  %3446 = vmatpush.bf16.msra.mxu0 %v2514
  %3447 = vmatpush.bf16.msra.mxu0 %v2507
  %3448 = vmatpush.bf16.msra.mxu0 %v2500
  %3449 = vmatpush.bf16.msra.mxu0 %v2493
  %3450 = vmatpush.bf16.msra.mxu0 %v2486
  %3451 = vmatpush.bf16.msra.mxu0 %v2479
  %3452 = vmatpush.bf16.msra.mxu0 %v2472
  %3453 = vmatpush.bf16.msra.mxu0 %v2465
  %3454 = vmatmul.bf16.gmra.mxu0 %v969
  %v3455 = vpop.f32.mrf.mxu0
  %v3456 = vadd.f32 %v1373, %v3455
  %v3457 = vpop.f32.mrf.mxu0
  %v3458 = vadd.f32 %v1373, %v3457
  %3459 = vdwg.mxu0
  %3460 = vmatpush.bf16.msra.mxu0 %v2570
  %3461 = vmatpush.bf16.msra.mxu0 %v2563
  %3462 = vmatpush.bf16.msra.mxu0 %v2556
  %3463 = vmatpush.bf16.msra.mxu0 %v2549
  %3464 = vmatpush.bf16.msra.mxu0 %v2542
  %3465 = vmatpush.bf16.msra.mxu0 %v2535
  %3466 = vmatpush.bf16.msra.mxu0 %v2528
  %3467 = vmatpush.bf16.msra.mxu0 %v2521
  %3468 = vmatmul.bf16.gmra.mxu0 %v970
  %v3469 = vpop.f32.mrf.mxu0
  %v3470 = vadd.f32 %v3456, %v3469
  %v3471 = vpop.f32.mrf.mxu0
  %v3472 = vadd.f32 %v3458, %v3471
  %3473 = vdwg.mxu0
  %3474 = vmatpush.bf16.msra.mxu0 %v2626
  %3475 = vmatpush.bf16.msra.mxu0 %v2619
  %3476 = vmatpush.bf16.msra.mxu0 %v2612
  %3477 = vmatpush.bf16.msra.mxu0 %v2605
  %3478 = vmatpush.bf16.msra.mxu0 %v2598
  %3479 = vmatpush.bf16.msra.mxu0 %v2591
  %3480 = vmatpush.bf16.msra.mxu0 %v2584
  %3481 = vmatpush.bf16.msra.mxu0 %v2577
  %3482 = vmatmul.bf16.gmra.mxu0 %v971
  %v3483 = vpop.f32.mrf.mxu0
  %v3484 = vadd.f32 %v3470, %v3483
  %v3485 = vpop.f32.mrf.mxu0
  %v3486 = vadd.f32 %v3472, %v3485
  %3487 = vdwg.mxu0
  %3488 = vmatpush.bf16.msra.mxu0 %v2682
  %3489 = vmatpush.bf16.msra.mxu0 %v2675
  %3490 = vmatpush.bf16.msra.mxu0 %v2668
  %3491 = vmatpush.bf16.msra.mxu0 %v2661
  %3492 = vmatpush.bf16.msra.mxu0 %v2654
  %3493 = vmatpush.bf16.msra.mxu0 %v2647
  %3494 = vmatpush.bf16.msra.mxu0 %v2640
  %3495 = vmatpush.bf16.msra.mxu0 %v2633
  %3496 = vmatmul.bf16.gmra.mxu0 %v972
  %v3497 = vpop.f32.mrf.mxu0
  %v3498 = vadd.f32 %v3484, %v3497
  %v3499 = vpop.f32.mrf.mxu0
  %v3500 = vadd.f32 %v3486, %v3499
  %3501 = vdwg.mxu0
  %3502 = vmatpush.bf16.msra.mxu0 %v2738
  %3503 = vmatpush.bf16.msra.mxu0 %v2731
  %3504 = vmatpush.bf16.msra.mxu0 %v2724
  %3505 = vmatpush.bf16.msra.mxu0 %v2717
  %3506 = vmatpush.bf16.msra.mxu0 %v2710
  %3507 = vmatpush.bf16.msra.mxu0 %v2703
  %3508 = vmatpush.bf16.msra.mxu0 %v2696
  %3509 = vmatpush.bf16.msra.mxu0 %v2689
  %3510 = vmatmul.bf16.gmra.mxu0 %v973
  %v3511 = vpop.f32.mrf.mxu0
  %v3512 = vadd.f32 %v3498, %v3511
  %v3513 = vpop.f32.mrf.mxu0
  %v3514 = vadd.f32 %v3500, %v3513
  %3515 = vdwg.mxu0
  %3516 = vmatpush.bf16.msra.mxu0 %v2794
  %3517 = vmatpush.bf16.msra.mxu0 %v2787
  %3518 = vmatpush.bf16.msra.mxu0 %v2780
  %3519 = vmatpush.bf16.msra.mxu0 %v2773
  %3520 = vmatpush.bf16.msra.mxu0 %v2766
  %3521 = vmatpush.bf16.msra.mxu0 %v2759
  %3522 = vmatpush.bf16.msra.mxu0 %v2752
  %3523 = vmatpush.bf16.msra.mxu0 %v2745
  %3524 = vmatmul.bf16.gmra.mxu0 %v974
  %v3525 = vpop.f32.mrf.mxu0
  %v3526 = vadd.f32 %v3512, %v3525
  %v3527 = vpop.f32.mrf.mxu0
  %v3528 = vadd.f32 %v3514, %v3527
  %3529 = vdwg.mxu0
  %3530 = vmatpush.bf16.msra.mxu0 0
  %3531 = vmatpush.bf16.msra.mxu0 0
  %3532 = vmatpush.bf16.msra.mxu0 0
  %3533 = vmatpush.bf16.msra.mxu0 0
  %3534 = vmatpush.bf16.msra.mxu0 0
  %3535 = vmatpush.bf16.msra.mxu0 0
  %3536 = vmatpush.bf16.msra.mxu0 0
  %3537 = vmatpush.bf16.msra.mxu0 %v2801
  %3538 = vmatmul.bf16.gmra.mxu0 %v3150
  %v3539 = vpop.f32.mrf.mxu0
  %v3540 = vadd.f32 %v3526, %v3539
  %v3541 = vpop.f32.mrf.mxu0
  %v3542 = vadd.f32 %v3528, %v3541
  %3543 = vdwg.mxu0
  %3544 = vmatpush.bf16.msra.mxu0 %v2515
  %3545 = vmatpush.bf16.msra.mxu0 %v2508
  %3546 = vmatpush.bf16.msra.mxu0 %v2501
  %3547 = vmatpush.bf16.msra.mxu0 %v2494
  %3548 = vmatpush.bf16.msra.mxu0 %v2487
  %3549 = vmatpush.bf16.msra.mxu0 %v2480
  %3550 = vmatpush.bf16.msra.mxu0 %v2473
  %3551 = vmatpush.bf16.msra.mxu0 %v2466
  %3552 = vmatmul.bf16.gmra.mxu0 %v969
  %v3553 = vpop.f32.mrf.mxu0
  %v3554 = vadd.f32 %v1374, %v3553
  %v3555 = vpop.f32.mrf.mxu0
  %v3556 = vadd.f32 %v1374, %v3555
  %3557 = vdwg.mxu0
  %3558 = vmatpush.bf16.msra.mxu0 %v2571
  %3559 = vmatpush.bf16.msra.mxu0 %v2564
  %3560 = vmatpush.bf16.msra.mxu0 %v2557
  %3561 = vmatpush.bf16.msra.mxu0 %v2550
  %3562 = vmatpush.bf16.msra.mxu0 %v2543
  %3563 = vmatpush.bf16.msra.mxu0 %v2536
  %3564 = vmatpush.bf16.msra.mxu0 %v2529
  %3565 = vmatpush.bf16.msra.mxu0 %v2522
  %3566 = vmatmul.bf16.gmra.mxu0 %v970
  %v3567 = vpop.f32.mrf.mxu0
  %v3568 = vadd.f32 %v3554, %v3567
  %v3569 = vpop.f32.mrf.mxu0
  %v3570 = vadd.f32 %v3556, %v3569
  %3571 = vdwg.mxu0
  %3572 = vmatpush.bf16.msra.mxu0 %v2627
  %3573 = vmatpush.bf16.msra.mxu0 %v2620
  %3574 = vmatpush.bf16.msra.mxu0 %v2613
  %3575 = vmatpush.bf16.msra.mxu0 %v2606
  %3576 = vmatpush.bf16.msra.mxu0 %v2599
  %3577 = vmatpush.bf16.msra.mxu0 %v2592
  %3578 = vmatpush.bf16.msra.mxu0 %v2585
  %3579 = vmatpush.bf16.msra.mxu0 %v2578
  %3580 = vmatmul.bf16.gmra.mxu0 %v971
  %v3581 = vpop.f32.mrf.mxu0
  %v3582 = vadd.f32 %v3568, %v3581
  %v3583 = vpop.f32.mrf.mxu0
  %v3584 = vadd.f32 %v3570, %v3583
  %3585 = vdwg.mxu0
  %3586 = vmatpush.bf16.msra.mxu0 %v2683
  %3587 = vmatpush.bf16.msra.mxu0 %v2676
  %3588 = vmatpush.bf16.msra.mxu0 %v2669
  %3589 = vmatpush.bf16.msra.mxu0 %v2662
  %3590 = vmatpush.bf16.msra.mxu0 %v2655
  %3591 = vmatpush.bf16.msra.mxu0 %v2648
  %3592 = vmatpush.bf16.msra.mxu0 %v2641
  %3593 = vmatpush.bf16.msra.mxu0 %v2634
  %3594 = vmatmul.bf16.gmra.mxu0 %v972
  %v3595 = vpop.f32.mrf.mxu0
  %v3596 = vadd.f32 %v3582, %v3595
  %v3597 = vpop.f32.mrf.mxu0
  %v3598 = vadd.f32 %v3584, %v3597
  %3599 = vdwg.mxu0
  %3600 = vmatpush.bf16.msra.mxu0 %v2739
  %3601 = vmatpush.bf16.msra.mxu0 %v2732
  %3602 = vmatpush.bf16.msra.mxu0 %v2725
  %3603 = vmatpush.bf16.msra.mxu0 %v2718
  %3604 = vmatpush.bf16.msra.mxu0 %v2711
  %3605 = vmatpush.bf16.msra.mxu0 %v2704
  %3606 = vmatpush.bf16.msra.mxu0 %v2697
  %3607 = vmatpush.bf16.msra.mxu0 %v2690
  %3608 = vmatmul.bf16.gmra.mxu0 %v973
  %v3609 = vpop.f32.mrf.mxu0
  %v3610 = vadd.f32 %v3596, %v3609
  %v3611 = vpop.f32.mrf.mxu0
  %v3612 = vadd.f32 %v3598, %v3611
  %3613 = vdwg.mxu0
  %3614 = vmatpush.bf16.msra.mxu0 %v2795
  %3615 = vmatpush.bf16.msra.mxu0 %v2788
  %3616 = vmatpush.bf16.msra.mxu0 %v2781
  %3617 = vmatpush.bf16.msra.mxu0 %v2774
  %3618 = vmatpush.bf16.msra.mxu0 %v2767
  %3619 = vmatpush.bf16.msra.mxu0 %v2760
  %3620 = vmatpush.bf16.msra.mxu0 %v2753
  %3621 = vmatpush.bf16.msra.mxu0 %v2746
  %3622 = vmatmul.bf16.gmra.mxu0 %v974
  %v3623 = vpop.f32.mrf.mxu0
  %v3624 = vadd.f32 %v3610, %v3623
  %v3625 = vpop.f32.mrf.mxu0
  %v3626 = vadd.f32 %v3612, %v3625
  %3627 = vdwg.mxu0
  %3628 = vmatpush.bf16.msra.mxu0 0
  %3629 = vmatpush.bf16.msra.mxu0 0
  %3630 = vmatpush.bf16.msra.mxu0 0
  %3631 = vmatpush.bf16.msra.mxu0 0
  %3632 = vmatpush.bf16.msra.mxu0 0
  %3633 = vmatpush.bf16.msra.mxu0 0
  %3634 = vmatpush.bf16.msra.mxu0 0
  %3635 = vmatpush.bf16.msra.mxu0 %v2802
  %3636 = vmatmul.bf16.gmra.mxu0 %v3150
  %v3637 = vpop.f32.mrf.mxu0
  %v3638 = vadd.f32 %v3624, %v3637
  %v3639 = vpop.f32.mrf.mxu0
  %v3640 = vadd.f32 %v3626, %v3639
  %3641 = vdwg.mxu0
  %3642 = vmatpush.bf16.msra.mxu0 %v2516
  %3643 = vmatpush.bf16.msra.mxu0 %v2509
  %3644 = vmatpush.bf16.msra.mxu0 %v2502
  %3645 = vmatpush.bf16.msra.mxu0 %v2495
  %3646 = vmatpush.bf16.msra.mxu0 %v2488
  %3647 = vmatpush.bf16.msra.mxu0 %v2481
  %3648 = vmatpush.bf16.msra.mxu0 %v2474
  %3649 = vmatpush.bf16.msra.mxu0 %v2467
  %3650 = vmatmul.bf16.gmra.mxu0 %v969
  %v3651 = vpop.f32.mrf.mxu0
  %v3652 = vadd.f32 %v1375, %v3651
  %v3653 = vpop.f32.mrf.mxu0
  %v3654 = vadd.f32 %v1375, %v3653
  %3655 = vdwg.mxu0
  %3656 = vmatpush.bf16.msra.mxu0 %v2572
  %3657 = vmatpush.bf16.msra.mxu0 %v2565
  %3658 = vmatpush.bf16.msra.mxu0 %v2558
  %3659 = vmatpush.bf16.msra.mxu0 %v2551
  %3660 = vmatpush.bf16.msra.mxu0 %v2544
  %3661 = vmatpush.bf16.msra.mxu0 %v2537
  %3662 = vmatpush.bf16.msra.mxu0 %v2530
  %3663 = vmatpush.bf16.msra.mxu0 %v2523
  %3664 = vmatmul.bf16.gmra.mxu0 %v970
  %v3665 = vpop.f32.mrf.mxu0
  %v3666 = vadd.f32 %v3652, %v3665
  %v3667 = vpop.f32.mrf.mxu0
  %v3668 = vadd.f32 %v3654, %v3667
  %3669 = vdwg.mxu0
  %3670 = vmatpush.bf16.msra.mxu0 %v2628
  %3671 = vmatpush.bf16.msra.mxu0 %v2621
  %3672 = vmatpush.bf16.msra.mxu0 %v2614
  %3673 = vmatpush.bf16.msra.mxu0 %v2607
  %3674 = vmatpush.bf16.msra.mxu0 %v2600
  %3675 = vmatpush.bf16.msra.mxu0 %v2593
  %3676 = vmatpush.bf16.msra.mxu0 %v2586
  %3677 = vmatpush.bf16.msra.mxu0 %v2579
  %3678 = vmatmul.bf16.gmra.mxu0 %v971
  %v3679 = vpop.f32.mrf.mxu0
  %v3680 = vadd.f32 %v3666, %v3679
  %v3681 = vpop.f32.mrf.mxu0
  %v3682 = vadd.f32 %v3668, %v3681
  %3683 = vdwg.mxu0
  %3684 = vmatpush.bf16.msra.mxu0 %v2684
  %3685 = vmatpush.bf16.msra.mxu0 %v2677
  %3686 = vmatpush.bf16.msra.mxu0 %v2670
  %3687 = vmatpush.bf16.msra.mxu0 %v2663
  %3688 = vmatpush.bf16.msra.mxu0 %v2656
  %3689 = vmatpush.bf16.msra.mxu0 %v2649
  %3690 = vmatpush.bf16.msra.mxu0 %v2642
  %3691 = vmatpush.bf16.msra.mxu0 %v2635
  %3692 = vmatmul.bf16.gmra.mxu0 %v972
  %v3693 = vpop.f32.mrf.mxu0
  %v3694 = vadd.f32 %v3680, %v3693
  %v3695 = vpop.f32.mrf.mxu0
  %v3696 = vadd.f32 %v3682, %v3695
  %3697 = vdwg.mxu0
  %3698 = vmatpush.bf16.msra.mxu0 %v2740
  %3699 = vmatpush.bf16.msra.mxu0 %v2733
  %3700 = vmatpush.bf16.msra.mxu0 %v2726
  %3701 = vmatpush.bf16.msra.mxu0 %v2719
  %3702 = vmatpush.bf16.msra.mxu0 %v2712
  %3703 = vmatpush.bf16.msra.mxu0 %v2705
  %3704 = vmatpush.bf16.msra.mxu0 %v2698
  %3705 = vmatpush.bf16.msra.mxu0 %v2691
  %3706 = vmatmul.bf16.gmra.mxu0 %v973
  %v3707 = vpop.f32.mrf.mxu0
  %v3708 = vadd.f32 %v3694, %v3707
  %v3709 = vpop.f32.mrf.mxu0
  %v3710 = vadd.f32 %v3696, %v3709
  %3711 = vdwg.mxu0
  %3712 = vmatpush.bf16.msra.mxu0 %v2796
  %3713 = vmatpush.bf16.msra.mxu0 %v2789
  %3714 = vmatpush.bf16.msra.mxu0 %v2782
  %3715 = vmatpush.bf16.msra.mxu0 %v2775
  %3716 = vmatpush.bf16.msra.mxu0 %v2768
  %3717 = vmatpush.bf16.msra.mxu0 %v2761
  %3718 = vmatpush.bf16.msra.mxu0 %v2754
  %3719 = vmatpush.bf16.msra.mxu0 %v2747
  %3720 = vmatmul.bf16.gmra.mxu0 %v974
  %v3721 = vpop.f32.mrf.mxu0
  %v3722 = vadd.f32 %v3708, %v3721
  %v3723 = vpop.f32.mrf.mxu0
  %v3724 = vadd.f32 %v3710, %v3723
  %3725 = vdwg.mxu0
  %3726 = vmatpush.bf16.msra.mxu0 0
  %3727 = vmatpush.bf16.msra.mxu0 0
  %3728 = vmatpush.bf16.msra.mxu0 0
  %3729 = vmatpush.bf16.msra.mxu0 0
  %3730 = vmatpush.bf16.msra.mxu0 0
  %3731 = vmatpush.bf16.msra.mxu0 0
  %3732 = vmatpush.bf16.msra.mxu0 0
  %3733 = vmatpush.bf16.msra.mxu0 %v2803
  %3734 = vmatmul.bf16.gmra.mxu0 %v3150
  %v3735 = vpop.f32.mrf.mxu0
  %v3736 = vadd.f32 %v3722, %v3735
  %v3737 = vpop.f32.mrf.mxu0
  %v3738 = vadd.f32 %v3724, %v3737
  %3739 = vdwg.mxu0
  %3740 = vmatpush.bf16.msra.mxu0 %v2517
  %3741 = vmatpush.bf16.msra.mxu0 %v2510
  %3742 = vmatpush.bf16.msra.mxu0 %v2503
  %3743 = vmatpush.bf16.msra.mxu0 %v2496
  %3744 = vmatpush.bf16.msra.mxu0 %v2489
  %3745 = vmatpush.bf16.msra.mxu0 %v2482
  %3746 = vmatpush.bf16.msra.mxu0 %v2475
  %3747 = vmatpush.bf16.msra.mxu0 %v2468
  %3748 = vmatmul.bf16.gmra.mxu0 %v969
  %v3749 = vpop.f32.mrf.mxu0
  %v3750 = vadd.f32 %v1376, %v3749
  %v3751 = vpop.f32.mrf.mxu0
  %v3752 = vadd.f32 %v1376, %v3751
  %3753 = vdwg.mxu0
  %3754 = vmatpush.bf16.msra.mxu0 %v2573
  %3755 = vmatpush.bf16.msra.mxu0 %v2566
  %3756 = vmatpush.bf16.msra.mxu0 %v2559
  %3757 = vmatpush.bf16.msra.mxu0 %v2552
  %3758 = vmatpush.bf16.msra.mxu0 %v2545
  %3759 = vmatpush.bf16.msra.mxu0 %v2538
  %3760 = vmatpush.bf16.msra.mxu0 %v2531
  %3761 = vmatpush.bf16.msra.mxu0 %v2524
  %3762 = vmatmul.bf16.gmra.mxu0 %v970
  %v3763 = vpop.f32.mrf.mxu0
  %v3764 = vadd.f32 %v3750, %v3763
  %v3765 = vpop.f32.mrf.mxu0
  %v3766 = vadd.f32 %v3752, %v3765
  %3767 = vdwg.mxu0
  %3768 = vmatpush.bf16.msra.mxu0 %v2629
  %3769 = vmatpush.bf16.msra.mxu0 %v2622
  %3770 = vmatpush.bf16.msra.mxu0 %v2615
  %3771 = vmatpush.bf16.msra.mxu0 %v2608
  %3772 = vmatpush.bf16.msra.mxu0 %v2601
  %3773 = vmatpush.bf16.msra.mxu0 %v2594
  %3774 = vmatpush.bf16.msra.mxu0 %v2587
  %3775 = vmatpush.bf16.msra.mxu0 %v2580
  %3776 = vmatmul.bf16.gmra.mxu0 %v971
  %v3777 = vpop.f32.mrf.mxu0
  %v3778 = vadd.f32 %v3764, %v3777
  %v3779 = vpop.f32.mrf.mxu0
  %v3780 = vadd.f32 %v3766, %v3779
  %3781 = vdwg.mxu0
  %3782 = vmatpush.bf16.msra.mxu0 %v2685
  %3783 = vmatpush.bf16.msra.mxu0 %v2678
  %3784 = vmatpush.bf16.msra.mxu0 %v2671
  %3785 = vmatpush.bf16.msra.mxu0 %v2664
  %3786 = vmatpush.bf16.msra.mxu0 %v2657
  %3787 = vmatpush.bf16.msra.mxu0 %v2650
  %3788 = vmatpush.bf16.msra.mxu0 %v2643
  %3789 = vmatpush.bf16.msra.mxu0 %v2636
  %3790 = vmatmul.bf16.gmra.mxu0 %v972
  %v3791 = vpop.f32.mrf.mxu0
  %v3792 = vadd.f32 %v3778, %v3791
  %v3793 = vpop.f32.mrf.mxu0
  %v3794 = vadd.f32 %v3780, %v3793
  %3795 = vdwg.mxu0
  %3796 = vmatpush.bf16.msra.mxu0 %v2741
  %3797 = vmatpush.bf16.msra.mxu0 %v2734
  %3798 = vmatpush.bf16.msra.mxu0 %v2727
  %3799 = vmatpush.bf16.msra.mxu0 %v2720
  %3800 = vmatpush.bf16.msra.mxu0 %v2713
  %3801 = vmatpush.bf16.msra.mxu0 %v2706
  %3802 = vmatpush.bf16.msra.mxu0 %v2699
  %3803 = vmatpush.bf16.msra.mxu0 %v2692
  %3804 = vmatmul.bf16.gmra.mxu0 %v973
  %v3805 = vpop.f32.mrf.mxu0
  %v3806 = vadd.f32 %v3792, %v3805
  %v3807 = vpop.f32.mrf.mxu0
  %v3808 = vadd.f32 %v3794, %v3807
  %3809 = vdwg.mxu0
  %3810 = vmatpush.bf16.msra.mxu0 %v2797
  %3811 = vmatpush.bf16.msra.mxu0 %v2790
  %3812 = vmatpush.bf16.msra.mxu0 %v2783
  %3813 = vmatpush.bf16.msra.mxu0 %v2776
  %3814 = vmatpush.bf16.msra.mxu0 %v2769
  %3815 = vmatpush.bf16.msra.mxu0 %v2762
  %3816 = vmatpush.bf16.msra.mxu0 %v2755
  %3817 = vmatpush.bf16.msra.mxu0 %v2748
  %3818 = vmatmul.bf16.gmra.mxu0 %v974
  %v3819 = vpop.f32.mrf.mxu0
  %v3820 = vadd.f32 %v3806, %v3819
  %v3821 = vpop.f32.mrf.mxu0
  %v3822 = vadd.f32 %v3808, %v3821
  %3823 = vdwg.mxu0
  %3824 = vmatpush.bf16.msra.mxu0 0
  %3825 = vmatpush.bf16.msra.mxu0 0
  %3826 = vmatpush.bf16.msra.mxu0 0
  %3827 = vmatpush.bf16.msra.mxu0 0
  %3828 = vmatpush.bf16.msra.mxu0 0
  %3829 = vmatpush.bf16.msra.mxu0 0
  %3830 = vmatpush.bf16.msra.mxu0 0
  %3831 = vmatpush.bf16.msra.mxu0 %v2804
  %3832 = vmatmul.bf16.gmra.mxu0 %v3150
  %v3833 = vpop.f32.mrf.mxu0
  %v3834 = vadd.f32 %v3820, %v3833
  %v3835 = vpop.f32.mrf.mxu0
  %v3836 = vadd.f32 %v3822, %v3835
  %3837 = vdwg.mxu0
  %v3838 = vmax.f32 %v3246, 0.0
  %v3839 = vmax.f32 %v3344, 0.0
  %v3840 = vmax.f32 %v3442, 0.0
  %v3841 = vmax.f32 %v3540, 0.0
  %v3842 = vmax.f32 %v3638, 0.0
  %v3843 = vmax.f32 %v3736, 0.0
  %v3844 = vmax.f32 %v3834, 0.0
  %v3845 = vmax.f32 %v3248, 0.0
  %v3846 = vmax.f32 %v3346, 0.0
  %v3847 = vmax.f32 %v3444, 0.0
  %v3848 = vmax.f32 %v3542, 0.0
  %v3849 = vmax.f32 %v3640, 0.0
  %v3850 = vmax.f32 %v3738, 0.0
  %v3851 = vmax.f32 %v3836, 0.0
  %v3852 = vpack.c.bf16 %v3845, %v3838
  %v3853 = vpack.c.bf16 %v3846, %v3839
  %v3854 = vpack.c.bf16 %v3847, %v3840
  %v3855 = vpack.c.bf16 %v3848, %v3841
  %v3856 = vpack.c.bf16 %v3849, %v3842
  %v3857 = vpack.c.bf16 %v3850, %v3843
  %v3858 = vpack.c.bf16 %v3851, %v3844
  %s3859 = smul.u32 4, 112
  %s3860 = smul.u32 %s3859, 8
  %s3861 = sshll.u32 %s3860, 4
  %3862 = dma.done [#allocation3], %s3861
  %v3863 = vld [vmem:[#allocation2] sm:$0xff]
  %v3864 = vld [vmem:[#allocation2 + $0x8] sm:$0xff]
  %v3865 = vld [vmem:[#allocation2 + $0x10] sm:$0xff]
  %v3866 = vld [vmem:[#allocation2 + $0x18] sm:$0xff]
  %v3867 = vld [vmem:[#allocation2 + $0x20] sm:$0xff]
  %v3868 = vld [vmem:[#allocation2 + $0x28] sm:$0xff]
  %v3869 = vld [vmem:[#allocation2 + $0x30] sm:$0xff]
  %v3870 = vld [vmem:[#allocation2 + $0x38] sm:$0xff]
  %v3871 = vld [vmem:[#allocation2 + $0x40] sm:$0xff]
  %v3872 = vld [vmem:[#allocation2 + $0x48] sm:$0xff]
  %v3873 = vld [vmem:[#allocation2 + $0x50] sm:$0xff]
  %v3874 = vld [vmem:[#allocation2 + $0x58] sm:$0xff]
  %v3875 = vld [vmem:[#allocation2 + $0x60] sm:$0xff]
  %v3876 = vld [vmem:[#allocation2 + $0x68] sm:$0xff]
  %v3877 = vld [vmem:[#allocation2 + $0x70] sm:$0xff]
  %v3878 = vld [vmem:[#allocation2 + $0x78] sm:$0xff]
  %v3879 = vld [vmem:[#allocation2 + $0x80] sm:$0xff]
  %v3880 = vld [vmem:[#allocation2 + $0x88] sm:$0xff]
  %v3881 = vld [vmem:[#allocation2 + $0x90] sm:$0xff]
  %v3882 = vld [vmem:[#allocation2 + $0x98] sm:$0xff]
  %v3883 = vld [vmem:[#allocation2 + $0xa0] sm:$0xff]
  %v3884 = vld [vmem:[#allocation2 + $0xa8] sm:$0xff]
  %v3885 = vld [vmem:[#allocation2 + $0xb0] sm:$0xff]
  %v3886 = vld [vmem:[#allocation2 + $0xb8] sm:$0xff]
  %v3887 = vld [vmem:[#allocation2 + $0xc0] sm:$0xff]
  %v3888 = vld [vmem:[#allocation2 + $0xc8] sm:$0xff]
  %v3889 = vld [vmem:[#allocation2 + $0xd0] sm:$0xff]
  %v3890 = vld [vmem:[#allocation2 + $0xd8] sm:$0xff]
  %v3891 = vld [vmem:[#allocation2 + $0xe0] sm:$0xff]
  %v3892 = vld [vmem:[#allocation2 + $0xe8] sm:$0xff]
  %v3893 = vld [vmem:[#allocation2 + $0xf0] sm:$0xff]
  %v3894 = vld [vmem:[#allocation2 + $0xf8] sm:$0xff]
  %v3895 = vld [vmem:[#allocation2 + $0x100] sm:$0xff]
  %v3896 = vld [vmem:[#allocation2 + $0x108] sm:$0xff]
  %v3897 = vld [vmem:[#allocation2 + $0x110] sm:$0xff]
  %v3898 = vld [vmem:[#allocation2 + $0x118] sm:$0xff]
  %v3899 = vld [vmem:[#allocation2 + $0x120] sm:$0xff]
  %v3900 = vld [vmem:[#allocation2 + $0x128] sm:$0xff]
  %v3901 = vld [vmem:[#allocation2 + $0x130] sm:$0xff]
  %v3902 = vld [vmem:[#allocation2 + $0x138] sm:$0xff]
  %v3903 = vld [vmem:[#allocation2 + $0x140] sm:$0xff]
  %v3904 = vld [vmem:[#allocation2 + $0x148] sm:$0xff]
  %v3905 = vld [vmem:[#allocation2 + $0x150] sm:$0xff]
  %v3906 = vld [vmem:[#allocation2 + $0x158] sm:$0xff]
  %v3907 = vld [vmem:[#allocation2 + $0x160] sm:$0xff]
  %v3908 = vld [vmem:[#allocation2 + $0x168] sm:$0xff]
  %v3909 = vld [vmem:[#allocation2 + $0x170] sm:$0xff]
  %v3910 = vld [vmem:[#allocation2 + $0x178] sm:$0xff]
  %v3911 = vld [vmem:[#allocation2 + $0x180] sm:$0xff]
  %v3912 = vld [vmem:[#allocation2 + $0x188] sm:$0xff]
  %v3913 = vld [vmem:[#allocation2 + $0x190] sm:$0xff]
  %v3914 = vld [vmem:[#allocation2 + $0x198] sm:$0xff]
  %v3915 = vld [vmem:[#allocation2 + $0x1a0] sm:$0xff]
  %v3916 = vld [vmem:[#allocation2 + $0x1a8] sm:$0xff]
  %v3917 = vld [vmem:[#allocation2 + $0x1b0] sm:$0xff]
  %v3918 = vld [vmem:[#allocation2 + $0x1b8] sm:$0xff]
  %v3919 = vld [vmem:[#allocation2 + $0x1c0] sm:$0xff]
  %v3920 = vld [vmem:[#allocation2 + $0x1c8] sm:$0xff]
  %v3921 = vld [vmem:[#allocation2 + $0x1d0] sm:$0xff]
  %v3922 = vld [vmem:[#allocation2 + $0x1d8] sm:$0xff]
  %v3923 = vld [vmem:[#allocation2 + $0x1e0] sm:$0xff]
  %v3924 = vld [vmem:[#allocation2 + $0x1e8] sm:$0xff]
  %v3925 = vld [vmem:[#allocation2 + $0x1f0] sm:$0xff]
  %v3926 = vld [vmem:[#allocation2 + $0x1f8] sm:$0xff]
  %v3927 = vld [vmem:[#allocation2 + $0x200] sm:$0xff]
  %v3928 = vld [vmem:[#allocation2 + $0x208] sm:$0xff]
  %v3929 = vld [vmem:[#allocation2 + $0x210] sm:$0xff]
  %v3930 = vld [vmem:[#allocation2 + $0x218] sm:$0xff]
  %v3931 = vld [vmem:[#allocation2 + $0x220] sm:$0xff]
  %v3932 = vld [vmem:[#allocation2 + $0x228] sm:$0xff]
  %v3933 = vld [vmem:[#allocation2 + $0x230] sm:$0xff]
  %v3934 = vld [vmem:[#allocation2 + $0x238] sm:$0xff]
  %v3935 = vld [vmem:[#allocation2 + $0x240] sm:$0xff]
  %v3936 = vld [vmem:[#allocation2 + $0x248] sm:$0xff]
  %v3937 = vld [vmem:[#allocation2 + $0x250] sm:$0xff]
  %v3938 = vld [vmem:[#allocation2 + $0x258] sm:$0xff]
  %v3939 = vld [vmem:[#allocation2 + $0x260] sm:$0xff]
  %v3940 = vld [vmem:[#allocation2 + $0x268] sm:$0xff]
  %v3941 = vld [vmem:[#allocation2 + $0x270] sm:$0xff]
  %v3942 = vld [vmem:[#allocation2 + $0x278] sm:$0xff]
  %v3943 = vld [vmem:[#allocation2 + $0x280] sm:$0xff]
  %v3944 = vld [vmem:[#allocation2 + $0x288] sm:$0xff]
  %v3945 = vld [vmem:[#allocation2 + $0x290] sm:$0xff]
  %v3946 = vld [vmem:[#allocation2 + $0x298] sm:$0xff]
  %v3947 = vld [vmem:[#allocation2 + $0x2a0] sm:$0xff]
  %v3948 = vld [vmem:[#allocation2 + $0x2a8] sm:$0xff]
  %v3949 = vld [vmem:[#allocation2 + $0x2b0] sm:$0xff]
  %v3950 = vld [vmem:[#allocation2 + $0x2b8] sm:$0xff]
  %v3951 = vld [vmem:[#allocation2 + $0x2c0] sm:$0xff]
  %v3952 = vld [vmem:[#allocation2 + $0x2c8] sm:$0xff]
  %v3953 = vld [vmem:[#allocation2 + $0x2d0] sm:$0xff]
  %v3954 = vld [vmem:[#allocation2 + $0x2d8] sm:$0xff]
  %v3955 = vld [vmem:[#allocation2 + $0x2e0] sm:$0xff]
  %v3956 = vld [vmem:[#allocation2 + $0x2e8] sm:$0xff]
  %v3957 = vld [vmem:[#allocation2 + $0x2f0] sm:$0xff]
  %v3958 = vld [vmem:[#allocation2 + $0x2f8] sm:$0xff]
  %v3959 = vld [vmem:[#allocation2 + $0x300] sm:$0xff]
  %v3960 = vld [vmem:[#allocation2 + $0x308] sm:$0xff]
  %v3961 = vld [vmem:[#allocation2 + $0x310] sm:$0xff]
  %v3962 = vld [vmem:[#allocation2 + $0x318] sm:$0xff]
  %v3963 = vld [vmem:[#allocation2 + $0x320] sm:$0xff]
  %v3964 = vld [vmem:[#allocation2 + $0x328] sm:$0xff]
  %v3965 = vld [vmem:[#allocation2 + $0x330] sm:$0xff]
  %v3966 = vld [vmem:[#allocation2 + $0x338] sm:$0xff]
  %v3967 = vld [vmem:[#allocation2 + $0x340] sm:$0xff]
  %v3968 = vld [vmem:[#allocation2 + $0x348] sm:$0xff]
  %v3969 = vld [vmem:[#allocation2 + $0x350] sm:$0xff]
  %v3970 = vld [vmem:[#allocation2 + $0x358] sm:$0xff]
  %v3971 = vld [vmem:[#allocation2 + $0x360] sm:$0xff]
  %v3972 = vld [vmem:[#allocation2 + $0x368] sm:$0xff]
  %v3973 = vld [vmem:[#allocation2 + $0x370] sm:$0xff]
  %v3974 = vld [vmem:[#allocation2 + $0x378] sm:$0xff]
  %v3975 = vld [vmem:[#allocation2 + $0x380] sm:$0xff]
  %v3976 = vld [vmem:[#allocation2 + $0x388] sm:$0xff]
  %v3977 = vld [vmem:[#allocation2 + $0x390] sm:$0xff]
  %v3978 = vld [vmem:[#allocation2 + $0x398] sm:$0xff]
  %v3979 = vld [vmem:[#allocation2 + $0x3a0] sm:$0xff]
  %v3980 = vld [vmem:[#allocation2 + $0x3a8] sm:$0xff]
  %v3981 = vld [vmem:[#allocation2 + $0x3b0] sm:$0xff]
  %v3982 = vld [vmem:[#allocation2 + $0x3b8] sm:$0xff]
  %v3983 = vld [vmem:[#allocation2 + $0x3c0] sm:$0xff]
  %v3984 = vld [vmem:[#allocation2 + $0x3c8] sm:$0xff]
  %v3985 = vld [vmem:[#allocation2 + $0x3d0] sm:$0xff]
  %v3986 = vld [vmem:[#allocation2 + $0x3d8] sm:$0xff]
  %v3987 = vld [vmem:[#allocation2 + $0x3e0] sm:$0xff]
  %v3988 = vld [vmem:[#allocation2 + $0x3e8] sm:$0xff]
  %v3989 = vld [vmem:[#allocation2 + $0x3f0] sm:$0xff]
  %v3990 = vld [vmem:[#allocation2 + $0x3f8] sm:$0xff]
  %v3991 = vld [vmem:[#allocation2 + $0x400] sm:$0xff]
  %v3992 = vld [vmem:[#allocation2 + $0x408] sm:$0xff]
  %v3993 = vld [vmem:[#allocation2 + $0x410] sm:$0xff]
  %v3994 = vld [vmem:[#allocation2 + $0x418] sm:$0xff]
  %v3995 = vld [vmem:[#allocation2 + $0x420] sm:$0xff]
  %v3996 = vld [vmem:[#allocation2 + $0x428] sm:$0xff]
  %v3997 = vld [vmem:[#allocation2 + $0x430] sm:$0xff]
  %v3998 = vld [vmem:[#allocation2 + $0x438] sm:$0xff]
  %v3999 = vld [vmem:[#allocation2 + $0x440] sm:$0xff]
  %v4000 = vld [vmem:[#allocation2 + $0x448] sm:$0xff]
  %v4001 = vld [vmem:[#allocation2 + $0x450] sm:$0xff]
  %v4002 = vld [vmem:[#allocation2 + $0x458] sm:$0xff]
  %v4003 = vld [vmem:[#allocation2 + $0x460] sm:$0xff]
  %v4004 = vld [vmem:[#allocation2 + $0x468] sm:$0xff]
  %v4005 = vld [vmem:[#allocation2 + $0x470] sm:$0xff]
  %v4006 = vld [vmem:[#allocation2 + $0x478] sm:$0xff]
  %v4007 = vld [vmem:[#allocation2 + $0x480] sm:$0xff]
  %v4008 = vld [vmem:[#allocation2 + $0x488] sm:$0xff]
  %v4009 = vld [vmem:[#allocation2 + $0x490] sm:$0xff]
  %v4010 = vld [vmem:[#allocation2 + $0x498] sm:$0xff]
  %v4011 = vld [vmem:[#allocation2 + $0x4a0] sm:$0xff]
  %v4012 = vld [vmem:[#allocation2 + $0x4a8] sm:$0xff]
  %v4013 = vld [vmem:[#allocation2 + $0x4b0] sm:$0xff]
  %v4014 = vld [vmem:[#allocation2 + $0x4b8] sm:$0xff]
  %v4015 = vld [vmem:[#allocation2 + $0x4c0] sm:$0xff]
  %v4016 = vld [vmem:[#allocation2 + $0x4c8] sm:$0xff]
  %v4017 = vld [vmem:[#allocation2 + $0x4d0] sm:$0xff]
  %v4018 = vld [vmem:[#allocation2 + $0x4d8] sm:$0xff]
  %v4019 = vld [vmem:[#allocation2 + $0x4e0] sm:$0xff]
  %v4020 = vld [vmem:[#allocation2 + $0x4e8] sm:$0xff]
  %v4021 = vld [vmem:[#allocation2 + $0x4f0] sm:$0xff]
  %v4022 = vld [vmem:[#allocation2 + $0x4f8] sm:$0xff]
  %v4023 = vld [vmem:[#allocation2 + $0x500] sm:$0xff]
  %v4024 = vld [vmem:[#allocation2 + $0x508] sm:$0xff]
  %v4025 = vld [vmem:[#allocation2 + $0x510] sm:$0xff]
  %v4026 = vld [vmem:[#allocation2 + $0x518] sm:$0xff]
  %v4027 = vld [vmem:[#allocation2 + $0x520] sm:$0xff]
  %v4028 = vld [vmem:[#allocation2 + $0x528] sm:$0xff]
  %v4029 = vld [vmem:[#allocation2 + $0x530] sm:$0xff]
  %v4030 = vld [vmem:[#allocation2 + $0x538] sm:$0xff]
  %v4031 = vld [vmem:[#allocation2 + $0x540] sm:$0xff]
  %v4032 = vld [vmem:[#allocation2 + $0x548] sm:$0xff]
  %v4033 = vld [vmem:[#allocation2 + $0x550] sm:$0xff]
  %v4034 = vld [vmem:[#allocation2 + $0x558] sm:$0xff]
  %v4035 = vld [vmem:[#allocation2 + $0x560] sm:$0xff]
  %v4036 = vld [vmem:[#allocation2 + $0x568] sm:$0xff]
  %v4037 = vld [vmem:[#allocation2 + $0x570] sm:$0xff]
  %v4038 = vld [vmem:[#allocation2 + $0x578] sm:$0xff]
  %v4039 = vld [vmem:[#allocation2 + $0x580] sm:$0xff]
  %v4040 = vld [vmem:[#allocation2 + $0x588] sm:$0xff]
  %v4041 = vld [vmem:[#allocation2 + $0x590] sm:$0xff]
  %v4042 = vld [vmem:[#allocation2 + $0x598] sm:$0xff]
  %v4043 = vld [vmem:[#allocation2 + $0x5a0] sm:$0xff]
  %v4044 = vld [vmem:[#allocation2 + $0x5a8] sm:$0xff]
  %v4045 = vld [vmem:[#allocation2 + $0x5b0] sm:$0xff]
  %v4046 = vld [vmem:[#allocation2 + $0x5b8] sm:$0xff]
  %v4047 = vld [vmem:[#allocation2 + $0x5c0] sm:$0xff]
  %v4048 = vld [vmem:[#allocation2 + $0x5c8] sm:$0xff]
  %v4049 = vld [vmem:[#allocation2 + $0x5d0] sm:$0xff]
  %v4050 = vld [vmem:[#allocation2 + $0x5d8] sm:$0xff]
  %v4051 = vld [vmem:[#allocation2 + $0x5e0] sm:$0xff]
  %v4052 = vld [vmem:[#allocation2 + $0x5e8] sm:$0xff]
  %v4053 = vld [vmem:[#allocation2 + $0x5f0] sm:$0xff]
  %v4054 = vld [vmem:[#allocation2 + $0x5f8] sm:$0xff]
  %v4055 = vld [vmem:[#allocation2 + $0x600] sm:$0xff]
  %v4056 = vld [vmem:[#allocation2 + $0x608] sm:$0xff]
  %v4057 = vld [vmem:[#allocation2 + $0x610] sm:$0xff]
  %v4058 = vld [vmem:[#allocation2 + $0x618] sm:$0xff]
  %v4059 = vld [vmem:[#allocation2 + $0x620] sm:$0xff]
  %v4060 = vld [vmem:[#allocation2 + $0x628] sm:$0xff]
  %v4061 = vld [vmem:[#allocation2 + $0x630] sm:$0xff]
  %v4062 = vld [vmem:[#allocation2 + $0x638] sm:$0xff]
  %v4063 = vld [vmem:[#allocation2 + $0x640] sm:$0xff]
  %v4064 = vld [vmem:[#allocation2 + $0x648] sm:$0xff]
  %v4065 = vld [vmem:[#allocation2 + $0x650] sm:$0xff]
  %v4066 = vld [vmem:[#allocation2 + $0x658] sm:$0xff]
  %v4067 = vld [vmem:[#allocation2 + $0x660] sm:$0xff]
  %v4068 = vld [vmem:[#allocation2 + $0x668] sm:$0xff]
  %v4069 = vld [vmem:[#allocation2 + $0x670] sm:$0xff]
  %v4070 = vld [vmem:[#allocation2 + $0x678] sm:$0xff]
  %v4071 = vld [vmem:[#allocation2 + $0x680] sm:$0xff]
  %v4072 = vld [vmem:[#allocation2 + $0x688] sm:$0xff]
  %v4073 = vld [vmem:[#allocation2 + $0x690] sm:$0xff]
  %v4074 = vld [vmem:[#allocation2 + $0x698] sm:$0xff]
  %v4075 = vld [vmem:[#allocation2 + $0x6a0] sm:$0xff]
  %v4076 = vld [vmem:[#allocation2 + $0x6a8] sm:$0xff]
  %v4077 = vld [vmem:[#allocation2 + $0x6b0] sm:$0xff]
  %v4078 = vld [vmem:[#allocation2 + $0x6b8] sm:$0xff]
  %v4079 = vld [vmem:[#allocation2 + $0x6c0] sm:$0xff]
  %v4080 = vld [vmem:[#allocation2 + $0x6c8] sm:$0xff]
  %v4081 = vld [vmem:[#allocation2 + $0x6d0] sm:$0xff]
  %v4082 = vld [vmem:[#allocation2 + $0x6d8] sm:$0xff]
  %v4083 = vld [vmem:[#allocation2 + $0x6e0] sm:$0xff]
  %v4084 = vld [vmem:[#allocation2 + $0x6e8] sm:$0xff]
  %v4085 = vld [vmem:[#allocation2 + $0x6f0] sm:$0xff]
  %v4086 = vld [vmem:[#allocation2 + $0x6f8] sm:$0xff]
  %v4087 = vld [vmem:[#allocation2 + $0x700] sm:$0xff]
  %v4088 = vld [vmem:[#allocation2 + $0x708] sm:$0xff]
  %v4089 = vld [vmem:[#allocation2 + $0x710] sm:$0xff]
  %v4090 = vld [vmem:[#allocation2 + $0x718] sm:$0xff]
  %v4091 = vld [vmem:[#allocation2 + $0x720] sm:$0xff]
  %v4092 = vld [vmem:[#allocation2 + $0x728] sm:$0xff]
  %v4093 = vld [vmem:[#allocation2 + $0x730] sm:$0xff]
  %v4094 = vld [vmem:[#allocation2 + $0x738] sm:$0xff]
  %v4095 = vld [vmem:[#allocation2 + $0x740] sm:$0xff]
  %v4096 = vld [vmem:[#allocation2 + $0x748] sm:$0xff]
  %v4097 = vld [vmem:[#allocation2 + $0x750] sm:$0xff]
  %v4098 = vld [vmem:[#allocation2 + $0x758] sm:$0xff]
  %v4099 = vld [vmem:[#allocation2 + $0x760] sm:$0xff]
  %v4100 = vld [vmem:[#allocation2 + $0x768] sm:$0xff]
  %v4101 = vld [vmem:[#allocation2 + $0x770] sm:$0xff]
  %v4102 = vld [vmem:[#allocation2 + $0x778] sm:$0xff]
  %v4103 = vld [vmem:[#allocation2 + $0x780] sm:$0xff]
  %v4104 = vld [vmem:[#allocation2 + $0x788] sm:$0xff]
  %v4105 = vld [vmem:[#allocation2 + $0x790] sm:$0xff]
  %v4106 = vld [vmem:[#allocation2 + $0x798] sm:$0xff]
  %v4107 = vld [vmem:[#allocation2 + $0x7a0] sm:$0xff]
  %v4108 = vld [vmem:[#allocation2 + $0x7a8] sm:$0xff]
  %v4109 = vld [vmem:[#allocation2 + $0x7b0] sm:$0xff]
  %v4110 = vld [vmem:[#allocation2 + $0x7b8] sm:$0xff]
  %v4111 = vld [vmem:[#allocation2 + $0x7c0] sm:$0xff]
  %v4112 = vld [vmem:[#allocation2 + $0x7c8] sm:$0xff]
  %v4113 = vld [vmem:[#allocation2 + $0x7d0] sm:$0xff]
  %v4114 = vld [vmem:[#allocation2 + $0x7d8] sm:$0xff]
  %v4115 = vld [vmem:[#allocation2 + $0x7e0] sm:$0xff]
  %v4116 = vld [vmem:[#allocation2 + $0x7e8] sm:$0xff]
  %v4117 = vld [vmem:[#allocation2 + $0x7f0] sm:$0xff]
  %v4118 = vld [vmem:[#allocation2 + $0x7f8] sm:$0xff]
  %v4119 = vld [vmem:[#allocation2 + $0x800] sm:$0xff]
  %v4120 = vld [vmem:[#allocation2 + $0x808] sm:$0xff]
  %v4121 = vld [vmem:[#allocation2 + $0x810] sm:$0xff]
  %v4122 = vld [vmem:[#allocation2 + $0x818] sm:$0xff]
  %v4123 = vld [vmem:[#allocation2 + $0x820] sm:$0xff]
  %v4124 = vld [vmem:[#allocation2 + $0x828] sm:$0xff]
  %v4125 = vld [vmem:[#allocation2 + $0x830] sm:$0xff]
  %v4126 = vld [vmem:[#allocation2 + $0x838] sm:$0xff]
  %v4127 = vld [vmem:[#allocation2 + $0x840] sm:$0xff]
  %v4128 = vld [vmem:[#allocation2 + $0x848] sm:$0xff]
  %v4129 = vld [vmem:[#allocation2 + $0x850] sm:$0xff]
  %v4130 = vld [vmem:[#allocation2 + $0x858] sm:$0xff]
  %v4131 = vld [vmem:[#allocation2 + $0x860] sm:$0xff]
  %v4132 = vld [vmem:[#allocation2 + $0x868] sm:$0xff]
  %v4133 = vld [vmem:[#allocation2 + $0x870] sm:$0xff]
  %v4134 = vld [vmem:[#allocation2 + $0x878] sm:$0xff]
  %v4135 = vld [vmem:[#allocation2 + $0x880] sm:$0xff]
  %v4136 = vld [vmem:[#allocation2 + $0x888] sm:$0xff]
  %v4137 = vld [vmem:[#allocation2 + $0x890] sm:$0xff]
  %v4138 = vld [vmem:[#allocation2 + $0x898] sm:$0xff]
  %v4139 = vld [vmem:[#allocation2 + $0x8a0] sm:$0xff]
  %v4140 = vld [vmem:[#allocation2 + $0x8a8] sm:$0xff]
  %v4141 = vld [vmem:[#allocation2 + $0x8b0] sm:$0xff]
  %v4142 = vld [vmem:[#allocation2 + $0x8b8] sm:$0xff]
  %v4143 = vld [vmem:[#allocation2 + $0x8c0] sm:$0xff]
  %v4144 = vld [vmem:[#allocation2 + $0x8c8] sm:$0xff]
  %v4145 = vld [vmem:[#allocation2 + $0x8d0] sm:$0xff]
  %v4146 = vld [vmem:[#allocation2 + $0x8d8] sm:$0xff]
  %v4147 = vld [vmem:[#allocation2 + $0x8e0] sm:$0xff]
  %v4148 = vld [vmem:[#allocation2 + $0x8e8] sm:$0xff]
  %v4149 = vld [vmem:[#allocation2 + $0x8f0] sm:$0xff]
  %v4150 = vld [vmem:[#allocation2 + $0x8f8] sm:$0xff]
  %v4151 = vld [vmem:[#allocation2 + $0x900] sm:$0xff]
  %v4152 = vld [vmem:[#allocation2 + $0x908] sm:$0xff]
  %v4153 = vld [vmem:[#allocation2 + $0x910] sm:$0xff]
  %v4154 = vld [vmem:[#allocation2 + $0x918] sm:$0xff]
  %v4155 = vld [vmem:[#allocation2 + $0x920] sm:$0xff]
  %v4156 = vld [vmem:[#allocation2 + $0x928] sm:$0xff]
  %v4157 = vld [vmem:[#allocation2 + $0x930] sm:$0xff]
  %v4158 = vld [vmem:[#allocation2 + $0x938] sm:$0xff]
  %v4159 = vld [vmem:[#allocation2 + $0x940] sm:$0xff]
  %v4160 = vld [vmem:[#allocation2 + $0x948] sm:$0xff]
  %v4161 = vld [vmem:[#allocation2 + $0x950] sm:$0xff]
  %v4162 = vld [vmem:[#allocation2 + $0x958] sm:$0xff]
  %v4163 = vld [vmem:[#allocation2 + $0x960] sm:$0xff]
  %v4164 = vld [vmem:[#allocation2 + $0x968] sm:$0xff]
  %v4165 = vld [vmem:[#allocation2 + $0x970] sm:$0xff]
  %v4166 = vld [vmem:[#allocation2 + $0x978] sm:$0xff]
  %v4167 = vld [vmem:[#allocation2 + $0x980] sm:$0xff]
  %v4168 = vld [vmem:[#allocation2 + $0x988] sm:$0xff]
  %v4169 = vld [vmem:[#allocation2 + $0x990] sm:$0xff]
  %v4170 = vld [vmem:[#allocation2 + $0x998] sm:$0xff]
  %v4171 = vld [vmem:[#allocation2 + $0x9a0] sm:$0xff]
  %v4172 = vld [vmem:[#allocation2 + $0x9a8] sm:$0xff]
  %v4173 = vld [vmem:[#allocation2 + $0x9b0] sm:$0xff]
  %v4174 = vld [vmem:[#allocation2 + $0x9b8] sm:$0xff]
  %v4175 = vld [vmem:[#allocation2 + $0x9c0] sm:$0xff]
  %v4176 = vld [vmem:[#allocation2 + $0x9c8] sm:$0xff]
  %v4177 = vld [vmem:[#allocation2 + $0x9d0] sm:$0xff]
  %v4178 = vld [vmem:[#allocation2 + $0x9d8] sm:$0xff]
  %v4179 = vld [vmem:[#allocation2 + $0x9e0] sm:$0xff]
  %v4180 = vld [vmem:[#allocation2 + $0x9e8] sm:$0xff]
  %v4181 = vld [vmem:[#allocation2 + $0x9f0] sm:$0xff]
  %v4182 = vld [vmem:[#allocation2 + $0x9f8] sm:$0xff]
  %v4183 = vld [vmem:[#allocation2 + $0xa00] sm:$0xff]
  %v4184 = vld [vmem:[#allocation2 + $0xa08] sm:$0xff]
  %v4185 = vld [vmem:[#allocation2 + $0xa10] sm:$0xff]
  %v4186 = vld [vmem:[#allocation2 + $0xa18] sm:$0xff]
  %v4187 = vld [vmem:[#allocation2 + $0xa20] sm:$0xff]
  %v4188 = vld [vmem:[#allocation2 + $0xa28] sm:$0xff]
  %v4189 = vld [vmem:[#allocation2 + $0xa30] sm:$0xff]
  %v4190 = vld [vmem:[#allocation2 + $0xa38] sm:$0xff]
  %v4191 = vld [vmem:[#allocation2 + $0xa40] sm:$0xff]
  %v4192 = vld [vmem:[#allocation2 + $0xa48] sm:$0xff]
  %v4193 = vld [vmem:[#allocation2 + $0xa50] sm:$0xff]
  %v4194 = vld [vmem:[#allocation2 + $0xa58] sm:$0xff]
  %v4195 = vld [vmem:[#allocation2 + $0xa60] sm:$0xff]
  %v4196 = vld [vmem:[#allocation2 + $0xa68] sm:$0xff]
  %v4197 = vld [vmem:[#allocation2 + $0xa70] sm:$0xff]
  %v4198 = vld [vmem:[#allocation2 + $0xa78] sm:$0xff]
  %v4199 = vld [vmem:[#allocation2 + $0xa80] sm:$0xff]
  %v4200 = vld [vmem:[#allocation2 + $0xa88] sm:$0xff]
  %v4201 = vld [vmem:[#allocation2 + $0xa90] sm:$0xff]
  %v4202 = vld [vmem:[#allocation2 + $0xa98] sm:$0xff]
  %v4203 = vld [vmem:[#allocation2 + $0xaa0] sm:$0xff]
  %v4204 = vld [vmem:[#allocation2 + $0xaa8] sm:$0xff]
  %v4205 = vld [vmem:[#allocation2 + $0xab0] sm:$0xff]
  %v4206 = vld [vmem:[#allocation2 + $0xab8] sm:$0xff]
  %v4207 = vld [vmem:[#allocation2 + $0xac0] sm:$0xff]
  %v4208 = vld [vmem:[#allocation2 + $0xac8] sm:$0xff]
  %v4209 = vld [vmem:[#allocation2 + $0xad0] sm:$0xff]
  %v4210 = vld [vmem:[#allocation2 + $0xad8] sm:$0xff]
  %v4211 = vld [vmem:[#allocation2 + $0xae0] sm:$0xff]
  %v4212 = vld [vmem:[#allocation2 + $0xae8] sm:$0xff]
  %v4213 = vld [vmem:[#allocation2 + $0xaf0] sm:$0xff]
  %v4214 = vld [vmem:[#allocation2 + $0xaf8] sm:$0xff]
  %v4215 = vld [vmem:[#allocation2 + $0xb00] sm:$0xff]
  %v4216 = vld [vmem:[#allocation2 + $0xb08] sm:$0xff]
  %v4217 = vld [vmem:[#allocation2 + $0xb10] sm:$0xff]
  %v4218 = vld [vmem:[#allocation2 + $0xb18] sm:$0xff]
  %v4219 = vld [vmem:[#allocation2 + $0xb20] sm:$0xff]
  %v4220 = vld [vmem:[#allocation2 + $0xb28] sm:$0xff]
  %v4221 = vld [vmem:[#allocation2 + $0xb30] sm:$0xff]
  %v4222 = vld [vmem:[#allocation2 + $0xb38] sm:$0xff]
  %v4223 = vld [vmem:[#allocation2 + $0xb40] sm:$0xff]
  %v4224 = vld [vmem:[#allocation2 + $0xb48] sm:$0xff]
  %v4225 = vld [vmem:[#allocation2 + $0xb50] sm:$0xff]
  %v4226 = vld [vmem:[#allocation2 + $0xb58] sm:$0xff]
  %v4227 = vld [vmem:[#allocation2 + $0xb60] sm:$0xff]
  %v4228 = vld [vmem:[#allocation2 + $0xb68] sm:$0xff]
  %v4229 = vld [vmem:[#allocation2 + $0xb70] sm:$0xff]
  %v4230 = vld [vmem:[#allocation2 + $0xb78] sm:$0xff]
  %v4231 = vld [vmem:[#allocation2 + $0xb80] sm:$0xff]
  %v4232 = vld [vmem:[#allocation2 + $0xb88] sm:$0xff]
  %v4233 = vld [vmem:[#allocation2 + $0xb90] sm:$0xff]
  %v4234 = vld [vmem:[#allocation2 + $0xb98] sm:$0xff]
  %v4235 = vld [vmem:[#allocation2 + $0xba0] sm:$0xff]
  %v4236 = vld [vmem:[#allocation2 + $0xba8] sm:$0xff]
  %v4237 = vld [vmem:[#allocation2 + $0xbb0] sm:$0xff]
  %v4238 = vld [vmem:[#allocation2 + $0xbb8] sm:$0xff]
  %v4239 = vld [vmem:[#allocation2 + $0xbc0] sm:$0xff]
  %v4240 = vld [vmem:[#allocation2 + $0xbc8] sm:$0xff]
  %v4241 = vld [vmem:[#allocation2 + $0xbd0] sm:$0xff]
  %v4242 = vld [vmem:[#allocation2 + $0xbd8] sm:$0xff]
  %v4243 = vld [vmem:[#allocation2 + $0xbe0] sm:$0xff]
  %v4244 = vld [vmem:[#allocation2 + $0xbe8] sm:$0xff]
  %v4245 = vld [vmem:[#allocation2 + $0xbf0] sm:$0xff]
  %v4246 = vld [vmem:[#allocation2 + $0xbf8] sm:$0xff]
  %v4247 = vld [vmem:[#allocation2 + $0xc00] sm:$0xff]
  %v4248 = vld [vmem:[#allocation2 + $0xc08] sm:$0xff]
  %v4249 = vld [vmem:[#allocation2 + $0xc10] sm:$0xff]
  %v4250 = vld [vmem:[#allocation2 + $0xc18] sm:$0xff]
  %v4251 = vld [vmem:[#allocation2 + $0xc20] sm:$0xff]
  %v4252 = vld [vmem:[#allocation2 + $0xc28] sm:$0xff]
  %v4253 = vld [vmem:[#allocation2 + $0xc30] sm:$0xff]
  %v4254 = vld [vmem:[#allocation2 + $0xc38] sm:$0xff]
  %v4255 = vld [vmem:[#allocation2 + $0xc40] sm:$0xff]
  %v4256 = vld [vmem:[#allocation2 + $0xc48] sm:$0xff]
  %v4257 = vld [vmem:[#allocation2 + $0xc50] sm:$0xff]
  %v4258 = vld [vmem:[#allocation2 + $0xc58] sm:$0xff]
  %v4259 = vld [vmem:[#allocation2 + $0xc60] sm:$0xff]
  %v4260 = vld [vmem:[#allocation2 + $0xc68] sm:$0xff]
  %v4261 = vld [vmem:[#allocation2 + $0xc70] sm:$0xff]
  %v4262 = vld [vmem:[#allocation2 + $0xc78] sm:$0xff]
  %v4263 = vld [vmem:[#allocation2 + $0xc80] sm:$0xff]
  %v4264 = vld [vmem:[#allocation2 + $0xc88] sm:$0xff]
  %v4265 = vld [vmem:[#allocation2 + $0xc90] sm:$0xff]
  %v4266 = vld [vmem:[#allocation2 + $0xc98] sm:$0xff]
  %v4267 = vld [vmem:[#allocation2 + $0xca0] sm:$0xff]
  %v4268 = vld [vmem:[#allocation2 + $0xca8] sm:$0xff]
  %v4269 = vld [vmem:[#allocation2 + $0xcb0] sm:$0xff]
  %v4270 = vld [vmem:[#allocation2 + $0xcb8] sm:$0xff]
  %v4271 = vld [vmem:[#allocation2 + $0xcc0] sm:$0xff]
  %v4272 = vld [vmem:[#allocation2 + $0xcc8] sm:$0xff]
  %v4273 = vld [vmem:[#allocation2 + $0xcd0] sm:$0xff]
  %v4274 = vld [vmem:[#allocation2 + $0xcd8] sm:$0xff]
  %v4275 = vld [vmem:[#allocation2 + $0xce0] sm:$0xff]
  %v4276 = vld [vmem:[#allocation2 + $0xce8] sm:$0xff]
  %v4277 = vld [vmem:[#allocation2 + $0xcf0] sm:$0xff]
  %v4278 = vld [vmem:[#allocation2 + $0xcf8] sm:$0xff]
  %v4279 = vld [vmem:[#allocation2 + $0xd00] sm:$0xff]
  %v4280 = vld [vmem:[#allocation2 + $0xd08] sm:$0xff]
  %v4281 = vld [vmem:[#allocation2 + $0xd10] sm:$0xff]
  %v4282 = vld [vmem:[#allocation2 + $0xd18] sm:$0xff]
  %v4283 = vld [vmem:[#allocation2 + $0xd20] sm:$0xff]
  %v4284 = vld [vmem:[#allocation2 + $0xd28] sm:$0xff]
  %v4285 = vld [vmem:[#allocation2 + $0xd30] sm:$0xff]
  %v4286 = vld [vmem:[#allocation2 + $0xd38] sm:$0xff]
  %v4287 = vld [vmem:[#allocation2 + $0xd40] sm:$0xff]
  %v4288 = vld [vmem:[#allocation2 + $0xd48] sm:$0xff]
  %v4289 = vld [vmem:[#allocation2 + $0xd50] sm:$0xff]
  %v4290 = vld [vmem:[#allocation2 + $0xd58] sm:$0xff]
  %v4291 = vld [vmem:[#allocation2 + $0xd60] sm:$0xff]
  %v4292 = vld [vmem:[#allocation2 + $0xd68] sm:$0xff]
  %v4293 = vld [vmem:[#allocation2 + $0xd70] sm:$0xff]
  %v4294 = vld [vmem:[#allocation2 + $0xd78] sm:$0xff]
  %v4295 = vld [vmem:[#allocation2 + $0xd80] sm:$0xff]
  %v4296 = vld [vmem:[#allocation2 + $0xd88] sm:$0xff]
  %v4297 = vld [vmem:[#allocation2 + $0xd90] sm:$0xff]
  %v4298 = vld [vmem:[#allocation2 + $0xd98] sm:$0xff]
  %v4299 = vld [vmem:[#allocation2 + $0xda0] sm:$0xff]
  %v4300 = vld [vmem:[#allocation2 + $0xda8] sm:$0xff]
  %v4301 = vld [vmem:[#allocation2 + $0xdb0] sm:$0xff]
  %v4302 = vld [vmem:[#allocation2 + $0xdb8] sm:$0xff]
  %v4303 = vld [vmem:[#allocation2 + $0xdc0] sm:$0xff]
  %v4304 = vld [vmem:[#allocation2 + $0xdc8] sm:$0xff]
  %v4305 = vld [vmem:[#allocation2 + $0xdd0] sm:$0xff]
  %v4306 = vld [vmem:[#allocation2 + $0xdd8] sm:$0xff]
  %v4307 = vld [vmem:[#allocation2 + $0xde0] sm:$0xff]
  %v4308 = vld [vmem:[#allocation2 + $0xde8] sm:$0xff]
  %v4309 = vld [vmem:[#allocation2 + $0xdf0] sm:$0xff]
  %v4310 = vld [vmem:[#allocation2 + $0xdf8] sm:$0xff]
  %v4311 = vld [vmem:[%s4] sm:$0xff]
  %v4313 = vperm.slane %v4311, 0
  %v4314 = vperm.slane %v4311, 1
  %v4315 = vperm.slane %v4311, 2
  %v4316 = vperm.slane %v4311, 3
  %v4317 = vperm.slane %v4311, 4
  %v4318 = vperm.slane %v4311, 5
  %v4319 = vperm.slane %v4311, 6
  %v4320 = vperm.slane %v4311, 7
  %v4777 = vunpack.c.l.b16 %v3863
  %v4778 = vunpack.c.h.b16 %v3863
  %v4779 = vunpack.c.l.b16 %v3864
  %v4780 = vunpack.c.h.b16 %v3864
  %v4781 = vunpack.c.l.b16 %v3865
  %v4782 = vunpack.c.h.b16 %v3865
  %v4783 = vunpack.c.l.b16 %v3866
  %v4784 = vunpack.c.h.b16 %v3866
  %v4785 = vunpack.c.l.b16 %v3867
  %v4786 = vunpack.c.h.b16 %v3867
  %v4787 = vunpack.c.l.b16 %v3868
  %v4788 = vunpack.c.h.b16 %v3868
  %v4789 = vunpack.c.l.b16 %v3869
  %v4790 = vunpack.c.h.b16 %v3869
  %v4791 = vunpack.c.l.b16 %v3870
  %v4792 = vunpack.c.h.b16 %v3870
  %v4793 = vunpack.c.l.b16 %v3871
  %v4794 = vunpack.c.h.b16 %v3871
  %v4795 = vunpack.c.l.b16 %v3872
  %v4796 = vunpack.c.h.b16 %v3872
  %v4797 = vunpack.c.l.b16 %v3873
  %v4798 = vunpack.c.h.b16 %v3873
  %v4799 = vunpack.c.l.b16 %v3874
  %v4800 = vunpack.c.h.b16 %v3874
  %v4801 = vunpack.c.l.b16 %v3875
  %v4802 = vunpack.c.h.b16 %v3875
  %v4803 = vunpack.c.l.b16 %v3876
  %v4804 = vunpack.c.h.b16 %v3876
  %v4805 = vunpack.c.l.b16 %v3877
  %v4806 = vunpack.c.h.b16 %v3877
  %v4807 = vunpack.c.l.b16 %v3878
  %v4808 = vunpack.c.h.b16 %v3878
  %v4809 = vunpack.c.l.b16 %v3879
  %v4810 = vunpack.c.h.b16 %v3879
  %v4811 = vunpack.c.l.b16 %v3880
  %v4812 = vunpack.c.h.b16 %v3880
  %v4813 = vunpack.c.l.b16 %v3881
  %v4814 = vunpack.c.h.b16 %v3881
  %v4815 = vunpack.c.l.b16 %v3882
  %v4816 = vunpack.c.h.b16 %v3882
  %v4817 = vunpack.c.l.b16 %v3883
  %v4818 = vunpack.c.h.b16 %v3883
  %v4819 = vunpack.c.l.b16 %v3884
  %v4820 = vunpack.c.h.b16 %v3884
  %v4821 = vunpack.c.l.b16 %v3885
  %v4822 = vunpack.c.h.b16 %v3885
  %v4823 = vunpack.c.l.b16 %v3886
  %v4824 = vunpack.c.h.b16 %v3886
  %v4825 = vunpack.c.l.b16 %v3887
  %v4826 = vunpack.c.h.b16 %v3887
  %v4827 = vunpack.c.l.b16 %v3888
  %v4828 = vunpack.c.h.b16 %v3888
  %v4829 = vunpack.c.l.b16 %v3889
  %v4830 = vunpack.c.h.b16 %v3889
  %v4831 = vunpack.c.l.b16 %v3890
  %v4832 = vunpack.c.h.b16 %v3890
  %v4833 = vunpack.c.l.b16 %v3891
  %v4834 = vunpack.c.h.b16 %v3891
  %v4835 = vunpack.c.l.b16 %v3892
  %v4836 = vunpack.c.h.b16 %v3892
  %v4837 = vunpack.c.l.b16 %v3893
  %v4838 = vunpack.c.h.b16 %v3893
  %v4839 = vunpack.c.l.b16 %v3894
  %v4840 = vunpack.c.h.b16 %v3894
  %v4841 = vunpack.c.l.b16 %v3895
  %v4842 = vunpack.c.h.b16 %v3895
  %v4843 = vunpack.c.l.b16 %v3896
  %v4844 = vunpack.c.h.b16 %v3896
  %v4845 = vunpack.c.l.b16 %v3897
  %v4846 = vunpack.c.h.b16 %v3897
  %v4847 = vunpack.c.l.b16 %v3898
  %v4848 = vunpack.c.h.b16 %v3898
  %v4849 = vunpack.c.l.b16 %v3899
  %v4850 = vunpack.c.h.b16 %v3899
  %v4851 = vunpack.c.l.b16 %v3900
  %v4852 = vunpack.c.h.b16 %v3900
  %v4853 = vunpack.c.l.b16 %v3901
  %v4854 = vunpack.c.h.b16 %v3901
  %v4855 = vunpack.c.l.b16 %v3902
  %v4856 = vunpack.c.h.b16 %v3902
  %v4857 = vunpack.c.l.b16 %v3903
  %v4858 = vunpack.c.h.b16 %v3903
  %v4859 = vunpack.c.l.b16 %v3904
  %v4860 = vunpack.c.h.b16 %v3904
  %v4861 = vunpack.c.l.b16 %v3905
  %v4862 = vunpack.c.h.b16 %v3905
  %v4863 = vunpack.c.l.b16 %v3906
  %v4864 = vunpack.c.h.b16 %v3906
  %v4865 = vunpack.c.l.b16 %v3907
  %v4866 = vunpack.c.h.b16 %v3907
  %v4867 = vunpack.c.l.b16 %v3908
  %v4868 = vunpack.c.h.b16 %v3908
  %v4869 = vunpack.c.l.b16 %v3909
  %v4870 = vunpack.c.h.b16 %v3909
  %v4871 = vunpack.c.l.b16 %v3910
  %v4872 = vunpack.c.h.b16 %v3910
  %v4873 = vunpack.c.l.b16 %v3911
  %v4874 = vunpack.c.h.b16 %v3911
  %v4875 = vunpack.c.l.b16 %v3912
  %v4876 = vunpack.c.h.b16 %v3912
  %v4877 = vunpack.c.l.b16 %v3913
  %v4878 = vunpack.c.h.b16 %v3913
  %v4879 = vunpack.c.l.b16 %v3914
  %v4880 = vunpack.c.h.b16 %v3914
  %v4881 = vunpack.c.l.b16 %v3915
  %v4882 = vunpack.c.h.b16 %v3915
  %v4883 = vunpack.c.l.b16 %v3916
  %v4884 = vunpack.c.h.b16 %v3916
  %v4885 = vunpack.c.l.b16 %v3917
  %v4886 = vunpack.c.h.b16 %v3917
  %v4887 = vunpack.c.l.b16 %v3918
  %v4888 = vunpack.c.h.b16 %v3918
  %v4889 = vunpack.c.l.b16 %v3919
  %v4890 = vunpack.c.h.b16 %v3919
  %v4891 = vunpack.c.l.b16 %v3920
  %v4892 = vunpack.c.h.b16 %v3920
  %v4893 = vunpack.c.l.b16 %v3921
  %v4894 = vunpack.c.h.b16 %v3921
  %v4895 = vunpack.c.l.b16 %v3922
  %v4896 = vunpack.c.h.b16 %v3922
  %v4897 = vunpack.c.l.b16 %v3923
  %v4898 = vunpack.c.h.b16 %v3923
  %v4899 = vunpack.c.l.b16 %v3924
  %v4900 = vunpack.c.h.b16 %v3924
  %v4901 = vunpack.c.l.b16 %v3925
  %v4902 = vunpack.c.h.b16 %v3925
  %v4903 = vunpack.c.l.b16 %v3926
  %v4904 = vunpack.c.h.b16 %v3926
  %v4905 = vunpack.c.l.b16 %v3927
  %v4906 = vunpack.c.h.b16 %v3927
  %v4907 = vunpack.c.l.b16 %v3928
  %v4908 = vunpack.c.h.b16 %v3928
  %v4909 = vunpack.c.l.b16 %v3929
  %v4910 = vunpack.c.h.b16 %v3929
  %v4911 = vunpack.c.l.b16 %v3930
  %v4912 = vunpack.c.h.b16 %v3930
  %v4913 = vunpack.c.l.b16 %v3931
  %v4914 = vunpack.c.h.b16 %v3931
  %v4915 = vunpack.c.l.b16 %v3932
  %v4916 = vunpack.c.h.b16 %v3932
  %v4917 = vunpack.c.l.b16 %v3933
  %v4918 = vunpack.c.h.b16 %v3933
  %v4919 = vunpack.c.l.b16 %v3934
  %v4920 = vunpack.c.h.b16 %v3934
  %v4921 = vunpack.c.l.b16 %v3935
  %v4922 = vunpack.c.h.b16 %v3935
  %v4923 = vunpack.c.l.b16 %v3936
  %v4924 = vunpack.c.h.b16 %v3936
  %v4925 = vunpack.c.l.b16 %v3937
  %v4926 = vunpack.c.h.b16 %v3937
  %v4927 = vunpack.c.l.b16 %v3938
  %v4928 = vunpack.c.h.b16 %v3938
  %v4929 = vunpack.c.l.b16 %v3939
  %v4930 = vunpack.c.h.b16 %v3939
  %v4931 = vunpack.c.l.b16 %v3940
  %v4932 = vunpack.c.h.b16 %v3940
  %v4933 = vunpack.c.l.b16 %v3941
  %v4934 = vunpack.c.h.b16 %v3941
  %v4935 = vunpack.c.l.b16 %v3942
  %v4936 = vunpack.c.h.b16 %v3942
  %v4937 = vunpack.c.l.b16 %v3943
  %v4938 = vunpack.c.h.b16 %v3943
  %v4939 = vunpack.c.l.b16 %v3944
  %v4940 = vunpack.c.h.b16 %v3944
  %v4941 = vunpack.c.l.b16 %v3945
  %v4942 = vunpack.c.h.b16 %v3945
  %v4943 = vunpack.c.l.b16 %v3946
  %v4944 = vunpack.c.h.b16 %v3946
  %v4945 = vunpack.c.l.b16 %v3947
  %v4946 = vunpack.c.h.b16 %v3947
  %v4947 = vunpack.c.l.b16 %v3948
  %v4948 = vunpack.c.h.b16 %v3948
  %v4949 = vunpack.c.l.b16 %v3949
  %v4950 = vunpack.c.h.b16 %v3949
  %v4951 = vunpack.c.l.b16 %v3950
  %v4952 = vunpack.c.h.b16 %v3950
  %v4953 = vunpack.c.l.b16 %v3951
  %v4954 = vunpack.c.h.b16 %v3951
  %v4955 = vunpack.c.l.b16 %v3952
  %v4956 = vunpack.c.h.b16 %v3952
  %v4957 = vunpack.c.l.b16 %v3953
  %v4958 = vunpack.c.h.b16 %v3953
  %v4959 = vunpack.c.l.b16 %v3954
  %v4960 = vunpack.c.h.b16 %v3954
  %v4961 = vunpack.c.l.b16 %v3955
  %v4962 = vunpack.c.h.b16 %v3955
  %v4963 = vunpack.c.l.b16 %v3956
  %v4964 = vunpack.c.h.b16 %v3956
  %v4965 = vunpack.c.l.b16 %v3957
  %v4966 = vunpack.c.h.b16 %v3957
  %v4967 = vunpack.c.l.b16 %v3958
  %v4968 = vunpack.c.h.b16 %v3958
  %v4969 = vunpack.c.l.b16 %v3959
  %v4970 = vunpack.c.h.b16 %v3959
  %v4971 = vunpack.c.l.b16 %v3960
  %v4972 = vunpack.c.h.b16 %v3960
  %v4973 = vunpack.c.l.b16 %v3961
  %v4974 = vunpack.c.h.b16 %v3961
  %v4975 = vunpack.c.l.b16 %v3962
  %v4976 = vunpack.c.h.b16 %v3962
  %v4977 = vunpack.c.l.b16 %v3963
  %v4978 = vunpack.c.h.b16 %v3963
  %v4979 = vunpack.c.l.b16 %v3964
  %v4980 = vunpack.c.h.b16 %v3964
  %v4981 = vunpack.c.l.b16 %v3965
  %v4982 = vunpack.c.h.b16 %v3965
  %v4983 = vunpack.c.l.b16 %v3966
  %v4984 = vunpack.c.h.b16 %v3966
  %v4985 = vunpack.c.l.b16 %v3967
  %v4986 = vunpack.c.h.b16 %v3967
  %v4987 = vunpack.c.l.b16 %v3968
  %v4988 = vunpack.c.h.b16 %v3968
  %v4989 = vunpack.c.l.b16 %v3969
  %v4990 = vunpack.c.h.b16 %v3969
  %v4991 = vunpack.c.l.b16 %v3970
  %v4992 = vunpack.c.h.b16 %v3970
  %v4993 = vunpack.c.l.b16 %v3971
  %v4994 = vunpack.c.h.b16 %v3971
  %v4995 = vunpack.c.l.b16 %v3972
  %v4996 = vunpack.c.h.b16 %v3972
  %v4997 = vunpack.c.l.b16 %v3973
  %v4998 = vunpack.c.h.b16 %v3973
  %v4999 = vunpack.c.l.b16 %v3974
  %v5000 = vunpack.c.h.b16 %v3974
  %v5001 = vunpack.c.l.b16 %v3975
  %v5002 = vunpack.c.h.b16 %v3975
  %v5003 = vunpack.c.l.b16 %v3976
  %v5004 = vunpack.c.h.b16 %v3976
  %v5005 = vunpack.c.l.b16 %v3977
  %v5006 = vunpack.c.h.b16 %v3977
  %v5007 = vunpack.c.l.b16 %v3978
  %v5008 = vunpack.c.h.b16 %v3978
  %v5009 = vunpack.c.l.b16 %v3979
  %v5010 = vunpack.c.h.b16 %v3979
  %v5011 = vunpack.c.l.b16 %v3980
  %v5012 = vunpack.c.h.b16 %v3980
  %v5013 = vunpack.c.l.b16 %v3981
  %v5014 = vunpack.c.h.b16 %v3981
  %v5015 = vunpack.c.l.b16 %v3982
  %v5016 = vunpack.c.h.b16 %v3982
  %v5017 = vunpack.c.l.b16 %v3983
  %v5018 = vunpack.c.h.b16 %v3983
  %v5019 = vunpack.c.l.b16 %v3984
  %v5020 = vunpack.c.h.b16 %v3984
  %v5021 = vunpack.c.l.b16 %v3985
  %v5022 = vunpack.c.h.b16 %v3985
  %v5023 = vunpack.c.l.b16 %v3986
  %v5024 = vunpack.c.h.b16 %v3986
  %v5025 = vunpack.c.l.b16 %v3987
  %v5026 = vunpack.c.h.b16 %v3987
  %v5027 = vunpack.c.l.b16 %v3988
  %v5028 = vunpack.c.h.b16 %v3988
  %v5029 = vunpack.c.l.b16 %v3989
  %v5030 = vunpack.c.h.b16 %v3989
  %v5031 = vunpack.c.l.b16 %v3990
  %v5032 = vunpack.c.h.b16 %v3990
  %v5033 = vunpack.c.l.b16 %v3991
  %v5034 = vunpack.c.h.b16 %v3991
  %v5035 = vunpack.c.l.b16 %v3992
  %v5036 = vunpack.c.h.b16 %v3992
  %v5037 = vunpack.c.l.b16 %v3993
  %v5038 = vunpack.c.h.b16 %v3993
  %v5039 = vunpack.c.l.b16 %v3994
  %v5040 = vunpack.c.h.b16 %v3994
  %v5041 = vunpack.c.l.b16 %v3995
  %v5042 = vunpack.c.h.b16 %v3995
  %v5043 = vunpack.c.l.b16 %v3996
  %v5044 = vunpack.c.h.b16 %v3996
  %v5045 = vunpack.c.l.b16 %v3997
  %v5046 = vunpack.c.h.b16 %v3997
  %v5047 = vunpack.c.l.b16 %v3998
  %v5048 = vunpack.c.h.b16 %v3998
  %v5049 = vunpack.c.l.b16 %v3999
  %v5050 = vunpack.c.h.b16 %v3999
  %v5051 = vunpack.c.l.b16 %v4000
  %v5052 = vunpack.c.h.b16 %v4000
  %v5053 = vunpack.c.l.b16 %v4001
  %v5054 = vunpack.c.h.b16 %v4001
  %v5055 = vunpack.c.l.b16 %v4002
  %v5056 = vunpack.c.h.b16 %v4002
  %v5057 = vunpack.c.l.b16 %v4003
  %v5058 = vunpack.c.h.b16 %v4003
  %v5059 = vunpack.c.l.b16 %v4004
  %v5060 = vunpack.c.h.b16 %v4004
  %v5061 = vunpack.c.l.b16 %v4005
  %v5062 = vunpack.c.h.b16 %v4005
  %v5063 = vunpack.c.l.b16 %v4006
  %v5064 = vunpack.c.h.b16 %v4006
  %v5065 = vunpack.c.l.b16 %v4007
  %v5066 = vunpack.c.h.b16 %v4007
  %v5067 = vunpack.c.l.b16 %v4008
  %v5068 = vunpack.c.h.b16 %v4008
  %v5069 = vunpack.c.l.b16 %v4009
  %v5070 = vunpack.c.h.b16 %v4009
  %v5071 = vunpack.c.l.b16 %v4010
  %v5072 = vunpack.c.h.b16 %v4010
  %v5073 = vunpack.c.l.b16 %v4011
  %v5074 = vunpack.c.h.b16 %v4011
  %v5075 = vunpack.c.l.b16 %v4012
  %v5076 = vunpack.c.h.b16 %v4012
  %v5077 = vunpack.c.l.b16 %v4013
  %v5078 = vunpack.c.h.b16 %v4013
  %v5079 = vunpack.c.l.b16 %v4014
  %v5080 = vunpack.c.h.b16 %v4014
  %v5081 = vunpack.c.l.b16 %v4015
  %v5082 = vunpack.c.h.b16 %v4015
  %v5083 = vunpack.c.l.b16 %v4016
  %v5084 = vunpack.c.h.b16 %v4016
  %v5085 = vunpack.c.l.b16 %v4017
  %v5086 = vunpack.c.h.b16 %v4017
  %v5087 = vunpack.c.l.b16 %v4018
  %v5088 = vunpack.c.h.b16 %v4018
  %v5089 = vunpack.c.l.b16 %v4019
  %v5090 = vunpack.c.h.b16 %v4019
  %v5091 = vunpack.c.l.b16 %v4020
  %v5092 = vunpack.c.h.b16 %v4020
  %v5093 = vunpack.c.l.b16 %v4021
  %v5094 = vunpack.c.h.b16 %v4021
  %v5095 = vunpack.c.l.b16 %v4022
  %v5096 = vunpack.c.h.b16 %v4022
  %v5097 = vunpack.c.l.b16 %v4023
  %v5098 = vunpack.c.h.b16 %v4023
  %v5099 = vunpack.c.l.b16 %v4024
  %v5100 = vunpack.c.h.b16 %v4024
  %v5101 = vunpack.c.l.b16 %v4025
  %v5102 = vunpack.c.h.b16 %v4025
  %v5103 = vunpack.c.l.b16 %v4026
  %v5104 = vunpack.c.h.b16 %v4026
  %v5105 = vunpack.c.l.b16 %v4027
  %v5106 = vunpack.c.h.b16 %v4027
  %v5107 = vunpack.c.l.b16 %v4028
  %v5108 = vunpack.c.h.b16 %v4028
  %v5109 = vunpack.c.l.b16 %v4029
  %v5110 = vunpack.c.h.b16 %v4029
  %v5111 = vunpack.c.l.b16 %v4030
  %v5112 = vunpack.c.h.b16 %v4030
  %v5113 = vunpack.c.l.b16 %v4031
  %v5114 = vunpack.c.h.b16 %v4031
  %v5115 = vunpack.c.l.b16 %v4032
  %v5116 = vunpack.c.h.b16 %v4032
  %v5117 = vunpack.c.l.b16 %v4033
  %v5118 = vunpack.c.h.b16 %v4033
  %v5119 = vunpack.c.l.b16 %v4034
  %v5120 = vunpack.c.h.b16 %v4034
  %v5121 = vunpack.c.l.b16 %v4035
  %v5122 = vunpack.c.h.b16 %v4035
  %v5123 = vunpack.c.l.b16 %v4036
  %v5124 = vunpack.c.h.b16 %v4036
  %v5125 = vunpack.c.l.b16 %v4037
  %v5126 = vunpack.c.h.b16 %v4037
  %v5127 = vunpack.c.l.b16 %v4038
  %v5128 = vunpack.c.h.b16 %v4038
  %v5129 = vunpack.c.l.b16 %v4039
  %v5130 = vunpack.c.h.b16 %v4039
  %v5131 = vunpack.c.l.b16 %v4040
  %v5132 = vunpack.c.h.b16 %v4040
  %v5133 = vunpack.c.l.b16 %v4041
  %v5134 = vunpack.c.h.b16 %v4041
  %v5135 = vunpack.c.l.b16 %v4042
  %v5136 = vunpack.c.h.b16 %v4042
  %v5137 = vunpack.c.l.b16 %v4043
  %v5138 = vunpack.c.h.b16 %v4043
  %v5139 = vunpack.c.l.b16 %v4044
  %v5140 = vunpack.c.h.b16 %v4044
  %v5141 = vunpack.c.l.b16 %v4045
  %v5142 = vunpack.c.h.b16 %v4045
  %v5143 = vunpack.c.l.b16 %v4046
  %v5144 = vunpack.c.h.b16 %v4046
  %v5145 = vunpack.c.l.b16 %v4047
  %v5146 = vunpack.c.h.b16 %v4047
  %v5147 = vunpack.c.l.b16 %v4048
  %v5148 = vunpack.c.h.b16 %v4048
  %v5149 = vunpack.c.l.b16 %v4049
  %v5150 = vunpack.c.h.b16 %v4049
  %v5151 = vunpack.c.l.b16 %v4050
  %v5152 = vunpack.c.h.b16 %v4050
  %v5153 = vunpack.c.l.b16 %v4051
  %v5154 = vunpack.c.h.b16 %v4051
  %v5155 = vunpack.c.l.b16 %v4052
  %v5156 = vunpack.c.h.b16 %v4052
  %v5157 = vunpack.c.l.b16 %v4053
  %v5158 = vunpack.c.h.b16 %v4053
  %v5159 = vunpack.c.l.b16 %v4054
  %v5160 = vunpack.c.h.b16 %v4054
  %v5161 = vunpack.c.l.b16 %v4055
  %v5162 = vunpack.c.h.b16 %v4055
  %v5163 = vunpack.c.l.b16 %v4056
  %v5164 = vunpack.c.h.b16 %v4056
  %v5165 = vunpack.c.l.b16 %v4057
  %v5166 = vunpack.c.h.b16 %v4057
  %v5167 = vunpack.c.l.b16 %v4058
  %v5168 = vunpack.c.h.b16 %v4058
  %v5169 = vunpack.c.l.b16 %v4059
  %v5170 = vunpack.c.h.b16 %v4059
  %v5171 = vunpack.c.l.b16 %v4060
  %v5172 = vunpack.c.h.b16 %v4060
  %v5173 = vunpack.c.l.b16 %v4061
  %v5174 = vunpack.c.h.b16 %v4061
  %v5175 = vunpack.c.l.b16 %v4062
  %v5176 = vunpack.c.h.b16 %v4062
  %v5177 = vunpack.c.l.b16 %v4063
  %v5178 = vunpack.c.h.b16 %v4063
  %v5179 = vunpack.c.l.b16 %v4064
  %v5180 = vunpack.c.h.b16 %v4064
  %v5181 = vunpack.c.l.b16 %v4065
  %v5182 = vunpack.c.h.b16 %v4065
  %v5183 = vunpack.c.l.b16 %v4066
  %v5184 = vunpack.c.h.b16 %v4066
  %v5185 = vunpack.c.l.b16 %v4067
  %v5186 = vunpack.c.h.b16 %v4067
  %v5187 = vunpack.c.l.b16 %v4068
  %v5188 = vunpack.c.h.b16 %v4068
  %v5189 = vunpack.c.l.b16 %v4069
  %v5190 = vunpack.c.h.b16 %v4069
  %v5191 = vunpack.c.l.b16 %v4070
  %v5192 = vunpack.c.h.b16 %v4070
  %v5193 = vunpack.c.l.b16 %v4071
  %v5194 = vunpack.c.h.b16 %v4071
  %v5195 = vunpack.c.l.b16 %v4072
  %v5196 = vunpack.c.h.b16 %v4072
  %v5197 = vunpack.c.l.b16 %v4073
  %v5198 = vunpack.c.h.b16 %v4073
  %v5199 = vunpack.c.l.b16 %v4074
  %v5200 = vunpack.c.h.b16 %v4074
  %v5201 = vunpack.c.l.b16 %v4075
  %v5202 = vunpack.c.h.b16 %v4075
  %v5203 = vunpack.c.l.b16 %v4076
  %v5204 = vunpack.c.h.b16 %v4076
  %v5205 = vunpack.c.l.b16 %v4077
  %v5206 = vunpack.c.h.b16 %v4077
  %v5207 = vunpack.c.l.b16 %v4078
  %v5208 = vunpack.c.h.b16 %v4078
  %v5209 = vunpack.c.l.b16 %v4079
  %v5210 = vunpack.c.h.b16 %v4079
  %v5211 = vunpack.c.l.b16 %v4080
  %v5212 = vunpack.c.h.b16 %v4080
  %v5213 = vunpack.c.l.b16 %v4081
  %v5214 = vunpack.c.h.b16 %v4081
  %v5215 = vunpack.c.l.b16 %v4082
  %v5216 = vunpack.c.h.b16 %v4082
  %v5217 = vunpack.c.l.b16 %v4083
  %v5218 = vunpack.c.h.b16 %v4083
  %v5219 = vunpack.c.l.b16 %v4084
  %v5220 = vunpack.c.h.b16 %v4084
  %v5221 = vunpack.c.l.b16 %v4085
  %v5222 = vunpack.c.h.b16 %v4085
  %v5223 = vunpack.c.l.b16 %v4086
  %v5224 = vunpack.c.h.b16 %v4086
  %v5225 = vunpack.c.l.b16 %v4087
  %v5226 = vunpack.c.h.b16 %v4087
  %v5227 = vunpack.c.l.b16 %v4088
  %v5228 = vunpack.c.h.b16 %v4088
  %v5229 = vunpack.c.l.b16 %v4089
  %v5230 = vunpack.c.h.b16 %v4089
  %v5231 = vunpack.c.l.b16 %v4090
  %v5232 = vunpack.c.h.b16 %v4090
  %v5233 = vunpack.c.l.b16 %v4091
  %v5234 = vunpack.c.h.b16 %v4091
  %v5235 = vunpack.c.l.b16 %v4092
  %v5236 = vunpack.c.h.b16 %v4092
  %v5237 = vunpack.c.l.b16 %v4093
  %v5238 = vunpack.c.h.b16 %v4093
  %v5239 = vunpack.c.l.b16 %v4094
  %v5240 = vunpack.c.h.b16 %v4094
  %v5241 = vunpack.c.l.b16 %v4095
  %v5242 = vunpack.c.h.b16 %v4095
  %v5243 = vunpack.c.l.b16 %v4096
  %v5244 = vunpack.c.h.b16 %v4096
  %v5245 = vunpack.c.l.b16 %v4097
  %v5246 = vunpack.c.h.b16 %v4097
  %v5247 = vunpack.c.l.b16 %v4098
  %v5248 = vunpack.c.h.b16 %v4098
  %v5249 = vunpack.c.l.b16 %v4099
  %v5250 = vunpack.c.h.b16 %v4099
  %v5251 = vunpack.c.l.b16 %v4100
  %v5252 = vunpack.c.h.b16 %v4100
  %v5253 = vunpack.c.l.b16 %v4101
  %v5254 = vunpack.c.h.b16 %v4101
  %v5255 = vunpack.c.l.b16 %v4102
  %v5256 = vunpack.c.h.b16 %v4102
  %v5257 = vunpack.c.l.b16 %v4103
  %v5258 = vunpack.c.h.b16 %v4103
  %v5259 = vunpack.c.l.b16 %v4104
  %v5260 = vunpack.c.h.b16 %v4104
  %v5261 = vunpack.c.l.b16 %v4105
  %v5262 = vunpack.c.h.b16 %v4105
  %v5263 = vunpack.c.l.b16 %v4106
  %v5264 = vunpack.c.h.b16 %v4106
  %v5265 = vunpack.c.l.b16 %v4107
  %v5266 = vunpack.c.h.b16 %v4107
  %v5267 = vunpack.c.l.b16 %v4108
  %v5268 = vunpack.c.h.b16 %v4108
  %v5269 = vunpack.c.l.b16 %v4109
  %v5270 = vunpack.c.h.b16 %v4109
  %v5271 = vunpack.c.l.b16 %v4110
  %v5272 = vunpack.c.h.b16 %v4110
  %v5273 = vunpack.c.l.b16 %v4111
  %v5274 = vunpack.c.h.b16 %v4111
  %v5275 = vunpack.c.l.b16 %v4112
  %v5276 = vunpack.c.h.b16 %v4112
  %v5277 = vunpack.c.l.b16 %v4113
  %v5278 = vunpack.c.h.b16 %v4113
  %v5279 = vunpack.c.l.b16 %v4114
  %v5280 = vunpack.c.h.b16 %v4114
  %v5281 = vunpack.c.l.b16 %v4115
  %v5282 = vunpack.c.h.b16 %v4115
  %v5283 = vunpack.c.l.b16 %v4116
  %v5284 = vunpack.c.h.b16 %v4116
  %v5285 = vunpack.c.l.b16 %v4117
  %v5286 = vunpack.c.h.b16 %v4117
  %v5287 = vunpack.c.l.b16 %v4118
  %v5288 = vunpack.c.h.b16 %v4118
  %v5289 = vunpack.c.l.b16 %v4119
  %v5290 = vunpack.c.h.b16 %v4119
  %v5291 = vunpack.c.l.b16 %v4120
  %v5292 = vunpack.c.h.b16 %v4120
  %v5293 = vunpack.c.l.b16 %v4121
  %v5294 = vunpack.c.h.b16 %v4121
  %v5295 = vunpack.c.l.b16 %v4122
  %v5296 = vunpack.c.h.b16 %v4122
  %v5297 = vunpack.c.l.b16 %v4123
  %v5298 = vunpack.c.h.b16 %v4123
  %v5299 = vunpack.c.l.b16 %v4124
  %v5300 = vunpack.c.h.b16 %v4124
  %v5301 = vunpack.c.l.b16 %v4125
  %v5302 = vunpack.c.h.b16 %v4125
  %v5303 = vunpack.c.l.b16 %v4126
  %v5304 = vunpack.c.h.b16 %v4126
  %v5305 = vunpack.c.l.b16 %v4127
  %v5306 = vunpack.c.h.b16 %v4127
  %v5307 = vunpack.c.l.b16 %v4128
  %v5308 = vunpack.c.h.b16 %v4128
  %v5309 = vunpack.c.l.b16 %v4129
  %v5310 = vunpack.c.h.b16 %v4129
  %v5311 = vunpack.c.l.b16 %v4130
  %v5312 = vunpack.c.h.b16 %v4130
  %v5313 = vunpack.c.l.b16 %v4131
  %v5314 = vunpack.c.h.b16 %v4131
  %v5315 = vunpack.c.l.b16 %v4132
  %v5316 = vunpack.c.h.b16 %v4132
  %v5317 = vunpack.c.l.b16 %v4133
  %v5318 = vunpack.c.h.b16 %v4133
  %v5319 = vunpack.c.l.b16 %v4134
  %v5320 = vunpack.c.h.b16 %v4134
  %v5321 = vunpack.c.l.b16 %v4135
  %v5322 = vunpack.c.h.b16 %v4135
  %v5323 = vunpack.c.l.b16 %v4136
  %v5324 = vunpack.c.h.b16 %v4136
  %v5325 = vunpack.c.l.b16 %v4137
  %v5326 = vunpack.c.h.b16 %v4137
  %v5327 = vunpack.c.l.b16 %v4138
  %v5328 = vunpack.c.h.b16 %v4138
  %v5329 = vunpack.c.l.b16 %v4139
  %v5330 = vunpack.c.h.b16 %v4139
  %v5331 = vunpack.c.l.b16 %v4140
  %v5332 = vunpack.c.h.b16 %v4140
  %v5333 = vunpack.c.l.b16 %v4141
  %v5334 = vunpack.c.h.b16 %v4141
  %v5335 = vunpack.c.l.b16 %v4142
  %v5336 = vunpack.c.h.b16 %v4142
  %v5337 = vunpack.c.l.b16 %v4143
  %v5338 = vunpack.c.h.b16 %v4143
  %v5339 = vunpack.c.l.b16 %v4144
  %v5340 = vunpack.c.h.b16 %v4144
  %v5341 = vunpack.c.l.b16 %v4145
  %v5342 = vunpack.c.h.b16 %v4145
  %v5343 = vunpack.c.l.b16 %v4146
  %v5344 = vunpack.c.h.b16 %v4146
  %v5345 = vunpack.c.l.b16 %v4147
  %v5346 = vunpack.c.h.b16 %v4147
  %v5347 = vunpack.c.l.b16 %v4148
  %v5348 = vunpack.c.h.b16 %v4148
  %v5349 = vunpack.c.l.b16 %v4149
  %v5350 = vunpack.c.h.b16 %v4149
  %v5351 = vunpack.c.l.b16 %v4150
  %v5352 = vunpack.c.h.b16 %v4150
  %v5353 = vunpack.c.l.b16 %v4151
  %v5354 = vunpack.c.h.b16 %v4151
  %v5355 = vunpack.c.l.b16 %v4152
  %v5356 = vunpack.c.h.b16 %v4152
  %v5357 = vunpack.c.l.b16 %v4153
  %v5358 = vunpack.c.h.b16 %v4153
  %v5359 = vunpack.c.l.b16 %v4154
  %v5360 = vunpack.c.h.b16 %v4154
  %v5361 = vunpack.c.l.b16 %v4155
  %v5362 = vunpack.c.h.b16 %v4155
  %v5363 = vunpack.c.l.b16 %v4156
  %v5364 = vunpack.c.h.b16 %v4156
  %v5365 = vunpack.c.l.b16 %v4157
  %v5366 = vunpack.c.h.b16 %v4157
  %v5367 = vunpack.c.l.b16 %v4158
  %v5368 = vunpack.c.h.b16 %v4158
  %v5369 = vunpack.c.l.b16 %v4159
  %v5370 = vunpack.c.h.b16 %v4159
  %v5371 = vunpack.c.l.b16 %v4160
  %v5372 = vunpack.c.h.b16 %v4160
  %v5373 = vunpack.c.l.b16 %v4161
  %v5374 = vunpack.c.h.b16 %v4161
  %v5375 = vunpack.c.l.b16 %v4162
  %v5376 = vunpack.c.h.b16 %v4162
  %v5377 = vunpack.c.l.b16 %v4163
  %v5378 = vunpack.c.h.b16 %v4163
  %v5379 = vunpack.c.l.b16 %v4164
  %v5380 = vunpack.c.h.b16 %v4164
  %v5381 = vunpack.c.l.b16 %v4165
  %v5382 = vunpack.c.h.b16 %v4165
  %v5383 = vunpack.c.l.b16 %v4166
  %v5384 = vunpack.c.h.b16 %v4166
  %v5385 = vunpack.c.l.b16 %v4167
  %v5386 = vunpack.c.h.b16 %v4167
  %v5387 = vunpack.c.l.b16 %v4168
  %v5388 = vunpack.c.h.b16 %v4168
  %v5389 = vunpack.c.l.b16 %v4169
  %v5390 = vunpack.c.h.b16 %v4169
  %v5391 = vunpack.c.l.b16 %v4170
  %v5392 = vunpack.c.h.b16 %v4170
  %v5393 = vunpack.c.l.b16 %v4171
  %v5394 = vunpack.c.h.b16 %v4171
  %v5395 = vunpack.c.l.b16 %v4172
  %v5396 = vunpack.c.h.b16 %v4172
  %v5397 = vunpack.c.l.b16 %v4173
  %v5398 = vunpack.c.h.b16 %v4173
  %v5399 = vunpack.c.l.b16 %v4174
  %v5400 = vunpack.c.h.b16 %v4174
  %v5401 = vunpack.c.l.b16 %v4175
  %v5402 = vunpack.c.h.b16 %v4175
  %v5403 = vunpack.c.l.b16 %v4176
  %v5404 = vunpack.c.h.b16 %v4176
  %v5405 = vunpack.c.l.b16 %v4177
  %v5406 = vunpack.c.h.b16 %v4177
  %v5407 = vunpack.c.l.b16 %v4178
  %v5408 = vunpack.c.h.b16 %v4178
  %v5409 = vunpack.c.l.b16 %v4179
  %v5410 = vunpack.c.h.b16 %v4179
  %v5411 = vunpack.c.l.b16 %v4180
  %v5412 = vunpack.c.h.b16 %v4180
  %v5413 = vunpack.c.l.b16 %v4181
  %v5414 = vunpack.c.h.b16 %v4181
  %v5415 = vunpack.c.l.b16 %v4182
  %v5416 = vunpack.c.h.b16 %v4182
  %v5417 = vunpack.c.l.b16 %v4183
  %v5418 = vunpack.c.h.b16 %v4183
  %v5419 = vunpack.c.l.b16 %v4184
  %v5420 = vunpack.c.h.b16 %v4184
  %v5421 = vunpack.c.l.b16 %v4185
  %v5422 = vunpack.c.h.b16 %v4185
  %v5423 = vunpack.c.l.b16 %v4186
  %v5424 = vunpack.c.h.b16 %v4186
  %v5425 = vunpack.c.l.b16 %v4187
  %v5426 = vunpack.c.h.b16 %v4187
  %v5427 = vunpack.c.l.b16 %v4188
  %v5428 = vunpack.c.h.b16 %v4188
  %v5429 = vunpack.c.l.b16 %v4189
  %v5430 = vunpack.c.h.b16 %v4189
  %v5431 = vunpack.c.l.b16 %v4190
  %v5432 = vunpack.c.h.b16 %v4190
  %v5433 = vunpack.c.l.b16 %v4191
  %v5434 = vunpack.c.h.b16 %v4191
  %v5435 = vunpack.c.l.b16 %v4192
  %v5436 = vunpack.c.h.b16 %v4192
  %v5437 = vunpack.c.l.b16 %v4193
  %v5438 = vunpack.c.h.b16 %v4193
  %v5439 = vunpack.c.l.b16 %v4194
  %v5440 = vunpack.c.h.b16 %v4194
  %v5441 = vunpack.c.l.b16 %v4195
  %v5442 = vunpack.c.h.b16 %v4195
  %v5443 = vunpack.c.l.b16 %v4196
  %v5444 = vunpack.c.h.b16 %v4196
  %v5445 = vunpack.c.l.b16 %v4197
  %v5446 = vunpack.c.h.b16 %v4197
  %v5447 = vunpack.c.l.b16 %v4198
  %v5448 = vunpack.c.h.b16 %v4198
  %v5449 = vunpack.c.l.b16 %v4199
  %v5450 = vunpack.c.h.b16 %v4199
  %v5451 = vunpack.c.l.b16 %v4200
  %v5452 = vunpack.c.h.b16 %v4200
  %v5453 = vunpack.c.l.b16 %v4201
  %v5454 = vunpack.c.h.b16 %v4201
  %v5455 = vunpack.c.l.b16 %v4202
  %v5456 = vunpack.c.h.b16 %v4202
  %v5457 = vunpack.c.l.b16 %v4203
  %v5458 = vunpack.c.h.b16 %v4203
  %v5459 = vunpack.c.l.b16 %v4204
  %v5460 = vunpack.c.h.b16 %v4204
  %v5461 = vunpack.c.l.b16 %v4205
  %v5462 = vunpack.c.h.b16 %v4205
  %v5463 = vunpack.c.l.b16 %v4206
  %v5464 = vunpack.c.h.b16 %v4206
  %v5465 = vunpack.c.l.b16 %v4207
  %v5466 = vunpack.c.h.b16 %v4207
  %v5467 = vunpack.c.l.b16 %v4208
  %v5468 = vunpack.c.h.b16 %v4208
  %v5469 = vunpack.c.l.b16 %v4209
  %v5470 = vunpack.c.h.b16 %v4209
  %v5471 = vunpack.c.l.b16 %v4210
  %v5472 = vunpack.c.h.b16 %v4210
  %v5473 = vunpack.c.l.b16 %v4211
  %v5474 = vunpack.c.h.b16 %v4211
  %v5475 = vunpack.c.l.b16 %v4212
  %v5476 = vunpack.c.h.b16 %v4212
  %v5477 = vunpack.c.l.b16 %v4213
  %v5478 = vunpack.c.h.b16 %v4213
  %v5479 = vunpack.c.l.b16 %v4214
  %v5480 = vunpack.c.h.b16 %v4214
  %v5481 = vunpack.c.l.b16 %v4215
  %v5482 = vunpack.c.h.b16 %v4215
  %v5483 = vunpack.c.l.b16 %v4216
  %v5484 = vunpack.c.h.b16 %v4216
  %v5485 = vunpack.c.l.b16 %v4217
  %v5486 = vunpack.c.h.b16 %v4217
  %v5487 = vunpack.c.l.b16 %v4218
  %v5488 = vunpack.c.h.b16 %v4218
  %v5489 = vunpack.c.l.b16 %v4219
  %v5490 = vunpack.c.h.b16 %v4219
  %v5491 = vunpack.c.l.b16 %v4220
  %v5492 = vunpack.c.h.b16 %v4220
  %v5493 = vunpack.c.l.b16 %v4221
  %v5494 = vunpack.c.h.b16 %v4221
  %v5495 = vunpack.c.l.b16 %v4222
  %v5496 = vunpack.c.h.b16 %v4222
  %v5497 = vunpack.c.l.b16 %v4223
  %v5498 = vunpack.c.h.b16 %v4223
  %v5499 = vunpack.c.l.b16 %v4224
  %v5500 = vunpack.c.h.b16 %v4224
  %v5501 = vunpack.c.l.b16 %v4225
  %v5502 = vunpack.c.h.b16 %v4225
  %v5503 = vunpack.c.l.b16 %v4226
  %v5504 = vunpack.c.h.b16 %v4226
  %v5505 = vunpack.c.l.b16 %v4227
  %v5506 = vunpack.c.h.b16 %v4227
  %v5507 = vunpack.c.l.b16 %v4228
  %v5508 = vunpack.c.h.b16 %v4228
  %v5509 = vunpack.c.l.b16 %v4229
  %v5510 = vunpack.c.h.b16 %v4229
  %v5511 = vunpack.c.l.b16 %v4230
  %v5512 = vunpack.c.h.b16 %v4230
  %v5513 = vunpack.c.l.b16 %v4231
  %v5514 = vunpack.c.h.b16 %v4231
  %v5515 = vunpack.c.l.b16 %v4232
  %v5516 = vunpack.c.h.b16 %v4232
  %v5517 = vunpack.c.l.b16 %v4233
  %v5518 = vunpack.c.h.b16 %v4233
  %v5519 = vunpack.c.l.b16 %v4234
  %v5520 = vunpack.c.h.b16 %v4234
  %v5521 = vunpack.c.l.b16 %v4235
  %v5522 = vunpack.c.h.b16 %v4235
  %v5523 = vunpack.c.l.b16 %v4236
  %v5524 = vunpack.c.h.b16 %v4236
  %v5525 = vunpack.c.l.b16 %v4237
  %v5526 = vunpack.c.h.b16 %v4237
  %v5527 = vunpack.c.l.b16 %v4238
  %v5528 = vunpack.c.h.b16 %v4238
  %v5529 = vunpack.c.l.b16 %v4239
  %v5530 = vunpack.c.h.b16 %v4239
  %v5531 = vunpack.c.l.b16 %v4240
  %v5532 = vunpack.c.h.b16 %v4240
  %v5533 = vunpack.c.l.b16 %v4241
  %v5534 = vunpack.c.h.b16 %v4241
  %v5535 = vunpack.c.l.b16 %v4242
  %v5536 = vunpack.c.h.b16 %v4242
  %v5537 = vunpack.c.l.b16 %v4243
  %v5538 = vunpack.c.h.b16 %v4243
  %v5539 = vunpack.c.l.b16 %v4244
  %v5540 = vunpack.c.h.b16 %v4244
  %v5541 = vunpack.c.l.b16 %v4245
  %v5542 = vunpack.c.h.b16 %v4245
  %v5543 = vunpack.c.l.b16 %v4246
  %v5544 = vunpack.c.h.b16 %v4246
  %v5545 = vunpack.c.l.b16 %v4247
  %v5546 = vunpack.c.h.b16 %v4247
  %v5547 = vunpack.c.l.b16 %v4248
  %v5548 = vunpack.c.h.b16 %v4248
  %v5549 = vunpack.c.l.b16 %v4249
  %v5550 = vunpack.c.h.b16 %v4249
  %v5551 = vunpack.c.l.b16 %v4250
  %v5552 = vunpack.c.h.b16 %v4250
  %v5553 = vunpack.c.l.b16 %v4251
  %v5554 = vunpack.c.h.b16 %v4251
  %v5555 = vunpack.c.l.b16 %v4252
  %v5556 = vunpack.c.h.b16 %v4252
  %v5557 = vunpack.c.l.b16 %v4253
  %v5558 = vunpack.c.h.b16 %v4253
  %v5559 = vunpack.c.l.b16 %v4254
  %v5560 = vunpack.c.h.b16 %v4254
  %v5561 = vunpack.c.l.b16 %v4255
  %v5562 = vunpack.c.h.b16 %v4255
  %v5563 = vunpack.c.l.b16 %v4256
  %v5564 = vunpack.c.h.b16 %v4256
  %v5565 = vunpack.c.l.b16 %v4257
  %v5566 = vunpack.c.h.b16 %v4257
  %v5567 = vunpack.c.l.b16 %v4258
  %v5568 = vunpack.c.h.b16 %v4258
  %v5569 = vunpack.c.l.b16 %v4259
  %v5570 = vunpack.c.h.b16 %v4259
  %v5571 = vunpack.c.l.b16 %v4260
  %v5572 = vunpack.c.h.b16 %v4260
  %v5573 = vunpack.c.l.b16 %v4261
  %v5574 = vunpack.c.h.b16 %v4261
  %v5575 = vunpack.c.l.b16 %v4262
  %v5576 = vunpack.c.h.b16 %v4262
  %v5577 = vunpack.c.l.b16 %v4263
  %v5578 = vunpack.c.h.b16 %v4263
  %v5579 = vunpack.c.l.b16 %v4264
  %v5580 = vunpack.c.h.b16 %v4264
  %v5581 = vunpack.c.l.b16 %v4265
  %v5582 = vunpack.c.h.b16 %v4265
  %v5583 = vunpack.c.l.b16 %v4266
  %v5584 = vunpack.c.h.b16 %v4266
  %v5585 = vunpack.c.l.b16 %v4267
  %v5586 = vunpack.c.h.b16 %v4267
  %v5587 = vunpack.c.l.b16 %v4268
  %v5588 = vunpack.c.h.b16 %v4268
  %v5589 = vunpack.c.l.b16 %v4269
  %v5590 = vunpack.c.h.b16 %v4269
  %v5591 = vunpack.c.l.b16 %v4270
  %v5592 = vunpack.c.h.b16 %v4270
  %v5593 = vunpack.c.l.b16 %v4271
  %v5594 = vunpack.c.h.b16 %v4271
  %v5595 = vunpack.c.l.b16 %v4272
  %v5596 = vunpack.c.h.b16 %v4272
  %v5597 = vunpack.c.l.b16 %v4273
  %v5598 = vunpack.c.h.b16 %v4273
  %v5599 = vunpack.c.l.b16 %v4274
  %v5600 = vunpack.c.h.b16 %v4274
  %v5601 = vunpack.c.l.b16 %v4275
  %v5602 = vunpack.c.h.b16 %v4275
  %v5603 = vunpack.c.l.b16 %v4276
  %v5604 = vunpack.c.h.b16 %v4276
  %v5605 = vunpack.c.l.b16 %v4277
  %v5606 = vunpack.c.h.b16 %v4277
  %v5607 = vunpack.c.l.b16 %v4278
  %v5608 = vunpack.c.h.b16 %v4278
  %v5609 = vunpack.c.l.b16 %v4279
  %v5610 = vunpack.c.h.b16 %v4279
  %v5611 = vunpack.c.l.b16 %v4280
  %v5612 = vunpack.c.h.b16 %v4280
  %v5613 = vunpack.c.l.b16 %v4281
  %v5614 = vunpack.c.h.b16 %v4281
  %v5615 = vunpack.c.l.b16 %v4282
  %v5616 = vunpack.c.h.b16 %v4282
  %v5617 = vunpack.c.l.b16 %v4283
  %v5618 = vunpack.c.h.b16 %v4283
  %v5619 = vunpack.c.l.b16 %v4284
  %v5620 = vunpack.c.h.b16 %v4284
  %v5621 = vunpack.c.l.b16 %v4285
  %v5622 = vunpack.c.h.b16 %v4285
  %v5623 = vunpack.c.l.b16 %v4286
  %v5624 = vunpack.c.h.b16 %v4286
  %v5625 = vunpack.c.l.b16 %v4287
  %v5626 = vunpack.c.h.b16 %v4287
  %v5627 = vunpack.c.l.b16 %v4288
  %v5628 = vunpack.c.h.b16 %v4288
  %v5629 = vunpack.c.l.b16 %v4289
  %v5630 = vunpack.c.h.b16 %v4289
  %v5631 = vunpack.c.l.b16 %v4290
  %v5632 = vunpack.c.h.b16 %v4290
  %v5633 = vunpack.c.l.b16 %v4291
  %v5634 = vunpack.c.h.b16 %v4291
  %v5635 = vunpack.c.l.b16 %v4292
  %v5636 = vunpack.c.h.b16 %v4292
  %v5637 = vunpack.c.l.b16 %v4293
  %v5638 = vunpack.c.h.b16 %v4293
  %v5639 = vunpack.c.l.b16 %v4294
  %v5640 = vunpack.c.h.b16 %v4294
  %v5641 = vunpack.c.l.b16 %v4295
  %v5642 = vunpack.c.h.b16 %v4295
  %v5643 = vunpack.c.l.b16 %v4296
  %v5644 = vunpack.c.h.b16 %v4296
  %v5645 = vunpack.c.l.b16 %v4297
  %v5646 = vunpack.c.h.b16 %v4297
  %v5647 = vunpack.c.l.b16 %v4298
  %v5648 = vunpack.c.h.b16 %v4298
  %v5649 = vunpack.c.l.b16 %v4299
  %v5650 = vunpack.c.h.b16 %v4299
  %v5651 = vunpack.c.l.b16 %v4300
  %v5652 = vunpack.c.h.b16 %v4300
  %v5653 = vunpack.c.l.b16 %v4301
  %v5654 = vunpack.c.h.b16 %v4301
  %v5655 = vunpack.c.l.b16 %v4302
  %v5656 = vunpack.c.h.b16 %v4302
  %v5657 = vunpack.c.l.b16 %v4303
  %v5658 = vunpack.c.h.b16 %v4303
  %v5659 = vunpack.c.l.b16 %v4304
  %v5660 = vunpack.c.h.b16 %v4304
  %v5661 = vunpack.c.l.b16 %v4305
  %v5662 = vunpack.c.h.b16 %v4305
  %v5663 = vunpack.c.l.b16 %v4306
  %v5664 = vunpack.c.h.b16 %v4306
  %v5665 = vunpack.c.l.b16 %v4307
  %v5666 = vunpack.c.h.b16 %v4307
  %v5667 = vunpack.c.l.b16 %v4308
  %v5668 = vunpack.c.h.b16 %v4308
  %v5669 = vunpack.c.l.b16 %v4309
  %v5670 = vunpack.c.h.b16 %v4309
  %v5671 = vunpack.c.l.b16 %v4310
  %v5672 = vunpack.c.h.b16 %v4310
  %v5673 = vpack.c.b16 %v4785, %v4777
  %v5674 = vpack.c.b16 %v4786, %v4778
  %v5675 = vpack.c.b16 %v4787, %v4779
  %v5676 = vpack.c.b16 %v4788, %v4780
  %v5677 = vpack.c.b16 %v4789, %v4781
  %v5678 = vpack.c.b16 %v4790, %v4782
  %v5679 = vpack.c.b16 %v4791, %v4783
  %v5680 = vpack.c.b16 %v4792, %v4784
  %v5681 = vpack.c.b16 %v4801, %v4793
  %v5682 = vpack.c.b16 %v4802, %v4794
  %v5683 = vpack.c.b16 %v4803, %v4795
  %v5684 = vpack.c.b16 %v4804, %v4796
  %v5685 = vpack.c.b16 %v4805, %v4797
  %v5686 = vpack.c.b16 %v4806, %v4798
  %v5687 = vpack.c.b16 %v4807, %v4799
  %v5688 = vpack.c.b16 %v4808, %v4800
  %v5689 = vpack.c.b16 %v4817, %v4809
  %v5690 = vpack.c.b16 %v4818, %v4810
  %v5691 = vpack.c.b16 %v4819, %v4811
  %v5692 = vpack.c.b16 %v4820, %v4812
  %v5693 = vpack.c.b16 %v4821, %v4813
  %v5694 = vpack.c.b16 %v4822, %v4814
  %v5695 = vpack.c.b16 %v4823, %v4815
  %v5696 = vpack.c.b16 %v4824, %v4816
  %v5697 = vpack.c.b16 %v4833, %v4825
  %v5698 = vpack.c.b16 %v4834, %v4826
  %v5699 = vpack.c.b16 %v4835, %v4827
  %v5700 = vpack.c.b16 %v4836, %v4828
  %v5701 = vpack.c.b16 %v4837, %v4829
  %v5702 = vpack.c.b16 %v4838, %v4830
  %v5703 = vpack.c.b16 %v4839, %v4831
  %v5704 = vpack.c.b16 %v4840, %v4832
  %v5705 = vpack.c.b16 %v4849, %v4841
  %v5706 = vpack.c.b16 %v4850, %v4842
  %v5707 = vpack.c.b16 %v4851, %v4843
  %v5708 = vpack.c.b16 %v4852, %v4844
  %v5709 = vpack.c.b16 %v4853, %v4845
  %v5710 = vpack.c.b16 %v4854, %v4846
  %v5711 = vpack.c.b16 %v4855, %v4847
  %v5712 = vpack.c.b16 %v4856, %v4848
  %v5713 = vpack.c.b16 %v4865, %v4857
  %v5714 = vpack.c.b16 %v4866, %v4858
  %v5715 = vpack.c.b16 %v4867, %v4859
  %v5716 = vpack.c.b16 %v4868, %v4860
  %v5717 = vpack.c.b16 %v4869, %v4861
  %v5718 = vpack.c.b16 %v4870, %v4862
  %v5719 = vpack.c.b16 %v4871, %v4863
  %v5720 = vpack.c.b16 %v4872, %v4864
  %v5721 = vpack.c.b16 %v4881, %v4873
  %v5722 = vpack.c.b16 %v4882, %v4874
  %v5723 = vpack.c.b16 %v4883, %v4875
  %v5724 = vpack.c.b16 %v4884, %v4876
  %v5725 = vpack.c.b16 %v4885, %v4877
  %v5726 = vpack.c.b16 %v4886, %v4878
  %v5727 = vpack.c.b16 %v4887, %v4879
  %v5728 = vpack.c.b16 %v4888, %v4880
  %v5729 = vpack.c.b16 %v4897, %v4889
  %v5730 = vpack.c.b16 %v4898, %v4890
  %v5731 = vpack.c.b16 %v4899, %v4891
  %v5732 = vpack.c.b16 %v4900, %v4892
  %v5733 = vpack.c.b16 %v4901, %v4893
  %v5734 = vpack.c.b16 %v4902, %v4894
  %v5735 = vpack.c.b16 %v4903, %v4895
  %v5736 = vpack.c.b16 %v4904, %v4896
  %v5737 = vpack.c.b16 %v4913, %v4905
  %v5738 = vpack.c.b16 %v4914, %v4906
  %v5739 = vpack.c.b16 %v4915, %v4907
  %v5740 = vpack.c.b16 %v4916, %v4908
  %v5741 = vpack.c.b16 %v4917, %v4909
  %v5742 = vpack.c.b16 %v4918, %v4910
  %v5743 = vpack.c.b16 %v4919, %v4911
  %v5744 = vpack.c.b16 %v4920, %v4912
  %v5745 = vpack.c.b16 %v4929, %v4921
  %v5746 = vpack.c.b16 %v4930, %v4922
  %v5747 = vpack.c.b16 %v4931, %v4923
  %v5748 = vpack.c.b16 %v4932, %v4924
  %v5749 = vpack.c.b16 %v4933, %v4925
  %v5750 = vpack.c.b16 %v4934, %v4926
  %v5751 = vpack.c.b16 %v4935, %v4927
  %v5752 = vpack.c.b16 %v4936, %v4928
  %v5753 = vpack.c.b16 %v4945, %v4937
  %v5754 = vpack.c.b16 %v4946, %v4938
  %v5755 = vpack.c.b16 %v4947, %v4939
  %v5756 = vpack.c.b16 %v4948, %v4940
  %v5757 = vpack.c.b16 %v4949, %v4941
  %v5758 = vpack.c.b16 %v4950, %v4942
  %v5759 = vpack.c.b16 %v4951, %v4943
  %v5760 = vpack.c.b16 %v4952, %v4944
  %v5761 = vpack.c.b16 %v4961, %v4953
  %v5762 = vpack.c.b16 %v4962, %v4954
  %v5763 = vpack.c.b16 %v4963, %v4955
  %v5764 = vpack.c.b16 %v4964, %v4956
  %v5765 = vpack.c.b16 %v4965, %v4957
  %v5766 = vpack.c.b16 %v4966, %v4958
  %v5767 = vpack.c.b16 %v4967, %v4959
  %v5768 = vpack.c.b16 %v4968, %v4960
  %v5769 = vpack.c.b16 %v4977, %v4969
  %v5770 = vpack.c.b16 %v4978, %v4970
  %v5771 = vpack.c.b16 %v4979, %v4971
  %v5772 = vpack.c.b16 %v4980, %v4972
  %v5773 = vpack.c.b16 %v4981, %v4973
  %v5774 = vpack.c.b16 %v4982, %v4974
  %v5775 = vpack.c.b16 %v4983, %v4975
  %v5776 = vpack.c.b16 %v4984, %v4976
  %v5777 = vpack.c.b16 %v4993, %v4985
  %v5778 = vpack.c.b16 %v4994, %v4986
  %v5779 = vpack.c.b16 %v4995, %v4987
  %v5780 = vpack.c.b16 %v4996, %v4988
  %v5781 = vpack.c.b16 %v4997, %v4989
  %v5782 = vpack.c.b16 %v4998, %v4990
  %v5783 = vpack.c.b16 %v4999, %v4991
  %v5784 = vpack.c.b16 %v5000, %v4992
  %v5785 = vpack.c.b16 %v5009, %v5001
  %v5786 = vpack.c.b16 %v5010, %v5002
  %v5787 = vpack.c.b16 %v5011, %v5003
  %v5788 = vpack.c.b16 %v5012, %v5004
  %v5789 = vpack.c.b16 %v5013, %v5005
  %v5790 = vpack.c.b16 %v5014, %v5006
  %v5791 = vpack.c.b16 %v5015, %v5007
  %v5792 = vpack.c.b16 %v5016, %v5008
  %v5793 = vpack.c.b16 %v5025, %v5017
  %v5794 = vpack.c.b16 %v5026, %v5018
  %v5795 = vpack.c.b16 %v5027, %v5019
  %v5796 = vpack.c.b16 %v5028, %v5020
  %v5797 = vpack.c.b16 %v5029, %v5021
  %v5798 = vpack.c.b16 %v5030, %v5022
  %v5799 = vpack.c.b16 %v5031, %v5023
  %v5800 = vpack.c.b16 %v5032, %v5024
  %v5801 = vpack.c.b16 %v5041, %v5033
  %v5802 = vpack.c.b16 %v5042, %v5034
  %v5803 = vpack.c.b16 %v5043, %v5035
  %v5804 = vpack.c.b16 %v5044, %v5036
  %v5805 = vpack.c.b16 %v5045, %v5037
  %v5806 = vpack.c.b16 %v5046, %v5038
  %v5807 = vpack.c.b16 %v5047, %v5039
  %v5808 = vpack.c.b16 %v5048, %v5040
  %v5809 = vpack.c.b16 %v5057, %v5049
  %v5810 = vpack.c.b16 %v5058, %v5050
  %v5811 = vpack.c.b16 %v5059, %v5051
  %v5812 = vpack.c.b16 %v5060, %v5052
  %v5813 = vpack.c.b16 %v5061, %v5053
  %v5814 = vpack.c.b16 %v5062, %v5054
  %v5815 = vpack.c.b16 %v5063, %v5055
  %v5816 = vpack.c.b16 %v5064, %v5056
  %v5817 = vpack.c.b16 %v5073, %v5065
  %v5818 = vpack.c.b16 %v5074, %v5066
  %v5819 = vpack.c.b16 %v5075, %v5067
  %v5820 = vpack.c.b16 %v5076, %v5068
  %v5821 = vpack.c.b16 %v5077, %v5069
  %v5822 = vpack.c.b16 %v5078, %v5070
  %v5823 = vpack.c.b16 %v5079, %v5071
  %v5824 = vpack.c.b16 %v5080, %v5072
  %v5825 = vpack.c.b16 %v5089, %v5081
  %v5826 = vpack.c.b16 %v5090, %v5082
  %v5827 = vpack.c.b16 %v5091, %v5083
  %v5828 = vpack.c.b16 %v5092, %v5084
  %v5829 = vpack.c.b16 %v5093, %v5085
  %v5830 = vpack.c.b16 %v5094, %v5086
  %v5831 = vpack.c.b16 %v5095, %v5087
  %v5832 = vpack.c.b16 %v5096, %v5088
  %v5833 = vpack.c.b16 %v5105, %v5097
  %v5834 = vpack.c.b16 %v5106, %v5098
  %v5835 = vpack.c.b16 %v5107, %v5099
  %v5836 = vpack.c.b16 %v5108, %v5100
  %v5837 = vpack.c.b16 %v5109, %v5101
  %v5838 = vpack.c.b16 %v5110, %v5102
  %v5839 = vpack.c.b16 %v5111, %v5103
  %v5840 = vpack.c.b16 %v5112, %v5104
  %v5841 = vpack.c.b16 %v5121, %v5113
  %v5842 = vpack.c.b16 %v5122, %v5114
  %v5843 = vpack.c.b16 %v5123, %v5115
  %v5844 = vpack.c.b16 %v5124, %v5116
  %v5845 = vpack.c.b16 %v5125, %v5117
  %v5846 = vpack.c.b16 %v5126, %v5118
  %v5847 = vpack.c.b16 %v5127, %v5119
  %v5848 = vpack.c.b16 %v5128, %v5120
  %v5849 = vpack.c.b16 %v5137, %v5129
  %v5850 = vpack.c.b16 %v5138, %v5130
  %v5851 = vpack.c.b16 %v5139, %v5131
  %v5852 = vpack.c.b16 %v5140, %v5132
  %v5853 = vpack.c.b16 %v5141, %v5133
  %v5854 = vpack.c.b16 %v5142, %v5134
  %v5855 = vpack.c.b16 %v5143, %v5135
  %v5856 = vpack.c.b16 %v5144, %v5136
  %v5857 = vpack.c.b16 %v5153, %v5145
  %v5858 = vpack.c.b16 %v5154, %v5146
  %v5859 = vpack.c.b16 %v5155, %v5147
  %v5860 = vpack.c.b16 %v5156, %v5148
  %v5861 = vpack.c.b16 %v5157, %v5149
  %v5862 = vpack.c.b16 %v5158, %v5150
  %v5863 = vpack.c.b16 %v5159, %v5151
  %v5864 = vpack.c.b16 %v5160, %v5152
  %v5865 = vpack.c.b16 %v5169, %v5161
  %v5866 = vpack.c.b16 %v5170, %v5162
  %v5867 = vpack.c.b16 %v5171, %v5163
  %v5868 = vpack.c.b16 %v5172, %v5164
  %v5869 = vpack.c.b16 %v5173, %v5165
  %v5870 = vpack.c.b16 %v5174, %v5166
  %v5871 = vpack.c.b16 %v5175, %v5167
  %v5872 = vpack.c.b16 %v5176, %v5168
  %v5873 = vpack.c.b16 %v5185, %v5177
  %v5874 = vpack.c.b16 %v5186, %v5178
  %v5875 = vpack.c.b16 %v5187, %v5179
  %v5876 = vpack.c.b16 %v5188, %v5180
  %v5877 = vpack.c.b16 %v5189, %v5181
  %v5878 = vpack.c.b16 %v5190, %v5182
  %v5879 = vpack.c.b16 %v5191, %v5183
  %v5880 = vpack.c.b16 %v5192, %v5184
  %v5881 = vpack.c.b16 %v5201, %v5193
  %v5882 = vpack.c.b16 %v5202, %v5194
  %v5883 = vpack.c.b16 %v5203, %v5195
  %v5884 = vpack.c.b16 %v5204, %v5196
  %v5885 = vpack.c.b16 %v5205, %v5197
  %v5886 = vpack.c.b16 %v5206, %v5198
  %v5887 = vpack.c.b16 %v5207, %v5199
  %v5888 = vpack.c.b16 %v5208, %v5200
  %v5889 = vpack.c.b16 %v5217, %v5209
  %v5890 = vpack.c.b16 %v5218, %v5210
  %v5891 = vpack.c.b16 %v5219, %v5211
  %v5892 = vpack.c.b16 %v5220, %v5212
  %v5893 = vpack.c.b16 %v5221, %v5213
  %v5894 = vpack.c.b16 %v5222, %v5214
  %v5895 = vpack.c.b16 %v5223, %v5215
  %v5896 = vpack.c.b16 %v5224, %v5216
  %v5897 = vpack.c.b16 %v5233, %v5225
  %v5898 = vpack.c.b16 %v5234, %v5226
  %v5899 = vpack.c.b16 %v5235, %v5227
  %v5900 = vpack.c.b16 %v5236, %v5228
  %v5901 = vpack.c.b16 %v5237, %v5229
  %v5902 = vpack.c.b16 %v5238, %v5230
  %v5903 = vpack.c.b16 %v5239, %v5231
  %v5904 = vpack.c.b16 %v5240, %v5232
  %v5905 = vpack.c.b16 %v5249, %v5241
  %v5906 = vpack.c.b16 %v5250, %v5242
  %v5907 = vpack.c.b16 %v5251, %v5243
  %v5908 = vpack.c.b16 %v5252, %v5244
  %v5909 = vpack.c.b16 %v5253, %v5245
  %v5910 = vpack.c.b16 %v5254, %v5246
  %v5911 = vpack.c.b16 %v5255, %v5247
  %v5912 = vpack.c.b16 %v5256, %v5248
  %v5913 = vpack.c.b16 %v5265, %v5257
  %v5914 = vpack.c.b16 %v5266, %v5258
  %v5915 = vpack.c.b16 %v5267, %v5259
  %v5916 = vpack.c.b16 %v5268, %v5260
  %v5917 = vpack.c.b16 %v5269, %v5261
  %v5918 = vpack.c.b16 %v5270, %v5262
  %v5919 = vpack.c.b16 %v5271, %v5263
  %v5920 = vpack.c.b16 %v5272, %v5264
  %v5921 = vpack.c.b16 %v5281, %v5273
  %v5922 = vpack.c.b16 %v5282, %v5274
  %v5923 = vpack.c.b16 %v5283, %v5275
  %v5924 = vpack.c.b16 %v5284, %v5276
  %v5925 = vpack.c.b16 %v5285, %v5277
  %v5926 = vpack.c.b16 %v5286, %v5278
  %v5927 = vpack.c.b16 %v5287, %v5279
  %v5928 = vpack.c.b16 %v5288, %v5280
  %v5929 = vpack.c.b16 %v5297, %v5289
  %v5930 = vpack.c.b16 %v5298, %v5290
  %v5931 = vpack.c.b16 %v5299, %v5291
  %v5932 = vpack.c.b16 %v5300, %v5292
  %v5933 = vpack.c.b16 %v5301, %v5293
  %v5934 = vpack.c.b16 %v5302, %v5294
  %v5935 = vpack.c.b16 %v5303, %v5295
  %v5936 = vpack.c.b16 %v5304, %v5296
  %v5937 = vpack.c.b16 %v5313, %v5305
  %v5938 = vpack.c.b16 %v5314, %v5306
  %v5939 = vpack.c.b16 %v5315, %v5307
  %v5940 = vpack.c.b16 %v5316, %v5308
  %v5941 = vpack.c.b16 %v5317, %v5309
  %v5942 = vpack.c.b16 %v5318, %v5310
  %v5943 = vpack.c.b16 %v5319, %v5311
  %v5944 = vpack.c.b16 %v5320, %v5312
  %v5945 = vpack.c.b16 %v5329, %v5321
  %v5946 = vpack.c.b16 %v5330, %v5322
  %v5947 = vpack.c.b16 %v5331, %v5323
  %v5948 = vpack.c.b16 %v5332, %v5324
  %v5949 = vpack.c.b16 %v5333, %v5325
  %v5950 = vpack.c.b16 %v5334, %v5326
  %v5951 = vpack.c.b16 %v5335, %v5327
  %v5952 = vpack.c.b16 %v5336, %v5328
  %v5953 = vpack.c.b16 %v5345, %v5337
  %v5954 = vpack.c.b16 %v5346, %v5338
  %v5955 = vpack.c.b16 %v5347, %v5339
  %v5956 = vpack.c.b16 %v5348, %v5340
  %v5957 = vpack.c.b16 %v5349, %v5341
  %v5958 = vpack.c.b16 %v5350, %v5342
  %v5959 = vpack.c.b16 %v5351, %v5343
  %v5960 = vpack.c.b16 %v5352, %v5344
  %v5961 = vpack.c.b16 %v5361, %v5353
  %v5962 = vpack.c.b16 %v5362, %v5354
  %v5963 = vpack.c.b16 %v5363, %v5355
  %v5964 = vpack.c.b16 %v5364, %v5356
  %v5965 = vpack.c.b16 %v5365, %v5357
  %v5966 = vpack.c.b16 %v5366, %v5358
  %v5967 = vpack.c.b16 %v5367, %v5359
  %v5968 = vpack.c.b16 %v5368, %v5360
  %v5969 = vpack.c.b16 %v5377, %v5369
  %v5970 = vpack.c.b16 %v5378, %v5370
  %v5971 = vpack.c.b16 %v5379, %v5371
  %v5972 = vpack.c.b16 %v5380, %v5372
  %v5973 = vpack.c.b16 %v5381, %v5373
  %v5974 = vpack.c.b16 %v5382, %v5374
  %v5975 = vpack.c.b16 %v5383, %v5375
  %v5976 = vpack.c.b16 %v5384, %v5376
  %v5977 = vpack.c.b16 %v5393, %v5385
  %v5978 = vpack.c.b16 %v5394, %v5386
  %v5979 = vpack.c.b16 %v5395, %v5387
  %v5980 = vpack.c.b16 %v5396, %v5388
  %v5981 = vpack.c.b16 %v5397, %v5389
  %v5982 = vpack.c.b16 %v5398, %v5390
  %v5983 = vpack.c.b16 %v5399, %v5391
  %v5984 = vpack.c.b16 %v5400, %v5392
  %v5985 = vpack.c.b16 %v5409, %v5401
  %v5986 = vpack.c.b16 %v5410, %v5402
  %v5987 = vpack.c.b16 %v5411, %v5403
  %v5988 = vpack.c.b16 %v5412, %v5404
  %v5989 = vpack.c.b16 %v5413, %v5405
  %v5990 = vpack.c.b16 %v5414, %v5406
  %v5991 = vpack.c.b16 %v5415, %v5407
  %v5992 = vpack.c.b16 %v5416, %v5408
  %v5993 = vpack.c.b16 %v5425, %v5417
  %v5994 = vpack.c.b16 %v5426, %v5418
  %v5995 = vpack.c.b16 %v5427, %v5419
  %v5996 = vpack.c.b16 %v5428, %v5420
  %v5997 = vpack.c.b16 %v5429, %v5421
  %v5998 = vpack.c.b16 %v5430, %v5422
  %v5999 = vpack.c.b16 %v5431, %v5423
  %v6000 = vpack.c.b16 %v5432, %v5424
  %v6001 = vpack.c.b16 %v5441, %v5433
  %v6002 = vpack.c.b16 %v5442, %v5434
  %v6003 = vpack.c.b16 %v5443, %v5435
  %v6004 = vpack.c.b16 %v5444, %v5436
  %v6005 = vpack.c.b16 %v5445, %v5437
  %v6006 = vpack.c.b16 %v5446, %v5438
  %v6007 = vpack.c.b16 %v5447, %v5439
  %v6008 = vpack.c.b16 %v5448, %v5440
  %v6009 = vpack.c.b16 %v5457, %v5449
  %v6010 = vpack.c.b16 %v5458, %v5450
  %v6011 = vpack.c.b16 %v5459, %v5451
  %v6012 = vpack.c.b16 %v5460, %v5452
  %v6013 = vpack.c.b16 %v5461, %v5453
  %v6014 = vpack.c.b16 %v5462, %v5454
  %v6015 = vpack.c.b16 %v5463, %v5455
  %v6016 = vpack.c.b16 %v5464, %v5456
  %v6017 = vpack.c.b16 %v5473, %v5465
  %v6018 = vpack.c.b16 %v5474, %v5466
  %v6019 = vpack.c.b16 %v5475, %v5467
  %v6020 = vpack.c.b16 %v5476, %v5468
  %v6021 = vpack.c.b16 %v5477, %v5469
  %v6022 = vpack.c.b16 %v5478, %v5470
  %v6023 = vpack.c.b16 %v5479, %v5471
  %v6024 = vpack.c.b16 %v5480, %v5472
  %v6025 = vpack.c.b16 %v5489, %v5481
  %v6026 = vpack.c.b16 %v5490, %v5482
  %v6027 = vpack.c.b16 %v5491, %v5483
  %v6028 = vpack.c.b16 %v5492, %v5484
  %v6029 = vpack.c.b16 %v5493, %v5485
  %v6030 = vpack.c.b16 %v5494, %v5486
  %v6031 = vpack.c.b16 %v5495, %v5487
  %v6032 = vpack.c.b16 %v5496, %v5488
  %v6033 = vpack.c.b16 %v5505, %v5497
  %v6034 = vpack.c.b16 %v5506, %v5498
  %v6035 = vpack.c.b16 %v5507, %v5499
  %v6036 = vpack.c.b16 %v5508, %v5500
  %v6037 = vpack.c.b16 %v5509, %v5501
  %v6038 = vpack.c.b16 %v5510, %v5502
  %v6039 = vpack.c.b16 %v5511, %v5503
  %v6040 = vpack.c.b16 %v5512, %v5504
  %v6041 = vpack.c.b16 %v5521, %v5513
  %v6042 = vpack.c.b16 %v5522, %v5514
  %v6043 = vpack.c.b16 %v5523, %v5515
  %v6044 = vpack.c.b16 %v5524, %v5516
  %v6045 = vpack.c.b16 %v5525, %v5517
  %v6046 = vpack.c.b16 %v5526, %v5518
  %v6047 = vpack.c.b16 %v5527, %v5519
  %v6048 = vpack.c.b16 %v5528, %v5520
  %v6049 = vpack.c.b16 %v5537, %v5529
  %v6050 = vpack.c.b16 %v5538, %v5530
  %v6051 = vpack.c.b16 %v5539, %v5531
  %v6052 = vpack.c.b16 %v5540, %v5532
  %v6053 = vpack.c.b16 %v5541, %v5533
  %v6054 = vpack.c.b16 %v5542, %v5534
  %v6055 = vpack.c.b16 %v5543, %v5535
  %v6056 = vpack.c.b16 %v5544, %v5536
  %v6057 = vpack.c.b16 %v5553, %v5545
  %v6058 = vpack.c.b16 %v5554, %v5546
  %v6059 = vpack.c.b16 %v5555, %v5547
  %v6060 = vpack.c.b16 %v5556, %v5548
  %v6061 = vpack.c.b16 %v5557, %v5549
  %v6062 = vpack.c.b16 %v5558, %v5550
  %v6063 = vpack.c.b16 %v5559, %v5551
  %v6064 = vpack.c.b16 %v5560, %v5552
  %v6065 = vpack.c.b16 %v5569, %v5561
  %v6066 = vpack.c.b16 %v5570, %v5562
  %v6067 = vpack.c.b16 %v5571, %v5563
  %v6068 = vpack.c.b16 %v5572, %v5564
  %v6069 = vpack.c.b16 %v5573, %v5565
  %v6070 = vpack.c.b16 %v5574, %v5566
  %v6071 = vpack.c.b16 %v5575, %v5567
  %v6072 = vpack.c.b16 %v5576, %v5568
  %v6073 = vpack.c.b16 %v5585, %v5577
  %v6074 = vpack.c.b16 %v5586, %v5578
  %v6075 = vpack.c.b16 %v5587, %v5579
  %v6076 = vpack.c.b16 %v5588, %v5580
  %v6077 = vpack.c.b16 %v5589, %v5581
  %v6078 = vpack.c.b16 %v5590, %v5582
  %v6079 = vpack.c.b16 %v5591, %v5583
  %v6080 = vpack.c.b16 %v5592, %v5584
  %v6081 = vpack.c.b16 %v5601, %v5593
  %v6082 = vpack.c.b16 %v5602, %v5594
  %v6083 = vpack.c.b16 %v5603, %v5595
  %v6084 = vpack.c.b16 %v5604, %v5596
  %v6085 = vpack.c.b16 %v5605, %v5597
  %v6086 = vpack.c.b16 %v5606, %v5598
  %v6087 = vpack.c.b16 %v5607, %v5599
  %v6088 = vpack.c.b16 %v5608, %v5600
  %v6089 = vpack.c.b16 %v5617, %v5609
  %v6090 = vpack.c.b16 %v5618, %v5610
  %v6091 = vpack.c.b16 %v5619, %v5611
  %v6092 = vpack.c.b16 %v5620, %v5612
  %v6093 = vpack.c.b16 %v5621, %v5613
  %v6094 = vpack.c.b16 %v5622, %v5614
  %v6095 = vpack.c.b16 %v5623, %v5615
  %v6096 = vpack.c.b16 %v5624, %v5616
  %v6097 = vpack.c.b16 %v5633, %v5625
  %v6098 = vpack.c.b16 %v5634, %v5626
  %v6099 = vpack.c.b16 %v5635, %v5627
  %v6100 = vpack.c.b16 %v5636, %v5628
  %v6101 = vpack.c.b16 %v5637, %v5629
  %v6102 = vpack.c.b16 %v5638, %v5630
  %v6103 = vpack.c.b16 %v5639, %v5631
  %v6104 = vpack.c.b16 %v5640, %v5632
  %v6105 = vpack.c.b16 %v5649, %v5641
  %v6106 = vpack.c.b16 %v5650, %v5642
  %v6107 = vpack.c.b16 %v5651, %v5643
  %v6108 = vpack.c.b16 %v5652, %v5644
  %v6109 = vpack.c.b16 %v5653, %v5645
  %v6110 = vpack.c.b16 %v5654, %v5646
  %v6111 = vpack.c.b16 %v5655, %v5647
  %v6112 = vpack.c.b16 %v5656, %v5648
  %v6113 = vpack.c.b16 %v5665, %v5657
  %v6114 = vpack.c.b16 %v5666, %v5658
  %v6115 = vpack.c.b16 %v5667, %v5659
  %v6116 = vpack.c.b16 %v5668, %v5660
  %v6117 = vpack.c.b16 %v5669, %v5661
  %v6118 = vpack.c.b16 %v5670, %v5662
  %v6119 = vpack.c.b16 %v5671, %v5663
  %v6120 = vpack.c.b16 %v5672, %v5664
  %6569 = vmatpush.bf16.msra.mxu0 %v5729
  %6570 = vmatpush.bf16.msra.mxu0 %v5721
  %6571 = vmatpush.bf16.msra.mxu0 %v5713
  %6572 = vmatpush.bf16.msra.mxu0 %v5705
  %6573 = vmatpush.bf16.msra.mxu0 %v5697
  %6574 = vmatpush.bf16.msra.mxu0 %v5689
  %6575 = vmatpush.bf16.msra.mxu0 %v5681
  %6576 = vmatpush.bf16.msra.mxu0 %v5673
  %6577 = vmatmul.bf16.gmra.mxu0 %v3852
  %v6578 = vpop.f32.mrf.mxu0
  %v6579 = vadd.f32 %v4313, %v6578
  %v6580 = vpop.f32.mrf.mxu0
  %v6581 = vadd.f32 %v4313, %v6580
  %6582 = vdwg.mxu0
  %6583 = vmatpush.bf16.msra.mxu0 %v5793
  %6584 = vmatpush.bf16.msra.mxu0 %v5785
  %6585 = vmatpush.bf16.msra.mxu0 %v5777
  %6586 = vmatpush.bf16.msra.mxu0 %v5769
  %6587 = vmatpush.bf16.msra.mxu0 %v5761
  %6588 = vmatpush.bf16.msra.mxu0 %v5753
  %6589 = vmatpush.bf16.msra.mxu0 %v5745
  %6590 = vmatpush.bf16.msra.mxu0 %v5737
  %6591 = vmatmul.bf16.gmra.mxu0 %v3853
  %v6592 = vpop.f32.mrf.mxu0
  %v6593 = vadd.f32 %v6579, %v6592
  %v6594 = vpop.f32.mrf.mxu0
  %v6595 = vadd.f32 %v6581, %v6594
  %6596 = vdwg.mxu0
  %6597 = vmatpush.bf16.msra.mxu0 %v5857
  %6598 = vmatpush.bf16.msra.mxu0 %v5849
  %6599 = vmatpush.bf16.msra.mxu0 %v5841
  %6600 = vmatpush.bf16.msra.mxu0 %v5833
  %6601 = vmatpush.bf16.msra.mxu0 %v5825
  %6602 = vmatpush.bf16.msra.mxu0 %v5817
  %6603 = vmatpush.bf16.msra.mxu0 %v5809
  %6604 = vmatpush.bf16.msra.mxu0 %v5801
  %6605 = vmatmul.bf16.gmra.mxu0 %v3854
  %v6606 = vpop.f32.mrf.mxu0
  %v6607 = vadd.f32 %v6593, %v6606
  %v6608 = vpop.f32.mrf.mxu0
  %v6609 = vadd.f32 %v6595, %v6608
  %6610 = vdwg.mxu0
  %6611 = vmatpush.bf16.msra.mxu0 %v5921
  %6612 = vmatpush.bf16.msra.mxu0 %v5913
  %6613 = vmatpush.bf16.msra.mxu0 %v5905
  %6614 = vmatpush.bf16.msra.mxu0 %v5897
  %6615 = vmatpush.bf16.msra.mxu0 %v5889
  %6616 = vmatpush.bf16.msra.mxu0 %v5881
  %6617 = vmatpush.bf16.msra.mxu0 %v5873
  %6618 = vmatpush.bf16.msra.mxu0 %v5865
  %6619 = vmatmul.bf16.gmra.mxu0 %v3855
  %v6620 = vpop.f32.mrf.mxu0
  %v6621 = vadd.f32 %v6607, %v6620
  %v6622 = vpop.f32.mrf.mxu0
  %v6623 = vadd.f32 %v6609, %v6622
  %6624 = vdwg.mxu0
  %6625 = vmatpush.bf16.msra.mxu0 %v5985
  %6626 = vmatpush.bf16.msra.mxu0 %v5977
  %6627 = vmatpush.bf16.msra.mxu0 %v5969
  %6628 = vmatpush.bf16.msra.mxu0 %v5961
  %6629 = vmatpush.bf16.msra.mxu0 %v5953
  %6630 = vmatpush.bf16.msra.mxu0 %v5945
  %6631 = vmatpush.bf16.msra.mxu0 %v5937
  %6632 = vmatpush.bf16.msra.mxu0 %v5929
  %6633 = vmatmul.bf16.gmra.mxu0 %v3856
  %v6634 = vpop.f32.mrf.mxu0
  %v6635 = vadd.f32 %v6621, %v6634
  %v6636 = vpop.f32.mrf.mxu0
  %v6637 = vadd.f32 %v6623, %v6636
  %6638 = vdwg.mxu0
  %6639 = vmatpush.bf16.msra.mxu0 %v6049
  %6640 = vmatpush.bf16.msra.mxu0 %v6041
  %6641 = vmatpush.bf16.msra.mxu0 %v6033
  %6642 = vmatpush.bf16.msra.mxu0 %v6025
  %6643 = vmatpush.bf16.msra.mxu0 %v6017
  %6644 = vmatpush.bf16.msra.mxu0 %v6009
  %6645 = vmatpush.bf16.msra.mxu0 %v6001
  %6646 = vmatpush.bf16.msra.mxu0 %v5993
  %6647 = vmatmul.bf16.gmra.mxu0 %v3857
  %v6648 = vpop.f32.mrf.mxu0
  %v6649 = vadd.f32 %v6635, %v6648
  %v6650 = vpop.f32.mrf.mxu0
  %v6651 = vadd.f32 %v6637, %v6650
  %6652 = vdwg.mxu0
  %6653 = vmatpush.bf16.msra.mxu0 %v6113
  %6654 = vmatpush.bf16.msra.mxu0 %v6105
  %6655 = vmatpush.bf16.msra.mxu0 %v6097
  %6656 = vmatpush.bf16.msra.mxu0 %v6089
  %6657 = vmatpush.bf16.msra.mxu0 %v6081
  %6658 = vmatpush.bf16.msra.mxu0 %v6073
  %6659 = vmatpush.bf16.msra.mxu0 %v6065
  %6660 = vmatpush.bf16.msra.mxu0 %v6057
  %6661 = vmatmul.bf16.gmra.mxu0 %v3858
  %v6662 = vpop.f32.mrf.mxu0
  %v6663 = vadd.f32 %v6649, %v6662
  %v6664 = vpop.f32.mrf.mxu0
  %v6665 = vadd.f32 %v6651, %v6664
  %6666 = vdwg.mxu0
  %6667 = vmatpush.bf16.msra.mxu0 %v5730
  %6668 = vmatpush.bf16.msra.mxu0 %v5722
  %6669 = vmatpush.bf16.msra.mxu0 %v5714
  %6670 = vmatpush.bf16.msra.mxu0 %v5706
  %6671 = vmatpush.bf16.msra.mxu0 %v5698
  %6672 = vmatpush.bf16.msra.mxu0 %v5690
  %6673 = vmatpush.bf16.msra.mxu0 %v5682
  %6674 = vmatpush.bf16.msra.mxu0 %v5674
  %6675 = vmatmul.bf16.gmra.mxu0 %v3852
  %v6676 = vpop.f32.mrf.mxu0
  %v6677 = vadd.f32 %v4314, %v6676
  %v6678 = vpop.f32.mrf.mxu0
  %v6679 = vadd.f32 %v4314, %v6678
  %6680 = vdwg.mxu0
  %6681 = vmatpush.bf16.msra.mxu0 %v5794
  %6682 = vmatpush.bf16.msra.mxu0 %v5786
  %6683 = vmatpush.bf16.msra.mxu0 %v5778
  %6684 = vmatpush.bf16.msra.mxu0 %v5770
  %6685 = vmatpush.bf16.msra.mxu0 %v5762
  %6686 = vmatpush.bf16.msra.mxu0 %v5754
  %6687 = vmatpush.bf16.msra.mxu0 %v5746
  %6688 = vmatpush.bf16.msra.mxu0 %v5738
  %6689 = vmatmul.bf16.gmra.mxu0 %v3853
  %v6690 = vpop.f32.mrf.mxu0
  %v6691 = vadd.f32 %v6677, %v6690
  %v6692 = vpop.f32.mrf.mxu0
  %v6693 = vadd.f32 %v6679, %v6692
  %6694 = vdwg.mxu0
  %6695 = vmatpush.bf16.msra.mxu0 %v5858
  %6696 = vmatpush.bf16.msra.mxu0 %v5850
  %6697 = vmatpush.bf16.msra.mxu0 %v5842
  %6698 = vmatpush.bf16.msra.mxu0 %v5834
  %6699 = vmatpush.bf16.msra.mxu0 %v5826
  %6700 = vmatpush.bf16.msra.mxu0 %v5818
  %6701 = vmatpush.bf16.msra.mxu0 %v5810
  %6702 = vmatpush.bf16.msra.mxu0 %v5802
  %6703 = vmatmul.bf16.gmra.mxu0 %v3854
  %v6704 = vpop.f32.mrf.mxu0
  %v6705 = vadd.f32 %v6691, %v6704
  %v6706 = vpop.f32.mrf.mxu0
  %v6707 = vadd.f32 %v6693, %v6706
  %6708 = vdwg.mxu0
  %6709 = vmatpush.bf16.msra.mxu0 %v5922
  %6710 = vmatpush.bf16.msra.mxu0 %v5914
  %6711 = vmatpush.bf16.msra.mxu0 %v5906
  %6712 = vmatpush.bf16.msra.mxu0 %v5898
  %6713 = vmatpush.bf16.msra.mxu0 %v5890
  %6714 = vmatpush.bf16.msra.mxu0 %v5882
  %6715 = vmatpush.bf16.msra.mxu0 %v5874
  %6716 = vmatpush.bf16.msra.mxu0 %v5866
  %6717 = vmatmul.bf16.gmra.mxu0 %v3855
  %v6718 = vpop.f32.mrf.mxu0
  %v6719 = vadd.f32 %v6705, %v6718
  %v6720 = vpop.f32.mrf.mxu0
  %v6721 = vadd.f32 %v6707, %v6720
  %6722 = vdwg.mxu0
  %6723 = vmatpush.bf16.msra.mxu0 %v5986
  %6724 = vmatpush.bf16.msra.mxu0 %v5978
  %6725 = vmatpush.bf16.msra.mxu0 %v5970
  %6726 = vmatpush.bf16.msra.mxu0 %v5962
  %6727 = vmatpush.bf16.msra.mxu0 %v5954
  %6728 = vmatpush.bf16.msra.mxu0 %v5946
  %6729 = vmatpush.bf16.msra.mxu0 %v5938
  %6730 = vmatpush.bf16.msra.mxu0 %v5930
  %6731 = vmatmul.bf16.gmra.mxu0 %v3856
  %v6732 = vpop.f32.mrf.mxu0
  %v6733 = vadd.f32 %v6719, %v6732
  %v6734 = vpop.f32.mrf.mxu0
  %v6735 = vadd.f32 %v6721, %v6734
  %6736 = vdwg.mxu0
  %6737 = vmatpush.bf16.msra.mxu0 %v6050
  %6738 = vmatpush.bf16.msra.mxu0 %v6042
  %6739 = vmatpush.bf16.msra.mxu0 %v6034
  %6740 = vmatpush.bf16.msra.mxu0 %v6026
  %6741 = vmatpush.bf16.msra.mxu0 %v6018
  %6742 = vmatpush.bf16.msra.mxu0 %v6010
  %6743 = vmatpush.bf16.msra.mxu0 %v6002
  %6744 = vmatpush.bf16.msra.mxu0 %v5994
  %6745 = vmatmul.bf16.gmra.mxu0 %v3857
  %v6746 = vpop.f32.mrf.mxu0
  %v6747 = vadd.f32 %v6733, %v6746
  %v6748 = vpop.f32.mrf.mxu0
  %v6749 = vadd.f32 %v6735, %v6748
  %6750 = vdwg.mxu0
  %6751 = vmatpush.bf16.msra.mxu0 %v6114
  %6752 = vmatpush.bf16.msra.mxu0 %v6106
  %6753 = vmatpush.bf16.msra.mxu0 %v6098
  %6754 = vmatpush.bf16.msra.mxu0 %v6090
  %6755 = vmatpush.bf16.msra.mxu0 %v6082
  %6756 = vmatpush.bf16.msra.mxu0 %v6074
  %6757 = vmatpush.bf16.msra.mxu0 %v6066
  %6758 = vmatpush.bf16.msra.mxu0 %v6058
  %6759 = vmatmul.bf16.gmra.mxu0 %v3858
  %v6760 = vpop.f32.mrf.mxu0
  %v6761 = vadd.f32 %v6747, %v6760
  %v6762 = vpop.f32.mrf.mxu0
  %v6763 = vadd.f32 %v6749, %v6762
  %6764 = vdwg.mxu0
  %6765 = vmatpush.bf16.msra.mxu0 %v5731
  %6766 = vmatpush.bf16.msra.mxu0 %v5723
  %6767 = vmatpush.bf16.msra.mxu0 %v5715
  %6768 = vmatpush.bf16.msra.mxu0 %v5707
  %6769 = vmatpush.bf16.msra.mxu0 %v5699
  %6770 = vmatpush.bf16.msra.mxu0 %v5691
  %6771 = vmatpush.bf16.msra.mxu0 %v5683
  %6772 = vmatpush.bf16.msra.mxu0 %v5675
  %6773 = vmatmul.bf16.gmra.mxu0 %v3852
  %v6774 = vpop.f32.mrf.mxu0
  %v6775 = vadd.f32 %v4315, %v6774
  %v6776 = vpop.f32.mrf.mxu0
  %v6777 = vadd.f32 %v4315, %v6776
  %6778 = vdwg.mxu0
  %6779 = vmatpush.bf16.msra.mxu0 %v5795
  %6780 = vmatpush.bf16.msra.mxu0 %v5787
  %6781 = vmatpush.bf16.msra.mxu0 %v5779
  %6782 = vmatpush.bf16.msra.mxu0 %v5771
  %6783 = vmatpush.bf16.msra.mxu0 %v5763
  %6784 = vmatpush.bf16.msra.mxu0 %v5755
  %6785 = vmatpush.bf16.msra.mxu0 %v5747
  %6786 = vmatpush.bf16.msra.mxu0 %v5739
  %6787 = vmatmul.bf16.gmra.mxu0 %v3853
  %v6788 = vpop.f32.mrf.mxu0
  %v6789 = vadd.f32 %v6775, %v6788
  %v6790 = vpop.f32.mrf.mxu0
  %v6791 = vadd.f32 %v6777, %v6790
  %6792 = vdwg.mxu0
  %6793 = vmatpush.bf16.msra.mxu0 %v5859
  %6794 = vmatpush.bf16.msra.mxu0 %v5851
  %6795 = vmatpush.bf16.msra.mxu0 %v5843
  %6796 = vmatpush.bf16.msra.mxu0 %v5835
  %6797 = vmatpush.bf16.msra.mxu0 %v5827
  %6798 = vmatpush.bf16.msra.mxu0 %v5819
  %6799 = vmatpush.bf16.msra.mxu0 %v5811
  %6800 = vmatpush.bf16.msra.mxu0 %v5803
  %6801 = vmatmul.bf16.gmra.mxu0 %v3854
  %v6802 = vpop.f32.mrf.mxu0
  %v6803 = vadd.f32 %v6789, %v6802
  %v6804 = vpop.f32.mrf.mxu0
  %v6805 = vadd.f32 %v6791, %v6804
  %6806 = vdwg.mxu0
  %6807 = vmatpush.bf16.msra.mxu0 %v5923
  %6808 = vmatpush.bf16.msra.mxu0 %v5915
  %6809 = vmatpush.bf16.msra.mxu0 %v5907
  %6810 = vmatpush.bf16.msra.mxu0 %v5899
  %6811 = vmatpush.bf16.msra.mxu0 %v5891
  %6812 = vmatpush.bf16.msra.mxu0 %v5883
  %6813 = vmatpush.bf16.msra.mxu0 %v5875
  %6814 = vmatpush.bf16.msra.mxu0 %v5867
  %6815 = vmatmul.bf16.gmra.mxu0 %v3855
  %v6816 = vpop.f32.mrf.mxu0
  %v6817 = vadd.f32 %v6803, %v6816
  %v6818 = vpop.f32.mrf.mxu0
  %v6819 = vadd.f32 %v6805, %v6818
  %6820 = vdwg.mxu0
  %6821 = vmatpush.bf16.msra.mxu0 %v5987
  %6822 = vmatpush.bf16.msra.mxu0 %v5979
  %6823 = vmatpush.bf16.msra.mxu0 %v5971
  %6824 = vmatpush.bf16.msra.mxu0 %v5963
  %6825 = vmatpush.bf16.msra.mxu0 %v5955
  %6826 = vmatpush.bf16.msra.mxu0 %v5947
  %6827 = vmatpush.bf16.msra.mxu0 %v5939
  %6828 = vmatpush.bf16.msra.mxu0 %v5931
  %6829 = vmatmul.bf16.gmra.mxu0 %v3856
  %v6830 = vpop.f32.mrf.mxu0
  %v6831 = vadd.f32 %v6817, %v6830
  %v6832 = vpop.f32.mrf.mxu0
  %v6833 = vadd.f32 %v6819, %v6832
  %6834 = vdwg.mxu0
  %6835 = vmatpush.bf16.msra.mxu0 %v6051
  %6836 = vmatpush.bf16.msra.mxu0 %v6043
  %6837 = vmatpush.bf16.msra.mxu0 %v6035
  %6838 = vmatpush.bf16.msra.mxu0 %v6027
  %6839 = vmatpush.bf16.msra.mxu0 %v6019
  %6840 = vmatpush.bf16.msra.mxu0 %v6011
  %6841 = vmatpush.bf16.msra.mxu0 %v6003
  %6842 = vmatpush.bf16.msra.mxu0 %v5995
  %6843 = vmatmul.bf16.gmra.mxu0 %v3857
  %v6844 = vpop.f32.mrf.mxu0
  %v6845 = vadd.f32 %v6831, %v6844
  %v6846 = vpop.f32.mrf.mxu0
  %v6847 = vadd.f32 %v6833, %v6846
  %6848 = vdwg.mxu0
  %6849 = vmatpush.bf16.msra.mxu0 %v6115
  %6850 = vmatpush.bf16.msra.mxu0 %v6107
  %6851 = vmatpush.bf16.msra.mxu0 %v6099
  %6852 = vmatpush.bf16.msra.mxu0 %v6091
  %6853 = vmatpush.bf16.msra.mxu0 %v6083
  %6854 = vmatpush.bf16.msra.mxu0 %v6075
  %6855 = vmatpush.bf16.msra.mxu0 %v6067
  %6856 = vmatpush.bf16.msra.mxu0 %v6059
  %6857 = vmatmul.bf16.gmra.mxu0 %v3858
  %v6858 = vpop.f32.mrf.mxu0
  %v6859 = vadd.f32 %v6845, %v6858
  %v6860 = vpop.f32.mrf.mxu0
  %v6861 = vadd.f32 %v6847, %v6860
  %6862 = vdwg.mxu0
  %6863 = vmatpush.bf16.msra.mxu0 %v5732
  %6864 = vmatpush.bf16.msra.mxu0 %v5724
  %6865 = vmatpush.bf16.msra.mxu0 %v5716
  %6866 = vmatpush.bf16.msra.mxu0 %v5708
  %6867 = vmatpush.bf16.msra.mxu0 %v5700
  %6868 = vmatpush.bf16.msra.mxu0 %v5692
  %6869 = vmatpush.bf16.msra.mxu0 %v5684
  %6870 = vmatpush.bf16.msra.mxu0 %v5676
  %6871 = vmatmul.bf16.gmra.mxu0 %v3852
  %v6872 = vpop.f32.mrf.mxu0
  %v6873 = vadd.f32 %v4316, %v6872
  %v6874 = vpop.f32.mrf.mxu0
  %v6875 = vadd.f32 %v4316, %v6874
  %6876 = vdwg.mxu0
  %6877 = vmatpush.bf16.msra.mxu0 %v5796
  %6878 = vmatpush.bf16.msra.mxu0 %v5788
  %6879 = vmatpush.bf16.msra.mxu0 %v5780
  %6880 = vmatpush.bf16.msra.mxu0 %v5772
  %6881 = vmatpush.bf16.msra.mxu0 %v5764
  %6882 = vmatpush.bf16.msra.mxu0 %v5756
  %6883 = vmatpush.bf16.msra.mxu0 %v5748
  %6884 = vmatpush.bf16.msra.mxu0 %v5740
  %6885 = vmatmul.bf16.gmra.mxu0 %v3853
  %v6886 = vpop.f32.mrf.mxu0
  %v6887 = vadd.f32 %v6873, %v6886
  %v6888 = vpop.f32.mrf.mxu0
  %v6889 = vadd.f32 %v6875, %v6888
  %6890 = vdwg.mxu0
  %6891 = vmatpush.bf16.msra.mxu0 %v5860
  %6892 = vmatpush.bf16.msra.mxu0 %v5852
  %6893 = vmatpush.bf16.msra.mxu0 %v5844
  %6894 = vmatpush.bf16.msra.mxu0 %v5836
  %6895 = vmatpush.bf16.msra.mxu0 %v5828
  %6896 = vmatpush.bf16.msra.mxu0 %v5820
  %6897 = vmatpush.bf16.msra.mxu0 %v5812
  %6898 = vmatpush.bf16.msra.mxu0 %v5804
  %6899 = vmatmul.bf16.gmra.mxu0 %v3854
  %v6900 = vpop.f32.mrf.mxu0
  %v6901 = vadd.f32 %v6887, %v6900
  %v6902 = vpop.f32.mrf.mxu0
  %v6903 = vadd.f32 %v6889, %v6902
  %6904 = vdwg.mxu0
  %6905 = vmatpush.bf16.msra.mxu0 %v5924
  %6906 = vmatpush.bf16.msra.mxu0 %v5916
  %6907 = vmatpush.bf16.msra.mxu0 %v5908
  %6908 = vmatpush.bf16.msra.mxu0 %v5900
  %6909 = vmatpush.bf16.msra.mxu0 %v5892
  %6910 = vmatpush.bf16.msra.mxu0 %v5884
  %6911 = vmatpush.bf16.msra.mxu0 %v5876
  %6912 = vmatpush.bf16.msra.mxu0 %v5868
  %6913 = vmatmul.bf16.gmra.mxu0 %v3855
  %v6914 = vpop.f32.mrf.mxu0
  %v6915 = vadd.f32 %v6901, %v6914
  %v6916 = vpop.f32.mrf.mxu0
  %v6917 = vadd.f32 %v6903, %v6916
  %6918 = vdwg.mxu0
  %6919 = vmatpush.bf16.msra.mxu0 %v5988
  %6920 = vmatpush.bf16.msra.mxu0 %v5980
  %6921 = vmatpush.bf16.msra.mxu0 %v5972
  %6922 = vmatpush.bf16.msra.mxu0 %v5964
  %6923 = vmatpush.bf16.msra.mxu0 %v5956
  %6924 = vmatpush.bf16.msra.mxu0 %v5948
  %6925 = vmatpush.bf16.msra.mxu0 %v5940
  %6926 = vmatpush.bf16.msra.mxu0 %v5932
  %6927 = vmatmul.bf16.gmra.mxu0 %v3856
  %v6928 = vpop.f32.mrf.mxu0
  %v6929 = vadd.f32 %v6915, %v6928
  %v6930 = vpop.f32.mrf.mxu0
  %v6931 = vadd.f32 %v6917, %v6930
  %6932 = vdwg.mxu0
  %6933 = vmatpush.bf16.msra.mxu0 %v6052
  %6934 = vmatpush.bf16.msra.mxu0 %v6044
  %6935 = vmatpush.bf16.msra.mxu0 %v6036
  %6936 = vmatpush.bf16.msra.mxu0 %v6028
  %6937 = vmatpush.bf16.msra.mxu0 %v6020
  %6938 = vmatpush.bf16.msra.mxu0 %v6012
  %6939 = vmatpush.bf16.msra.mxu0 %v6004
  %6940 = vmatpush.bf16.msra.mxu0 %v5996
  %6941 = vmatmul.bf16.gmra.mxu0 %v3857
  %v6942 = vpop.f32.mrf.mxu0
  %v6943 = vadd.f32 %v6929, %v6942
  %v6944 = vpop.f32.mrf.mxu0
  %v6945 = vadd.f32 %v6931, %v6944
  %6946 = vdwg.mxu0
  %6947 = vmatpush.bf16.msra.mxu0 %v6116
  %6948 = vmatpush.bf16.msra.mxu0 %v6108
  %6949 = vmatpush.bf16.msra.mxu0 %v6100
  %6950 = vmatpush.bf16.msra.mxu0 %v6092
  %6951 = vmatpush.bf16.msra.mxu0 %v6084
  %6952 = vmatpush.bf16.msra.mxu0 %v6076
  %6953 = vmatpush.bf16.msra.mxu0 %v6068
  %6954 = vmatpush.bf16.msra.mxu0 %v6060
  %6955 = vmatmul.bf16.gmra.mxu0 %v3858
  %v6956 = vpop.f32.mrf.mxu0
  %v6957 = vadd.f32 %v6943, %v6956
  %v6958 = vpop.f32.mrf.mxu0
  %v6959 = vadd.f32 %v6945, %v6958
  %6960 = vdwg.mxu0
  %6961 = vmatpush.bf16.msra.mxu0 %v5733
  %6962 = vmatpush.bf16.msra.mxu0 %v5725
  %6963 = vmatpush.bf16.msra.mxu0 %v5717
  %6964 = vmatpush.bf16.msra.mxu0 %v5709
  %6965 = vmatpush.bf16.msra.mxu0 %v5701
  %6966 = vmatpush.bf16.msra.mxu0 %v5693
  %6967 = vmatpush.bf16.msra.mxu0 %v5685
  %6968 = vmatpush.bf16.msra.mxu0 %v5677
  %6969 = vmatmul.bf16.gmra.mxu0 %v3852
  %v6970 = vpop.f32.mrf.mxu0
  %v6971 = vadd.f32 %v4317, %v6970
  %v6972 = vpop.f32.mrf.mxu0
  %v6973 = vadd.f32 %v4317, %v6972
  %6974 = vdwg.mxu0
  %6975 = vmatpush.bf16.msra.mxu0 %v5797
  %6976 = vmatpush.bf16.msra.mxu0 %v5789
  %6977 = vmatpush.bf16.msra.mxu0 %v5781
  %6978 = vmatpush.bf16.msra.mxu0 %v5773
  %6979 = vmatpush.bf16.msra.mxu0 %v5765
  %6980 = vmatpush.bf16.msra.mxu0 %v5757
  %6981 = vmatpush.bf16.msra.mxu0 %v5749
  %6982 = vmatpush.bf16.msra.mxu0 %v5741
  %6983 = vmatmul.bf16.gmra.mxu0 %v3853
  %v6984 = vpop.f32.mrf.mxu0
  %v6985 = vadd.f32 %v6971, %v6984
  %v6986 = vpop.f32.mrf.mxu0
  %v6987 = vadd.f32 %v6973, %v6986
  %6988 = vdwg.mxu0
  %6989 = vmatpush.bf16.msra.mxu0 %v5861
  %6990 = vmatpush.bf16.msra.mxu0 %v5853
  %6991 = vmatpush.bf16.msra.mxu0 %v5845
  %6992 = vmatpush.bf16.msra.mxu0 %v5837
  %6993 = vmatpush.bf16.msra.mxu0 %v5829
  %6994 = vmatpush.bf16.msra.mxu0 %v5821
  %6995 = vmatpush.bf16.msra.mxu0 %v5813
  %6996 = vmatpush.bf16.msra.mxu0 %v5805
  %6997 = vmatmul.bf16.gmra.mxu0 %v3854
  %v6998 = vpop.f32.mrf.mxu0
  %v6999 = vadd.f32 %v6985, %v6998
  %v7000 = vpop.f32.mrf.mxu0
  %v7001 = vadd.f32 %v6987, %v7000
  %7002 = vdwg.mxu0
  %7003 = vmatpush.bf16.msra.mxu0 %v5925
  %7004 = vmatpush.bf16.msra.mxu0 %v5917
  %7005 = vmatpush.bf16.msra.mxu0 %v5909
  %7006 = vmatpush.bf16.msra.mxu0 %v5901
  %7007 = vmatpush.bf16.msra.mxu0 %v5893
  %7008 = vmatpush.bf16.msra.mxu0 %v5885
  %7009 = vmatpush.bf16.msra.mxu0 %v5877
  %7010 = vmatpush.bf16.msra.mxu0 %v5869
  %7011 = vmatmul.bf16.gmra.mxu0 %v3855
  %v7012 = vpop.f32.mrf.mxu0
  %v7013 = vadd.f32 %v6999, %v7012
  %v7014 = vpop.f32.mrf.mxu0
  %v7015 = vadd.f32 %v7001, %v7014
  %7016 = vdwg.mxu0
  %7017 = vmatpush.bf16.msra.mxu0 %v5989
  %7018 = vmatpush.bf16.msra.mxu0 %v5981
  %7019 = vmatpush.bf16.msra.mxu0 %v5973
  %7020 = vmatpush.bf16.msra.mxu0 %v5965
  %7021 = vmatpush.bf16.msra.mxu0 %v5957
  %7022 = vmatpush.bf16.msra.mxu0 %v5949
  %7023 = vmatpush.bf16.msra.mxu0 %v5941
  %7024 = vmatpush.bf16.msra.mxu0 %v5933
  %7025 = vmatmul.bf16.gmra.mxu0 %v3856
  %v7026 = vpop.f32.mrf.mxu0
  %v7027 = vadd.f32 %v7013, %v7026
  %v7028 = vpop.f32.mrf.mxu0
  %v7029 = vadd.f32 %v7015, %v7028
  %7030 = vdwg.mxu0
  %7031 = vmatpush.bf16.msra.mxu0 %v6053
  %7032 = vmatpush.bf16.msra.mxu0 %v6045
  %7033 = vmatpush.bf16.msra.mxu0 %v6037
  %7034 = vmatpush.bf16.msra.mxu0 %v6029
  %7035 = vmatpush.bf16.msra.mxu0 %v6021
  %7036 = vmatpush.bf16.msra.mxu0 %v6013
  %7037 = vmatpush.bf16.msra.mxu0 %v6005
  %7038 = vmatpush.bf16.msra.mxu0 %v5997
  %7039 = vmatmul.bf16.gmra.mxu0 %v3857
  %v7040 = vpop.f32.mrf.mxu0
  %v7041 = vadd.f32 %v7027, %v7040
  %v7042 = vpop.f32.mrf.mxu0
  %v7043 = vadd.f32 %v7029, %v7042
  %7044 = vdwg.mxu0
  %7045 = vmatpush.bf16.msra.mxu0 %v6117
  %7046 = vmatpush.bf16.msra.mxu0 %v6109
  %7047 = vmatpush.bf16.msra.mxu0 %v6101
  %7048 = vmatpush.bf16.msra.mxu0 %v6093
  %7049 = vmatpush.bf16.msra.mxu0 %v6085
  %7050 = vmatpush.bf16.msra.mxu0 %v6077
  %7051 = vmatpush.bf16.msra.mxu0 %v6069
  %7052 = vmatpush.bf16.msra.mxu0 %v6061
  %7053 = vmatmul.bf16.gmra.mxu0 %v3858
  %v7054 = vpop.f32.mrf.mxu0
  %v7055 = vadd.f32 %v7041, %v7054
  %v7056 = vpop.f32.mrf.mxu0
  %v7057 = vadd.f32 %v7043, %v7056
  %7058 = vdwg.mxu0
  %7059 = vmatpush.bf16.msra.mxu0 %v5734
  %7060 = vmatpush.bf16.msra.mxu0 %v5726
  %7061 = vmatpush.bf16.msra.mxu0 %v5718
  %7062 = vmatpush.bf16.msra.mxu0 %v5710
  %7063 = vmatpush.bf16.msra.mxu0 %v5702
  %7064 = vmatpush.bf16.msra.mxu0 %v5694
  %7065 = vmatpush.bf16.msra.mxu0 %v5686
  %7066 = vmatpush.bf16.msra.mxu0 %v5678
  %7067 = vmatmul.bf16.gmra.mxu0 %v3852
  %v7068 = vpop.f32.mrf.mxu0
  %v7069 = vadd.f32 %v4318, %v7068
  %v7070 = vpop.f32.mrf.mxu0
  %v7071 = vadd.f32 %v4318, %v7070
  %7072 = vdwg.mxu0
  %7073 = vmatpush.bf16.msra.mxu0 %v5798
  %7074 = vmatpush.bf16.msra.mxu0 %v5790
  %7075 = vmatpush.bf16.msra.mxu0 %v5782
  %7076 = vmatpush.bf16.msra.mxu0 %v5774
  %7077 = vmatpush.bf16.msra.mxu0 %v5766
  %7078 = vmatpush.bf16.msra.mxu0 %v5758
  %7079 = vmatpush.bf16.msra.mxu0 %v5750
  %7080 = vmatpush.bf16.msra.mxu0 %v5742
  %7081 = vmatmul.bf16.gmra.mxu0 %v3853
  %v7082 = vpop.f32.mrf.mxu0
  %v7083 = vadd.f32 %v7069, %v7082
  %v7084 = vpop.f32.mrf.mxu0
  %v7085 = vadd.f32 %v7071, %v7084
  %7086 = vdwg.mxu0
  %7087 = vmatpush.bf16.msra.mxu0 %v5862
  %7088 = vmatpush.bf16.msra.mxu0 %v5854
  %7089 = vmatpush.bf16.msra.mxu0 %v5846
  %7090 = vmatpush.bf16.msra.mxu0 %v5838
  %7091 = vmatpush.bf16.msra.mxu0 %v5830
  %7092 = vmatpush.bf16.msra.mxu0 %v5822
  %7093 = vmatpush.bf16.msra.mxu0 %v5814
  %7094 = vmatpush.bf16.msra.mxu0 %v5806
  %7095 = vmatmul.bf16.gmra.mxu0 %v3854
  %v7096 = vpop.f32.mrf.mxu0
  %v7097 = vadd.f32 %v7083, %v7096
  %v7098 = vpop.f32.mrf.mxu0
  %v7099 = vadd.f32 %v7085, %v7098
  %7100 = vdwg.mxu0
  %7101 = vmatpush.bf16.msra.mxu0 %v5926
  %7102 = vmatpush.bf16.msra.mxu0 %v5918
  %7103 = vmatpush.bf16.msra.mxu0 %v5910
  %7104 = vmatpush.bf16.msra.mxu0 %v5902
  %7105 = vmatpush.bf16.msra.mxu0 %v5894
  %7106 = vmatpush.bf16.msra.mxu0 %v5886
  %7107 = vmatpush.bf16.msra.mxu0 %v5878
  %7108 = vmatpush.bf16.msra.mxu0 %v5870
  %7109 = vmatmul.bf16.gmra.mxu0 %v3855
  %v7110 = vpop.f32.mrf.mxu0
  %v7111 = vadd.f32 %v7097, %v7110
  %v7112 = vpop.f32.mrf.mxu0
  %v7113 = vadd.f32 %v7099, %v7112
  %7114 = vdwg.mxu0
  %7115 = vmatpush.bf16.msra.mxu0 %v5990
  %7116 = vmatpush.bf16.msra.mxu0 %v5982
  %7117 = vmatpush.bf16.msra.mxu0 %v5974
  %7118 = vmatpush.bf16.msra.mxu0 %v5966
  %7119 = vmatpush.bf16.msra.mxu0 %v5958
  %7120 = vmatpush.bf16.msra.mxu0 %v5950
  %7121 = vmatpush.bf16.msra.mxu0 %v5942
  %7122 = vmatpush.bf16.msra.mxu0 %v5934
  %7123 = vmatmul.bf16.gmra.mxu0 %v3856
  %v7124 = vpop.f32.mrf.mxu0
  %v7125 = vadd.f32 %v7111, %v7124
  %v7126 = vpop.f32.mrf.mxu0
  %v7127 = vadd.f32 %v7113, %v7126
  %7128 = vdwg.mxu0
  %7129 = vmatpush.bf16.msra.mxu0 %v6054
  %7130 = vmatpush.bf16.msra.mxu0 %v6046
  %7131 = vmatpush.bf16.msra.mxu0 %v6038
  %7132 = vmatpush.bf16.msra.mxu0 %v6030
  %7133 = vmatpush.bf16.msra.mxu0 %v6022
  %7134 = vmatpush.bf16.msra.mxu0 %v6014
  %7135 = vmatpush.bf16.msra.mxu0 %v6006
  %7136 = vmatpush.bf16.msra.mxu0 %v5998
  %7137 = vmatmul.bf16.gmra.mxu0 %v3857
  %v7138 = vpop.f32.mrf.mxu0
  %v7139 = vadd.f32 %v7125, %v7138
  %v7140 = vpop.f32.mrf.mxu0
  %v7141 = vadd.f32 %v7127, %v7140
  %7142 = vdwg.mxu0
  %7143 = vmatpush.bf16.msra.mxu0 %v6118
  %7144 = vmatpush.bf16.msra.mxu0 %v6110
  %7145 = vmatpush.bf16.msra.mxu0 %v6102
  %7146 = vmatpush.bf16.msra.mxu0 %v6094
  %7147 = vmatpush.bf16.msra.mxu0 %v6086
  %7148 = vmatpush.bf16.msra.mxu0 %v6078
  %7149 = vmatpush.bf16.msra.mxu0 %v6070
  %7150 = vmatpush.bf16.msra.mxu0 %v6062
  %7151 = vmatmul.bf16.gmra.mxu0 %v3858
  %v7152 = vpop.f32.mrf.mxu0
  %v7153 = vadd.f32 %v7139, %v7152
  %v7154 = vpop.f32.mrf.mxu0
  %v7155 = vadd.f32 %v7141, %v7154
  %7156 = vdwg.mxu0
  %7157 = vmatpush.bf16.msra.mxu0 %v5735
  %7158 = vmatpush.bf16.msra.mxu0 %v5727
  %7159 = vmatpush.bf16.msra.mxu0 %v5719
  %7160 = vmatpush.bf16.msra.mxu0 %v5711
  %7161 = vmatpush.bf16.msra.mxu0 %v5703
  %7162 = vmatpush.bf16.msra.mxu0 %v5695
  %7163 = vmatpush.bf16.msra.mxu0 %v5687
  %7164 = vmatpush.bf16.msra.mxu0 %v5679
  %7165 = vmatmul.bf16.gmra.mxu0 %v3852
  %v7166 = vpop.f32.mrf.mxu0
  %v7167 = vadd.f32 %v4319, %v7166
  %v7168 = vpop.f32.mrf.mxu0
  %v7169 = vadd.f32 %v4319, %v7168
  %7170 = vdwg.mxu0
  %7171 = vmatpush.bf16.msra.mxu0 %v5799
  %7172 = vmatpush.bf16.msra.mxu0 %v5791
  %7173 = vmatpush.bf16.msra.mxu0 %v5783
  %7174 = vmatpush.bf16.msra.mxu0 %v5775
  %7175 = vmatpush.bf16.msra.mxu0 %v5767
  %7176 = vmatpush.bf16.msra.mxu0 %v5759
  %7177 = vmatpush.bf16.msra.mxu0 %v5751
  %7178 = vmatpush.bf16.msra.mxu0 %v5743
  %7179 = vmatmul.bf16.gmra.mxu0 %v3853
  %v7180 = vpop.f32.mrf.mxu0
  %v7181 = vadd.f32 %v7167, %v7180
  %v7182 = vpop.f32.mrf.mxu0
  %v7183 = vadd.f32 %v7169, %v7182
  %7184 = vdwg.mxu0
  %7185 = vmatpush.bf16.msra.mxu0 %v5863
  %7186 = vmatpush.bf16.msra.mxu0 %v5855
  %7187 = vmatpush.bf16.msra.mxu0 %v5847
  %7188 = vmatpush.bf16.msra.mxu0 %v5839
  %7189 = vmatpush.bf16.msra.mxu0 %v5831
  %7190 = vmatpush.bf16.msra.mxu0 %v5823
  %7191 = vmatpush.bf16.msra.mxu0 %v5815
  %7192 = vmatpush.bf16.msra.mxu0 %v5807
  %7193 = vmatmul.bf16.gmra.mxu0 %v3854
  %v7194 = vpop.f32.mrf.mxu0
  %v7195 = vadd.f32 %v7181, %v7194
  %v7196 = vpop.f32.mrf.mxu0
  %v7197 = vadd.f32 %v7183, %v7196
  %7198 = vdwg.mxu0
  %7199 = vmatpush.bf16.msra.mxu0 %v5927
  %7200 = vmatpush.bf16.msra.mxu0 %v5919
  %7201 = vmatpush.bf16.msra.mxu0 %v5911
  %7202 = vmatpush.bf16.msra.mxu0 %v5903
  %7203 = vmatpush.bf16.msra.mxu0 %v5895
  %7204 = vmatpush.bf16.msra.mxu0 %v5887
  %7205 = vmatpush.bf16.msra.mxu0 %v5879
  %7206 = vmatpush.bf16.msra.mxu0 %v5871
  %7207 = vmatmul.bf16.gmra.mxu0 %v3855
  %v7208 = vpop.f32.mrf.mxu0
  %v7209 = vadd.f32 %v7195, %v7208
  %v7210 = vpop.f32.mrf.mxu0
  %v7211 = vadd.f32 %v7197, %v7210
  %7212 = vdwg.mxu0
  %7213 = vmatpush.bf16.msra.mxu0 %v5991
  %7214 = vmatpush.bf16.msra.mxu0 %v5983
  %7215 = vmatpush.bf16.msra.mxu0 %v5975
  %7216 = vmatpush.bf16.msra.mxu0 %v5967
  %7217 = vmatpush.bf16.msra.mxu0 %v5959
  %7218 = vmatpush.bf16.msra.mxu0 %v5951
  %7219 = vmatpush.bf16.msra.mxu0 %v5943
  %7220 = vmatpush.bf16.msra.mxu0 %v5935
  %7221 = vmatmul.bf16.gmra.mxu0 %v3856
  %v7222 = vpop.f32.mrf.mxu0
  %v7223 = vadd.f32 %v7209, %v7222
  %v7224 = vpop.f32.mrf.mxu0
  %v7225 = vadd.f32 %v7211, %v7224
  %7226 = vdwg.mxu0
  %7227 = vmatpush.bf16.msra.mxu0 %v6055
  %7228 = vmatpush.bf16.msra.mxu0 %v6047
  %7229 = vmatpush.bf16.msra.mxu0 %v6039
  %7230 = vmatpush.bf16.msra.mxu0 %v6031
  %7231 = vmatpush.bf16.msra.mxu0 %v6023
  %7232 = vmatpush.bf16.msra.mxu0 %v6015
  %7233 = vmatpush.bf16.msra.mxu0 %v6007
  %7234 = vmatpush.bf16.msra.mxu0 %v5999
  %7235 = vmatmul.bf16.gmra.mxu0 %v3857
  %v7236 = vpop.f32.mrf.mxu0
  %v7237 = vadd.f32 %v7223, %v7236
  %v7238 = vpop.f32.mrf.mxu0
  %v7239 = vadd.f32 %v7225, %v7238
  %7240 = vdwg.mxu0
  %7241 = vmatpush.bf16.msra.mxu0 %v6119
  %7242 = vmatpush.bf16.msra.mxu0 %v6111
  %7243 = vmatpush.bf16.msra.mxu0 %v6103
  %7244 = vmatpush.bf16.msra.mxu0 %v6095
  %7245 = vmatpush.bf16.msra.mxu0 %v6087
  %7246 = vmatpush.bf16.msra.mxu0 %v6079
  %7247 = vmatpush.bf16.msra.mxu0 %v6071
  %7248 = vmatpush.bf16.msra.mxu0 %v6063
  %7249 = vmatmul.bf16.gmra.mxu0 %v3858
  %v7250 = vpop.f32.mrf.mxu0
  %v7251 = vadd.f32 %v7237, %v7250
  %v7252 = vpop.f32.mrf.mxu0
  %v7253 = vadd.f32 %v7239, %v7252
  %7254 = vdwg.mxu0
  %7255 = vmatpush.bf16.msra.mxu0 %v5736
  %7256 = vmatpush.bf16.msra.mxu0 %v5728
  %7257 = vmatpush.bf16.msra.mxu0 %v5720
  %7258 = vmatpush.bf16.msra.mxu0 %v5712
  %7259 = vmatpush.bf16.msra.mxu0 %v5704
  %7260 = vmatpush.bf16.msra.mxu0 %v5696
  %7261 = vmatpush.bf16.msra.mxu0 %v5688
  %7262 = vmatpush.bf16.msra.mxu0 %v5680
  %7263 = vmatmul.bf16.gmra.mxu0 %v3852
  %v7264 = vpop.f32.mrf.mxu0
  %v7265 = vadd.f32 %v4320, %v7264
  %v7266 = vpop.f32.mrf.mxu0
  %v7267 = vadd.f32 %v4320, %v7266
  %7268 = vdwg.mxu0
  %7269 = vmatpush.bf16.msra.mxu0 %v5800
  %7270 = vmatpush.bf16.msra.mxu0 %v5792
  %7271 = vmatpush.bf16.msra.mxu0 %v5784
  %7272 = vmatpush.bf16.msra.mxu0 %v5776
  %7273 = vmatpush.bf16.msra.mxu0 %v5768
  %7274 = vmatpush.bf16.msra.mxu0 %v5760
  %7275 = vmatpush.bf16.msra.mxu0 %v5752
  %7276 = vmatpush.bf16.msra.mxu0 %v5744
  %7277 = vmatmul.bf16.gmra.mxu0 %v3853
  %v7278 = vpop.f32.mrf.mxu0
  %v7279 = vadd.f32 %v7265, %v7278
  %v7280 = vpop.f32.mrf.mxu0
  %v7281 = vadd.f32 %v7267, %v7280
  %7282 = vdwg.mxu0
  %7283 = vmatpush.bf16.msra.mxu0 %v5864
  %7284 = vmatpush.bf16.msra.mxu0 %v5856
  %7285 = vmatpush.bf16.msra.mxu0 %v5848
  %7286 = vmatpush.bf16.msra.mxu0 %v5840
  %7287 = vmatpush.bf16.msra.mxu0 %v5832
  %7288 = vmatpush.bf16.msra.mxu0 %v5824
  %7289 = vmatpush.bf16.msra.mxu0 %v5816
  %7290 = vmatpush.bf16.msra.mxu0 %v5808
  %7291 = vmatmul.bf16.gmra.mxu0 %v3854
  %v7292 = vpop.f32.mrf.mxu0
  %v7293 = vadd.f32 %v7279, %v7292
  %v7294 = vpop.f32.mrf.mxu0
  %v7295 = vadd.f32 %v7281, %v7294
  %7296 = vdwg.mxu0
  %7297 = vmatpush.bf16.msra.mxu0 %v5928
  %7298 = vmatpush.bf16.msra.mxu0 %v5920
  %7299 = vmatpush.bf16.msra.mxu0 %v5912
  %7300 = vmatpush.bf16.msra.mxu0 %v5904
  %7301 = vmatpush.bf16.msra.mxu0 %v5896
  %7302 = vmatpush.bf16.msra.mxu0 %v5888
  %7303 = vmatpush.bf16.msra.mxu0 %v5880
  %7304 = vmatpush.bf16.msra.mxu0 %v5872
  %7305 = vmatmul.bf16.gmra.mxu0 %v3855
  %v7306 = vpop.f32.mrf.mxu0
  %v7307 = vadd.f32 %v7293, %v7306
  %v7308 = vpop.f32.mrf.mxu0
  %v7309 = vadd.f32 %v7295, %v7308
  %7310 = vdwg.mxu0
  %7311 = vmatpush.bf16.msra.mxu0 %v5992
  %7312 = vmatpush.bf16.msra.mxu0 %v5984
  %7313 = vmatpush.bf16.msra.mxu0 %v5976
  %7314 = vmatpush.bf16.msra.mxu0 %v5968
  %7315 = vmatpush.bf16.msra.mxu0 %v5960
  %7316 = vmatpush.bf16.msra.mxu0 %v5952
  %7317 = vmatpush.bf16.msra.mxu0 %v5944
  %7318 = vmatpush.bf16.msra.mxu0 %v5936
  %7319 = vmatmul.bf16.gmra.mxu0 %v3856
  %v7320 = vpop.f32.mrf.mxu0
  %v7321 = vadd.f32 %v7307, %v7320
  %v7322 = vpop.f32.mrf.mxu0
  %v7323 = vadd.f32 %v7309, %v7322
  %7324 = vdwg.mxu0
  %7325 = vmatpush.bf16.msra.mxu0 %v6056
  %7326 = vmatpush.bf16.msra.mxu0 %v6048
  %7327 = vmatpush.bf16.msra.mxu0 %v6040
  %7328 = vmatpush.bf16.msra.mxu0 %v6032
  %7329 = vmatpush.bf16.msra.mxu0 %v6024
  %7330 = vmatpush.bf16.msra.mxu0 %v6016
  %7331 = vmatpush.bf16.msra.mxu0 %v6008
  %7332 = vmatpush.bf16.msra.mxu0 %v6000
  %7333 = vmatmul.bf16.gmra.mxu0 %v3857
  %v7334 = vpop.f32.mrf.mxu0
  %v7335 = vadd.f32 %v7321, %v7334
  %v7336 = vpop.f32.mrf.mxu0
  %v7337 = vadd.f32 %v7323, %v7336
  %7338 = vdwg.mxu0
  %7339 = vmatpush.bf16.msra.mxu0 %v6120
  %7340 = vmatpush.bf16.msra.mxu0 %v6112
  %7341 = vmatpush.bf16.msra.mxu0 %v6104
  %7342 = vmatpush.bf16.msra.mxu0 %v6096
  %7343 = vmatpush.bf16.msra.mxu0 %v6088
  %7344 = vmatpush.bf16.msra.mxu0 %v6080
  %7345 = vmatpush.bf16.msra.mxu0 %v6072
  %7346 = vmatpush.bf16.msra.mxu0 %v6064
  %7347 = vmatmul.bf16.gmra.mxu0 %v3858
  %v7348 = vpop.f32.mrf.mxu0
  %v7349 = vadd.f32 %v7335, %v7348
  %v7350 = vpop.f32.mrf.mxu0
  %v7351 = vadd.f32 %v7337, %v7350
  %7352 = vdwg.mxu0
  %v7353 = vmax.f32 %v6663, 0.0
  %v7354 = vmax.f32 %v6761, 0.0
  %v7355 = vmax.f32 %v6859, 0.0
  %v7356 = vmax.f32 %v6957, 0.0
  %v7357 = vmax.f32 %v7055, 0.0
  %v7358 = vmax.f32 %v7153, 0.0
  %v7359 = vmax.f32 %v7251, 0.0
  %v7360 = vmax.f32 %v7349, 0.0
  %v7361 = vmax.f32 %v6665, 0.0
  %v7362 = vmax.f32 %v6763, 0.0
  %v7363 = vmax.f32 %v6861, 0.0
  %v7364 = vmax.f32 %v6959, 0.0
  %v7365 = vmax.f32 %v7057, 0.0
  %v7366 = vmax.f32 %v7155, 0.0
  %v7367 = vmax.f32 %v7253, 0.0
  %v7368 = vmax.f32 %v7351, 0.0
  %v7369 = vpack.c.bf16 %v7361, %v7353
  %v7370 = vpack.c.bf16 %v7362, %v7354
  %v7371 = vpack.c.bf16 %v7363, %v7355
  %v7372 = vpack.c.bf16 %v7364, %v7356
  %v7373 = vpack.c.bf16 %v7365, %v7357
  %v7374 = vpack.c.bf16 %v7366, %v7358
  %v7375 = vpack.c.bf16 %v7367, %v7359
  %v7376 = vpack.c.bf16 %v7368, %v7360
  %v7377 = vld [vmem:[%s5] sm:$0xf]
  %v7378 = vld [vmem:[%s5 + $0x4] sm:$0xf]
  %v7379 = vld [vmem:[%s5 + $0x8] sm:$0xf]
  %v7380 = vld [vmem:[%s5 + $0xc] sm:$0xf]
  %v7381 = vld [vmem:[%s5 + $0x10] sm:$0xf]
  %v7382 = vld [vmem:[%s5 + $0x14] sm:$0xf]
  %v7383 = vld [vmem:[%s5 + $0x18] sm:$0xf]
  %v7384 = vld [vmem:[%s5 + $0x1c] sm:$0xf]
  %v7385 = vld [vmem:[%s5 + $0x20] sm:$0xf]
  %v7386 = vld [vmem:[%s5 + $0x24] sm:$0xf]
  %v7387 = vld [vmem:[%s5 + $0x28] sm:$0xf]
  %v7388 = vld [vmem:[%s5 + $0x2c] sm:$0xf]
  %v7389 = vld [vmem:[%s5 + $0x30] sm:$0xf]
  %v7390 = vld [vmem:[%s5 + $0x34] sm:$0xf]
  %v7391 = vld [vmem:[%s5 + $0x38] sm:$0xf]
  %v7392 = vld [vmem:[%s5 + $0x3c] sm:$0xf]
  %v7393 = vld [vmem:[%s5 + $0x40] sm:$0xf]
  %v7394 = vld [vmem:[%s5 + $0x44] sm:$0xf]
  %v7395 = vld [vmem:[%s5 + $0x48] sm:$0xf]
  %v7396 = vld [vmem:[%s5 + $0x4c] sm:$0xf]
  %v7397 = vld [vmem:[%s5 + $0x50] sm:$0xf]
  %v7398 = vld [vmem:[%s5 + $0x54] sm:$0xf]
  %v7399 = vld [vmem:[%s5 + $0x58] sm:$0xf]
  %v7400 = vld [vmem:[%s5 + $0x5c] sm:$0xf]
  %v7401 = vld [vmem:[%s5 + $0x60] sm:$0xf]
  %v7402 = vld [vmem:[%s5 + $0x64] sm:$0xf]
  %v7403 = vld [vmem:[%s5 + $0x68] sm:$0xf]
  %v7404 = vld [vmem:[%s5 + $0x6c] sm:$0xf]
  %v7405 = vld [vmem:[%s5 + $0x70] sm:$0xf]
  %v7406 = vld [vmem:[%s5 + $0x74] sm:$0xf]
  %v7407 = vld [vmem:[%s5 + $0x78] sm:$0xf]
  %v7408 = vld [vmem:[%s5 + $0x7c] sm:$0xf]
  %v7409 = vld [vmem:[%s5 + $0x80] sm:$0xf]
  %v7410 = vld [vmem:[%s5 + $0x84] sm:$0xf]
  %v7411 = vld [vmem:[%s5 + $0x88] sm:$0xf]
  %v7412 = vld [vmem:[%s5 + $0x8c] sm:$0xf]
  %v7413 = vld [vmem:[%s5 + $0x90] sm:$0xf]
  %v7414 = vld [vmem:[%s5 + $0x94] sm:$0xf]
  %v7415 = vld [vmem:[%s5 + $0x98] sm:$0xf]
  %v7416 = vld [vmem:[%s5 + $0x9c] sm:$0xf]
  %v7417 = vld [vmem:[%s5 + $0xa0] sm:$0xf]
  %v7418 = vld [vmem:[%s5 + $0xa4] sm:$0xf]
  %v7419 = vld [vmem:[%s5 + $0xa8] sm:$0xf]
  %v7420 = vld [vmem:[%s5 + $0xac] sm:$0xf]
  %v7421 = vld [vmem:[%s5 + $0xb0] sm:$0xf]
  %v7422 = vld [vmem:[%s5 + $0xb4] sm:$0xf]
  %v7423 = vld [vmem:[%s5 + $0xb8] sm:$0xf]
  %v7424 = vld [vmem:[%s5 + $0xbc] sm:$0xf]
  %v7425 = vld [vmem:[%s5 + $0xc0] sm:$0xf]
  %v7426 = vld [vmem:[%s5 + $0xc4] sm:$0xf]
  %v7427 = vld [vmem:[%s5 + $0xc8] sm:$0xf]
  %v7428 = vld [vmem:[%s5 + $0xcc] sm:$0xf]
  %v7429 = vld [vmem:[%s5 + $0xd0] sm:$0xf]
  %v7430 = vld [vmem:[%s5 + $0xd4] sm:$0xf]
  %v7431 = vld [vmem:[%s5 + $0xd8] sm:$0xf]
  %v7432 = vld [vmem:[%s5 + $0xdc] sm:$0xf]
  %v7433 = vld [vmem:[%s5 + $0xe0] sm:$0xf]
  %v7434 = vld [vmem:[%s5 + $0xe4] sm:$0xf]
  %v7435 = vld [vmem:[%s5 + $0xe8] sm:$0xf]
  %v7436 = vld [vmem:[%s5 + $0xec] sm:$0xf]
  %v7437 = vld [vmem:[%s5 + $0xf0] sm:$0xf]
  %v7438 = vld [vmem:[%s5 + $0xf4] sm:$0xf]
  %v7439 = vld [vmem:[%s5 + $0xf8] sm:$0xf]
  %v7440 = vld [vmem:[%s5 + $0xfc] sm:$0xf]
  %v7441 = vld [vmem:[%s5 + $0x100] sm:$0xf]
  %v7442 = vld [vmem:[%s5 + $0x104] sm:$0xf]
  %v7443 = vld [vmem:[%s5 + $0x108] sm:$0xf]
  %v7444 = vld [vmem:[%s5 + $0x10c] sm:$0xf]
  %v7445 = vld [vmem:[%s5 + $0x110] sm:$0xf]
  %v7446 = vld [vmem:[%s5 + $0x114] sm:$0xf]
  %v7447 = vld [vmem:[%s5 + $0x118] sm:$0xf]
  %v7448 = vld [vmem:[%s5 + $0x11c] sm:$0xf]
  %v7449 = vld [vmem:[%s5 + $0x120] sm:$0xf]
  %v7450 = vld [vmem:[%s5 + $0x124] sm:$0xf]
  %v7451 = vld [vmem:[%s5 + $0x128] sm:$0xf]
  %v7452 = vld [vmem:[%s5 + $0x12c] sm:$0xf]
  %v7453 = vld [vmem:[%s5 + $0x130] sm:$0xf]
  %v7454 = vld [vmem:[%s5 + $0x134] sm:$0xf]
  %v7455 = vld [vmem:[%s5 + $0x138] sm:$0xf]
  %v7456 = vld [vmem:[%s5 + $0x13c] sm:$0xf]
  %v7457 = vld [vmem:[%s5 + $0x140] sm:$0xf]
  %v7458 = vld [vmem:[%s5 + $0x144] sm:$0xf]
  %v7459 = vld [vmem:[%s5 + $0x148] sm:$0xf]
  %v7460 = vld [vmem:[%s5 + $0x14c] sm:$0xf]
  %v7461 = vld [vmem:[%s5 + $0x150] sm:$0xf]
  %v7462 = vld [vmem:[%s5 + $0x154] sm:$0xf]
  %v7463 = vld [vmem:[%s5 + $0x158] sm:$0xf]
  %v7464 = vld [vmem:[%s5 + $0x15c] sm:$0xf]
  %v7465 = vld [vmem:[%s5 + $0x160] sm:$0xf]
  %v7466 = vld [vmem:[%s5 + $0x164] sm:$0xf]
  %v7467 = vld [vmem:[%s5 + $0x168] sm:$0xf]
  %v7468 = vld [vmem:[%s5 + $0x16c] sm:$0xf]
  %v7469 = vld [vmem:[%s5 + $0x170] sm:$0xf]
  %v7470 = vld [vmem:[%s5 + $0x174] sm:$0xf]
  %v7471 = vld [vmem:[%s5 + $0x178] sm:$0xf]
  %v7472 = vld [vmem:[%s5 + $0x17c] sm:$0xf]
  %v7473 = vld [vmem:[%s5 + $0x180] sm:$0xf]
  %v7474 = vld [vmem:[%s5 + $0x184] sm:$0xf]
  %v7475 = vld [vmem:[%s5 + $0x188] sm:$0xf]
  %v7476 = vld [vmem:[%s5 + $0x18c] sm:$0xf]
  %v7477 = vld [vmem:[%s5 + $0x190] sm:$0xf]
  %v7478 = vld [vmem:[%s5 + $0x194] sm:$0xf]
  %v7479 = vld [vmem:[%s5 + $0x198] sm:$0xf]
  %v7480 = vld [vmem:[%s5 + $0x19c] sm:$0xf]
  %v7481 = vld [vmem:[%s5 + $0x1a0] sm:$0xf]
  %v7482 = vld [vmem:[%s5 + $0x1a4] sm:$0xf]
  %v7483 = vld [vmem:[%s5 + $0x1a8] sm:$0xf]
  %v7484 = vld [vmem:[%s5 + $0x1ac] sm:$0xf]
  %v7485 = vld [vmem:[%s5 + $0x1b0] sm:$0xf]
  %v7486 = vld [vmem:[%s5 + $0x1b4] sm:$0xf]
  %v7487 = vld [vmem:[%s5 + $0x1b8] sm:$0xf]
  %v7488 = vld [vmem:[%s5 + $0x1bc] sm:$0xf]
  %v7489 = vld [vmem:[%s5 + $0x1c0] sm:$0xf]
  %v7490 = vld [vmem:[%s5 + $0x1c4] sm:$0xf]
  %v7491 = vld [vmem:[%s5 + $0x1c8] sm:$0xf]
  %v7492 = vld [vmem:[%s5 + $0x1cc] sm:$0xf]
  %v7493 = vld [vmem:[%s5 + $0x1d0] sm:$0xf]
  %v7494 = vld [vmem:[%s5 + $0x1d4] sm:$0xf]
  %v7495 = vld [vmem:[%s5 + $0x1d8] sm:$0xf]
  %v7496 = vld [vmem:[%s5 + $0x1dc] sm:$0xf]
  %v7497 = vld [vmem:[%s5 + $0x1e0] sm:$0xf]
  %v7498 = vld [vmem:[%s5 + $0x1e4] sm:$0xf]
  %v7499 = vld [vmem:[%s5 + $0x1e8] sm:$0xf]
  %v7500 = vld [vmem:[%s5 + $0x1ec] sm:$0xf]
  %v7501 = vld [vmem:[%s5 + $0x1f0] sm:$0xf]
  %v7502 = vld [vmem:[%s5 + $0x1f4] sm:$0xf]
  %v7503 = vld [vmem:[%s5 + $0x1f8] sm:$0xf]
  %v7504 = vld [vmem:[%s5 + $0x1fc] sm:$0xf]
  %v7505 = vld [vmem:[%s6] sm:$0x1]
  %v7507 = vperm.slane %v7505, 0
  %v7637 = vunpack.c.l.b16 %v7377
  %v7638 = vunpack.c.l.b16 %v7378
  %v7639 = vunpack.c.l.b16 %v7379
  %v7640 = vunpack.c.l.b16 %v7380
  %v7641 = vunpack.c.l.b16 %v7381
  %v7642 = vunpack.c.l.b16 %v7382
  %v7643 = vunpack.c.l.b16 %v7383
  %v7644 = vunpack.c.l.b16 %v7384
  %v7645 = vunpack.c.l.b16 %v7385
  %v7646 = vunpack.c.l.b16 %v7386
  %v7647 = vunpack.c.l.b16 %v7387
  %v7648 = vunpack.c.l.b16 %v7388
  %v7649 = vunpack.c.l.b16 %v7389
  %v7650 = vunpack.c.l.b16 %v7390
  %v7651 = vunpack.c.l.b16 %v7391
  %v7652 = vunpack.c.l.b16 %v7392
  %v7653 = vunpack.c.l.b16 %v7393
  %v7654 = vunpack.c.l.b16 %v7394
  %v7655 = vunpack.c.l.b16 %v7395
  %v7656 = vunpack.c.l.b16 %v7396
  %v7657 = vunpack.c.l.b16 %v7397
  %v7658 = vunpack.c.l.b16 %v7398
  %v7659 = vunpack.c.l.b16 %v7399
  %v7660 = vunpack.c.l.b16 %v7400
  %v7661 = vunpack.c.l.b16 %v7401
  %v7662 = vunpack.c.l.b16 %v7402
  %v7663 = vunpack.c.l.b16 %v7403
  %v7664 = vunpack.c.l.b16 %v7404
  %v7665 = vunpack.c.l.b16 %v7405
  %v7666 = vunpack.c.l.b16 %v7406
  %v7667 = vunpack.c.l.b16 %v7407
  %v7668 = vunpack.c.l.b16 %v7408
  %v7669 = vunpack.c.l.b16 %v7409
  %v7670 = vunpack.c.l.b16 %v7410
  %v7671 = vunpack.c.l.b16 %v7411
  %v7672 = vunpack.c.l.b16 %v7412
  %v7673 = vunpack.c.l.b16 %v7413
  %v7674 = vunpack.c.l.b16 %v7414
  %v7675 = vunpack.c.l.b16 %v7415
  %v7676 = vunpack.c.l.b16 %v7416
  %v7677 = vunpack.c.l.b16 %v7417
  %v7678 = vunpack.c.l.b16 %v7418
  %v7679 = vunpack.c.l.b16 %v7419
  %v7680 = vunpack.c.l.b16 %v7420
  %v7681 = vunpack.c.l.b16 %v7421
  %v7682 = vunpack.c.l.b16 %v7422
  %v7683 = vunpack.c.l.b16 %v7423
  %v7684 = vunpack.c.l.b16 %v7424
  %v7685 = vunpack.c.l.b16 %v7425
  %v7686 = vunpack.c.l.b16 %v7426
  %v7687 = vunpack.c.l.b16 %v7427
  %v7688 = vunpack.c.l.b16 %v7428
  %v7689 = vunpack.c.l.b16 %v7429
  %v7690 = vunpack.c.l.b16 %v7430
  %v7691 = vunpack.c.l.b16 %v7431
  %v7692 = vunpack.c.l.b16 %v7432
  %v7693 = vunpack.c.l.b16 %v7433
  %v7694 = vunpack.c.l.b16 %v7434
  %v7695 = vunpack.c.l.b16 %v7435
  %v7696 = vunpack.c.l.b16 %v7436
  %v7697 = vunpack.c.l.b16 %v7437
  %v7698 = vunpack.c.l.b16 %v7438
  %v7699 = vunpack.c.l.b16 %v7439
  %v7700 = vunpack.c.l.b16 %v7440
  %v7701 = vunpack.c.l.b16 %v7441
  %v7702 = vunpack.c.l.b16 %v7442
  %v7703 = vunpack.c.l.b16 %v7443
  %v7704 = vunpack.c.l.b16 %v7444
  %v7705 = vunpack.c.l.b16 %v7445
  %v7706 = vunpack.c.l.b16 %v7446
  %v7707 = vunpack.c.l.b16 %v7447
  %v7708 = vunpack.c.l.b16 %v7448
  %v7709 = vunpack.c.l.b16 %v7449
  %v7710 = vunpack.c.l.b16 %v7450
  %v7711 = vunpack.c.l.b16 %v7451
  %v7712 = vunpack.c.l.b16 %v7452
  %v7713 = vunpack.c.l.b16 %v7453
  %v7714 = vunpack.c.l.b16 %v7454
  %v7715 = vunpack.c.l.b16 %v7455
  %v7716 = vunpack.c.l.b16 %v7456
  %v7717 = vunpack.c.l.b16 %v7457
  %v7718 = vunpack.c.l.b16 %v7458
  %v7719 = vunpack.c.l.b16 %v7459
  %v7720 = vunpack.c.l.b16 %v7460
  %v7721 = vunpack.c.l.b16 %v7461
  %v7722 = vunpack.c.l.b16 %v7462
  %v7723 = vunpack.c.l.b16 %v7463
  %v7724 = vunpack.c.l.b16 %v7464
  %v7725 = vunpack.c.l.b16 %v7465
  %v7726 = vunpack.c.l.b16 %v7466
  %v7727 = vunpack.c.l.b16 %v7467
  %v7728 = vunpack.c.l.b16 %v7468
  %v7729 = vunpack.c.l.b16 %v7469
  %v7730 = vunpack.c.l.b16 %v7470
  %v7731 = vunpack.c.l.b16 %v7471
  %v7732 = vunpack.c.l.b16 %v7472
  %v7733 = vunpack.c.l.b16 %v7473
  %v7734 = vunpack.c.l.b16 %v7474
  %v7735 = vunpack.c.l.b16 %v7475
  %v7736 = vunpack.c.l.b16 %v7476
  %v7737 = vunpack.c.l.b16 %v7477
  %v7738 = vunpack.c.l.b16 %v7478
  %v7739 = vunpack.c.l.b16 %v7479
  %v7740 = vunpack.c.l.b16 %v7480
  %v7741 = vunpack.c.l.b16 %v7481
  %v7742 = vunpack.c.l.b16 %v7482
  %v7743 = vunpack.c.l.b16 %v7483
  %v7744 = vunpack.c.l.b16 %v7484
  %v7745 = vunpack.c.l.b16 %v7485
  %v7746 = vunpack.c.l.b16 %v7486
  %v7747 = vunpack.c.l.b16 %v7487
  %v7748 = vunpack.c.l.b16 %v7488
  %v7749 = vunpack.c.l.b16 %v7489
  %v7750 = vunpack.c.l.b16 %v7490
  %v7751 = vunpack.c.l.b16 %v7491
  %v7752 = vunpack.c.l.b16 %v7492
  %v7753 = vunpack.c.l.b16 %v7493
  %v7754 = vunpack.c.l.b16 %v7494
  %v7755 = vunpack.c.l.b16 %v7495
  %v7756 = vunpack.c.l.b16 %v7496
  %v7757 = vunpack.c.l.b16 %v7497
  %v7758 = vunpack.c.l.b16 %v7498
  %v7759 = vunpack.c.l.b16 %v7499
  %v7760 = vunpack.c.l.b16 %v7500
  %v7761 = vunpack.c.l.b16 %v7501
  %v7762 = vunpack.c.l.b16 %v7502
  %v7763 = vunpack.c.l.b16 %v7503
  %v7764 = vunpack.c.l.b16 %v7504
  %v7765 = vpack.c.b16 %v7638, %v7637
  %v7766 = vpack.c.b16 %v7640, %v7639
  %v7767 = vpack.c.b16 %v7642, %v7641
  %v7768 = vpack.c.b16 %v7644, %v7643
  %v7769 = vpack.c.b16 %v7646, %v7645
  %v7770 = vpack.c.b16 %v7648, %v7647
  %v7771 = vpack.c.b16 %v7650, %v7649
  %v7772 = vpack.c.b16 %v7652, %v7651
  %v7773 = vpack.c.b16 %v7654, %v7653
  %v7774 = vpack.c.b16 %v7656, %v7655
  %v7775 = vpack.c.b16 %v7658, %v7657
  %v7776 = vpack.c.b16 %v7660, %v7659
  %v7777 = vpack.c.b16 %v7662, %v7661
  %v7778 = vpack.c.b16 %v7664, %v7663
  %v7779 = vpack.c.b16 %v7666, %v7665
  %v7780 = vpack.c.b16 %v7668, %v7667
  %v7781 = vpack.c.b16 %v7670, %v7669
  %v7782 = vpack.c.b16 %v7672, %v7671
  %v7783 = vpack.c.b16 %v7674, %v7673
  %v7784 = vpack.c.b16 %v7676, %v7675
  %v7785 = vpack.c.b16 %v7678, %v7677
  %v7786 = vpack.c.b16 %v7680, %v7679
  %v7787 = vpack.c.b16 %v7682, %v7681
  %v7788 = vpack.c.b16 %v7684, %v7683
  %v7789 = vpack.c.b16 %v7686, %v7685
  %v7790 = vpack.c.b16 %v7688, %v7687
  %v7791 = vpack.c.b16 %v7690, %v7689
  %v7792 = vpack.c.b16 %v7692, %v7691
  %v7793 = vpack.c.b16 %v7694, %v7693
  %v7794 = vpack.c.b16 %v7696, %v7695
  %v7795 = vpack.c.b16 %v7698, %v7697
  %v7796 = vpack.c.b16 %v7700, %v7699
  %v7797 = vpack.c.b16 %v7702, %v7701
  %v7798 = vpack.c.b16 %v7704, %v7703
  %v7799 = vpack.c.b16 %v7706, %v7705
  %v7800 = vpack.c.b16 %v7708, %v7707
  %v7801 = vpack.c.b16 %v7710, %v7709
  %v7802 = vpack.c.b16 %v7712, %v7711
  %v7803 = vpack.c.b16 %v7714, %v7713
  %v7804 = vpack.c.b16 %v7716, %v7715
  %v7805 = vpack.c.b16 %v7718, %v7717
  %v7806 = vpack.c.b16 %v7720, %v7719
  %v7807 = vpack.c.b16 %v7722, %v7721
  %v7808 = vpack.c.b16 %v7724, %v7723
  %v7809 = vpack.c.b16 %v7726, %v7725
  %v7810 = vpack.c.b16 %v7728, %v7727
  %v7811 = vpack.c.b16 %v7730, %v7729
  %v7812 = vpack.c.b16 %v7732, %v7731
  %v7813 = vpack.c.b16 %v7734, %v7733
  %v7814 = vpack.c.b16 %v7736, %v7735
  %v7815 = vpack.c.b16 %v7738, %v7737
  %v7816 = vpack.c.b16 %v7740, %v7739
  %v7817 = vpack.c.b16 %v7742, %v7741
  %v7818 = vpack.c.b16 %v7744, %v7743
  %v7819 = vpack.c.b16 %v7746, %v7745
  %v7820 = vpack.c.b16 %v7748, %v7747
  %v7821 = vpack.c.b16 %v7750, %v7749
  %v7822 = vpack.c.b16 %v7752, %v7751
  %v7823 = vpack.c.b16 %v7754, %v7753
  %v7824 = vpack.c.b16 %v7756, %v7755
  %v7825 = vpack.c.b16 %v7758, %v7757
  %v7826 = vpack.c.b16 %v7760, %v7759
  %v7827 = vpack.c.b16 %v7762, %v7761
  %v7828 = vpack.c.b16 %v7764, %v7763
  %7893 = vmatpush.bf16.msra.mxu0 %v7772
  %7894 = vmatpush.bf16.msra.mxu0 %v7771
  %7895 = vmatpush.bf16.msra.mxu0 %v7770
  %7896 = vmatpush.bf16.msra.mxu0 %v7769
  %7897 = vmatpush.bf16.msra.mxu0 %v7768
  %7898 = vmatpush.bf16.msra.mxu0 %v7767
  %7899 = vmatpush.bf16.msra.mxu0 %v7766
  %7900 = vmatpush.bf16.msra.mxu0 %v7765
  %7901 = vmatmul.bf16.gmra.mxu0 %v7369
  %v7902 = vpop.f32.mrf.mxu0
  %v7903 = vadd.f32 %v7507, %v7902
  %v7904 = vpop.f32.mrf.mxu0
  %v7905 = vadd.f32 %v7507, %v7904
  %7906 = vdwg.mxu0
  %7907 = vmatpush.bf16.msra.mxu0 %v7780
  %7908 = vmatpush.bf16.msra.mxu0 %v7779
  %7909 = vmatpush.bf16.msra.mxu0 %v7778
  %7910 = vmatpush.bf16.msra.mxu0 %v7777
  %7911 = vmatpush.bf16.msra.mxu0 %v7776
  %7912 = vmatpush.bf16.msra.mxu0 %v7775
  %7913 = vmatpush.bf16.msra.mxu0 %v7774
  %7914 = vmatpush.bf16.msra.mxu0 %v7773
  %7915 = vmatmul.bf16.gmra.mxu0 %v7370
  %v7916 = vpop.f32.mrf.mxu0
  %v7917 = vadd.f32 %v7903, %v7916
  %v7918 = vpop.f32.mrf.mxu0
  %v7919 = vadd.f32 %v7905, %v7918
  %7920 = vdwg.mxu0
  %7921 = vmatpush.bf16.msra.mxu0 %v7788
  %7922 = vmatpush.bf16.msra.mxu0 %v7787
  %7923 = vmatpush.bf16.msra.mxu0 %v7786
  %7924 = vmatpush.bf16.msra.mxu0 %v7785
  %7925 = vmatpush.bf16.msra.mxu0 %v7784
  %7926 = vmatpush.bf16.msra.mxu0 %v7783
  %7927 = vmatpush.bf16.msra.mxu0 %v7782
  %7928 = vmatpush.bf16.msra.mxu0 %v7781
  %7929 = vmatmul.bf16.gmra.mxu0 %v7371
  %v7930 = vpop.f32.mrf.mxu0
  %v7931 = vadd.f32 %v7917, %v7930
  %v7932 = vpop.f32.mrf.mxu0
  %v7933 = vadd.f32 %v7919, %v7932
  %7934 = vdwg.mxu0
  %7935 = vmatpush.bf16.msra.mxu0 %v7796
  %7936 = vmatpush.bf16.msra.mxu0 %v7795
  %7937 = vmatpush.bf16.msra.mxu0 %v7794
  %7938 = vmatpush.bf16.msra.mxu0 %v7793
  %7939 = vmatpush.bf16.msra.mxu0 %v7792
  %7940 = vmatpush.bf16.msra.mxu0 %v7791
  %7941 = vmatpush.bf16.msra.mxu0 %v7790
  %7942 = vmatpush.bf16.msra.mxu0 %v7789
  %7943 = vmatmul.bf16.gmra.mxu0 %v7372
  %v7944 = vpop.f32.mrf.mxu0
  %v7945 = vadd.f32 %v7931, %v7944
  %v7946 = vpop.f32.mrf.mxu0
  %v7947 = vadd.f32 %v7933, %v7946
  %7948 = vdwg.mxu0
  %7949 = vmatpush.bf16.msra.mxu0 %v7804
  %7950 = vmatpush.bf16.msra.mxu0 %v7803
  %7951 = vmatpush.bf16.msra.mxu0 %v7802
  %7952 = vmatpush.bf16.msra.mxu0 %v7801
  %7953 = vmatpush.bf16.msra.mxu0 %v7800
  %7954 = vmatpush.bf16.msra.mxu0 %v7799
  %7955 = vmatpush.bf16.msra.mxu0 %v7798
  %7956 = vmatpush.bf16.msra.mxu0 %v7797
  %7957 = vmatmul.bf16.gmra.mxu0 %v7373
  %v7958 = vpop.f32.mrf.mxu0
  %v7959 = vadd.f32 %v7945, %v7958
  %v7960 = vpop.f32.mrf.mxu0
  %v7961 = vadd.f32 %v7947, %v7960
  %7962 = vdwg.mxu0
  %7963 = vmatpush.bf16.msra.mxu0 %v7812
  %7964 = vmatpush.bf16.msra.mxu0 %v7811
  %7965 = vmatpush.bf16.msra.mxu0 %v7810
  %7966 = vmatpush.bf16.msra.mxu0 %v7809
  %7967 = vmatpush.bf16.msra.mxu0 %v7808
  %7968 = vmatpush.bf16.msra.mxu0 %v7807
  %7969 = vmatpush.bf16.msra.mxu0 %v7806
  %7970 = vmatpush.bf16.msra.mxu0 %v7805
  %7971 = vmatmul.bf16.gmra.mxu0 %v7374
  %v7972 = vpop.f32.mrf.mxu0
  %v7973 = vadd.f32 %v7959, %v7972
  %v7974 = vpop.f32.mrf.mxu0
  %v7975 = vadd.f32 %v7961, %v7974
  %7976 = vdwg.mxu0
  %7977 = vmatpush.bf16.msra.mxu0 %v7820
  %7978 = vmatpush.bf16.msra.mxu0 %v7819
  %7979 = vmatpush.bf16.msra.mxu0 %v7818
  %7980 = vmatpush.bf16.msra.mxu0 %v7817
  %7981 = vmatpush.bf16.msra.mxu0 %v7816
  %7982 = vmatpush.bf16.msra.mxu0 %v7815
  %7983 = vmatpush.bf16.msra.mxu0 %v7814
  %7984 = vmatpush.bf16.msra.mxu0 %v7813
  %7985 = vmatmul.bf16.gmra.mxu0 %v7375
  %v7986 = vpop.f32.mrf.mxu0
  %v7987 = vadd.f32 %v7973, %v7986
  %v7988 = vpop.f32.mrf.mxu0
  %v7989 = vadd.f32 %v7975, %v7988
  %7990 = vdwg.mxu0
  %7991 = vmatpush.bf16.msra.mxu0 %v7828
  %7992 = vmatpush.bf16.msra.mxu0 %v7827
  %7993 = vmatpush.bf16.msra.mxu0 %v7826
  %7994 = vmatpush.bf16.msra.mxu0 %v7825
  %7995 = vmatpush.bf16.msra.mxu0 %v7824
  %7996 = vmatpush.bf16.msra.mxu0 %v7823
  %7997 = vmatpush.bf16.msra.mxu0 %v7822
  %7998 = vmatpush.bf16.msra.mxu0 %v7821
  %7999 = vmatmul.bf16.gmra.mxu0 %v7376
  %v8000 = vpop.f32.mrf.mxu0
  %v8001 = vadd.f32 %v7987, %v8000
  %v8002 = vpop.f32.mrf.mxu0
  %v8003 = vadd.f32 %v7989, %v8002
  %8004 = vdwg.mxu0
  %v8005 = vmax.f32 %v8001, 0.0
  %v8006 = vmax.f32 %v8003, 0.0
  %v8007 = vpack.c.bf16 %v8006, %v8005
  %v8008 = vld [vmem:[%s7] sm:$0xf]
  %v8009 = vld [vmem:[%s7 + $0x4] sm:$0xf]
  %v8010 = vld [vmem:[%s7 + $0x8] sm:$0xf]
  %v8011 = vld [vmem:[%s7 + $0xc] sm:$0xf]
  %v8012 = vld [vmem:[%s7 + $0x10] sm:$0xf]
  %v8013 = vld [vmem:[%s7 + $0x14] sm:$0xf]
  %v8014 = vld [vmem:[%s7 + $0x18] sm:$0xf]
  %v8015 = vld [vmem:[%s7 + $0x1c] sm:$0xf]
  %v8016 = vld [vmem:[%s7 + $0x20] sm:$0xf]
  %v8017 = vld [vmem:[%s7 + $0x24] sm:$0xf]
  %v8018 = vld [vmem:[%s7 + $0x28] sm:$0xf]
  %v8019 = vld [vmem:[%s7 + $0x2c] sm:$0xf]
  %v8020 = vld [vmem:[%s7 + $0x30] sm:$0xf]
  %v8021 = vld [vmem:[%s7 + $0x34] sm:$0xf]
  %v8022 = vld [vmem:[%s7 + $0x38] sm:$0xf]
  %v8023 = vld [vmem:[%s7 + $0x3c] sm:$0xf]
  %v8024 = vld [vmem:[%s8] sm:$0x1]
  %v8026 = vperm.slane %v8024, 0
  %v8044 = vunpack.c.l.b16 %v8008
  %v8045 = vunpack.c.l.b16 %v8009
  %v8046 = vunpack.c.l.b16 %v8010
  %v8047 = vunpack.c.l.b16 %v8011
  %v8048 = vunpack.c.l.b16 %v8012
  %v8049 = vunpack.c.l.b16 %v8013
  %v8050 = vunpack.c.l.b16 %v8014
  %v8051 = vunpack.c.l.b16 %v8015
  %v8052 = vunpack.c.l.b16 %v8016
  %v8053 = vunpack.c.l.b16 %v8017
  %v8054 = vunpack.c.l.b16 %v8018
  %v8055 = vunpack.c.l.b16 %v8019
  %v8056 = vunpack.c.l.b16 %v8020
  %v8057 = vunpack.c.l.b16 %v8021
  %v8058 = vunpack.c.l.b16 %v8022
  %v8059 = vunpack.c.l.b16 %v8023
  %v8060 = vpack.c.b16 %v8045, %v8044
  %v8061 = vpack.c.b16 %v8047, %v8046
  %v8062 = vpack.c.b16 %v8049, %v8048
  %v8063 = vpack.c.b16 %v8051, %v8050
  %v8064 = vpack.c.b16 %v8053, %v8052
  %v8065 = vpack.c.b16 %v8055, %v8054
  %v8066 = vpack.c.b16 %v8057, %v8056
  %v8067 = vpack.c.b16 %v8059, %v8058
  %8076 = vmatpush.bf16.msra.mxu0 %v8067
  %8077 = vmatpush.bf16.msra.mxu0 %v8066
  %8078 = vmatpush.bf16.msra.mxu0 %v8065
  %8079 = vmatpush.bf16.msra.mxu0 %v8064
  %8080 = vmatpush.bf16.msra.mxu0 %v8063
  %8081 = vmatpush.bf16.msra.mxu0 %v8062
  %8082 = vmatpush.bf16.msra.mxu0 %v8061
  %8083 = vmatpush.bf16.msra.mxu0 %v8060
  %8084 = vmatmul.bf16.gmra.mxu0 %v8007
  %v8085 = vpop.f32.mrf.mxu0
  %v8086 = vadd.f32 %v8026, %v8085
  %v8087 = vpop.f32.mrf.mxu0
  %v8088 = vadd.f32 %v8026, %v8087
  %8089 = vdwg.mxu0
  %v8090 = vmax.f32 %v8086, 0.0
  %v8091 = vmax.f32 %v8088, 0.0
  %v8092 = vpack.c.bf16 %v8091, %v8090
  %v8093 = vld [vmem:[%s9] sm:$0xf]
  %v8094 = vld [vmem:[%s9 + $0x4] sm:$0xf]
  %v8095 = vld [vmem:[%s9 + $0x8] sm:$0xf]
  %v8096 = vld [vmem:[%s9 + $0xc] sm:$0xf]
  %v8097 = vld [vmem:[%s9 + $0x10] sm:$0xf]
  %v8098 = vld [vmem:[%s9 + $0x14] sm:$0xf]
  %v8099 = vld [vmem:[%s9 + $0x18] sm:$0xf]
  %v8100 = vld [vmem:[%s9 + $0x1c] sm:$0xf]
  %v8101 = vld [vmem:[%s9 + $0x20] sm:$0xf]
  %v8102 = vld [vmem:[%s9 + $0x24] sm:$0xf]
  %v8103 = vld [vmem:[%s9 + $0x28] sm:$0xf]
  %v8104 = vld [vmem:[%s9 + $0x2c] sm:$0xf]
  %v8105 = vld [vmem:[%s9 + $0x30] sm:$0xf]
  %v8106 = vld [vmem:[%s9 + $0x34] sm:$0xf]
  %v8107 = vld [vmem:[%s9 + $0x38] sm:$0xf]
  %v8108 = vld [vmem:[%s9 + $0x3c] sm:$0xf]
  %v8109 = vld [vmem:[%s10] sm:$0x1]
  %v8111 = vperm.slane %v8109, 0
  %v8129 = vunpack.c.l.b16 %v8093
  %v8130 = vunpack.c.l.b16 %v8094
  %v8131 = vunpack.c.l.b16 %v8095
  %v8132 = vunpack.c.l.b16 %v8096
  %v8133 = vunpack.c.l.b16 %v8097
  %v8134 = vunpack.c.l.b16 %v8098
  %v8135 = vunpack.c.l.b16 %v8099
  %v8136 = vunpack.c.l.b16 %v8100
  %v8137 = vunpack.c.l.b16 %v8101
  %v8138 = vunpack.c.l.b16 %v8102
  %v8139 = vunpack.c.l.b16 %v8103
  %v8140 = vunpack.c.l.b16 %v8104
  %v8141 = vunpack.c.l.b16 %v8105
  %v8142 = vunpack.c.l.b16 %v8106
  %v8143 = vunpack.c.l.b16 %v8107
  %v8144 = vunpack.c.l.b16 %v8108
  %v8145 = vpack.c.b16 %v8130, %v8129
  %v8146 = vpack.c.b16 %v8132, %v8131
  %v8147 = vpack.c.b16 %v8134, %v8133
  %v8148 = vpack.c.b16 %v8136, %v8135
  %v8149 = vpack.c.b16 %v8138, %v8137
  %v8150 = vpack.c.b16 %v8140, %v8139
  %v8151 = vpack.c.b16 %v8142, %v8141
  %v8152 = vpack.c.b16 %v8144, %v8143
  %8161 = vmatpush.bf16.msra.mxu0 %v8152
  %8162 = vmatpush.bf16.msra.mxu0 %v8151
  %8163 = vmatpush.bf16.msra.mxu0 %v8150
  %8164 = vmatpush.bf16.msra.mxu0 %v8149
  %8165 = vmatpush.bf16.msra.mxu0 %v8148
  %8166 = vmatpush.bf16.msra.mxu0 %v8147
  %8167 = vmatpush.bf16.msra.mxu0 %v8146
  %8168 = vmatpush.bf16.msra.mxu0 %v8145
  %8169 = vmatmul.bf16.gmra.mxu0 %v8092
  %v8170 = vpop.f32.mrf.mxu0
  %v8171 = vadd.f32 %v8111, %v8170
  %v8172 = vpop.f32.mrf.mxu0
  %v8173 = vadd.f32 %v8111, %v8172
  %8174 = vdwg.mxu0
  %v8175 = vmax.f32 %v8171, 0.0
  %v8176 = vmax.f32 %v8173, 0.0
  %v8177 = vpack.c.bf16 %v8176, %v8175
  %v8178 = vld [vmem:[%s11] sm:$0xf]
  %v8179 = vld [vmem:[%s11 + $0x4] sm:$0xf]
  %v8180 = vld [vmem:[%s11 + $0x8] sm:$0xf]
  %v8181 = vld [vmem:[%s11 + $0xc] sm:$0xf]
  %v8182 = vld [vmem:[%s11 + $0x10] sm:$0xf]
  %v8183 = vld [vmem:[%s11 + $0x14] sm:$0xf]
  %v8184 = vld [vmem:[%s11 + $0x18] sm:$0xf]
  %v8185 = vld [vmem:[%s11 + $0x1c] sm:$0xf]
  %v8186 = vld [vmem:[%s11 + $0x20] sm:$0xf]
  %v8187 = vld [vmem:[%s11 + $0x24] sm:$0xf]
  %v8188 = vld [vmem:[%s11 + $0x28] sm:$0xf]
  %v8189 = vld [vmem:[%s11 + $0x2c] sm:$0xf]
  %v8190 = vld [vmem:[%s11 + $0x30] sm:$0xf]
  %v8191 = vld [vmem:[%s11 + $0x34] sm:$0xf]
  %v8192 = vld [vmem:[%s11 + $0x38] sm:$0xf]
  %v8193 = vld [vmem:[%s11 + $0x3c] sm:$0xf]
  %v8194 = vld [vmem:[%s12] sm:$0x1]
  %v8196 = vperm.slane %v8194, 0
  %v8214 = vunpack.c.l.b16 %v8178
  %v8215 = vunpack.c.l.b16 %v8179
  %v8216 = vunpack.c.l.b16 %v8180
  %v8217 = vunpack.c.l.b16 %v8181
  %v8218 = vunpack.c.l.b16 %v8182
  %v8219 = vunpack.c.l.b16 %v8183
  %v8220 = vunpack.c.l.b16 %v8184
  %v8221 = vunpack.c.l.b16 %v8185
  %v8222 = vunpack.c.l.b16 %v8186
  %v8223 = vunpack.c.l.b16 %v8187
  %v8224 = vunpack.c.l.b16 %v8188
  %v8225 = vunpack.c.l.b16 %v8189
  %v8226 = vunpack.c.l.b16 %v8190
  %v8227 = vunpack.c.l.b16 %v8191
  %v8228 = vunpack.c.l.b16 %v8192
  %v8229 = vunpack.c.l.b16 %v8193
  %v8230 = vpack.c.b16 %v8215, %v8214
  %v8231 = vpack.c.b16 %v8217, %v8216
  %v8232 = vpack.c.b16 %v8219, %v8218
  %v8233 = vpack.c.b16 %v8221, %v8220
  %v8234 = vpack.c.b16 %v8223, %v8222
  %v8235 = vpack.c.b16 %v8225, %v8224
  %v8236 = vpack.c.b16 %v8227, %v8226
  %v8237 = vpack.c.b16 %v8229, %v8228
  %8246 = vmatpush.bf16.msra.mxu0 %v8237
  %8247 = vmatpush.bf16.msra.mxu0 %v8236
  %8248 = vmatpush.bf16.msra.mxu0 %v8235
  %8249 = vmatpush.bf16.msra.mxu0 %v8234
  %8250 = vmatpush.bf16.msra.mxu0 %v8233
  %8251 = vmatpush.bf16.msra.mxu0 %v8232
  %8252 = vmatpush.bf16.msra.mxu0 %v8231
  %8253 = vmatpush.bf16.msra.mxu0 %v8230
  %8254 = vmatmul.bf16.gmra.mxu0 %v8177
  %v8255 = vpop.f32.mrf.mxu0
  %v8256 = vadd.f32 %v8196, %v8255
  %v8257 = vpop.f32.mrf.mxu0
  %v8258 = vadd.f32 %v8196, %v8257
  %8259 = vdwg.mxu0
  %8260 = vst [vmem:[%s13] sm:$0xff] %v8256
  %8261 = vst [vmem:[%s13 + $0x8] sm:$0xff] %v8258
  // Predicated region
  $region69: #{fc3_forward.1} parent=0 // pred_check
    _
  $region70: #{fc3_forward.1} parent=0 // pred_check_branch
    %8263 = sbr.rel (0) target = $region72
  $region71: #{fc3_forward.1} parent=0 // pred_region
    _
  $region72: #{fc3_forward.1} parent=0 // pred_fallthru
    _
  // Predicated region
  $region73: #{fc3_forward.1} parent=0 // pred_check
    _
  $region74: #{fc3_forward.1} parent=0 // pred_check_branch
    %8265 = sbr.rel (0) target = $region76
  $region75: #{fc3_forward.1} parent=0 // pred_region
    _
  $region76: #{fc3_forward.1} parent=0 // pred_fallthru
    _
  %8266 = vsyncmov [#allocation3]
  %s8267 = vpop.sfrf %8266
  %p8268 = scmp.eq.s32.totalorder %s8267, 0
  %p8269 = pneg %p8268
  %8271 = shalt.err (%p8269)

</llo_original>
